<compile_context>
chip_gen: v5e
topology: v5e:2x2
jax: 0.10.0
libtpu: 0.0.40
codegen_flags: <defaults>
</compile_context>

<pallas_src>
import jax
import jax.numpy as jnp
from jax import lax
from jax.experimental import pallas as pl
from jax.experimental.pallas import tpu as pltpu

T_IN = 750           # time samples
T_PAD = T_IN + 50    # zero-padded time axis for the 51-tap first conv
K1 = 51              # first conv kernel width (padding 25)
K3 = 15              # third conv kernel width (padding 7)
T_P4 = 187           # floor(750 / 4) after AvgPool(1,4)
T_P8 = 23            # floor(187 / 8) after AvgPool(1,8)
EPS = 1e-5
UNROLL = 3           # 51 = 17 * 3 taps per fori_loop iteration


def _elu(x):
    return jnp.where(x > 0, x, jnp.exp(jnp.minimum(x, 0.0)) - 1.0)


def _make_kernel(bb):
    bb2 = bb * 2      # (sample, electrode-row) pairs per grid step
    bbc = bb * 32     # feature rows per grid step after the second layer

    def kernel(x_ref, w1_ref, w2_ref, c2_ref, w3_ref, c3_ref,
               p4_ref, p8_ref, wfc_ref, ssum_ref, bfc_ref,
               out_ref, xcol_ref, h_ref, y2s_ref):
        # ---- shared im2col of the (already zero-padded) time axis --------------
        for k in range(K1):
            xcol_ref[k] = x_ref[:, k:k + T_IN]                     # (bb2, 750)

        # ---- first layer: Conv2d(1,16,(1,51)) raw taps on the VPU ---------------
        # conv1 bias + BatchNorm1 are folded into the second-layer matmul below.
        for c in range(16):
            def tap_block(i, acc, c=c):
                k0 = i * UNROLL
                for j in range(UNROLL):
                    w = w1_ref[k0 + j][0:1, c:c + 1]               # (1, 1) tap weight
                    acc = acc + w * xcol_ref[k0 + j]
                return acc
            acc = lax.fori_loop(0, K1 // UNROLL, tap_block,
                                jnp.zeros((bb2, T_IN), jnp.float32))
            h_ref[c * bb2:(c + 1) * bb2, :] = acc                  # channel-major layout

        # ---- second layer: depthwise Conv2d(16,32,(2,1)) + BN1 + BN2 folded into
        #      one batched block-diagonal MXU matmul, then ELU + AvgPool(1,4).
        h_bf = h_ref[...].astype(jnp.bfloat16)                     # (16*bb2, 750)
        d = jnp.dot(w2_ref[...], h_bf, preferred_element_type=jnp.float32)
        e = _elu(d + c2_ref[...])                                  # (bbc, 750)
        y2 = jnp.dot(e.astype(jnp.bfloat16), p4_ref[...],
                     preferred_element_type=jnp.float32)           # (bbc, 187)

        # ---- third layer: Conv2d(32,32,(1,15),pad 7) as a single deep matmul
        #      (taps stacked on the contraction axis), BN3 folded, ELU, AvgPool(1,8).
        zpad = jnp.zeros((bbc, 7), jnp.float32)
        y2p = jnp.concatenate([zpad, y2, zpad], axis=1).astype(jnp.bfloat16)  # (bbc, 201)
        for k in range(K3):
            y2s_ref[k * bbc:(k + 1) * bbc, :] = y2p[:, k:k + T_P4]
        acc3 = jnp.dot(w3_ref[...], y2s_ref[...],
                       preferred_element_type=jnp.float32)         # (bbc, 187)
        z3 = _elu(acc3 + c3_ref[...])
        y3 = jnp.dot(z3.astype(jnp.bfloat16), p8_ref[...],
                     preferred_element_type=jnp.float32)           # (bbc, 23)

        # ---- classifier: Flatten + Linear(736, 2), batched over bb samples ------
        v0 = jnp.sum(y3 * wfc_ref[0:bbc, :], axis=1, keepdims=True)
        v1 = jnp.sum(y3 * wfc_ref[bbc:2 * bbc, :], axis=1, keepdims=True)
        v = jnp.concatenate([v0, v1], axis=1).astype(jnp.bfloat16)  # (bbc, 2)
        logits = jnp.dot(ssum_ref[...], v, preferred_element_type=jnp.float32)  # (bb, 2)
        out_ref[...] = logits + bfc_ref[...]

    return kernel


def eegnet_forward(x, p, block_b=8):
    """x: (B, 1, 2, 750) float32, NCHW exactly like the PyTorch module."""
    B = x.shape[0]
    bb = block_b if B >= block_b else B
    n_blk = (B + bb - 1) // bb
    Bp = n_blk * bb
    bb2, bbc = bb * 2, bb * 32

    xr = x[:, 0, :, :].astype(jnp.float32)                          # (B, 2, 750)
    if Bp != B:
        xr = jnp.pad(xr, ((0, Bp - B), (0, 0), (0, 0)))
    x_flat = jnp.pad(xr, ((0, 0), (0, 0), (25, 25))).reshape(Bp * 2, T_PAD)

    # ---- fold BatchNorms (inference) into scales / shifts ----
    s1 = p["bn1_gamma"] / jnp.sqrt(p["bn1_var"] + EPS)
    t1 = p["bn1_beta"] - p["bn1_mean"] * s1
    s2 = p["bn2_gamma"] / jnp.sqrt(p["bn2_var"] + EPS)
    t2 = p["bn2_beta"] - p["bn2_mean"] * s2
    s3 = p["bn3_gamma"] / jnp.sqrt(p["bn3_var"] + EPS)
    t3 = p["bn3_beta"] - p["bn3_mean"] * s3

    # first layer: raw taps only; bias + BN1 are folded into the second layer.
    w1_3d = p["w1"].reshape(16, K1).T.reshape(K1, 1, 16).astype(jnp.float32)  # [k, 1, c]
    beta1 = s1 * p["b1"].reshape(16) + t1                           # (16,)

    # second layer (depthwise (2,1) conv + BN2) folded with BN1 into one
    # block-diagonal (over the batch block) matmul operator.
    w2a = p["w2"][:, 0, 0, 0]
    w2b = p["w2"][:, 0, 1, 0]
    ic = jnp.arange(32) // 2
    mask = (jnp.arange(16)[None, :, None] == ic[:, None, None]).astype(jnp.float32)
    wsmall = mask * jnp.stack([s2 * w2a, s2 * w2b], axis=1)[:, None, :] * s1[None, :, None]
    eye_b = jnp.eye(bb, dtype=jnp.float32)
    w2big = (wsmall[None, :, :, None, :] * eye_b[:, None, None, :, None]
             ).reshape(bbc, 16 * bb2).astype(jnp.bfloat16)
    c2 = s2 * ((w2a + w2b) * beta1[ic] + p["b2"]) + t2
    c2_all = jnp.tile(c2, bb).reshape(bbc, 1).astype(jnp.float32)

    # third layer: 15 taps stacked along the contraction axis, block-diagonal over
    # the batch block, BN3 scale folded into the weights.
    w3s = p["w3"][:, :, 0, :] * s3[:, None, None]                   # (oc, ic, k)
    w3small = jnp.transpose(w3s, (0, 2, 1))                         # (oc, k, ic)
    w3cat = (w3small[None, :, :, None, :] * eye_b[:, None, None, :, None]
             ).reshape(bbc, K3 * bbc).astype(jnp.bfloat16)
    c3_all = jnp.tile(s3 * p["b3"] + t3, bb).reshape(bbc, 1).astype(jnp.float32)

    # constant pooling operators (values 0 / 0.25 / 0.125 are exact in bf16)
    p4 = ((jnp.arange(T_IN)[:, None] // 4 == jnp.arange(T_P4)[None, :])
          .astype(jnp.float32) * 0.25).astype(jnp.bfloat16)
    p8 = ((jnp.arange(T_P4)[:, None] // 8 == jnp.arange(T_P8)[None, :])
          .astype(jnp.float32) * 0.125).astype(jnp.bfloat16)

    # classifier: weights tiled over the batch block; Ssum sums each sample's 32 rows.
    wfc = p["wfc"].reshape(2, 32, T_P8)
    wfc_t = jnp.concatenate([jnp.tile(wfc[0], (bb, 1)),
                             jnp.tile(wfc[1], (bb, 1))], axis=0).astype(jnp.float32)
    ssum = (jnp.arange(bbc)[None, :] // 32 == jnp.arange(bb)[:, None]).astype(jnp.bfloat16)
    bfc = p["bfc"].reshape(1, 2).astype(jnp.float32)

    operands = (x_flat, w1_3d, w2big, c2_all, w3cat, c3_all,
                p4, p8, wfc_t, ssum, bfc)

    def fullspec(shape):
        n = len(shape)
        return pl.BlockSpec(shape, lambda i, n=n: (0,) * n)

    in_specs = [pl.BlockSpec((bb2, T_PAD), lambda i: (i, 0))]
    in_specs += [fullspec(op.shape) for op in operands[1:]]

    out = pl.pallas_call(
        _make_kernel(bb),
        out_shape=jax.ShapeDtypeStruct((Bp, 2), jnp.float32),
        grid_spec=pltpu.PrefetchScalarGridSpec(
            num_scalar_prefetch=0,
            grid=(n_blk,),
            in_specs=in_specs,
            out_specs=pl.BlockSpec((bb, 2), lambda i: (i, 0)),
            scratch_shapes=[
                pltpu.VMEM((K1, bb2, T_IN), jnp.float32),    # shared im2col tap slices
                pltpu.VMEM((16 * bb2, T_IN), jnp.float32),   # batched conv1 output
                pltpu.VMEM((K3 * bbc, T_P4), jnp.bfloat16),  # conv3 stacked contraction RHS
            ],
        ),
        compiler_params=pltpu.CompilerParams(
            dimension_semantics=("parallel",),
            vmem_limit_bytes=32 * 1024 * 1024,
        ),
    )(*operands)
    return out[:B]


def init_params(key):
    ks = jax.random.split(key, 20)
    n = lambda k, shape, s=0.1: s * jax.random.normal(k, shape, jnp.float32)
    u = lambda k, shape: jax.random.uniform(k, shape, jnp.float32, 0.5, 1.5)
    return dict(
        w1=n(ks[0], (16, 1, 1, 51)), b1=n(ks[1], (16,)),
        bn1_gamma=1.0 + n(ks[2], (16,)), bn1_beta=n(ks[3], (16,)),
        bn1_mean=n(ks[4], (16,)), bn1_var=u(ks[5], (16,)),
        w2=n(ks[6], (32, 1, 2, 1)), b2=n(ks[7], (32,)),
        bn2_gamma=1.0 + n(ks[8], (32,)), bn2_beta=n(ks[9], (32,)),
        bn2_mean=n(ks[10], (32,)), bn2_var=u(ks[11], (32,)),
        w3=n(ks[12], (32, 32, 1, 15)), b3=n(ks[13], (32,)),
        bn3_gamma=1.0 + n(ks[14], (32,)), bn3_beta=n(ks[15], (32,)),
        bn3_mean=n(ks[16], (32,)), bn3_var=u(ks[17], (32,)),
        wfc=n(ks[18], (2, 736)), bfc=n(ks[19], (2,)),
    )


def reference_forward(x, p):
    """Pure-JAX reference replicating the PyTorch module in eval mode (f32 precision)."""
    prec = lax.Precision.HIGHEST

    def bn(y, g, b, m, v):
        sh = (1, -1, 1, 1)
        return (y - m.reshape(sh)) / jnp.sqrt(v.reshape(sh) + EPS) * g.reshape(sh) + b.reshape(sh)

    dn = ("NCHW", "OIHW", "NCHW")
    B = x.shape[0]
    y = lax.conv_general_dilated(x, p["w1"], (1, 1), [(0, 0), (25, 25)],
                                 dimension_numbers=dn, precision=prec)
    y = bn(y + p["b1"].reshape(1, -1, 1, 1), p["bn1_gamma"], p["bn1_beta"],
           p["bn1_mean"], p["bn1_var"])
    y = lax.conv_general_dilated(y, p["w2"], (1, 1), [(0, 0), (0, 0)],
                                 dimension_numbers=dn, feature_group_count=16,
                                 precision=prec)
    y = _elu(bn(y + p["b2"].reshape(1, -1, 1, 1), p["bn2_gamma"], p["bn2_beta"],
                p["bn2_mean"], p["bn2_var"]))
    y = y[..., :748].reshape(B, 32, 1, 187, 4).mean(-1)
    y = lax.conv_general_dilated(y, p["w3"], (1, 1), [(0, 0), (7, 7)],
                                 dimension_numbers=dn, precision=prec)
    y = _elu(bn(y + p["b3"].reshape(1, -1, 1, 1), p["bn3_gamma"], p["bn3_beta"],
                p["bn3_mean"], p["bn3_var"]))
    y = y[..., :184].reshape(B, 32, 1, 23, 8).mean(-1)
    y = y.reshape(B, -1)                                            # (B, 736)
    return jnp.matmul(y, p["wfc"].T, precision=prec) + p["bfc"]


if __name__ == "__main__":
    key = jax.random.PRNGKey(0)
    pkey, xkey = jax.random.split(key)
    params = init_params(pkey)
    # Input shape implied by the module: Linear(736,2) requires 32*23 features -> x is (B,1,2,750)
    x = jax.random.normal(xkey, (2, 1, 2, 750), jnp.float32)

    out = jax.block_until_ready(eegnet_forward(x, params))
    ref = jax.block_until_ready(reference_forward(x, params))

    assert out.shape == (2, 2), out.shape
    err = float(jnp.max(jnp.abs(out - ref)))
    assert err < 5e-2, f"max abs error vs reference: {err}"
    print("KERNEL_OK")
</pallas_src>

<mosaic_0001>
module attributes {stable_mosaic.version = 11 : i64} {
  func.func @kernel(%arg0: i32, %arg1: memref<4x800xf32, #tpu.memory_space<vmem>>, %arg2: memref<51x1x16xf32, #tpu.memory_space<vmem>>, %arg3: memref<64x64xbf16, #tpu.memory_space<vmem>>, %arg4: memref<64x1xf32, #tpu.memory_space<vmem>>, %arg5: memref<64x960xbf16, #tpu.memory_space<vmem>>, %arg6: memref<64x1xf32, #tpu.memory_space<vmem>>, %arg7: memref<750x187xbf16, #tpu.memory_space<vmem>>, %arg8: memref<187x23xbf16, #tpu.memory_space<vmem>>, %arg9: memref<128x23xf32, #tpu.memory_space<vmem>>, %arg10: memref<2x64xbf16, #tpu.memory_space<vmem>>, %arg11: memref<1x2xf32, #tpu.memory_space<vmem>>, %arg12: memref<2x2xf32, #tpu.memory_space<vmem>>, %arg13: memref<51x4x750xf32, #tpu.memory_space<vmem>>, %arg14: memref<64x750xf32, #tpu.memory_space<vmem>>, %arg15: memref<960x187xbf16, #tpu.memory_space<vmem>>) attributes {dimension_semantics = [#tpu.dimension_semantics<parallel>], iteration_bounds = array<i64: 1>, scalar_prefetch = 0 : i64, scratch_operands = 3 : i64, tpu.core_type = #tpu.core_type<tc>, window_params = [{transform_indices = @transform_0, window_bounds = array<i64: 4, 800>}, {pipeline_mode = #tpu.pipeline_mode<synchronous>, transform_indices = @transform_1, window_bounds = array<i64: 51, 1, 16>}, {pipeline_mode = #tpu.pipeline_mode<synchronous>, transform_indices = @transform_2, window_bounds = array<i64: 64, 64>}, {pipeline_mode = #tpu.pipeline_mode<synchronous>, transform_indices = @transform_3, window_bounds = array<i64: 64, 1>}, {pipeline_mode = #tpu.pipeline_mode<synchronous>, transform_indices = @transform_4, window_bounds = array<i64: 64, 960>}, {pipeline_mode = #tpu.pipeline_mode<synchronous>, transform_indices = @transform_5, window_bounds = array<i64: 64, 1>}, {pipeline_mode = #tpu.pipeline_mode<synchronous>, transform_indices = @transform_6, window_bounds = array<i64: 750, 187>}, {pipeline_mode = #tpu.pipeline_mode<synchronous>, transform_indices = @transform_7, window_bounds = array<i64: 187, 23>}, {pipeline_mode = #tpu.pipeline_mode<synchronous>, transform_indices = @transform_8, window_bounds = array<i64: 128, 23>}, {pipeline_mode = #tpu.pipeline_mode<synchronous>, transform_indices = @transform_9, window_bounds = array<i64: 2, 64>}, {pipeline_mode = #tpu.pipeline_mode<synchronous>, transform_indices = @transform_10, window_bounds = array<i64: 1, 2>}, {transform_indices = @transform_11, window_bounds = array<i64: 2, 2>}]} {
    %c0 = arith.constant 0 : index
    %c0_0 = arith.constant 0 : index
    %0 = vector.load %arg1[%c0, %c0_0] : memref<4x800xf32, #tpu.memory_space<vmem>>, vector<4x750xf32>
    %c0_1 = arith.constant 0 : index
    %c0_2 = arith.constant 0 : index
    %c0_3 = arith.constant 0 : index
    %1 = vector.load %arg13[%c0_1, %c0_2, %c0_3] : memref<51x4x750xf32, #tpu.memory_space<vmem>>, vector<1x4x750xf32>
    %2 = vector.shape_cast %1 : vector<1x4x750xf32> to vector<4x750xf32>
    %3 = vector.shape_cast %0 : vector<4x750xf32> to vector<1x4x750xf32>
    tpu.vector_store %arg13[%c0_1, %c0_2, %c0_3], %3 {strides = array<i32>} : memref<51x4x750xf32, #tpu.memory_space<vmem>>, vector<1x4x750xf32>,
    %c0_4 = arith.constant 0 : index
    %c1 = arith.constant 1 : index
    %4 = vector.load %arg1[%c0_4, %c1] : memref<4x800xf32, #tpu.memory_space<vmem>>, vector<4x750xf32>
    %c1_5 = arith.constant 1 : index
    %c0_6 = arith.constant 0 : index
    %c0_7 = arith.constant 0 : index
    %5 = vector.load %arg13[%c1_5, %c0_6, %c0_7] : memref<51x4x750xf32, #tpu.memory_space<vmem>>, vector<1x4x750xf32>
    %6 = vector.shape_cast %5 : vector<1x4x750xf32> to vector<4x750xf32>
    %7 = vector.shape_cast %4 : vector<4x750xf32> to vector<1x4x750xf32>
    tpu.vector_store %arg13[%c1_5, %c0_6, %c0_7], %7 {strides = array<i32>} : memref<51x4x750xf32, #tpu.memory_space<vmem>>, vector<1x4x750xf32>,
    %c0_8 = arith.constant 0 : index
    %c2 = arith.constant 2 : index
    %8 = vector.load %arg1[%c0_8, %c2] : memref<4x800xf32, #tpu.memory_space<vmem>>, vector<4x750xf32>
    %c2_9 = arith.constant 2 : index
    %c0_10 = arith.constant 0 : index
    %c0_11 = arith.constant 0 : index
    %9 = vector.load %arg13[%c2_9, %c0_10, %c0_11] : memref<51x4x750xf32, #tpu.memory_space<vmem>>, vector<1x4x750xf32>
    %10 = vector.shape_cast %9 : vector<1x4x750xf32> to vector<4x750xf32>
    %11 = vector.shape_cast %8 : vector<4x750xf32> to vector<1x4x750xf32>
    tpu.vector_store %arg13[%c2_9, %c0_10, %c0_11], %11 {strides = array<i32>} : memref<51x4x750xf32, #tpu.memory_space<vmem>>, vector<1x4x750xf32>,
    %c0_12 = arith.constant 0 : index
    %c3 = arith.constant 3 : index
    %12 = vector.load %arg1[%c0_12, %c3] : memref<4x800xf32, #tpu.memory_space<vmem>>, vector<4x750xf32>
    %c3_13 = arith.constant 3 : index
    %c0_14 = arith.constant 0 : index
    %c0_15 = arith.constant 0 : index
    %13 = vector.load %arg13[%c3_13, %c0_14, %c0_15] : memref<51x4x750xf32, #tpu.memory_space<vmem>>, vector<1x4x750xf32>
    %14 = vector.shape_cast %13 : vector<1x4x750xf32> to vector<4x750xf32>
    %15 = vector.shape_cast %12 : vector<4x750xf32> to vector<1x4x750xf32>
    tpu.vector_store %arg13[%c3_13, %c0_14, %c0_15], %15 {strides = array<i32>} : memref<51x4x750xf32, #tpu.memory_space<vmem>>, vector<1x4x750xf32>,
    %c0_16 = arith.constant 0 : index
    %c4 = arith.constant 4 : index
    %16 = vector.load %arg1[%c0_16, %c4] : memref<4x800xf32, #tpu.memory_space<vmem>>, vector<4x750xf32>
    %c4_17 = arith.constant 4 : index
    %c0_18 = arith.constant 0 : index
    %c0_19 = arith.constant 0 : index
    %17 = vector.load %arg13[%c4_17, %c0_18, %c0_19] : memref<51x4x750xf32, #tpu.memory_space<vmem>>, vector<1x4x750xf32>
    %18 = vector.shape_cast %17 : vector<1x4x750xf32> to vector<4x750xf32>
    %19 = vector.shape_cast %16 : vector<4x750xf32> to vector<1x4x750xf32>
    tpu.vector_store %arg13[%c4_17, %c0_18, %c0_19], %19 {strides = array<i32>} : memref<51x4x750xf32, #tpu.memory_space<vmem>>, vector<1x4x750xf32>,
    %c0_20 = arith.constant 0 : index
    %c5 = arith.constant 5 : index
    %20 = vector.load %arg1[%c0_20, %c5] : memref<4x800xf32, #tpu.memory_space<vmem>>, vector<4x750xf32>
    %c5_21 = arith.constant 5 : index
    %c0_22 = arith.constant 0 : index
    %c0_23 = arith.constant 0 : index
    %21 = vector.load %arg13[%c5_21, %c0_22, %c0_23] : memref<51x4x750xf32, #tpu.memory_space<vmem>>, vector<1x4x750xf32>
    %22 = vector.shape_cast %21 : vector<1x4x750xf32> to vector<4x750xf32>
    %23 = vector.shape_cast %20 : vector<4x750xf32> to vector<1x4x750xf32>
    tpu.vector_store %arg13[%c5_21, %c0_22, %c0_23], %23 {strides = array<i32>} : memref<51x4x750xf32, #tpu.memory_space<vmem>>, vector<1x4x750xf32>,
    %c0_24 = arith.constant 0 : index
    %c6 = arith.constant 6 : index
    %24 = vector.load %arg1[%c0_24, %c6] : memref<4x800xf32, #tpu.memory_space<vmem>>, vector<4x750xf32>
    %c6_25 = arith.constant 6 : index
    %c0_26 = arith.constant 0 : index
    %c0_27 = arith.constant 0 : index
    %25 = vector.load %arg13[%c6_25, %c0_26, %c0_27] : memref<51x4x750xf32, #tpu.memory_space<vmem>>, vector<1x4x750xf32>
    %26 = vector.shape_cast %25 : vector<1x4x750xf32> to vector<4x750xf32>
    %27 = vector.shape_cast %24 : vector<4x750xf32> to vector<1x4x750xf32>
    tpu.vector_store %arg13[%c6_25, %c0_26, %c0_27], %27 {strides = array<i32>} : memref<51x4x750xf32, #tpu.memory_space<vmem>>, vector<1x4x750xf32>,
    %c0_28 = arith.constant 0 : index
    %c7 = arith.constant 7 : index
    %28 = vector.load %arg1[%c0_28, %c7] : memref<4x800xf32, #tpu.memory_space<vmem>>, vector<4x750xf32>
    %c7_29 = arith.constant 7 : index
    %c0_30 = arith.constant 0 : index
    %c0_31 = arith.constant 0 : index
    %29 = vector.load %arg13[%c7_29, %c0_30, %c0_31] : memref<51x4x750xf32, #tpu.memory_space<vmem>>, vector<1x4x750xf32>
    %30 = vector.shape_cast %29 : vector<1x4x750xf32> to vector<4x750xf32>
    %31 = vector.shape_cast %28 : vector<4x750xf32> to vector<1x4x750xf32>
    tpu.vector_store %arg13[%c7_29, %c0_30, %c0_31], %31 {strides = array<i32>} : memref<51x4x750xf32, #tpu.memory_space<vmem>>, vector<1x4x750xf32>,
    %c0_32 = arith.constant 0 : index
    %c8 = arith.constant 8 : index
    %32 = vector.load %arg1[%c0_32, %c8] : memref<4x800xf32, #tpu.memory_space<vmem>>, vector<4x750xf32>
    %c8_33 = arith.constant 8 : index
    %c0_34 = arith.constant 0 : index
    %c0_35 = arith.constant 0 : index
    %33 = vector.load %arg13[%c8_33, %c0_34, %c0_35] : memref<51x4x750xf32, #tpu.memory_space<vmem>>, vector<1x4x750xf32>
    %34 = vector.shape_cast %33 : vector<1x4x750xf32> to vector<4x750xf32>
    %35 = vector.shape_cast %32 : vector<4x750xf32> to vector<1x4x750xf32>
    tpu.vector_store %arg13[%c8_33, %c0_34, %c0_35], %35 {strides = array<i32>} : memref<51x4x750xf32, #tpu.memory_space<vmem>>, vector<1x4x750xf32>,
    %c0_36 = arith.constant 0 : index
    %c9 = arith.constant 9 : index
    %36 = vector.load %arg1[%c0_36, %c9] : memref<4x800xf32, #tpu.memory_space<vmem>>, vector<4x750xf32>
    %c9_37 = arith.constant 9 : index
    %c0_38 = arith.constant 0 : index
    %c0_39 = arith.constant 0 : index
    %37 = vector.load %arg13[%c9_37, %c0_38, %c0_39] : memref<51x4x750xf32, #tpu.memory_space<vmem>>, vector<1x4x750xf32>
    %38 = vector.shape_cast %37 : vector<1x4x750xf32> to vector<4x750xf32>
    %39 = vector.shape_cast %36 : vector<4x750xf32> to vector<1x4x750xf32>
    tpu.vector_store %arg13[%c9_37, %c0_38, %c0_39], %39 {strides = array<i32>} : memref<51x4x750xf32, #tpu.memory_space<vmem>>, vector<1x4x750xf32>,
    %c0_40 = arith.constant 0 : index
    %c10 = arith.constant 10 : index
    %40 = vector.load %arg1[%c0_40, %c10] : memref<4x800xf32, #tpu.memory_space<vmem>>, vector<4x750xf32>
    %c10_41 = arith.constant 10 : index
    %c0_42 = arith.constant 0 : index
    %c0_43 = arith.constant 0 : index
    %41 = vector.load %arg13[%c10_41, %c0_42, %c0_43] : memref<51x4x750xf32, #tpu.memory_space<vmem>>, vector<1x4x750xf32>
    %42 = vector.shape_cast %41 : vector<1x4x750xf32> to vector<4x750xf32>
    %43 = vector.shape_cast %40 : vector<4x750xf32> to vector<1x4x750xf32>
    tpu.vector_store %arg13[%c10_41, %c0_42, %c0_43], %43 {strides = array<i32>} : memref<51x4x750xf32, #tpu.memory_space<vmem>>, vector<1x4x750xf32>,
    %c0_44 = arith.constant 0 : index
    %c11 = arith.constant 11 : index
    %44 = vector.load %arg1[%c0_44, %c11] : memref<4x800xf32, #tpu.memory_space<vmem>>, vector<4x750xf32>
    %c11_45 = arith.constant 11 : index
    %c0_46 = arith.constant 0 : index
    %c0_47 = arith.constant 0 : index
    %45 = vector.load %arg13[%c11_45, %c0_46, %c0_47] : memref<51x4x750xf32, #tpu.memory_space<vmem>>, vector<1x4x750xf32>
    %46 = vector.shape_cast %45 : vector<1x4x750xf32> to vector<4x750xf32>
    %47 = vector.shape_cast %44 : vector<4x750xf32> to vector<1x4x750xf32>
    tpu.vector_store %arg13[%c11_45, %c0_46, %c0_47], %47 {strides = array<i32>} : memref<51x4x750xf32, #tpu.memory_space<vmem>>, vector<1x4x750xf32>,
    %c0_48 = arith.constant 0 : index
    %c12 = arith.constant 12 : index
    %48 = vector.load %arg1[%c0_48, %c12] : memref<4x800xf32, #tpu.memory_space<vmem>>, vector<4x750xf32>
    %c12_49 = arith.constant 12 : index
    %c0_50 = arith.constant 0 : index
    %c0_51 = arith.constant 0 : index
    %49 = vector.load %arg13[%c12_49, %c0_50, %c0_51] : memref<51x4x750xf32, #tpu.memory_space<vmem>>, vector<1x4x750xf32>
    %50 = vector.shape_cast %49 : vector<1x4x750xf32> to vector<4x750xf32>
    %51 = vector.shape_cast %48 : vector<4x750xf32> to vector<1x4x750xf32>
    tpu.vector_store %arg13[%c12_49, %c0_50, %c0_51], %51 {strides = array<i32>} : memref<51x4x750xf32, #tpu.memory_space<vmem>>, vector<1x4x750xf32>,
    %c0_52 = arith.constant 0 : index
    %c13 = arith.constant 13 : index
    %52 = vector.load %arg1[%c0_52, %c13] : memref<4x800xf32, #tpu.memory_space<vmem>>, vector<4x750xf32>
    %c13_53 = arith.constant 13 : index
    %c0_54 = arith.constant 0 : index
    %c0_55 = arith.constant 0 : index
    %53 = vector.load %arg13[%c13_53, %c0_54, %c0_55] : memref<51x4x750xf32, #tpu.memory_space<vmem>>, vector<1x4x750xf32>
    %54 = vector.shape_cast %53 : vector<1x4x750xf32> to vector<4x750xf32>
    %55 = vector.shape_cast %52 : vector<4x750xf32> to vector<1x4x750xf32>
    tpu.vector_store %arg13[%c13_53, %c0_54, %c0_55], %55 {strides = array<i32>} : memref<51x4x750xf32, #tpu.memory_space<vmem>>, vector<1x4x750xf32>,
    %c0_56 = arith.constant 0 : index
    %c14 = arith.constant 14 : index
    %56 = vector.load %arg1[%c0_56, %c14] : memref<4x800xf32, #tpu.memory_space<vmem>>, vector<4x750xf32>
    %c14_57 = arith.constant 14 : index
    %c0_58 = arith.constant 0 : index
    %c0_59 = arith.constant 0 : index
    %57 = vector.load %arg13[%c14_57, %c0_58, %c0_59] : memref<51x4x750xf32, #tpu.memory_space<vmem>>, vector<1x4x750xf32>
    %58 = vector.shape_cast %57 : vector<1x4x750xf32> to vector<4x750xf32>
    %59 = vector.shape_cast %56 : vector<4x750xf32> to vector<1x4x750xf32>
    tpu.vector_store %arg13[%c14_57, %c0_58, %c0_59], %59 {strides = array<i32>} : memref<51x4x750xf32, #tpu.memory_space<vmem>>, vector<1x4x750xf32>,
    %c0_60 = arith.constant 0 : index
    %c15 = arith.constant 15 : index
    %60 = vector.load %arg1[%c0_60, %c15] : memref<4x800xf32, #tpu.memory_space<vmem>>, vector<4x750xf32>
    %c15_61 = arith.constant 15 : index
    %c0_62 = arith.constant 0 : index
    %c0_63 = arith.constant 0 : index
    %61 = vector.load %arg13[%c15_61, %c0_62, %c0_63] : memref<51x4x750xf32, #tpu.memory_space<vmem>>, vector<1x4x750xf32>
    %62 = vector.shape_cast %61 : vector<1x4x750xf32> to vector<4x750xf32>
    %63 = vector.shape_cast %60 : vector<4x750xf32> to vector<1x4x750xf32>
    tpu.vector_store %arg13[%c15_61, %c0_62, %c0_63], %63 {strides = array<i32>} : memref<51x4x750xf32, #tpu.memory_space<vmem>>, vector<1x4x750xf32>,
    %c0_64 = arith.constant 0 : index
    %c16 = arith.constant 16 : index
    %64 = vector.load %arg1[%c0_64, %c16] : memref<4x800xf32, #tpu.memory_space<vmem>>, vector<4x750xf32>
    %c16_65 = arith.constant 16 : index
    %c0_66 = arith.constant 0 : index
    %c0_67 = arith.constant 0 : index
    %65 = vector.load %arg13[%c16_65, %c0_66, %c0_67] : memref<51x4x750xf32, #tpu.memory_space<vmem>>, vector<1x4x750xf32>
    %66 = vector.shape_cast %65 : vector<1x4x750xf32> to vector<4x750xf32>
    %67 = vector.shape_cast %64 : vector<4x750xf32> to vector<1x4x750xf32>
    tpu.vector_store %arg13[%c16_65, %c0_66, %c0_67], %67 {strides = array<i32>} : memref<51x4x750xf32, #tpu.memory_space<vmem>>, vector<1x4x750xf32>,
    %c0_68 = arith.constant 0 : index
    %c17 = arith.constant 17 : index
    %68 = vector.load %arg1[%c0_68, %c17] : memref<4x800xf32, #tpu.memory_space<vmem>>, vector<4x750xf32>
    %c17_69 = arith.constant 17 : index
    %c0_70 = arith.constant 0 : index
    %c0_71 = arith.constant 0 : index
    %69 = vector.load %arg13[%c17_69, %c0_70, %c0_71] : memref<51x4x750xf32, #tpu.memory_space<vmem>>, vector<1x4x750xf32>
    %70 = vector.shape_cast %69 : vector<1x4x750xf32> to vector<4x750xf32>
    %71 = vector.shape_cast %68 : vector<4x750xf32> to vector<1x4x750xf32>
    tpu.vector_store %arg13[%c17_69, %c0_70, %c0_71], %71 {strides = array<i32>} : memref<51x4x750xf32, #tpu.memory_space<vmem>>, vector<1x4x750xf32>,
    %c0_72 = arith.constant 0 : index
    %c18 = arith.constant 18 : index
    %72 = vector.load %arg1[%c0_72, %c18] : memref<4x800xf32, #tpu.memory_space<vmem>>, vector<4x750xf32>
    %c18_73 = arith.constant 18 : index
    %c0_74 = arith.constant 0 : index
    %c0_75 = arith.constant 0 : index
    %73 = vector.load %arg13[%c18_73, %c0_74, %c0_75] : memref<51x4x750xf32, #tpu.memory_space<vmem>>, vector<1x4x750xf32>
    %74 = vector.shape_cast %73 : vector<1x4x750xf32> to vector<4x750xf32>
    %75 = vector.shape_cast %72 : vector<4x750xf32> to vector<1x4x750xf32>
    tpu.vector_store %arg13[%c18_73, %c0_74, %c0_75], %75 {strides = array<i32>} : memref<51x4x750xf32, #tpu.memory_space<vmem>>, vector<1x4x750xf32>,
    %c0_76 = arith.constant 0 : index
    %c19 = arith.constant 19 : index
    %76 = vector.load %arg1[%c0_76, %c19] : memref<4x800xf32, #tpu.memory_space<vmem>>, vector<4x750xf32>
    %c19_77 = arith.constant 19 : index
    %c0_78 = arith.constant 0 : index
    %c0_79 = arith.constant 0 : index
    %77 = vector.load %arg13[%c19_77, %c0_78, %c0_79] : memref<51x4x750xf32, #tpu.memory_space<vmem>>, vector<1x4x750xf32>
    %78 = vector.shape_cast %77 : vector<1x4x750xf32> to vector<4x750xf32>
    %79 = vector.shape_cast %76 : vector<4x750xf32> to vector<1x4x750xf32>
    tpu.vector_store %arg13[%c19_77, %c0_78, %c0_79], %79 {strides = array<i32>} : memref<51x4x750xf32, #tpu.memory_space<vmem>>, vector<1x4x750xf32>,
    %c0_80 = arith.constant 0 : index
    %c20 = arith.constant 20 : index
    %80 = vector.load %arg1[%c0_80, %c20] : memref<4x800xf32, #tpu.memory_space<vmem>>, vector<4x750xf32>
    %c20_81 = arith.constant 20 : index
    %c0_82 = arith.constant 0 : index
    %c0_83 = arith.constant 0 : index
    %81 = vector.load %arg13[%c20_81, %c0_82, %c0_83] : memref<51x4x750xf32, #tpu.memory_space<vmem>>, vector<1x4x750xf32>
    %82 = vector.shape_cast %81 : vector<1x4x750xf32> to vector<4x750xf32>
    %83 = vector.shape_cast %80 : vector<4x750xf32> to vector<1x4x750xf32>
    tpu.vector_store %arg13[%c20_81, %c0_82, %c0_83], %83 {strides = array<i32>} : memref<51x4x750xf32, #tpu.memory_space<vmem>>, vector<1x4x750xf32>,
    %c0_84 = arith.constant 0 : index
    %c21 = arith.constant 21 : index
    %84 = vector.load %arg1[%c0_84, %c21] : memref<4x800xf32, #tpu.memory_space<vmem>>, vector<4x750xf32>
    %c21_85 = arith.constant 21 : index
    %c0_86 = arith.constant 0 : index
    %c0_87 = arith.constant 0 : index
    %85 = vector.load %arg13[%c21_85, %c0_86, %c0_87] : memref<51x4x750xf32, #tpu.memory_space<vmem>>, vector<1x4x750xf32>
    %86 = vector.shape_cast %85 : vector<1x4x750xf32> to vector<4x750xf32>
    %87 = vector.shape_cast %84 : vector<4x750xf32> to vector<1x4x750xf32>
    tpu.vector_store %arg13[%c21_85, %c0_86, %c0_87], %87 {strides = array<i32>} : memref<51x4x750xf32, #tpu.memory_space<vmem>>, vector<1x4x750xf32>,
    %c0_88 = arith.constant 0 : index
    %c22 = arith.constant 22 : index
    %88 = vector.load %arg1[%c0_88, %c22] : memref<4x800xf32, #tpu.memory_space<vmem>>, vector<4x750xf32>
    %c22_89 = arith.constant 22 : index
    %c0_90 = arith.constant 0 : index
    %c0_91 = arith.constant 0 : index
    %89 = vector.load %arg13[%c22_89, %c0_90, %c0_91] : memref<51x4x750xf32, #tpu.memory_space<vmem>>, vector<1x4x750xf32>
    %90 = vector.shape_cast %89 : vector<1x4x750xf32> to vector<4x750xf32>
    %91 = vector.shape_cast %88 : vector<4x750xf32> to vector<1x4x750xf32>
    tpu.vector_store %arg13[%c22_89, %c0_90, %c0_91], %91 {strides = array<i32>} : memref<51x4x750xf32, #tpu.memory_space<vmem>>, vector<1x4x750xf32>,
    %c0_92 = arith.constant 0 : index
    %c23 = arith.constant 23 : index
    %92 = vector.load %arg1[%c0_92, %c23] : memref<4x800xf32, #tpu.memory_space<vmem>>, vector<4x750xf32>
    %c23_93 = arith.constant 23 : index
    %c0_94 = arith.constant 0 : index
    %c0_95 = arith.constant 0 : index
    %93 = vector.load %arg13[%c23_93, %c0_94, %c0_95] : memref<51x4x750xf32, #tpu.memory_space<vmem>>, vector<1x4x750xf32>
    %94 = vector.shape_cast %93 : vector<1x4x750xf32> to vector<4x750xf32>
    %95 = vector.shape_cast %92 : vector<4x750xf32> to vector<1x4x750xf32>
    tpu.vector_store %arg13[%c23_93, %c0_94, %c0_95], %95 {strides = array<i32>} : memref<51x4x750xf32, #tpu.memory_space<vmem>>, vector<1x4x750xf32>,
    %c0_96 = arith.constant 0 : index
    %c24 = arith.constant 24 : index
    %96 = vector.load %arg1[%c0_96, %c24] : memref<4x800xf32, #tpu.memory_space<vmem>>, vector<4x750xf32>
    %c24_97 = arith.constant 24 : index
    %c0_98 = arith.constant 0 : index
    %c0_99 = arith.constant 0 : index
    %97 = vector.load %arg13[%c24_97, %c0_98, %c0_99] : memref<51x4x750xf32, #tpu.memory_space<vmem>>, vector<1x4x750xf32>
    %98 = vector.shape_cast %97 : vector<1x4x750xf32> to vector<4x750xf32>
    %99 = vector.shape_cast %96 : vector<4x750xf32> to vector<1x4x750xf32>
    tpu.vector_store %arg13[%c24_97, %c0_98, %c0_99], %99 {strides = array<i32>} : memref<51x4x750xf32, #tpu.memory_space<vmem>>, vector<1x4x750xf32>,
    %c0_100 = arith.constant 0 : index
    %c25 = arith.constant 25 : index
    %100 = vector.load %arg1[%c0_100, %c25] : memref<4x800xf32, #tpu.memory_space<vmem>>, vector<4x750xf32>
    %c25_101 = arith.constant 25 : index
    %c0_102 = arith.constant 0 : index
    %c0_103 = arith.constant 0 : index
    %101 = vector.load %arg13[%c25_101, %c0_102, %c0_103] : memref<51x4x750xf32, #tpu.memory_space<vmem>>, vector<1x4x750xf32>
    %102 = vector.shape_cast %101 : vector<1x4x750xf32> to vector<4x750xf32>
    %103 = vector.shape_cast %100 : vector<4x750xf32> to vector<1x4x750xf32>
    tpu.vector_store %arg13[%c25_101, %c0_102, %c0_103], %103 {strides = array<i32>} : memref<51x4x750xf32, #tpu.memory_space<vmem>>, vector<1x4x750xf32>,
    %c0_104 = arith.constant 0 : index
    %c26 = arith.constant 26 : index
    %104 = vector.load %arg1[%c0_104, %c26] : memref<4x800xf32, #tpu.memory_space<vmem>>, vector<4x750xf32>
    %c26_105 = arith.constant 26 : index
    %c0_106 = arith.constant 0 : index
    %c0_107 = arith.constant 0 : index
    %105 = vector.load %arg13[%c26_105, %c0_106, %c0_107] : memref<51x4x750xf32, #tpu.memory_space<vmem>>, vector<1x4x750xf32>
    %106 = vector.shape_cast %105 : vector<1x4x750xf32> to vector<4x750xf32>
    %107 = vector.shape_cast %104 : vector<4x750xf32> to vector<1x4x750xf32>
    tpu.vector_store %arg13[%c26_105, %c0_106, %c0_107], %107 {strides = array<i32>} : memref<51x4x750xf32, #tpu.memory_space<vmem>>, vector<1x4x750xf32>,
    %c0_108 = arith.constant 0 : index
    %c27 = arith.constant 27 : index
    %108 = vector.load %arg1[%c0_108, %c27] : memref<4x800xf32, #tpu.memory_space<vmem>>, vector<4x750xf32>
    %c27_109 = arith.constant 27 : index
    %c0_110 = arith.constant 0 : index
    %c0_111 = arith.constant 0 : index
    %109 = vector.load %arg13[%c27_109, %c0_110, %c0_111] : memref<51x4x750xf32, #tpu.memory_space<vmem>>, vector<1x4x750xf32>
    %110 = vector.shape_cast %109 : vector<1x4x750xf32> to vector<4x750xf32>
    %111 = vector.shape_cast %108 : vector<4x750xf32> to vector<1x4x750xf32>
    tpu.vector_store %arg13[%c27_109, %c0_110, %c0_111], %111 {strides = array<i32>} : memref<51x4x750xf32, #tpu.memory_space<vmem>>, vector<1x4x750xf32>,
    %c0_112 = arith.constant 0 : index
    %c28 = arith.constant 28 : index
    %112 = vector.load %arg1[%c0_112, %c28] : memref<4x800xf32, #tpu.memory_space<vmem>>, vector<4x750xf32>
    %c28_113 = arith.constant 28 : index
    %c0_114 = arith.constant 0 : index
    %c0_115 = arith.constant 0 : index
    %113 = vector.load %arg13[%c28_113, %c0_114, %c0_115] : memref<51x4x750xf32, #tpu.memory_space<vmem>>, vector<1x4x750xf32>
    %114 = vector.shape_cast %113 : vector<1x4x750xf32> to vector<4x750xf32>
    %115 = vector.shape_cast %112 : vector<4x750xf32> to vector<1x4x750xf32>
    tpu.vector_store %arg13[%c28_113, %c0_114, %c0_115], %115 {strides = array<i32>} : memref<51x4x750xf32, #tpu.memory_space<vmem>>, vector<1x4x750xf32>,
    %c0_116 = arith.constant 0 : index
    %c29 = arith.constant 29 : index
    %116 = vector.load %arg1[%c0_116, %c29] : memref<4x800xf32, #tpu.memory_space<vmem>>, vector<4x750xf32>
    %c29_117 = arith.constant 29 : index
    %c0_118 = arith.constant 0 : index
    %c0_119 = arith.constant 0 : index
    %117 = vector.load %arg13[%c29_117, %c0_118, %c0_119] : memref<51x4x750xf32, #tpu.memory_space<vmem>>, vector<1x4x750xf32>
    %118 = vector.shape_cast %117 : vector<1x4x750xf32> to vector<4x750xf32>
    %119 = vector.shape_cast %116 : vector<4x750xf32> to vector<1x4x750xf32>
    tpu.vector_store %arg13[%c29_117, %c0_118, %c0_119], %119 {strides = array<i32>} : memref<51x4x750xf32, #tpu.memory_space<vmem>>, vector<1x4x750xf32>,
    %c0_120 = arith.constant 0 : index
    %c30 = arith.constant 30 : index
    %120 = vector.load %arg1[%c0_120, %c30] : memref<4x800xf32, #tpu.memory_space<vmem>>, vector<4x750xf32>
    %c30_121 = arith.constant 30 : index
    %c0_122 = arith.constant 0 : index
    %c0_123 = arith.constant 0 : index
    %121 = vector.load %arg13[%c30_121, %c0_122, %c0_123] : memref<51x4x750xf32, #tpu.memory_space<vmem>>, vector<1x4x750xf32>
    %122 = vector.shape_cast %121 : vector<1x4x750xf32> to vector<4x750xf32>
    %123 = vector.shape_cast %120 : vector<4x750xf32> to vector<1x4x750xf32>
    tpu.vector_store %arg13[%c30_121, %c0_122, %c0_123], %123 {strides = array<i32>} : memref<51x4x750xf32, #tpu.memory_space<vmem>>, vector<1x4x750xf32>,
    %c0_124 = arith.constant 0 : index
    %c31 = arith.constant 31 : index
    %124 = vector.load %arg1[%c0_124, %c31] : memref<4x800xf32, #tpu.memory_space<vmem>>, vector<4x750xf32>
    %c31_125 = arith.constant 31 : index
    %c0_126 = arith.constant 0 : index
    %c0_127 = arith.constant 0 : index
    %125 = vector.load %arg13[%c31_125, %c0_126, %c0_127] : memref<51x4x750xf32, #tpu.memory_space<vmem>>, vector<1x4x750xf32>
    %126 = vector.shape_cast %125 : vector<1x4x750xf32> to vector<4x750xf32>
    %127 = vector.shape_cast %124 : vector<4x750xf32> to vector<1x4x750xf32>
    tpu.vector_store %arg13[%c31_125, %c0_126, %c0_127], %127 {strides = array<i32>} : memref<51x4x750xf32, #tpu.memory_space<vmem>>, vector<1x4x750xf32>,
    %c0_128 = arith.constant 0 : index
    %c32 = arith.constant 32 : index
    %128 = vector.load %arg1[%c0_128, %c32] : memref<4x800xf32, #tpu.memory_space<vmem>>, vector<4x750xf32>
    %c32_129 = arith.constant 32 : index
    %c0_130 = arith.constant 0 : index
    %c0_131 = arith.constant 0 : index
    %129 = vector.load %arg13[%c32_129, %c0_130, %c0_131] : memref<51x4x750xf32, #tpu.memory_space<vmem>>, vector<1x4x750xf32>
    %130 = vector.shape_cast %129 : vector<1x4x750xf32> to vector<4x750xf32>
    %131 = vector.shape_cast %128 : vector<4x750xf32> to vector<1x4x750xf32>
    tpu.vector_store %arg13[%c32_129, %c0_130, %c0_131], %131 {strides = array<i32>} : memref<51x4x750xf32, #tpu.memory_space<vmem>>, vector<1x4x750xf32>,
    %c0_132 = arith.constant 0 : index
    %c33 = arith.constant 33 : index
    %132 = vector.load %arg1[%c0_132, %c33] : memref<4x800xf32, #tpu.memory_space<vmem>>, vector<4x750xf32>
    %c33_133 = arith.constant 33 : index
    %c0_134 = arith.constant 0 : index
    %c0_135 = arith.constant 0 : index
    %133 = vector.load %arg13[%c33_133, %c0_134, %c0_135] : memref<51x4x750xf32, #tpu.memory_space<vmem>>, vector<1x4x750xf32>
    %134 = vector.shape_cast %133 : vector<1x4x750xf32> to vector<4x750xf32>
    %135 = vector.shape_cast %132 : vector<4x750xf32> to vector<1x4x750xf32>
    tpu.vector_store %arg13[%c33_133, %c0_134, %c0_135], %135 {strides = array<i32>} : memref<51x4x750xf32, #tpu.memory_space<vmem>>, vector<1x4x750xf32>,
    %c0_136 = arith.constant 0 : index
    %c34 = arith.constant 34 : index
    %136 = vector.load %arg1[%c0_136, %c34] : memref<4x800xf32, #tpu.memory_space<vmem>>, vector<4x750xf32>
    %c34_137 = arith.constant 34 : index
    %c0_138 = arith.constant 0 : index
    %c0_139 = arith.constant 0 : index
    %137 = vector.load %arg13[%c34_137, %c0_138, %c0_139] : memref<51x4x750xf32, #tpu.memory_space<vmem>>, vector<1x4x750xf32>
    %138 = vector.shape_cast %137 : vector<1x4x750xf32> to vector<4x750xf32>
    %139 = vector.shape_cast %136 : vector<4x750xf32> to vector<1x4x750xf32>
    tpu.vector_store %arg13[%c34_137, %c0_138, %c0_139], %139 {strides = array<i32>} : memref<51x4x750xf32, #tpu.memory_space<vmem>>, vector<1x4x750xf32>,
    %c0_140 = arith.constant 0 : index
    %c35 = arith.constant 35 : index
    %140 = vector.load %arg1[%c0_140, %c35] : memref<4x800xf32, #tpu.memory_space<vmem>>, vector<4x750xf32>
    %c35_141 = arith.constant 35 : index
    %c0_142 = arith.constant 0 : index
    %c0_143 = arith.constant 0 : index
    %141 = vector.load %arg13[%c35_141, %c0_142, %c0_143] : memref<51x4x750xf32, #tpu.memory_space<vmem>>, vector<1x4x750xf32>
    %142 = vector.shape_cast %141 : vector<1x4x750xf32> to vector<4x750xf32>
    %143 = vector.shape_cast %140 : vector<4x750xf32> to vector<1x4x750xf32>
    tpu.vector_store %arg13[%c35_141, %c0_142, %c0_143], %143 {strides = array<i32>} : memref<51x4x750xf32, #tpu.memory_space<vmem>>, vector<1x4x750xf32>,
    %c0_144 = arith.constant 0 : index
    %c36 = arith.constant 36 : index
    %144 = vector.load %arg1[%c0_144, %c36] : memref<4x800xf32, #tpu.memory_space<vmem>>, vector<4x750xf32>
    %c36_145 = arith.constant 36 : index
    %c0_146 = arith.constant 0 : index
    %c0_147 = arith.constant 0 : index
    %145 = vector.load %arg13[%c36_145, %c0_146, %c0_147] : memref<51x4x750xf32, #tpu.memory_space<vmem>>, vector<1x4x750xf32>
    %146 = vector.shape_cast %145 : vector<1x4x750xf32> to vector<4x750xf32>
    %147 = vector.shape_cast %144 : vector<4x750xf32> to vector<1x4x750xf32>
    tpu.vector_store %arg13[%c36_145, %c0_146, %c0_147], %147 {strides = array<i32>} : memref<51x4x750xf32, #tpu.memory_space<vmem>>, vector<1x4x750xf32>,
    %c0_148 = arith.constant 0 : index
    %c37 = arith.constant 37 : index
    %148 = vector.load %arg1[%c0_148, %c37] : memref<4x800xf32, #tpu.memory_space<vmem>>, vector<4x750xf32>
    %c37_149 = arith.constant 37 : index
    %c0_150 = arith.constant 0 : index
    %c0_151 = arith.constant 0 : index
    %149 = vector.load %arg13[%c37_149, %c0_150, %c0_151] : memref<51x4x750xf32, #tpu.memory_space<vmem>>, vector<1x4x750xf32>
    %150 = vector.shape_cast %149 : vector<1x4x750xf32> to vector<4x750xf32>
    %151 = vector.shape_cast %148 : vector<4x750xf32> to vector<1x4x750xf32>
    tpu.vector_store %arg13[%c37_149, %c0_150, %c0_151], %151 {strides = array<i32>} : memref<51x4x750xf32, #tpu.memory_space<vmem>>, vector<1x4x750xf32>,
    %c0_152 = arith.constant 0 : index
    %c38 = arith.constant 38 : index
    %152 = vector.load %arg1[%c0_152, %c38] : memref<4x800xf32, #tpu.memory_space<vmem>>, vector<4x750xf32>
    %c38_153 = arith.constant 38 : index
    %c0_154 = arith.constant 0 : index
    %c0_155 = arith.constant 0 : index
    %153 = vector.load %arg13[%c38_153, %c0_154, %c0_155] : memref<51x4x750xf32, #tpu.memory_space<vmem>>, vector<1x4x750xf32>
    %154 = vector.shape_cast %153 : vector<1x4x750xf32> to vector<4x750xf32>
    %155 = vector.shape_cast %152 : vector<4x750xf32> to vector<1x4x750xf32>
    tpu.vector_store %arg13[%c38_153, %c0_154, %c0_155], %155 {strides = array<i32>} : memref<51x4x750xf32, #tpu.memory_space<vmem>>, vector<1x4x750xf32>,
    %c0_156 = arith.constant 0 : index
    %c39 = arith.constant 39 : index
    %156 = vector.load %arg1[%c0_156, %c39] : memref<4x800xf32, #tpu.memory_space<vmem>>, vector<4x750xf32>
    %c39_157 = arith.constant 39 : index
    %c0_158 = arith.constant 0 : index
    %c0_159 = arith.constant 0 : index
    %157 = vector.load %arg13[%c39_157, %c0_158, %c0_159] : memref<51x4x750xf32, #tpu.memory_space<vmem>>, vector<1x4x750xf32>
    %158 = vector.shape_cast %157 : vector<1x4x750xf32> to vector<4x750xf32>
    %159 = vector.shape_cast %156 : vector<4x750xf32> to vector<1x4x750xf32>
    tpu.vector_store %arg13[%c39_157, %c0_158, %c0_159], %159 {strides = array<i32>} : memref<51x4x750xf32, #tpu.memory_space<vmem>>, vector<1x4x750xf32>,
    %c0_160 = arith.constant 0 : index
    %c40 = arith.constant 40 : index
    %160 = vector.load %arg1[%c0_160, %c40] : memref<4x800xf32, #tpu.memory_space<vmem>>, vector<4x750xf32>
    %c40_161 = arith.constant 40 : index
    %c0_162 = arith.constant 0 : index
    %c0_163 = arith.constant 0 : index
    %161 = vector.load %arg13[%c40_161, %c0_162, %c0_163] : memref<51x4x750xf32, #tpu.memory_space<vmem>>, vector<1x4x750xf32>
    %162 = vector.shape_cast %161 : vector<1x4x750xf32> to vector<4x750xf32>
    %163 = vector.shape_cast %160 : vector<4x750xf32> to vector<1x4x750xf32>
    tpu.vector_store %arg13[%c40_161, %c0_162, %c0_163], %163 {strides = array<i32>} : memref<51x4x750xf32, #tpu.memory_space<vmem>>, vector<1x4x750xf32>,
    %c0_164 = arith.constant 0 : index
    %c41 = arith.constant 41 : index
    %164 = vector.load %arg1[%c0_164, %c41] : memref<4x800xf32, #tpu.memory_space<vmem>>, vector<4x750xf32>
    %c41_165 = arith.constant 41 : index
    %c0_166 = arith.constant 0 : index
    %c0_167 = arith.constant 0 : index
    %165 = vector.load %arg13[%c41_165, %c0_166, %c0_167] : memref<51x4x750xf32, #tpu.memory_space<vmem>>, vector<1x4x750xf32>
    %166 = vector.shape_cast %165 : vector<1x4x750xf32> to vector<4x750xf32>
    %167 = vector.shape_cast %164 : vector<4x750xf32> to vector<1x4x750xf32>
    tpu.vector_store %arg13[%c41_165, %c0_166, %c0_167], %167 {strides = array<i32>} : memref<51x4x750xf32, #tpu.memory_space<vmem>>, vector<1x4x750xf32>,
    %c0_168 = arith.constant 0 : index
    %c42 = arith.constant 42 : index
    %168 = vector.load %arg1[%c0_168, %c42] : memref<4x800xf32, #tpu.memory_space<vmem>>, vector<4x750xf32>
    %c42_169 = arith.constant 42 : index
    %c0_170 = arith.constant 0 : index
    %c0_171 = arith.constant 0 : index
    %169 = vector.load %arg13[%c42_169, %c0_170, %c0_171] : memref<51x4x750xf32, #tpu.memory_space<vmem>>, vector<1x4x750xf32>
    %170 = vector.shape_cast %169 : vector<1x4x750xf32> to vector<4x750xf32>
    %171 = vector.shape_cast %168 : vector<4x750xf32> to vector<1x4x750xf32>
    tpu.vector_store %arg13[%c42_169, %c0_170, %c0_171], %171 {strides = array<i32>} : memref<51x4x750xf32, #tpu.memory_space<vmem>>, vector<1x4x750xf32>,
    %c0_172 = arith.constant 0 : index
    %c43 = arith.constant 43 : index
    %172 = vector.load %arg1[%c0_172, %c43] : memref<4x800xf32, #tpu.memory_space<vmem>>, vector<4x750xf32>
    %c43_173 = arith.constant 43 : index
    %c0_174 = arith.constant 0 : index
    %c0_175 = arith.constant 0 : index
    %173 = vector.load %arg13[%c43_173, %c0_174, %c0_175] : memref<51x4x750xf32, #tpu.memory_space<vmem>>, vector<1x4x750xf32>
    %174 = vector.shape_cast %173 : vector<1x4x750xf32> to vector<4x750xf32>
    %175 = vector.shape_cast %172 : vector<4x750xf32> to vector<1x4x750xf32>
    tpu.vector_store %arg13[%c43_173, %c0_174, %c0_175], %175 {strides = array<i32>} : memref<51x4x750xf32, #tpu.memory_space<vmem>>, vector<1x4x750xf32>,
    %c0_176 = arith.constant 0 : index
    %c44 = arith.constant 44 : index
    %176 = vector.load %arg1[%c0_176, %c44] : memref<4x800xf32, #tpu.memory_space<vmem>>, vector<4x750xf32>
    %c44_177 = arith.constant 44 : index
    %c0_178 = arith.constant 0 : index
    %c0_179 = arith.constant 0 : index
    %177 = vector.load %arg13[%c44_177, %c0_178, %c0_179] : memref<51x4x750xf32, #tpu.memory_space<vmem>>, vector<1x4x750xf32>
    %178 = vector.shape_cast %177 : vector<1x4x750xf32> to vector<4x750xf32>
    %179 = vector.shape_cast %176 : vector<4x750xf32> to vector<1x4x750xf32>
    tpu.vector_store %arg13[%c44_177, %c0_178, %c0_179], %179 {strides = array<i32>} : memref<51x4x750xf32, #tpu.memory_space<vmem>>, vector<1x4x750xf32>,
    %c0_180 = arith.constant 0 : index
    %c45 = arith.constant 45 : index
    %180 = vector.load %arg1[%c0_180, %c45] : memref<4x800xf32, #tpu.memory_space<vmem>>, vector<4x750xf32>
    %c45_181 = arith.constant 45 : index
    %c0_182 = arith.constant 0 : index
    %c0_183 = arith.constant 0 : index
    %181 = vector.load %arg13[%c45_181, %c0_182, %c0_183] : memref<51x4x750xf32, #tpu.memory_space<vmem>>, vector<1x4x750xf32>
    %182 = vector.shape_cast %181 : vector<1x4x750xf32> to vector<4x750xf32>
    %183 = vector.shape_cast %180 : vector<4x750xf32> to vector<1x4x750xf32>
    tpu.vector_store %arg13[%c45_181, %c0_182, %c0_183], %183 {strides = array<i32>} : memref<51x4x750xf32, #tpu.memory_space<vmem>>, vector<1x4x750xf32>,
    %c0_184 = arith.constant 0 : index
    %c46 = arith.constant 46 : index
    %184 = vector.load %arg1[%c0_184, %c46] : memref<4x800xf32, #tpu.memory_space<vmem>>, vector<4x750xf32>
    %c46_185 = arith.constant 46 : index
    %c0_186 = arith.constant 0 : index
    %c0_187 = arith.constant 0 : index
    %185 = vector.load %arg13[%c46_185, %c0_186, %c0_187] : memref<51x4x750xf32, #tpu.memory_space<vmem>>, vector<1x4x750xf32>
    %186 = vector.shape_cast %185 : vector<1x4x750xf32> to vector<4x750xf32>
    %187 = vector.shape_cast %184 : vector<4x750xf32> to vector<1x4x750xf32>
    tpu.vector_store %arg13[%c46_185, %c0_186, %c0_187], %187 {strides = array<i32>} : memref<51x4x750xf32, #tpu.memory_space<vmem>>, vector<1x4x750xf32>,
    %c0_188 = arith.constant 0 : index
    %c47 = arith.constant 47 : index
    %188 = vector.load %arg1[%c0_188, %c47] : memref<4x800xf32, #tpu.memory_space<vmem>>, vector<4x750xf32>
    %c47_189 = arith.constant 47 : index
    %c0_190 = arith.constant 0 : index
    %c0_191 = arith.constant 0 : index
    %189 = vector.load %arg13[%c47_189, %c0_190, %c0_191] : memref<51x4x750xf32, #tpu.memory_space<vmem>>, vector<1x4x750xf32>
    %190 = vector.shape_cast %189 : vector<1x4x750xf32> to vector<4x750xf32>
    %191 = vector.shape_cast %188 : vector<4x750xf32> to vector<1x4x750xf32>
    tpu.vector_store %arg13[%c47_189, %c0_190, %c0_191], %191 {strides = array<i32>} : memref<51x4x750xf32, #tpu.memory_space<vmem>>, vector<1x4x750xf32>,
    %c0_192 = arith.constant 0 : index
    %c48 = arith.constant 48 : index
    %192 = vector.load %arg1[%c0_192, %c48] : memref<4x800xf32, #tpu.memory_space<vmem>>, vector<4x750xf32>
    %c48_193 = arith.constant 48 : index
    %c0_194 = arith.constant 0 : index
    %c0_195 = arith.constant 0 : index
    %193 = vector.load %arg13[%c48_193, %c0_194, %c0_195] : memref<51x4x750xf32, #tpu.memory_space<vmem>>, vector<1x4x750xf32>
    %194 = vector.shape_cast %193 : vector<1x4x750xf32> to vector<4x750xf32>
    %195 = vector.shape_cast %192 : vector<4x750xf32> to vector<1x4x750xf32>
    tpu.vector_store %arg13[%c48_193, %c0_194, %c0_195], %195 {strides = array<i32>} : memref<51x4x750xf32, #tpu.memory_space<vmem>>, vector<1x4x750xf32>,
    %c0_196 = arith.constant 0 : index
    %c49 = arith.constant 49 : index
    %196 = vector.load %arg1[%c0_196, %c49] : memref<4x800xf32, #tpu.memory_space<vmem>>, vector<4x750xf32>
    %c49_197 = arith.constant 49 : index
    %c0_198 = arith.constant 0 : index
    %c0_199 = arith.constant 0 : index
    %197 = vector.load %arg13[%c49_197, %c0_198, %c0_199] : memref<51x4x750xf32, #tpu.memory_space<vmem>>, vector<1x4x750xf32>
    %198 = vector.shape_cast %197 : vector<1x4x750xf32> to vector<4x750xf32>
    %199 = vector.shape_cast %196 : vector<4x750xf32> to vector<1x4x750xf32>
    tpu.vector_store %arg13[%c49_197, %c0_198, %c0_199], %199 {strides = array<i32>} : memref<51x4x750xf32, #tpu.memory_space<vmem>>, vector<1x4x750xf32>,
    %c0_200 = arith.constant 0 : index
    %c50 = arith.constant 50 : index
    %200 = vector.load %arg1[%c0_200, %c50] : memref<4x800xf32, #tpu.memory_space<vmem>>, vector<4x750xf32>
    %c50_201 = arith.constant 50 : index
    %c0_202 = arith.constant 0 : index
    %c0_203 = arith.constant 0 : index
    %201 = vector.load %arg13[%c50_201, %c0_202, %c0_203] : memref<51x4x750xf32, #tpu.memory_space<vmem>>, vector<1x4x750xf32>
    %202 = vector.shape_cast %201 : vector<1x4x750xf32> to vector<4x750xf32>
    %203 = vector.shape_cast %200 : vector<4x750xf32> to vector<1x4x750xf32>
    tpu.vector_store %arg13[%c50_201, %c0_202, %c0_203], %203 {strides = array<i32>} : memref<51x4x750xf32, #tpu.memory_space<vmem>>, vector<1x4x750xf32>,
    %cst = arith.constant 0.000000e+00 : f32
    %204 = vector.broadcast %cst : f32 to vector<4x750xf32>
    %c0_i32 = arith.constant 0 : i32
    %c17_i32 = arith.constant 17 : i32
    %205 = arith.addi %c0_i32, %c17_i32 : i32
    %c1_i32 = arith.constant 1 : i32
    %206 = scf.for %arg16 = %c0_i32 to %205 step %c1_i32 iter_args(%arg17 = %204) -> (vector<4x750xf32>)  : i32 {
      %c3_i32 = arith.constant 3 : i32
      %352 = arith.muli %arg16, %c3_i32 : i32
      %c0_i32_365 = arith.constant 0 : i32
      %353 = arith.addi %352, %c0_i32_365 : i32
      %354 = arith.index_cast %353 : i32 to index
      %c0_366 = arith.constant 0 : index
      %c0_367 = arith.constant 0 : index
      %355 = vector.load %arg2[%354, %c0_366, %c0_367] : memref<51x1x16xf32, #tpu.memory_space<vmem>>, vector<1x1x16xf32>
      %356 = vector.shape_cast %355 : vector<1x1x16xf32> to vector<1x16xf32>
      %357 = vector.extract_strided_slice %356 {offsets = [0, 0], sizes = [1, 1], strides = [1, 1]} : vector<1x16xf32> to vector<1x1xf32>
      %c0_i32_368 = arith.constant 0 : i32
      %358 = arith.addi %352, %c0_i32_368 : i32
      %359 = arith.index_cast %358 : i32 to index
      %c0_369 = arith.constant 0 : index
      %c0_370 = arith.constant 0 : index
      %360 = vector.load %arg13[%359, %c0_369, %c0_370] : memref<51x4x750xf32, #tpu.memory_space<vmem>>, vector<1x4x750xf32>
      %361 = vector.shape_cast %360 : vector<1x4x750xf32> to vector<4x750xf32>
      %362 = vector.broadcast %357 : vector<1x1xf32> to vector<4x750xf32>
      %363 = arith.mulf %362, %361 : vector<4x750xf32>
      %364 = arith.addf %arg17, %363 : vector<4x750xf32>
      %c1_i32_371 = arith.constant 1 : i32
      %365 = arith.addi %352, %c1_i32_371 : i32
      %366 = arith.index_cast %365 : i32 to index
      %c0_372 = arith.constant 0 : index
      %c0_373 = arith.constant 0 : index
      %367 = vector.load %arg2[%366, %c0_372, %c0_373] : memref<51x1x16xf32, #tpu.memory_space<vmem>>, vector<1x1x16xf32>
      %368 = vector.shape_cast %367 : vector<1x1x16xf32> to vector<1x16xf32>
      %369 = vector.extract_strided_slice %368 {offsets = [0, 0], sizes = [1, 1], strides = [1, 1]} : vector<1x16xf32> to vector<1x1xf32>
      %c1_i32_374 = arith.constant 1 : i32
      %370 = arith.addi %352, %c1_i32_374 : i32
      %371 = arith.index_cast %370 : i32 to index
      %c0_375 = arith.constant 0 : index
      %c0_376 = arith.constant 0 : index
      %372 = vector.load %arg13[%371, %c0_375, %c0_376] : memref<51x4x750xf32, #tpu.memory_space<vmem>>, vector<1x4x750xf32>
      %373 = vector.shape_cast %372 : vector<1x4x750xf32> to vector<4x750xf32>
      %374 = vector.broadcast %369 : vector<1x1xf32> to vector<4x750xf32>
      %375 = arith.mulf %374, %373 : vector<4x750xf32>
      %376 = arith.addf %364, %375 : vector<4x750xf32>
      %c2_i32 = arith.constant 2 : i32
      %377 = arith.addi %352, %c2_i32 : i32
      %378 = arith.index_cast %377 : i32 to index
      %c0_377 = arith.constant 0 : index
      %c0_378 = arith.constant 0 : index
      %379 = vector.load %arg2[%378, %c0_377, %c0_378] : memref<51x1x16xf32, #tpu.memory_space<vmem>>, vector<1x1x16xf32>
      %380 = vector.shape_cast %379 : vector<1x1x16xf32> to vector<1x16xf32>
      %381 = vector.extract_strided_slice %380 {offsets = [0, 0], sizes = [1, 1], strides = [1, 1]} : vector<1x16xf32> to vector<1x1xf32>
      %c2_i32_379 = arith.constant 2 : i32
      %382 = arith.addi %352, %c2_i32_379 : i32
      %383 = arith.index_cast %382 : i32 to index
      %c0_380 = arith.constant 0 : index
      %c0_381 = arith.constant 0 : index
      %384 = vector.load %arg13[%383, %c0_380, %c0_381] : memref<51x4x750xf32, #tpu.memory_space<vmem>>, vector<1x4x750xf32>
      %385 = vector.shape_cast %384 : vector<1x4x750xf32> to vector<4x750xf32>
      %386 = vector.broadcast %381 : vector<1x1xf32> to vector<4x750xf32>
      %387 = arith.mulf %386, %385 : vector<4x750xf32>
      %388 = arith.addf %376, %387 : vector<4x750xf32>
      scf.yield %388 : vector<4x750xf32>
    }
    %c17_i32_204 = arith.constant 17 : i32
    %c0_205 = arith.constant 0 : index
    %c0_206 = arith.constant 0 : index
    %207 = vector.load %arg14[%c0_205, %c0_206] : memref<64x750xf32, #tpu.memory_space<vmem>>, vector<4x750xf32>
    tpu.vector_store %arg14[%c0_205, %c0_206], %206 {strides = array<i32>} : memref<64x750xf32, #tpu.memory_space<vmem>>, vector<4x750xf32>,
    %cst_207 = arith.constant 0.000000e+00 : f32
    %208 = vector.broadcast %cst_207 : f32 to vector<4x750xf32>
    %c0_i32_208 = arith.constant 0 : i32
    %c17_i32_209 = arith.constant 17 : i32
    %209 = arith.addi %c0_i32_208, %c17_i32_209 : i32
    %c1_i32_210 = arith.constant 1 : i32
    %210 = scf.for %arg16 = %c0_i32_208 to %209 step %c1_i32_210 iter_args(%arg17 = %208) -> (vector<4x750xf32>)  : i32 {
      %c3_i32 = arith.constant 3 : i32
      %352 = arith.muli %arg16, %c3_i32 : i32
      %c0_i32_365 = arith.constant 0 : i32
      %353 = arith.addi %352, %c0_i32_365 : i32
      %354 = arith.index_cast %353 : i32 to index
      %c0_366 = arith.constant 0 : index
      %c0_367 = arith.constant 0 : index
      %355 = vector.load %arg2[%354, %c0_366, %c0_367] : memref<51x1x16xf32, #tpu.memory_space<vmem>>, vector<1x1x16xf32>
      %356 = vector.shape_cast %355 : vector<1x1x16xf32> to vector<1x16xf32>
      %357 = vector.extract_strided_slice %356 {offsets = [0, 1], sizes = [1, 1], strides = [1, 1]} : vector<1x16xf32> to vector<1x1xf32>
      %c0_i32_368 = arith.constant 0 : i32
      %358 = arith.addi %352, %c0_i32_368 : i32
      %359 = arith.index_cast %358 : i32 to index
      %c0_369 = arith.constant 0 : index
      %c0_370 = arith.constant 0 : index
      %360 = vector.load %arg13[%359, %c0_369, %c0_370] : memref<51x4x750xf32, #tpu.memory_space<vmem>>, vector<1x4x750xf32>
      %361 = vector.shape_cast %360 : vector<1x4x750xf32> to vector<4x750xf32>
      %362 = vector.broadcast %357 : vector<1x1xf32> to vector<4x750xf32>
      %363 = arith.mulf %362, %361 : vector<4x750xf32>
      %364 = arith.addf %arg17, %363 : vector<4x750xf32>
      %c1_i32_371 = arith.constant 1 : i32
      %365 = arith.addi %352, %c1_i32_371 : i32
      %366 = arith.index_cast %365 : i32 to index
      %c0_372 = arith.constant 0 : index
      %c0_373 = arith.constant 0 : index
      %367 = vector.load %arg2[%366, %c0_372, %c0_373] : memref<51x1x16xf32, #tpu.memory_space<vmem>>, vector<1x1x16xf32>
      %368 = vector.shape_cast %367 : vector<1x1x16xf32> to vector<1x16xf32>
      %369 = vector.extract_strided_slice %368 {offsets = [0, 1], sizes = [1, 1], strides = [1, 1]} : vector<1x16xf32> to vector<1x1xf32>
      %c1_i32_374 = arith.constant 1 : i32
      %370 = arith.addi %352, %c1_i32_374 : i32
      %371 = arith.index_cast %370 : i32 to index
      %c0_375 = arith.constant 0 : index
      %c0_376 = arith.constant 0 : index
      %372 = vector.load %arg13[%371, %c0_375, %c0_376] : memref<51x4x750xf32, #tpu.memory_space<vmem>>, vector<1x4x750xf32>
      %373 = vector.shape_cast %372 : vector<1x4x750xf32> to vector<4x750xf32>
      %374 = vector.broadcast %369 : vector<1x1xf32> to vector<4x750xf32>
      %375 = arith.mulf %374, %373 : vector<4x750xf32>
      %376 = arith.addf %364, %375 : vector<4x750xf32>
      %c2_i32 = arith.constant 2 : i32
      %377 = arith.addi %352, %c2_i32 : i32
      %378 = arith.index_cast %377 : i32 to index
      %c0_377 = arith.constant 0 : index
      %c0_378 = arith.constant 0 : index
      %379 = vector.load %arg2[%378, %c0_377, %c0_378] : memref<51x1x16xf32, #tpu.memory_space<vmem>>, vector<1x1x16xf32>
      %380 = vector.shape_cast %379 : vector<1x1x16xf32> to vector<1x16xf32>
      %381 = vector.extract_strided_slice %380 {offsets = [0, 1], sizes = [1, 1], strides = [1, 1]} : vector<1x16xf32> to vector<1x1xf32>
      %c2_i32_379 = arith.constant 2 : i32
      %382 = arith.addi %352, %c2_i32_379 : i32
      %383 = arith.index_cast %382 : i32 to index
      %c0_380 = arith.constant 0 : index
      %c0_381 = arith.constant 0 : index
      %384 = vector.load %arg13[%383, %c0_380, %c0_381] : memref<51x4x750xf32, #tpu.memory_space<vmem>>, vector<1x4x750xf32>
      %385 = vector.shape_cast %384 : vector<1x4x750xf32> to vector<4x750xf32>
      %386 = vector.broadcast %381 : vector<1x1xf32> to vector<4x750xf32>
      %387 = arith.mulf %386, %385 : vector<4x750xf32>
      %388 = arith.addf %376, %387 : vector<4x750xf32>
      scf.yield %388 : vector<4x750xf32>
    }
    %c17_i32_211 = arith.constant 17 : i32
    %c4_212 = arith.constant 4 : index
    %c0_213 = arith.constant 0 : index
    %211 = vector.load %arg14[%c4_212, %c0_213] : memref<64x750xf32, #tpu.memory_space<vmem>>, vector<4x750xf32>
    tpu.vector_store %arg14[%c4_212, %c0_213], %210 {strides = array<i32>} : memref<64x750xf32, #tpu.memory_space<vmem>>, vector<4x750xf32>,
    %cst_214 = arith.constant 0.000000e+00 : f32
    %212 = vector.broadcast %cst_214 : f32 to vector<4x750xf32>
    %c0_i32_215 = arith.constant 0 : i32
    %c17_i32_216 = arith.constant 17 : i32
    %213 = arith.addi %c0_i32_215, %c17_i32_216 : i32
    %c1_i32_217 = arith.constant 1 : i32
    %214 = scf.for %arg16 = %c0_i32_215 to %213 step %c1_i32_217 iter_args(%arg17 = %212) -> (vector<4x750xf32>)  : i32 {
      %c3_i32 = arith.constant 3 : i32
      %352 = arith.muli %arg16, %c3_i32 : i32
      %c0_i32_365 = arith.constant 0 : i32
      %353 = arith.addi %352, %c0_i32_365 : i32
      %354 = arith.index_cast %353 : i32 to index
      %c0_366 = arith.constant 0 : index
      %c0_367 = arith.constant 0 : index
      %355 = vector.load %arg2[%354, %c0_366, %c0_367] : memref<51x1x16xf32, #tpu.memory_space<vmem>>, vector<1x1x16xf32>
      %356 = vector.shape_cast %355 : vector<1x1x16xf32> to vector<1x16xf32>
      %357 = vector.extract_strided_slice %356 {offsets = [0, 2], sizes = [1, 1], strides = [1, 1]} : vector<1x16xf32> to vector<1x1xf32>
      %c0_i32_368 = arith.constant 0 : i32
      %358 = arith.addi %352, %c0_i32_368 : i32
      %359 = arith.index_cast %358 : i32 to index
      %c0_369 = arith.constant 0 : index
      %c0_370 = arith.constant 0 : index
      %360 = vector.load %arg13[%359, %c0_369, %c0_370] : memref<51x4x750xf32, #tpu.memory_space<vmem>>, vector<1x4x750xf32>
      %361 = vector.shape_cast %360 : vector<1x4x750xf32> to vector<4x750xf32>
      %362 = vector.broadcast %357 : vector<1x1xf32> to vector<4x750xf32>
      %363 = arith.mulf %362, %361 : vector<4x750xf32>
      %364 = arith.addf %arg17, %363 : vector<4x750xf32>
      %c1_i32_371 = arith.constant 1 : i32
      %365 = arith.addi %352, %c1_i32_371 : i32
      %366 = arith.index_cast %365 : i32 to index
      %c0_372 = arith.constant 0 : index
      %c0_373 = arith.constant 0 : index
      %367 = vector.load %arg2[%366, %c0_372, %c0_373] : memref<51x1x16xf32, #tpu.memory_space<vmem>>, vector<1x1x16xf32>
      %368 = vector.shape_cast %367 : vector<1x1x16xf32> to vector<1x16xf32>
      %369 = vector.extract_strided_slice %368 {offsets = [0, 2], sizes = [1, 1], strides = [1, 1]} : vector<1x16xf32> to vector<1x1xf32>
      %c1_i32_374 = arith.constant 1 : i32
      %370 = arith.addi %352, %c1_i32_374 : i32
      %371 = arith.index_cast %370 : i32 to index
      %c0_375 = arith.constant 0 : index
      %c0_376 = arith.constant 0 : index
      %372 = vector.load %arg13[%371, %c0_375, %c0_376] : memref<51x4x750xf32, #tpu.memory_space<vmem>>, vector<1x4x750xf32>
      %373 = vector.shape_cast %372 : vector<1x4x750xf32> to vector<4x750xf32>
      %374 = vector.broadcast %369 : vector<1x1xf32> to vector<4x750xf32>
      %375 = arith.mulf %374, %373 : vector<4x750xf32>
      %376 = arith.addf %364, %375 : vector<4x750xf32>
      %c2_i32 = arith.constant 2 : i32
      %377 = arith.addi %352, %c2_i32 : i32
      %378 = arith.index_cast %377 : i32 to index
      %c0_377 = arith.constant 0 : index
      %c0_378 = arith.constant 0 : index
      %379 = vector.load %arg2[%378, %c0_377, %c0_378] : memref<51x1x16xf32, #tpu.memory_space<vmem>>, vector<1x1x16xf32>
      %380 = vector.shape_cast %379 : vector<1x1x16xf32> to vector<1x16xf32>
      %381 = vector.extract_strided_slice %380 {offsets = [0, 2], sizes = [1, 1], strides = [1, 1]} : vector<1x16xf32> to vector<1x1xf32>
      %c2_i32_379 = arith.constant 2 : i32
      %382 = arith.addi %352, %c2_i32_379 : i32
      %383 = arith.index_cast %382 : i32 to index
      %c0_380 = arith.constant 0 : index
      %c0_381 = arith.constant 0 : index
      %384 = vector.load %arg13[%383, %c0_380, %c0_381] : memref<51x4x750xf32, #tpu.memory_space<vmem>>, vector<1x4x750xf32>
      %385 = vector.shape_cast %384 : vector<1x4x750xf32> to vector<4x750xf32>
      %386 = vector.broadcast %381 : vector<1x1xf32> to vector<4x750xf32>
      %387 = arith.mulf %386, %385 : vector<4x750xf32>
      %388 = arith.addf %376, %387 : vector<4x750xf32>
      scf.yield %388 : vector<4x750xf32>
    }
    %c17_i32_218 = arith.constant 17 : i32
    %c8_219 = arith.constant 8 : index
    %c0_220 = arith.constant 0 : index
    %215 = vector.load %arg14[%c8_219, %c0_220] : memref<64x750xf32, #tpu.memory_space<vmem>>, vector<4x750xf32>
    tpu.vector_store %arg14[%c8_219, %c0_220], %214 {strides = array<i32>} : memref<64x750xf32, #tpu.memory_space<vmem>>, vector<4x750xf32>,
    %cst_221 = arith.constant 0.000000e+00 : f32
    %216 = vector.broadcast %cst_221 : f32 to vector<4x750xf32>
    %c0_i32_222 = arith.constant 0 : i32
    %c17_i32_223 = arith.constant 17 : i32
    %217 = arith.addi %c0_i32_222, %c17_i32_223 : i32
    %c1_i32_224 = arith.constant 1 : i32
    %218 = scf.for %arg16 = %c0_i32_222 to %217 step %c1_i32_224 iter_args(%arg17 = %216) -> (vector<4x750xf32>)  : i32 {
      %c3_i32 = arith.constant 3 : i32
      %352 = arith.muli %arg16, %c3_i32 : i32
      %c0_i32_365 = arith.constant 0 : i32
      %353 = arith.addi %352, %c0_i32_365 : i32
      %354 = arith.index_cast %353 : i32 to index
      %c0_366 = arith.constant 0 : index
      %c0_367 = arith.constant 0 : index
      %355 = vector.load %arg2[%354, %c0_366, %c0_367] : memref<51x1x16xf32, #tpu.memory_space<vmem>>, vector<1x1x16xf32>
      %356 = vector.shape_cast %355 : vector<1x1x16xf32> to vector<1x16xf32>
      %357 = vector.extract_strided_slice %356 {offsets = [0, 3], sizes = [1, 1], strides = [1, 1]} : vector<1x16xf32> to vector<1x1xf32>
      %c0_i32_368 = arith.constant 0 : i32
      %358 = arith.addi %352, %c0_i32_368 : i32
      %359 = arith.index_cast %358 : i32 to index
      %c0_369 = arith.constant 0 : index
      %c0_370 = arith.constant 0 : index
      %360 = vector.load %arg13[%359, %c0_369, %c0_370] : memref<51x4x750xf32, #tpu.memory_space<vmem>>, vector<1x4x750xf32>
      %361 = vector.shape_cast %360 : vector<1x4x750xf32> to vector<4x750xf32>
      %362 = vector.broadcast %357 : vector<1x1xf32> to vector<4x750xf32>
      %363 = arith.mulf %362, %361 : vector<4x750xf32>
      %364 = arith.addf %arg17, %363 : vector<4x750xf32>
      %c1_i32_371 = arith.constant 1 : i32
      %365 = arith.addi %352, %c1_i32_371 : i32
      %366 = arith.index_cast %365 : i32 to index
      %c0_372 = arith.constant 0 : index
      %c0_373 = arith.constant 0 : index
      %367 = vector.load %arg2[%366, %c0_372, %c0_373] : memref<51x1x16xf32, #tpu.memory_space<vmem>>, vector<1x1x16xf32>
      %368 = vector.shape_cast %367 : vector<1x1x16xf32> to vector<1x16xf32>
      %369 = vector.extract_strided_slice %368 {offsets = [0, 3], sizes = [1, 1], strides = [1, 1]} : vector<1x16xf32> to vector<1x1xf32>
      %c1_i32_374 = arith.constant 1 : i32
      %370 = arith.addi %352, %c1_i32_374 : i32
      %371 = arith.index_cast %370 : i32 to index
      %c0_375 = arith.constant 0 : index
      %c0_376 = arith.constant 0 : index
      %372 = vector.load %arg13[%371, %c0_375, %c0_376] : memref<51x4x750xf32, #tpu.memory_space<vmem>>, vector<1x4x750xf32>
      %373 = vector.shape_cast %372 : vector<1x4x750xf32> to vector<4x750xf32>
      %374 = vector.broadcast %369 : vector<1x1xf32> to vector<4x750xf32>
      %375 = arith.mulf %374, %373 : vector<4x750xf32>
      %376 = arith.addf %364, %375 : vector<4x750xf32>
      %c2_i32 = arith.constant 2 : i32
      %377 = arith.addi %352, %c2_i32 : i32
      %378 = arith.index_cast %377 : i32 to index
      %c0_377 = arith.constant 0 : index
      %c0_378 = arith.constant 0 : index
      %379 = vector.load %arg2[%378, %c0_377, %c0_378] : memref<51x1x16xf32, #tpu.memory_space<vmem>>, vector<1x1x16xf32>
      %380 = vector.shape_cast %379 : vector<1x1x16xf32> to vector<1x16xf32>
      %381 = vector.extract_strided_slice %380 {offsets = [0, 3], sizes = [1, 1], strides = [1, 1]} : vector<1x16xf32> to vector<1x1xf32>
      %c2_i32_379 = arith.constant 2 : i32
      %382 = arith.addi %352, %c2_i32_379 : i32
      %383 = arith.index_cast %382 : i32 to index
      %c0_380 = arith.constant 0 : index
      %c0_381 = arith.constant 0 : index
      %384 = vector.load %arg13[%383, %c0_380, %c0_381] : memref<51x4x750xf32, #tpu.memory_space<vmem>>, vector<1x4x750xf32>
      %385 = vector.shape_cast %384 : vector<1x4x750xf32> to vector<4x750xf32>
      %386 = vector.broadcast %381 : vector<1x1xf32> to vector<4x750xf32>
      %387 = arith.mulf %386, %385 : vector<4x750xf32>
      %388 = arith.addf %376, %387 : vector<4x750xf32>
      scf.yield %388 : vector<4x750xf32>
    }
    %c17_i32_225 = arith.constant 17 : i32
    %c12_226 = arith.constant 12 : index
    %c0_227 = arith.constant 0 : index
    %219 = vector.load %arg14[%c12_226, %c0_227] : memref<64x750xf32, #tpu.memory_space<vmem>>, vector<4x750xf32>
    tpu.vector_store %arg14[%c12_226, %c0_227], %218 {strides = array<i32>} : memref<64x750xf32, #tpu.memory_space<vmem>>, vector<4x750xf32>,
    %cst_228 = arith.constant 0.000000e+00 : f32
    %220 = vector.broadcast %cst_228 : f32 to vector<4x750xf32>
    %c0_i32_229 = arith.constant 0 : i32
    %c17_i32_230 = arith.constant 17 : i32
    %221 = arith.addi %c0_i32_229, %c17_i32_230 : i32
    %c1_i32_231 = arith.constant 1 : i32
    %222 = scf.for %arg16 = %c0_i32_229 to %221 step %c1_i32_231 iter_args(%arg17 = %220) -> (vector<4x750xf32>)  : i32 {
      %c3_i32 = arith.constant 3 : i32
      %352 = arith.muli %arg16, %c3_i32 : i32
      %c0_i32_365 = arith.constant 0 : i32
      %353 = arith.addi %352, %c0_i32_365 : i32
      %354 = arith.index_cast %353 : i32 to index
      %c0_366 = arith.constant 0 : index
      %c0_367 = arith.constant 0 : index
      %355 = vector.load %arg2[%354, %c0_366, %c0_367] : memref<51x1x16xf32, #tpu.memory_space<vmem>>, vector<1x1x16xf32>
      %356 = vector.shape_cast %355 : vector<1x1x16xf32> to vector<1x16xf32>
      %357 = vector.extract_strided_slice %356 {offsets = [0, 4], sizes = [1, 1], strides = [1, 1]} : vector<1x16xf32> to vector<1x1xf32>
      %c0_i32_368 = arith.constant 0 : i32
      %358 = arith.addi %352, %c0_i32_368 : i32
      %359 = arith.index_cast %358 : i32 to index
      %c0_369 = arith.constant 0 : index
      %c0_370 = arith.constant 0 : index
      %360 = vector.load %arg13[%359, %c0_369, %c0_370] : memref<51x4x750xf32, #tpu.memory_space<vmem>>, vector<1x4x750xf32>
      %361 = vector.shape_cast %360 : vector<1x4x750xf32> to vector<4x750xf32>
      %362 = vector.broadcast %357 : vector<1x1xf32> to vector<4x750xf32>
      %363 = arith.mulf %362, %361 : vector<4x750xf32>
      %364 = arith.addf %arg17, %363 : vector<4x750xf32>
      %c1_i32_371 = arith.constant 1 : i32
      %365 = arith.addi %352, %c1_i32_371 : i32
      %366 = arith.index_cast %365 : i32 to index
      %c0_372 = arith.constant 0 : index
      %c0_373 = arith.constant 0 : index
      %367 = vector.load %arg2[%366, %c0_372, %c0_373] : memref<51x1x16xf32, #tpu.memory_space<vmem>>, vector<1x1x16xf32>
      %368 = vector.shape_cast %367 : vector<1x1x16xf32> to vector<1x16xf32>
      %369 = vector.extract_strided_slice %368 {offsets = [0, 4], sizes = [1, 1], strides = [1, 1]} : vector<1x16xf32> to vector<1x1xf32>
      %c1_i32_374 = arith.constant 1 : i32
      %370 = arith.addi %352, %c1_i32_374 : i32
      %371 = arith.index_cast %370 : i32 to index
      %c0_375 = arith.constant 0 : index
      %c0_376 = arith.constant 0 : index
      %372 = vector.load %arg13[%371, %c0_375, %c0_376] : memref<51x4x750xf32, #tpu.memory_space<vmem>>, vector<1x4x750xf32>
      %373 = vector.shape_cast %372 : vector<1x4x750xf32> to vector<4x750xf32>
      %374 = vector.broadcast %369 : vector<1x1xf32> to vector<4x750xf32>
      %375 = arith.mulf %374, %373 : vector<4x750xf32>
      %376 = arith.addf %364, %375 : vector<4x750xf32>
      %c2_i32 = arith.constant 2 : i32
      %377 = arith.addi %352, %c2_i32 : i32
      %378 = arith.index_cast %377 : i32 to index
      %c0_377 = arith.constant 0 : index
      %c0_378 = arith.constant 0 : index
      %379 = vector.load %arg2[%378, %c0_377, %c0_378] : memref<51x1x16xf32, #tpu.memory_space<vmem>>, vector<1x1x16xf32>
      %380 = vector.shape_cast %379 : vector<1x1x16xf32> to vector<1x16xf32>
      %381 = vector.extract_strided_slice %380 {offsets = [0, 4], sizes = [1, 1], strides = [1, 1]} : vector<1x16xf32> to vector<1x1xf32>
      %c2_i32_379 = arith.constant 2 : i32
      %382 = arith.addi %352, %c2_i32_379 : i32
      %383 = arith.index_cast %382 : i32 to index
      %c0_380 = arith.constant 0 : index
      %c0_381 = arith.constant 0 : index
      %384 = vector.load %arg13[%383, %c0_380, %c0_381] : memref<51x4x750xf32, #tpu.memory_space<vmem>>, vector<1x4x750xf32>
      %385 = vector.shape_cast %384 : vector<1x4x750xf32> to vector<4x750xf32>
      %386 = vector.broadcast %381 : vector<1x1xf32> to vector<4x750xf32>
      %387 = arith.mulf %386, %385 : vector<4x750xf32>
      %388 = arith.addf %376, %387 : vector<4x750xf32>
      scf.yield %388 : vector<4x750xf32>
    }
    %c17_i32_232 = arith.constant 17 : i32
    %c16_233 = arith.constant 16 : index
    %c0_234 = arith.constant 0 : index
    %223 = vector.load %arg14[%c16_233, %c0_234] : memref<64x750xf32, #tpu.memory_space<vmem>>, vector<4x750xf32>
    tpu.vector_store %arg14[%c16_233, %c0_234], %222 {strides = array<i32>} : memref<64x750xf32, #tpu.memory_space<vmem>>, vector<4x750xf32>,
    %cst_235 = arith.constant 0.000000e+00 : f32
    %224 = vector.broadcast %cst_235 : f32 to vector<4x750xf32>
    %c0_i32_236 = arith.constant 0 : i32
    %c17_i32_237 = arith.constant 17 : i32
    %225 = arith.addi %c0_i32_236, %c17_i32_237 : i32
    %c1_i32_238 = arith.constant 1 : i32
    %226 = scf.for %arg16 = %c0_i32_236 to %225 step %c1_i32_238 iter_args(%arg17 = %224) -> (vector<4x750xf32>)  : i32 {
      %c3_i32 = arith.constant 3 : i32
      %352 = arith.muli %arg16, %c3_i32 : i32
      %c0_i32_365 = arith.constant 0 : i32
      %353 = arith.addi %352, %c0_i32_365 : i32
      %354 = arith.index_cast %353 : i32 to index
      %c0_366 = arith.constant 0 : index
      %c0_367 = arith.constant 0 : index
      %355 = vector.load %arg2[%354, %c0_366, %c0_367] : memref<51x1x16xf32, #tpu.memory_space<vmem>>, vector<1x1x16xf32>
      %356 = vector.shape_cast %355 : vector<1x1x16xf32> to vector<1x16xf32>
      %357 = vector.extract_strided_slice %356 {offsets = [0, 5], sizes = [1, 1], strides = [1, 1]} : vector<1x16xf32> to vector<1x1xf32>
      %c0_i32_368 = arith.constant 0 : i32
      %358 = arith.addi %352, %c0_i32_368 : i32
      %359 = arith.index_cast %358 : i32 to index
      %c0_369 = arith.constant 0 : index
      %c0_370 = arith.constant 0 : index
      %360 = vector.load %arg13[%359, %c0_369, %c0_370] : memref<51x4x750xf32, #tpu.memory_space<vmem>>, vector<1x4x750xf32>
      %361 = vector.shape_cast %360 : vector<1x4x750xf32> to vector<4x750xf32>
      %362 = vector.broadcast %357 : vector<1x1xf32> to vector<4x750xf32>
      %363 = arith.mulf %362, %361 : vector<4x750xf32>
      %364 = arith.addf %arg17, %363 : vector<4x750xf32>
      %c1_i32_371 = arith.constant 1 : i32
      %365 = arith.addi %352, %c1_i32_371 : i32
      %366 = arith.index_cast %365 : i32 to index
      %c0_372 = arith.constant 0 : index
      %c0_373 = arith.constant 0 : index
      %367 = vector.load %arg2[%366, %c0_372, %c0_373] : memref<51x1x16xf32, #tpu.memory_space<vmem>>, vector<1x1x16xf32>
      %368 = vector.shape_cast %367 : vector<1x1x16xf32> to vector<1x16xf32>
      %369 = vector.extract_strided_slice %368 {offsets = [0, 5], sizes = [1, 1], strides = [1, 1]} : vector<1x16xf32> to vector<1x1xf32>
      %c1_i32_374 = arith.constant 1 : i32
      %370 = arith.addi %352, %c1_i32_374 : i32
      %371 = arith.index_cast %370 : i32 to index
      %c0_375 = arith.constant 0 : index
      %c0_376 = arith.constant 0 : index
      %372 = vector.load %arg13[%371, %c0_375, %c0_376] : memref<51x4x750xf32, #tpu.memory_space<vmem>>, vector<1x4x750xf32>
      %373 = vector.shape_cast %372 : vector<1x4x750xf32> to vector<4x750xf32>
      %374 = vector.broadcast %369 : vector<1x1xf32> to vector<4x750xf32>
      %375 = arith.mulf %374, %373 : vector<4x750xf32>
      %376 = arith.addf %364, %375 : vector<4x750xf32>
      %c2_i32 = arith.constant 2 : i32
      %377 = arith.addi %352, %c2_i32 : i32
      %378 = arith.index_cast %377 : i32 to index
      %c0_377 = arith.constant 0 : index
      %c0_378 = arith.constant 0 : index
      %379 = vector.load %arg2[%378, %c0_377, %c0_378] : memref<51x1x16xf32, #tpu.memory_space<vmem>>, vector<1x1x16xf32>
      %380 = vector.shape_cast %379 : vector<1x1x16xf32> to vector<1x16xf32>
      %381 = vector.extract_strided_slice %380 {offsets = [0, 5], sizes = [1, 1], strides = [1, 1]} : vector<1x16xf32> to vector<1x1xf32>
      %c2_i32_379 = arith.constant 2 : i32
      %382 = arith.addi %352, %c2_i32_379 : i32
      %383 = arith.index_cast %382 : i32 to index
      %c0_380 = arith.constant 0 : index
      %c0_381 = arith.constant 0 : index
      %384 = vector.load %arg13[%383, %c0_380, %c0_381] : memref<51x4x750xf32, #tpu.memory_space<vmem>>, vector<1x4x750xf32>
      %385 = vector.shape_cast %384 : vector<1x4x750xf32> to vector<4x750xf32>
      %386 = vector.broadcast %381 : vector<1x1xf32> to vector<4x750xf32>
      %387 = arith.mulf %386, %385 : vector<4x750xf32>
      %388 = arith.addf %376, %387 : vector<4x750xf32>
      scf.yield %388 : vector<4x750xf32>
    }
    %c17_i32_239 = arith.constant 17 : i32
    %c20_240 = arith.constant 20 : index
    %c0_241 = arith.constant 0 : index
    %227 = vector.load %arg14[%c20_240, %c0_241] : memref<64x750xf32, #tpu.memory_space<vmem>>, vector<4x750xf32>
    tpu.vector_store %arg14[%c20_240, %c0_241], %226 {strides = array<i32>} : memref<64x750xf32, #tpu.memory_space<vmem>>, vector<4x750xf32>,
    %cst_242 = arith.constant 0.000000e+00 : f32
    %228 = vector.broadcast %cst_242 : f32 to vector<4x750xf32>
    %c0_i32_243 = arith.constant 0 : i32
    %c17_i32_244 = arith.constant 17 : i32
    %229 = arith.addi %c0_i32_243, %c17_i32_244 : i32
    %c1_i32_245 = arith.constant 1 : i32
    %230 = scf.for %arg16 = %c0_i32_243 to %229 step %c1_i32_245 iter_args(%arg17 = %228) -> (vector<4x750xf32>)  : i32 {
      %c3_i32 = arith.constant 3 : i32
      %352 = arith.muli %arg16, %c3_i32 : i32
      %c0_i32_365 = arith.constant 0 : i32
      %353 = arith.addi %352, %c0_i32_365 : i32
      %354 = arith.index_cast %353 : i32 to index
      %c0_366 = arith.constant 0 : index
      %c0_367 = arith.constant 0 : index
      %355 = vector.load %arg2[%354, %c0_366, %c0_367] : memref<51x1x16xf32, #tpu.memory_space<vmem>>, vector<1x1x16xf32>
      %356 = vector.shape_cast %355 : vector<1x1x16xf32> to vector<1x16xf32>
      %357 = vector.extract_strided_slice %356 {offsets = [0, 6], sizes = [1, 1], strides = [1, 1]} : vector<1x16xf32> to vector<1x1xf32>
      %c0_i32_368 = arith.constant 0 : i32
      %358 = arith.addi %352, %c0_i32_368 : i32
      %359 = arith.index_cast %358 : i32 to index
      %c0_369 = arith.constant 0 : index
      %c0_370 = arith.constant 0 : index
      %360 = vector.load %arg13[%359, %c0_369, %c0_370] : memref<51x4x750xf32, #tpu.memory_space<vmem>>, vector<1x4x750xf32>
      %361 = vector.shape_cast %360 : vector<1x4x750xf32> to vector<4x750xf32>
      %362 = vector.broadcast %357 : vector<1x1xf32> to vector<4x750xf32>
      %363 = arith.mulf %362, %361 : vector<4x750xf32>
      %364 = arith.addf %arg17, %363 : vector<4x750xf32>
      %c1_i32_371 = arith.constant 1 : i32
      %365 = arith.addi %352, %c1_i32_371 : i32
      %366 = arith.index_cast %365 : i32 to index
      %c0_372 = arith.constant 0 : index
      %c0_373 = arith.constant 0 : index
      %367 = vector.load %arg2[%366, %c0_372, %c0_373] : memref<51x1x16xf32, #tpu.memory_space<vmem>>, vector<1x1x16xf32>
      %368 = vector.shape_cast %367 : vector<1x1x16xf32> to vector<1x16xf32>
      %369 = vector.extract_strided_slice %368 {offsets = [0, 6], sizes = [1, 1], strides = [1, 1]} : vector<1x16xf32> to vector<1x1xf32>
      %c1_i32_374 = arith.constant 1 : i32
      %370 = arith.addi %352, %c1_i32_374 : i32
      %371 = arith.index_cast %370 : i32 to index
      %c0_375 = arith.constant 0 : index
      %c0_376 = arith.constant 0 : index
      %372 = vector.load %arg13[%371, %c0_375, %c0_376] : memref<51x4x750xf32, #tpu.memory_space<vmem>>, vector<1x4x750xf32>
      %373 = vector.shape_cast %372 : vector<1x4x750xf32> to vector<4x750xf32>
      %374 = vector.broadcast %369 : vector<1x1xf32> to vector<4x750xf32>
      %375 = arith.mulf %374, %373 : vector<4x750xf32>
      %376 = arith.addf %364, %375 : vector<4x750xf32>
      %c2_i32 = arith.constant 2 : i32
      %377 = arith.addi %352, %c2_i32 : i32
      %378 = arith.index_cast %377 : i32 to index
      %c0_377 = arith.constant 0 : index
      %c0_378 = arith.constant 0 : index
      %379 = vector.load %arg2[%378, %c0_377, %c0_378] : memref<51x1x16xf32, #tpu.memory_space<vmem>>, vector<1x1x16xf32>
      %380 = vector.shape_cast %379 : vector<1x1x16xf32> to vector<1x16xf32>
      %381 = vector.extract_strided_slice %380 {offsets = [0, 6], sizes = [1, 1], strides = [1, 1]} : vector<1x16xf32> to vector<1x1xf32>
      %c2_i32_379 = arith.constant 2 : i32
      %382 = arith.addi %352, %c2_i32_379 : i32
      %383 = arith.index_cast %382 : i32 to index
      %c0_380 = arith.constant 0 : index
      %c0_381 = arith.constant 0 : index
      %384 = vector.load %arg13[%383, %c0_380, %c0_381] : memref<51x4x750xf32, #tpu.memory_space<vmem>>, vector<1x4x750xf32>
      %385 = vector.shape_cast %384 : vector<1x4x750xf32> to vector<4x750xf32>
      %386 = vector.broadcast %381 : vector<1x1xf32> to vector<4x750xf32>
      %387 = arith.mulf %386, %385 : vector<4x750xf32>
      %388 = arith.addf %376, %387 : vector<4x750xf32>
      scf.yield %388 : vector<4x750xf32>
    }
    %c17_i32_246 = arith.constant 17 : i32
    %c24_247 = arith.constant 24 : index
    %c0_248 = arith.constant 0 : index
    %231 = vector.load %arg14[%c24_247, %c0_248] : memref<64x750xf32, #tpu.memory_space<vmem>>, vector<4x750xf32>
    tpu.vector_store %arg14[%c24_247, %c0_248], %230 {strides = array<i32>} : memref<64x750xf32, #tpu.memory_space<vmem>>, vector<4x750xf32>,
    %cst_249 = arith.constant 0.000000e+00 : f32
    %232 = vector.broadcast %cst_249 : f32 to vector<4x750xf32>
    %c0_i32_250 = arith.constant 0 : i32
    %c17_i32_251 = arith.constant 17 : i32
    %233 = arith.addi %c0_i32_250, %c17_i32_251 : i32
    %c1_i32_252 = arith.constant 1 : i32
    %234 = scf.for %arg16 = %c0_i32_250 to %233 step %c1_i32_252 iter_args(%arg17 = %232) -> (vector<4x750xf32>)  : i32 {
      %c3_i32 = arith.constant 3 : i32
      %352 = arith.muli %arg16, %c3_i32 : i32
      %c0_i32_365 = arith.constant 0 : i32
      %353 = arith.addi %352, %c0_i32_365 : i32
      %354 = arith.index_cast %353 : i32 to index
      %c0_366 = arith.constant 0 : index
      %c0_367 = arith.constant 0 : index
      %355 = vector.load %arg2[%354, %c0_366, %c0_367] : memref<51x1x16xf32, #tpu.memory_space<vmem>>, vector<1x1x16xf32>
      %356 = vector.shape_cast %355 : vector<1x1x16xf32> to vector<1x16xf32>
      %357 = vector.extract_strided_slice %356 {offsets = [0, 7], sizes = [1, 1], strides = [1, 1]} : vector<1x16xf32> to vector<1x1xf32>
      %c0_i32_368 = arith.constant 0 : i32
      %358 = arith.addi %352, %c0_i32_368 : i32
      %359 = arith.index_cast %358 : i32 to index
      %c0_369 = arith.constant 0 : index
      %c0_370 = arith.constant 0 : index
      %360 = vector.load %arg13[%359, %c0_369, %c0_370] : memref<51x4x750xf32, #tpu.memory_space<vmem>>, vector<1x4x750xf32>
      %361 = vector.shape_cast %360 : vector<1x4x750xf32> to vector<4x750xf32>
      %362 = vector.broadcast %357 : vector<1x1xf32> to vector<4x750xf32>
      %363 = arith.mulf %362, %361 : vector<4x750xf32>
      %364 = arith.addf %arg17, %363 : vector<4x750xf32>
      %c1_i32_371 = arith.constant 1 : i32
      %365 = arith.addi %352, %c1_i32_371 : i32
      %366 = arith.index_cast %365 : i32 to index
      %c0_372 = arith.constant 0 : index
      %c0_373 = arith.constant 0 : index
      %367 = vector.load %arg2[%366, %c0_372, %c0_373] : memref<51x1x16xf32, #tpu.memory_space<vmem>>, vector<1x1x16xf32>
      %368 = vector.shape_cast %367 : vector<1x1x16xf32> to vector<1x16xf32>
      %369 = vector.extract_strided_slice %368 {offsets = [0, 7], sizes = [1, 1], strides = [1, 1]} : vector<1x16xf32> to vector<1x1xf32>
      %c1_i32_374 = arith.constant 1 : i32
      %370 = arith.addi %352, %c1_i32_374 : i32
      %371 = arith.index_cast %370 : i32 to index
      %c0_375 = arith.constant 0 : index
      %c0_376 = arith.constant 0 : index
      %372 = vector.load %arg13[%371, %c0_375, %c0_376] : memref<51x4x750xf32, #tpu.memory_space<vmem>>, vector<1x4x750xf32>
      %373 = vector.shape_cast %372 : vector<1x4x750xf32> to vector<4x750xf32>
      %374 = vector.broadcast %369 : vector<1x1xf32> to vector<4x750xf32>
      %375 = arith.mulf %374, %373 : vector<4x750xf32>
      %376 = arith.addf %364, %375 : vector<4x750xf32>
      %c2_i32 = arith.constant 2 : i32
      %377 = arith.addi %352, %c2_i32 : i32
      %378 = arith.index_cast %377 : i32 to index
      %c0_377 = arith.constant 0 : index
      %c0_378 = arith.constant 0 : index
      %379 = vector.load %arg2[%378, %c0_377, %c0_378] : memref<51x1x16xf32, #tpu.memory_space<vmem>>, vector<1x1x16xf32>
      %380 = vector.shape_cast %379 : vector<1x1x16xf32> to vector<1x16xf32>
      %381 = vector.extract_strided_slice %380 {offsets = [0, 7], sizes = [1, 1], strides = [1, 1]} : vector<1x16xf32> to vector<1x1xf32>
      %c2_i32_379 = arith.constant 2 : i32
      %382 = arith.addi %352, %c2_i32_379 : i32
      %383 = arith.index_cast %382 : i32 to index
      %c0_380 = arith.constant 0 : index
      %c0_381 = arith.constant 0 : index
      %384 = vector.load %arg13[%383, %c0_380, %c0_381] : memref<51x4x750xf32, #tpu.memory_space<vmem>>, vector<1x4x750xf32>
      %385 = vector.shape_cast %384 : vector<1x4x750xf32> to vector<4x750xf32>
      %386 = vector.broadcast %381 : vector<1x1xf32> to vector<4x750xf32>
      %387 = arith.mulf %386, %385 : vector<4x750xf32>
      %388 = arith.addf %376, %387 : vector<4x750xf32>
      scf.yield %388 : vector<4x750xf32>
    }
    %c17_i32_253 = arith.constant 17 : i32
    %c28_254 = arith.constant 28 : index
    %c0_255 = arith.constant 0 : index
    %235 = vector.load %arg14[%c28_254, %c0_255] : memref<64x750xf32, #tpu.memory_space<vmem>>, vector<4x750xf32>
    tpu.vector_store %arg14[%c28_254, %c0_255], %234 {strides = array<i32>} : memref<64x750xf32, #tpu.memory_space<vmem>>, vector<4x750xf32>,
    %cst_256 = arith.constant 0.000000e+00 : f32
    %236 = vector.broadcast %cst_256 : f32 to vector<4x750xf32>
    %c0_i32_257 = arith.constant 0 : i32
    %c17_i32_258 = arith.constant 17 : i32
    %237 = arith.addi %c0_i32_257, %c17_i32_258 : i32
    %c1_i32_259 = arith.constant 1 : i32
    %238 = scf.for %arg16 = %c0_i32_257 to %237 step %c1_i32_259 iter_args(%arg17 = %236) -> (vector<4x750xf32>)  : i32 {
      %c3_i32 = arith.constant 3 : i32
      %352 = arith.muli %arg16, %c3_i32 : i32
      %c0_i32_365 = arith.constant 0 : i32
      %353 = arith.addi %352, %c0_i32_365 : i32
      %354 = arith.index_cast %353 : i32 to index
      %c0_366 = arith.constant 0 : index
      %c0_367 = arith.constant 0 : index
      %355 = vector.load %arg2[%354, %c0_366, %c0_367] : memref<51x1x16xf32, #tpu.memory_space<vmem>>, vector<1x1x16xf32>
      %356 = vector.shape_cast %355 : vector<1x1x16xf32> to vector<1x16xf32>
      %357 = vector.extract_strided_slice %356 {offsets = [0, 8], sizes = [1, 1], strides = [1, 1]} : vector<1x16xf32> to vector<1x1xf32>
      %c0_i32_368 = arith.constant 0 : i32
      %358 = arith.addi %352, %c0_i32_368 : i32
      %359 = arith.index_cast %358 : i32 to index
      %c0_369 = arith.constant 0 : index
      %c0_370 = arith.constant 0 : index
      %360 = vector.load %arg13[%359, %c0_369, %c0_370] : memref<51x4x750xf32, #tpu.memory_space<vmem>>, vector<1x4x750xf32>
      %361 = vector.shape_cast %360 : vector<1x4x750xf32> to vector<4x750xf32>
      %362 = vector.broadcast %357 : vector<1x1xf32> to vector<4x750xf32>
      %363 = arith.mulf %362, %361 : vector<4x750xf32>
      %364 = arith.addf %arg17, %363 : vector<4x750xf32>
      %c1_i32_371 = arith.constant 1 : i32
      %365 = arith.addi %352, %c1_i32_371 : i32
      %366 = arith.index_cast %365 : i32 to index
      %c0_372 = arith.constant 0 : index
      %c0_373 = arith.constant 0 : index
      %367 = vector.load %arg2[%366, %c0_372, %c0_373] : memref<51x1x16xf32, #tpu.memory_space<vmem>>, vector<1x1x16xf32>
      %368 = vector.shape_cast %367 : vector<1x1x16xf32> to vector<1x16xf32>
      %369 = vector.extract_strided_slice %368 {offsets = [0, 8], sizes = [1, 1], strides = [1, 1]} : vector<1x16xf32> to vector<1x1xf32>
      %c1_i32_374 = arith.constant 1 : i32
      %370 = arith.addi %352, %c1_i32_374 : i32
      %371 = arith.index_cast %370 : i32 to index
      %c0_375 = arith.constant 0 : index
      %c0_376 = arith.constant 0 : index
      %372 = vector.load %arg13[%371, %c0_375, %c0_376] : memref<51x4x750xf32, #tpu.memory_space<vmem>>, vector<1x4x750xf32>
      %373 = vector.shape_cast %372 : vector<1x4x750xf32> to vector<4x750xf32>
      %374 = vector.broadcast %369 : vector<1x1xf32> to vector<4x750xf32>
      %375 = arith.mulf %374, %373 : vector<4x750xf32>
      %376 = arith.addf %364, %375 : vector<4x750xf32>
      %c2_i32 = arith.constant 2 : i32
      %377 = arith.addi %352, %c2_i32 : i32
      %378 = arith.index_cast %377 : i32 to index
      %c0_377 = arith.constant 0 : index
      %c0_378 = arith.constant 0 : index
      %379 = vector.load %arg2[%378, %c0_377, %c0_378] : memref<51x1x16xf32, #tpu.memory_space<vmem>>, vector<1x1x16xf32>
      %380 = vector.shape_cast %379 : vector<1x1x16xf32> to vector<1x16xf32>
      %381 = vector.extract_strided_slice %380 {offsets = [0, 8], sizes = [1, 1], strides = [1, 1]} : vector<1x16xf32> to vector<1x1xf32>
      %c2_i32_379 = arith.constant 2 : i32
      %382 = arith.addi %352, %c2_i32_379 : i32
      %383 = arith.index_cast %382 : i32 to index
      %c0_380 = arith.constant 0 : index
      %c0_381 = arith.constant 0 : index
      %384 = vector.load %arg13[%383, %c0_380, %c0_381] : memref<51x4x750xf32, #tpu.memory_space<vmem>>, vector<1x4x750xf32>
      %385 = vector.shape_cast %384 : vector<1x4x750xf32> to vector<4x750xf32>
      %386 = vector.broadcast %381 : vector<1x1xf32> to vector<4x750xf32>
      %387 = arith.mulf %386, %385 : vector<4x750xf32>
      %388 = arith.addf %376, %387 : vector<4x750xf32>
      scf.yield %388 : vector<4x750xf32>
    }
    %c17_i32_260 = arith.constant 17 : i32
    %c32_261 = arith.constant 32 : index
    %c0_262 = arith.constant 0 : index
    %239 = vector.load %arg14[%c32_261, %c0_262] : memref<64x750xf32, #tpu.memory_space<vmem>>, vector<4x750xf32>
    tpu.vector_store %arg14[%c32_261, %c0_262], %238 {strides = array<i32>} : memref<64x750xf32, #tpu.memory_space<vmem>>, vector<4x750xf32>,
    %cst_263 = arith.constant 0.000000e+00 : f32
    %240 = vector.broadcast %cst_263 : f32 to vector<4x750xf32>
    %c0_i32_264 = arith.constant 0 : i32
    %c17_i32_265 = arith.constant 17 : i32
    %241 = arith.addi %c0_i32_264, %c17_i32_265 : i32
    %c1_i32_266 = arith.constant 1 : i32
    %242 = scf.for %arg16 = %c0_i32_264 to %241 step %c1_i32_266 iter_args(%arg17 = %240) -> (vector<4x750xf32>)  : i32 {
      %c3_i32 = arith.constant 3 : i32
      %352 = arith.muli %arg16, %c3_i32 : i32
      %c0_i32_365 = arith.constant 0 : i32
      %353 = arith.addi %352, %c0_i32_365 : i32
      %354 = arith.index_cast %353 : i32 to index
      %c0_366 = arith.constant 0 : index
      %c0_367 = arith.constant 0 : index
      %355 = vector.load %arg2[%354, %c0_366, %c0_367] : memref<51x1x16xf32, #tpu.memory_space<vmem>>, vector<1x1x16xf32>
      %356 = vector.shape_cast %355 : vector<1x1x16xf32> to vector<1x16xf32>
      %357 = vector.extract_strided_slice %356 {offsets = [0, 9], sizes = [1, 1], strides = [1, 1]} : vector<1x16xf32> to vector<1x1xf32>
      %c0_i32_368 = arith.constant 0 : i32
      %358 = arith.addi %352, %c0_i32_368 : i32
      %359 = arith.index_cast %358 : i32 to index
      %c0_369 = arith.constant 0 : index
      %c0_370 = arith.constant 0 : index
      %360 = vector.load %arg13[%359, %c0_369, %c0_370] : memref<51x4x750xf32, #tpu.memory_space<vmem>>, vector<1x4x750xf32>
      %361 = vector.shape_cast %360 : vector<1x4x750xf32> to vector<4x750xf32>
      %362 = vector.broadcast %357 : vector<1x1xf32> to vector<4x750xf32>
      %363 = arith.mulf %362, %361 : vector<4x750xf32>
      %364 = arith.addf %arg17, %363 : vector<4x750xf32>
      %c1_i32_371 = arith.constant 1 : i32
      %365 = arith.addi %352, %c1_i32_371 : i32
      %366 = arith.index_cast %365 : i32 to index
      %c0_372 = arith.constant 0 : index
      %c0_373 = arith.constant 0 : index
      %367 = vector.load %arg2[%366, %c0_372, %c0_373] : memref<51x1x16xf32, #tpu.memory_space<vmem>>, vector<1x1x16xf32>
      %368 = vector.shape_cast %367 : vector<1x1x16xf32> to vector<1x16xf32>
      %369 = vector.extract_strided_slice %368 {offsets = [0, 9], sizes = [1, 1], strides = [1, 1]} : vector<1x16xf32> to vector<1x1xf32>
      %c1_i32_374 = arith.constant 1 : i32
      %370 = arith.addi %352, %c1_i32_374 : i32
      %371 = arith.index_cast %370 : i32 to index
      %c0_375 = arith.constant 0 : index
      %c0_376 = arith.constant 0 : index
      %372 = vector.load %arg13[%371, %c0_375, %c0_376] : memref<51x4x750xf32, #tpu.memory_space<vmem>>, vector<1x4x750xf32>
      %373 = vector.shape_cast %372 : vector<1x4x750xf32> to vector<4x750xf32>
      %374 = vector.broadcast %369 : vector<1x1xf32> to vector<4x750xf32>
      %375 = arith.mulf %374, %373 : vector<4x750xf32>
      %376 = arith.addf %364, %375 : vector<4x750xf32>
      %c2_i32 = arith.constant 2 : i32
      %377 = arith.addi %352, %c2_i32 : i32
      %378 = arith.index_cast %377 : i32 to index
      %c0_377 = arith.constant 0 : index
      %c0_378 = arith.constant 0 : index
      %379 = vector.load %arg2[%378, %c0_377, %c0_378] : memref<51x1x16xf32, #tpu.memory_space<vmem>>, vector<1x1x16xf32>
      %380 = vector.shape_cast %379 : vector<1x1x16xf32> to vector<1x16xf32>
      %381 = vector.extract_strided_slice %380 {offsets = [0, 9], sizes = [1, 1], strides = [1, 1]} : vector<1x16xf32> to vector<1x1xf32>
      %c2_i32_379 = arith.constant 2 : i32
      %382 = arith.addi %352, %c2_i32_379 : i32
      %383 = arith.index_cast %382 : i32 to index
      %c0_380 = arith.constant 0 : index
      %c0_381 = arith.constant 0 : index
      %384 = vector.load %arg13[%383, %c0_380, %c0_381] : memref<51x4x750xf32, #tpu.memory_space<vmem>>, vector<1x4x750xf32>
      %385 = vector.shape_cast %384 : vector<1x4x750xf32> to vector<4x750xf32>
      %386 = vector.broadcast %381 : vector<1x1xf32> to vector<4x750xf32>
      %387 = arith.mulf %386, %385 : vector<4x750xf32>
      %388 = arith.addf %376, %387 : vector<4x750xf32>
      scf.yield %388 : vector<4x750xf32>
    }
    %c17_i32_267 = arith.constant 17 : i32
    %c36_268 = arith.constant 36 : index
    %c0_269 = arith.constant 0 : index
    %243 = vector.load %arg14[%c36_268, %c0_269] : memref<64x750xf32, #tpu.memory_space<vmem>>, vector<4x750xf32>
    tpu.vector_store %arg14[%c36_268, %c0_269], %242 {strides = array<i32>} : memref<64x750xf32, #tpu.memory_space<vmem>>, vector<4x750xf32>,
    %cst_270 = arith.constant 0.000000e+00 : f32
    %244 = vector.broadcast %cst_270 : f32 to vector<4x750xf32>
    %c0_i32_271 = arith.constant 0 : i32
    %c17_i32_272 = arith.constant 17 : i32
    %245 = arith.addi %c0_i32_271, %c17_i32_272 : i32
    %c1_i32_273 = arith.constant 1 : i32
    %246 = scf.for %arg16 = %c0_i32_271 to %245 step %c1_i32_273 iter_args(%arg17 = %244) -> (vector<4x750xf32>)  : i32 {
      %c3_i32 = arith.constant 3 : i32
      %352 = arith.muli %arg16, %c3_i32 : i32
      %c0_i32_365 = arith.constant 0 : i32
      %353 = arith.addi %352, %c0_i32_365 : i32
      %354 = arith.index_cast %353 : i32 to index
      %c0_366 = arith.constant 0 : index
      %c0_367 = arith.constant 0 : index
      %355 = vector.load %arg2[%354, %c0_366, %c0_367] : memref<51x1x16xf32, #tpu.memory_space<vmem>>, vector<1x1x16xf32>
      %356 = vector.shape_cast %355 : vector<1x1x16xf32> to vector<1x16xf32>
      %357 = vector.extract_strided_slice %356 {offsets = [0, 10], sizes = [1, 1], strides = [1, 1]} : vector<1x16xf32> to vector<1x1xf32>
      %c0_i32_368 = arith.constant 0 : i32
      %358 = arith.addi %352, %c0_i32_368 : i32
      %359 = arith.index_cast %358 : i32 to index
      %c0_369 = arith.constant 0 : index
      %c0_370 = arith.constant 0 : index
      %360 = vector.load %arg13[%359, %c0_369, %c0_370] : memref<51x4x750xf32, #tpu.memory_space<vmem>>, vector<1x4x750xf32>
      %361 = vector.shape_cast %360 : vector<1x4x750xf32> to vector<4x750xf32>
      %362 = vector.broadcast %357 : vector<1x1xf32> to vector<4x750xf32>
      %363 = arith.mulf %362, %361 : vector<4x750xf32>
      %364 = arith.addf %arg17, %363 : vector<4x750xf32>
      %c1_i32_371 = arith.constant 1 : i32
      %365 = arith.addi %352, %c1_i32_371 : i32
      %366 = arith.index_cast %365 : i32 to index
      %c0_372 = arith.constant 0 : index
      %c0_373 = arith.constant 0 : index
      %367 = vector.load %arg2[%366, %c0_372, %c0_373] : memref<51x1x16xf32, #tpu.memory_space<vmem>>, vector<1x1x16xf32>
      %368 = vector.shape_cast %367 : vector<1x1x16xf32> to vector<1x16xf32>
      %369 = vector.extract_strided_slice %368 {offsets = [0, 10], sizes = [1, 1], strides = [1, 1]} : vector<1x16xf32> to vector<1x1xf32>
      %c1_i32_374 = arith.constant 1 : i32
      %370 = arith.addi %352, %c1_i32_374 : i32
      %371 = arith.index_cast %370 : i32 to index
      %c0_375 = arith.constant 0 : index
      %c0_376 = arith.constant 0 : index
      %372 = vector.load %arg13[%371, %c0_375, %c0_376] : memref<51x4x750xf32, #tpu.memory_space<vmem>>, vector<1x4x750xf32>
      %373 = vector.shape_cast %372 : vector<1x4x750xf32> to vector<4x750xf32>
      %374 = vector.broadcast %369 : vector<1x1xf32> to vector<4x750xf32>
      %375 = arith.mulf %374, %373 : vector<4x750xf32>
      %376 = arith.addf %364, %375 : vector<4x750xf32>
      %c2_i32 = arith.constant 2 : i32
      %377 = arith.addi %352, %c2_i32 : i32
      %378 = arith.index_cast %377 : i32 to index
      %c0_377 = arith.constant 0 : index
      %c0_378 = arith.constant 0 : index
      %379 = vector.load %arg2[%378, %c0_377, %c0_378] : memref<51x1x16xf32, #tpu.memory_space<vmem>>, vector<1x1x16xf32>
      %380 = vector.shape_cast %379 : vector<1x1x16xf32> to vector<1x16xf32>
      %381 = vector.extract_strided_slice %380 {offsets = [0, 10], sizes = [1, 1], strides = [1, 1]} : vector<1x16xf32> to vector<1x1xf32>
      %c2_i32_379 = arith.constant 2 : i32
      %382 = arith.addi %352, %c2_i32_379 : i32
      %383 = arith.index_cast %382 : i32 to index
      %c0_380 = arith.constant 0 : index
      %c0_381 = arith.constant 0 : index
      %384 = vector.load %arg13[%383, %c0_380, %c0_381] : memref<51x4x750xf32, #tpu.memory_space<vmem>>, vector<1x4x750xf32>
      %385 = vector.shape_cast %384 : vector<1x4x750xf32> to vector<4x750xf32>
      %386 = vector.broadcast %381 : vector<1x1xf32> to vector<4x750xf32>
      %387 = arith.mulf %386, %385 : vector<4x750xf32>
      %388 = arith.addf %376, %387 : vector<4x750xf32>
      scf.yield %388 : vector<4x750xf32>
    }
    %c17_i32_274 = arith.constant 17 : i32
    %c40_275 = arith.constant 40 : index
    %c0_276 = arith.constant 0 : index
    %247 = vector.load %arg14[%c40_275, %c0_276] : memref<64x750xf32, #tpu.memory_space<vmem>>, vector<4x750xf32>
    tpu.vector_store %arg14[%c40_275, %c0_276], %246 {strides = array<i32>} : memref<64x750xf32, #tpu.memory_space<vmem>>, vector<4x750xf32>,
    %cst_277 = arith.constant 0.000000e+00 : f32
    %248 = vector.broadcast %cst_277 : f32 to vector<4x750xf32>
    %c0_i32_278 = arith.constant 0 : i32
    %c17_i32_279 = arith.constant 17 : i32
    %249 = arith.addi %c0_i32_278, %c17_i32_279 : i32
    %c1_i32_280 = arith.constant 1 : i32
    %250 = scf.for %arg16 = %c0_i32_278 to %249 step %c1_i32_280 iter_args(%arg17 = %248) -> (vector<4x750xf32>)  : i32 {
      %c3_i32 = arith.constant 3 : i32
      %352 = arith.muli %arg16, %c3_i32 : i32
      %c0_i32_365 = arith.constant 0 : i32
      %353 = arith.addi %352, %c0_i32_365 : i32
      %354 = arith.index_cast %353 : i32 to index
      %c0_366 = arith.constant 0 : index
      %c0_367 = arith.constant 0 : index
      %355 = vector.load %arg2[%354, %c0_366, %c0_367] : memref<51x1x16xf32, #tpu.memory_space<vmem>>, vector<1x1x16xf32>
      %356 = vector.shape_cast %355 : vector<1x1x16xf32> to vector<1x16xf32>
      %357 = vector.extract_strided_slice %356 {offsets = [0, 11], sizes = [1, 1], strides = [1, 1]} : vector<1x16xf32> to vector<1x1xf32>
      %c0_i32_368 = arith.constant 0 : i32
      %358 = arith.addi %352, %c0_i32_368 : i32
      %359 = arith.index_cast %358 : i32 to index
      %c0_369 = arith.constant 0 : index
      %c0_370 = arith.constant 0 : index
      %360 = vector.load %arg13[%359, %c0_369, %c0_370] : memref<51x4x750xf32, #tpu.memory_space<vmem>>, vector<1x4x750xf32>
      %361 = vector.shape_cast %360 : vector<1x4x750xf32> to vector<4x750xf32>
      %362 = vector.broadcast %357 : vector<1x1xf32> to vector<4x750xf32>
      %363 = arith.mulf %362, %361 : vector<4x750xf32>
      %364 = arith.addf %arg17, %363 : vector<4x750xf32>
      %c1_i32_371 = arith.constant 1 : i32
      %365 = arith.addi %352, %c1_i32_371 : i32
      %366 = arith.index_cast %365 : i32 to index
      %c0_372 = arith.constant 0 : index
      %c0_373 = arith.constant 0 : index
      %367 = vector.load %arg2[%366, %c0_372, %c0_373] : memref<51x1x16xf32, #tpu.memory_space<vmem>>, vector<1x1x16xf32>
      %368 = vector.shape_cast %367 : vector<1x1x16xf32> to vector<1x16xf32>
      %369 = vector.extract_strided_slice %368 {offsets = [0, 11], sizes = [1, 1], strides = [1, 1]} : vector<1x16xf32> to vector<1x1xf32>
      %c1_i32_374 = arith.constant 1 : i32
      %370 = arith.addi %352, %c1_i32_374 : i32
      %371 = arith.index_cast %370 : i32 to index
      %c0_375 = arith.constant 0 : index
      %c0_376 = arith.constant 0 : index
      %372 = vector.load %arg13[%371, %c0_375, %c0_376] : memref<51x4x750xf32, #tpu.memory_space<vmem>>, vector<1x4x750xf32>
      %373 = vector.shape_cast %372 : vector<1x4x750xf32> to vector<4x750xf32>
      %374 = vector.broadcast %369 : vector<1x1xf32> to vector<4x750xf32>
      %375 = arith.mulf %374, %373 : vector<4x750xf32>
      %376 = arith.addf %364, %375 : vector<4x750xf32>
      %c2_i32 = arith.constant 2 : i32
      %377 = arith.addi %352, %c2_i32 : i32
      %378 = arith.index_cast %377 : i32 to index
      %c0_377 = arith.constant 0 : index
      %c0_378 = arith.constant 0 : index
      %379 = vector.load %arg2[%378, %c0_377, %c0_378] : memref<51x1x16xf32, #tpu.memory_space<vmem>>, vector<1x1x16xf32>
      %380 = vector.shape_cast %379 : vector<1x1x16xf32> to vector<1x16xf32>
      %381 = vector.extract_strided_slice %380 {offsets = [0, 11], sizes = [1, 1], strides = [1, 1]} : vector<1x16xf32> to vector<1x1xf32>
      %c2_i32_379 = arith.constant 2 : i32
      %382 = arith.addi %352, %c2_i32_379 : i32
      %383 = arith.index_cast %382 : i32 to index
      %c0_380 = arith.constant 0 : index
      %c0_381 = arith.constant 0 : index
      %384 = vector.load %arg13[%383, %c0_380, %c0_381] : memref<51x4x750xf32, #tpu.memory_space<vmem>>, vector<1x4x750xf32>
      %385 = vector.shape_cast %384 : vector<1x4x750xf32> to vector<4x750xf32>
      %386 = vector.broadcast %381 : vector<1x1xf32> to vector<4x750xf32>
      %387 = arith.mulf %386, %385 : vector<4x750xf32>
      %388 = arith.addf %376, %387 : vector<4x750xf32>
      scf.yield %388 : vector<4x750xf32>
    }
    %c17_i32_281 = arith.constant 17 : i32
    %c44_282 = arith.constant 44 : index
    %c0_283 = arith.constant 0 : index
    %251 = vector.load %arg14[%c44_282, %c0_283] : memref<64x750xf32, #tpu.memory_space<vmem>>, vector<4x750xf32>
    tpu.vector_store %arg14[%c44_282, %c0_283], %250 {strides = array<i32>} : memref<64x750xf32, #tpu.memory_space<vmem>>, vector<4x750xf32>,
    %cst_284 = arith.constant 0.000000e+00 : f32
    %252 = vector.broadcast %cst_284 : f32 to vector<4x750xf32>
    %c0_i32_285 = arith.constant 0 : i32
    %c17_i32_286 = arith.constant 17 : i32
    %253 = arith.addi %c0_i32_285, %c17_i32_286 : i32
    %c1_i32_287 = arith.constant 1 : i32
    %254 = scf.for %arg16 = %c0_i32_285 to %253 step %c1_i32_287 iter_args(%arg17 = %252) -> (vector<4x750xf32>)  : i32 {
      %c3_i32 = arith.constant 3 : i32
      %352 = arith.muli %arg16, %c3_i32 : i32
      %c0_i32_365 = arith.constant 0 : i32
      %353 = arith.addi %352, %c0_i32_365 : i32
      %354 = arith.index_cast %353 : i32 to index
      %c0_366 = arith.constant 0 : index
      %c0_367 = arith.constant 0 : index
      %355 = vector.load %arg2[%354, %c0_366, %c0_367] : memref<51x1x16xf32, #tpu.memory_space<vmem>>, vector<1x1x16xf32>
      %356 = vector.shape_cast %355 : vector<1x1x16xf32> to vector<1x16xf32>
      %357 = vector.extract_strided_slice %356 {offsets = [0, 12], sizes = [1, 1], strides = [1, 1]} : vector<1x16xf32> to vector<1x1xf32>
      %c0_i32_368 = arith.constant 0 : i32
      %358 = arith.addi %352, %c0_i32_368 : i32
      %359 = arith.index_cast %358 : i32 to index
      %c0_369 = arith.constant 0 : index
      %c0_370 = arith.constant 0 : index
      %360 = vector.load %arg13[%359, %c0_369, %c0_370] : memref<51x4x750xf32, #tpu.memory_space<vmem>>, vector<1x4x750xf32>
      %361 = vector.shape_cast %360 : vector<1x4x750xf32> to vector<4x750xf32>
      %362 = vector.broadcast %357 : vector<1x1xf32> to vector<4x750xf32>
      %363 = arith.mulf %362, %361 : vector<4x750xf32>
      %364 = arith.addf %arg17, %363 : vector<4x750xf32>
      %c1_i32_371 = arith.constant 1 : i32
      %365 = arith.addi %352, %c1_i32_371 : i32
      %366 = arith.index_cast %365 : i32 to index
      %c0_372 = arith.constant 0 : index
      %c0_373 = arith.constant 0 : index
      %367 = vector.load %arg2[%366, %c0_372, %c0_373] : memref<51x1x16xf32, #tpu.memory_space<vmem>>, vector<1x1x16xf32>
      %368 = vector.shape_cast %367 : vector<1x1x16xf32> to vector<1x16xf32>
      %369 = vector.extract_strided_slice %368 {offsets = [0, 12], sizes = [1, 1], strides = [1, 1]} : vector<1x16xf32> to vector<1x1xf32>
      %c1_i32_374 = arith.constant 1 : i32
      %370 = arith.addi %352, %c1_i32_374 : i32
      %371 = arith.index_cast %370 : i32 to index
      %c0_375 = arith.constant 0 : index
      %c0_376 = arith.constant 0 : index
      %372 = vector.load %arg13[%371, %c0_375, %c0_376] : memref<51x4x750xf32, #tpu.memory_space<vmem>>, vector<1x4x750xf32>
      %373 = vector.shape_cast %372 : vector<1x4x750xf32> to vector<4x750xf32>
      %374 = vector.broadcast %369 : vector<1x1xf32> to vector<4x750xf32>
      %375 = arith.mulf %374, %373 : vector<4x750xf32>
      %376 = arith.addf %364, %375 : vector<4x750xf32>
      %c2_i32 = arith.constant 2 : i32
      %377 = arith.addi %352, %c2_i32 : i32
      %378 = arith.index_cast %377 : i32 to index
      %c0_377 = arith.constant 0 : index
      %c0_378 = arith.constant 0 : index
      %379 = vector.load %arg2[%378, %c0_377, %c0_378] : memref<51x1x16xf32, #tpu.memory_space<vmem>>, vector<1x1x16xf32>
      %380 = vector.shape_cast %379 : vector<1x1x16xf32> to vector<1x16xf32>
      %381 = vector.extract_strided_slice %380 {offsets = [0, 12], sizes = [1, 1], strides = [1, 1]} : vector<1x16xf32> to vector<1x1xf32>
      %c2_i32_379 = arith.constant 2 : i32
      %382 = arith.addi %352, %c2_i32_379 : i32
      %383 = arith.index_cast %382 : i32 to index
      %c0_380 = arith.constant 0 : index
      %c0_381 = arith.constant 0 : index
      %384 = vector.load %arg13[%383, %c0_380, %c0_381] : memref<51x4x750xf32, #tpu.memory_space<vmem>>, vector<1x4x750xf32>
      %385 = vector.shape_cast %384 : vector<1x4x750xf32> to vector<4x750xf32>
      %386 = vector.broadcast %381 : vector<1x1xf32> to vector<4x750xf32>
      %387 = arith.mulf %386, %385 : vector<4x750xf32>
      %388 = arith.addf %376, %387 : vector<4x750xf32>
      scf.yield %388 : vector<4x750xf32>
    }
    %c17_i32_288 = arith.constant 17 : i32
    %c48_289 = arith.constant 48 : index
    %c0_290 = arith.constant 0 : index
    %255 = vector.load %arg14[%c48_289, %c0_290] : memref<64x750xf32, #tpu.memory_space<vmem>>, vector<4x750xf32>
    tpu.vector_store %arg14[%c48_289, %c0_290], %254 {strides = array<i32>} : memref<64x750xf32, #tpu.memory_space<vmem>>, vector<4x750xf32>,
    %cst_291 = arith.constant 0.000000e+00 : f32
    %256 = vector.broadcast %cst_291 : f32 to vector<4x750xf32>
    %c0_i32_292 = arith.constant 0 : i32
    %c17_i32_293 = arith.constant 17 : i32
    %257 = arith.addi %c0_i32_292, %c17_i32_293 : i32
    %c1_i32_294 = arith.constant 1 : i32
    %258 = scf.for %arg16 = %c0_i32_292 to %257 step %c1_i32_294 iter_args(%arg17 = %256) -> (vector<4x750xf32>)  : i32 {
      %c3_i32 = arith.constant 3 : i32
      %352 = arith.muli %arg16, %c3_i32 : i32
      %c0_i32_365 = arith.constant 0 : i32
      %353 = arith.addi %352, %c0_i32_365 : i32
      %354 = arith.index_cast %353 : i32 to index
      %c0_366 = arith.constant 0 : index
      %c0_367 = arith.constant 0 : index
      %355 = vector.load %arg2[%354, %c0_366, %c0_367] : memref<51x1x16xf32, #tpu.memory_space<vmem>>, vector<1x1x16xf32>
      %356 = vector.shape_cast %355 : vector<1x1x16xf32> to vector<1x16xf32>
      %357 = vector.extract_strided_slice %356 {offsets = [0, 13], sizes = [1, 1], strides = [1, 1]} : vector<1x16xf32> to vector<1x1xf32>
      %c0_i32_368 = arith.constant 0 : i32
      %358 = arith.addi %352, %c0_i32_368 : i32
      %359 = arith.index_cast %358 : i32 to index
      %c0_369 = arith.constant 0 : index
      %c0_370 = arith.constant 0 : index
      %360 = vector.load %arg13[%359, %c0_369, %c0_370] : memref<51x4x750xf32, #tpu.memory_space<vmem>>, vector<1x4x750xf32>
      %361 = vector.shape_cast %360 : vector<1x4x750xf32> to vector<4x750xf32>
      %362 = vector.broadcast %357 : vector<1x1xf32> to vector<4x750xf32>
      %363 = arith.mulf %362, %361 : vector<4x750xf32>
      %364 = arith.addf %arg17, %363 : vector<4x750xf32>
      %c1_i32_371 = arith.constant 1 : i32
      %365 = arith.addi %352, %c1_i32_371 : i32
      %366 = arith.index_cast %365 : i32 to index
      %c0_372 = arith.constant 0 : index
      %c0_373 = arith.constant 0 : index
      %367 = vector.load %arg2[%366, %c0_372, %c0_373] : memref<51x1x16xf32, #tpu.memory_space<vmem>>, vector<1x1x16xf32>
      %368 = vector.shape_cast %367 : vector<1x1x16xf32> to vector<1x16xf32>
      %369 = vector.extract_strided_slice %368 {offsets = [0, 13], sizes = [1, 1], strides = [1, 1]} : vector<1x16xf32> to vector<1x1xf32>
      %c1_i32_374 = arith.constant 1 : i32
      %370 = arith.addi %352, %c1_i32_374 : i32
      %371 = arith.index_cast %370 : i32 to index
      %c0_375 = arith.constant 0 : index
      %c0_376 = arith.constant 0 : index
      %372 = vector.load %arg13[%371, %c0_375, %c0_376] : memref<51x4x750xf32, #tpu.memory_space<vmem>>, vector<1x4x750xf32>
      %373 = vector.shape_cast %372 : vector<1x4x750xf32> to vector<4x750xf32>
      %374 = vector.broadcast %369 : vector<1x1xf32> to vector<4x750xf32>
      %375 = arith.mulf %374, %373 : vector<4x750xf32>
      %376 = arith.addf %364, %375 : vector<4x750xf32>
      %c2_i32 = arith.constant 2 : i32
      %377 = arith.addi %352, %c2_i32 : i32
      %378 = arith.index_cast %377 : i32 to index
      %c0_377 = arith.constant 0 : index
      %c0_378 = arith.constant 0 : index
      %379 = vector.load %arg2[%378, %c0_377, %c0_378] : memref<51x1x16xf32, #tpu.memory_space<vmem>>, vector<1x1x16xf32>
      %380 = vector.shape_cast %379 : vector<1x1x16xf32> to vector<1x16xf32>
      %381 = vector.extract_strided_slice %380 {offsets = [0, 13], sizes = [1, 1], strides = [1, 1]} : vector<1x16xf32> to vector<1x1xf32>
      %c2_i32_379 = arith.constant 2 : i32
      %382 = arith.addi %352, %c2_i32_379 : i32
      %383 = arith.index_cast %382 : i32 to index
      %c0_380 = arith.constant 0 : index
      %c0_381 = arith.constant 0 : index
      %384 = vector.load %arg13[%383, %c0_380, %c0_381] : memref<51x4x750xf32, #tpu.memory_space<vmem>>, vector<1x4x750xf32>
      %385 = vector.shape_cast %384 : vector<1x4x750xf32> to vector<4x750xf32>
      %386 = vector.broadcast %381 : vector<1x1xf32> to vector<4x750xf32>
      %387 = arith.mulf %386, %385 : vector<4x750xf32>
      %388 = arith.addf %376, %387 : vector<4x750xf32>
      scf.yield %388 : vector<4x750xf32>
    }
    %c17_i32_295 = arith.constant 17 : i32
    %c52 = arith.constant 52 : index
    %c0_296 = arith.constant 0 : index
    %259 = vector.load %arg14[%c52, %c0_296] : memref<64x750xf32, #tpu.memory_space<vmem>>, vector<4x750xf32>
    tpu.vector_store %arg14[%c52, %c0_296], %258 {strides = array<i32>} : memref<64x750xf32, #tpu.memory_space<vmem>>, vector<4x750xf32>,
    %cst_297 = arith.constant 0.000000e+00 : f32
    %260 = vector.broadcast %cst_297 : f32 to vector<4x750xf32>
    %c0_i32_298 = arith.constant 0 : i32
    %c17_i32_299 = arith.constant 17 : i32
    %261 = arith.addi %c0_i32_298, %c17_i32_299 : i32
    %c1_i32_300 = arith.constant 1 : i32
    %262 = scf.for %arg16 = %c0_i32_298 to %261 step %c1_i32_300 iter_args(%arg17 = %260) -> (vector<4x750xf32>)  : i32 {
      %c3_i32 = arith.constant 3 : i32
      %352 = arith.muli %arg16, %c3_i32 : i32
      %c0_i32_365 = arith.constant 0 : i32
      %353 = arith.addi %352, %c0_i32_365 : i32
      %354 = arith.index_cast %353 : i32 to index
      %c0_366 = arith.constant 0 : index
      %c0_367 = arith.constant 0 : index
      %355 = vector.load %arg2[%354, %c0_366, %c0_367] : memref<51x1x16xf32, #tpu.memory_space<vmem>>, vector<1x1x16xf32>
      %356 = vector.shape_cast %355 : vector<1x1x16xf32> to vector<1x16xf32>
      %357 = vector.extract_strided_slice %356 {offsets = [0, 14], sizes = [1, 1], strides = [1, 1]} : vector<1x16xf32> to vector<1x1xf32>
      %c0_i32_368 = arith.constant 0 : i32
      %358 = arith.addi %352, %c0_i32_368 : i32
      %359 = arith.index_cast %358 : i32 to index
      %c0_369 = arith.constant 0 : index
      %c0_370 = arith.constant 0 : index
      %360 = vector.load %arg13[%359, %c0_369, %c0_370] : memref<51x4x750xf32, #tpu.memory_space<vmem>>, vector<1x4x750xf32>
      %361 = vector.shape_cast %360 : vector<1x4x750xf32> to vector<4x750xf32>
      %362 = vector.broadcast %357 : vector<1x1xf32> to vector<4x750xf32>
      %363 = arith.mulf %362, %361 : vector<4x750xf32>
      %364 = arith.addf %arg17, %363 : vector<4x750xf32>
      %c1_i32_371 = arith.constant 1 : i32
      %365 = arith.addi %352, %c1_i32_371 : i32
      %366 = arith.index_cast %365 : i32 to index
      %c0_372 = arith.constant 0 : index
      %c0_373 = arith.constant 0 : index
      %367 = vector.load %arg2[%366, %c0_372, %c0_373] : memref<51x1x16xf32, #tpu.memory_space<vmem>>, vector<1x1x16xf32>
      %368 = vector.shape_cast %367 : vector<1x1x16xf32> to vector<1x16xf32>
      %369 = vector.extract_strided_slice %368 {offsets = [0, 14], sizes = [1, 1], strides = [1, 1]} : vector<1x16xf32> to vector<1x1xf32>
      %c1_i32_374 = arith.constant 1 : i32
      %370 = arith.addi %352, %c1_i32_374 : i32
      %371 = arith.index_cast %370 : i32 to index
      %c0_375 = arith.constant 0 : index
      %c0_376 = arith.constant 0 : index
      %372 = vector.load %arg13[%371, %c0_375, %c0_376] : memref<51x4x750xf32, #tpu.memory_space<vmem>>, vector<1x4x750xf32>
      %373 = vector.shape_cast %372 : vector<1x4x750xf32> to vector<4x750xf32>
      %374 = vector.broadcast %369 : vector<1x1xf32> to vector<4x750xf32>
      %375 = arith.mulf %374, %373 : vector<4x750xf32>
      %376 = arith.addf %364, %375 : vector<4x750xf32>
      %c2_i32 = arith.constant 2 : i32
      %377 = arith.addi %352, %c2_i32 : i32
      %378 = arith.index_cast %377 : i32 to index
      %c0_377 = arith.constant 0 : index
      %c0_378 = arith.constant 0 : index
      %379 = vector.load %arg2[%378, %c0_377, %c0_378] : memref<51x1x16xf32, #tpu.memory_space<vmem>>, vector<1x1x16xf32>
      %380 = vector.shape_cast %379 : vector<1x1x16xf32> to vector<1x16xf32>
      %381 = vector.extract_strided_slice %380 {offsets = [0, 14], sizes = [1, 1], strides = [1, 1]} : vector<1x16xf32> to vector<1x1xf32>
      %c2_i32_379 = arith.constant 2 : i32
      %382 = arith.addi %352, %c2_i32_379 : i32
      %383 = arith.index_cast %382 : i32 to index
      %c0_380 = arith.constant 0 : index
      %c0_381 = arith.constant 0 : index
      %384 = vector.load %arg13[%383, %c0_380, %c0_381] : memref<51x4x750xf32, #tpu.memory_space<vmem>>, vector<1x4x750xf32>
      %385 = vector.shape_cast %384 : vector<1x4x750xf32> to vector<4x750xf32>
      %386 = vector.broadcast %381 : vector<1x1xf32> to vector<4x750xf32>
      %387 = arith.mulf %386, %385 : vector<4x750xf32>
      %388 = arith.addf %376, %387 : vector<4x750xf32>
      scf.yield %388 : vector<4x750xf32>
    }
    %c17_i32_301 = arith.constant 17 : i32
    %c56 = arith.constant 56 : index
    %c0_302 = arith.constant 0 : index
    %263 = vector.load %arg14[%c56, %c0_302] : memref<64x750xf32, #tpu.memory_space<vmem>>, vector<4x750xf32>
    tpu.vector_store %arg14[%c56, %c0_302], %262 {strides = array<i32>} : memref<64x750xf32, #tpu.memory_space<vmem>>, vector<4x750xf32>,
    %cst_303 = arith.constant 0.000000e+00 : f32
    %264 = vector.broadcast %cst_303 : f32 to vector<4x750xf32>
    %c0_i32_304 = arith.constant 0 : i32
    %c17_i32_305 = arith.constant 17 : i32
    %265 = arith.addi %c0_i32_304, %c17_i32_305 : i32
    %c1_i32_306 = arith.constant 1 : i32
    %266 = scf.for %arg16 = %c0_i32_304 to %265 step %c1_i32_306 iter_args(%arg17 = %264) -> (vector<4x750xf32>)  : i32 {
      %c3_i32 = arith.constant 3 : i32
      %352 = arith.muli %arg16, %c3_i32 : i32
      %c0_i32_365 = arith.constant 0 : i32
      %353 = arith.addi %352, %c0_i32_365 : i32
      %354 = arith.index_cast %353 : i32 to index
      %c0_366 = arith.constant 0 : index
      %c0_367 = arith.constant 0 : index
      %355 = vector.load %arg2[%354, %c0_366, %c0_367] : memref<51x1x16xf32, #tpu.memory_space<vmem>>, vector<1x1x16xf32>
      %356 = vector.shape_cast %355 : vector<1x1x16xf32> to vector<1x16xf32>
      %357 = vector.extract_strided_slice %356 {offsets = [0, 15], sizes = [1, 1], strides = [1, 1]} : vector<1x16xf32> to vector<1x1xf32>
      %c0_i32_368 = arith.constant 0 : i32
      %358 = arith.addi %352, %c0_i32_368 : i32
      %359 = arith.index_cast %358 : i32 to index
      %c0_369 = arith.constant 0 : index
      %c0_370 = arith.constant 0 : index
      %360 = vector.load %arg13[%359, %c0_369, %c0_370] : memref<51x4x750xf32, #tpu.memory_space<vmem>>, vector<1x4x750xf32>
      %361 = vector.shape_cast %360 : vector<1x4x750xf32> to vector<4x750xf32>
      %362 = vector.broadcast %357 : vector<1x1xf32> to vector<4x750xf32>
      %363 = arith.mulf %362, %361 : vector<4x750xf32>
      %364 = arith.addf %arg17, %363 : vector<4x750xf32>
      %c1_i32_371 = arith.constant 1 : i32
      %365 = arith.addi %352, %c1_i32_371 : i32
      %366 = arith.index_cast %365 : i32 to index
      %c0_372 = arith.constant 0 : index
      %c0_373 = arith.constant 0 : index
      %367 = vector.load %arg2[%366, %c0_372, %c0_373] : memref<51x1x16xf32, #tpu.memory_space<vmem>>, vector<1x1x16xf32>
      %368 = vector.shape_cast %367 : vector<1x1x16xf32> to vector<1x16xf32>
      %369 = vector.extract_strided_slice %368 {offsets = [0, 15], sizes = [1, 1], strides = [1, 1]} : vector<1x16xf32> to vector<1x1xf32>
      %c1_i32_374 = arith.constant 1 : i32
      %370 = arith.addi %352, %c1_i32_374 : i32
      %371 = arith.index_cast %370 : i32 to index
      %c0_375 = arith.constant 0 : index
      %c0_376 = arith.constant 0 : index
      %372 = vector.load %arg13[%371, %c0_375, %c0_376] : memref<51x4x750xf32, #tpu.memory_space<vmem>>, vector<1x4x750xf32>
      %373 = vector.shape_cast %372 : vector<1x4x750xf32> to vector<4x750xf32>
      %374 = vector.broadcast %369 : vector<1x1xf32> to vector<4x750xf32>
      %375 = arith.mulf %374, %373 : vector<4x750xf32>
      %376 = arith.addf %364, %375 : vector<4x750xf32>
      %c2_i32 = arith.constant 2 : i32
      %377 = arith.addi %352, %c2_i32 : i32
      %378 = arith.index_cast %377 : i32 to index
      %c0_377 = arith.constant 0 : index
      %c0_378 = arith.constant 0 : index
      %379 = vector.load %arg2[%378, %c0_377, %c0_378] : memref<51x1x16xf32, #tpu.memory_space<vmem>>, vector<1x1x16xf32>
      %380 = vector.shape_cast %379 : vector<1x1x16xf32> to vector<1x16xf32>
      %381 = vector.extract_strided_slice %380 {offsets = [0, 15], sizes = [1, 1], strides = [1, 1]} : vector<1x16xf32> to vector<1x1xf32>
      %c2_i32_379 = arith.constant 2 : i32
      %382 = arith.addi %352, %c2_i32_379 : i32
      %383 = arith.index_cast %382 : i32 to index
      %c0_380 = arith.constant 0 : index
      %c0_381 = arith.constant 0 : index
      %384 = vector.load %arg13[%383, %c0_380, %c0_381] : memref<51x4x750xf32, #tpu.memory_space<vmem>>, vector<1x4x750xf32>
      %385 = vector.shape_cast %384 : vector<1x4x750xf32> to vector<4x750xf32>
      %386 = vector.broadcast %381 : vector<1x1xf32> to vector<4x750xf32>
      %387 = arith.mulf %386, %385 : vector<4x750xf32>
      %388 = arith.addf %376, %387 : vector<4x750xf32>
      scf.yield %388 : vector<4x750xf32>
    }
    %c17_i32_307 = arith.constant 17 : i32
    %c60 = arith.constant 60 : index
    %c0_308 = arith.constant 0 : index
    %267 = vector.load %arg14[%c60, %c0_308] : memref<64x750xf32, #tpu.memory_space<vmem>>, vector<4x750xf32>
    tpu.vector_store %arg14[%c60, %c0_308], %266 {strides = array<i32>} : memref<64x750xf32, #tpu.memory_space<vmem>>, vector<4x750xf32>,
    %c0_309 = arith.constant 0 : index
    %c0_310 = arith.constant 0 : index
    %268 = vector.load %arg14[%c0_309, %c0_310] : memref<64x750xf32, #tpu.memory_space<vmem>>, vector<64x750xf32>
    %269 = arith.truncf %268 : vector<64x750xf32> to vector<64x750xbf16>
    %c0_311 = arith.constant 0 : index
    %c0_312 = arith.constant 0 : index
    %270 = vector.load %arg3[%c0_311, %c0_312] : memref<64x64xbf16, #tpu.memory_space<vmem>>, vector<64x64xbf16>
    %cst_313 = arith.constant dense<0.000000e+00> : vector<64x750xf32>
    %271 = tpu.matmul %270, %269, %cst_313 {dimension_numbers = #tpu.dot_dimension_numbers<[1], [0], [0], [1], [0, 0, 1, 1], [], []>} : vector<64x64xbf16>, vector<64x750xbf16>, vector<64x750xf32> -> vector<64x750xf32>
    %c0_314 = arith.constant 0 : index
    %c0_315 = arith.constant 0 : index
    %272 = vector.load %arg4[%c0_314, %c0_315] : memref<64x1xf32, #tpu.memory_space<vmem>>, vector<64x1xf32>
    %273 = vector.broadcast %272 : vector<64x1xf32> to vector<64x750xf32>
    %274 = arith.addf %271, %273 : vector<64x750xf32>
    %cst_316 = arith.constant 0.000000e+00 : f32
    %275 = vector.broadcast %cst_316 : f32 to vector<64x750xf32>
    %276 = arith.cmpf ogt, %274, %275 : vector<64x750xf32>
    %cst_317 = arith.constant 0.000000e+00 : f32
    %277 = vector.broadcast %cst_317 : f32 to vector<64x750xf32>
    %278 = arith.minimumf %274, %277 : vector<64x750xf32>
    %279 = math.exp %278 : vector<64x750xf32>
    %cst_318 = arith.constant 1.000000e+00 : f32
    %280 = vector.broadcast %cst_318 : f32 to vector<64x750xf32>
    %281 = arith.subf %279, %280 : vector<64x750xf32>
    %282 = arith.select %276, %274, %281 : vector<64x750xi1>, vector<64x750xf32>
    %283 = arith.truncf %282 : vector<64x750xf32> to vector<64x750xbf16>
    %c0_319 = arith.constant 0 : index
    %c0_320 = arith.constant 0 : index
    %284 = vector.load %arg7[%c0_319, %c0_320] : memref<750x187xbf16, #tpu.memory_space<vmem>>, vector<750x187xbf16>
    %cst_321 = arith.constant dense<0.000000e+00> : vector<64x187xf32>
    %285 = tpu.matmul %283, %284, %cst_321 {dimension_numbers = #tpu.dot_dimension_numbers<[1], [0], [0], [1], [0, 0, 1, 1], [], []>} : vector<64x750xbf16>, vector<750x187xbf16>, vector<64x187xf32> -> vector<64x187xf32>
    %cst_322 = arith.constant 0.000000e+00 : f32
    %286 = vector.broadcast %cst_322 : f32 to vector<64x7xf32>
    %287 = tpu.concatenate %286, %285, %286 in 1 : vector<64x7xf32>, vector<64x187xf32>, vector<64x7xf32> -> vector<64x201xf32>
    %288 = arith.truncf %287 : vector<64x201xf32> to vector<64x201xbf16>
    %289 = vector.extract_strided_slice %288 {offsets = [0, 0], sizes = [64, 187], strides = [1, 1]} : vector<64x201xbf16> to vector<64x187xbf16>
    %c0_323 = arith.constant 0 : index
    %c0_324 = arith.constant 0 : index
    %290 = vector.load %arg15[%c0_323, %c0_324] : memref<960x187xbf16, #tpu.memory_space<vmem>>, vector<64x187xbf16>
    tpu.vector_store %arg15[%c0_323, %c0_324], %289 {strides = array<i32>} : memref<960x187xbf16, #tpu.memory_space<vmem>>, vector<64x187xbf16>,
    %291 = vector.extract_strided_slice %288 {offsets = [0, 1], sizes = [64, 187], strides = [1, 1]} : vector<64x201xbf16> to vector<64x187xbf16>
    %c64 = arith.constant 64 : index
    %c0_325 = arith.constant 0 : index
    %292 = vector.load %arg15[%c64, %c0_325] : memref<960x187xbf16, #tpu.memory_space<vmem>>, vector<64x187xbf16>
    tpu.vector_store %arg15[%c64, %c0_325], %291 {strides = array<i32>} : memref<960x187xbf16, #tpu.memory_space<vmem>>, vector<64x187xbf16>,
    %293 = vector.extract_strided_slice %288 {offsets = [0, 2], sizes = [64, 187], strides = [1, 1]} : vector<64x201xbf16> to vector<64x187xbf16>
    %c128 = arith.constant 128 : index
    %c0_326 = arith.constant 0 : index
    %294 = vector.load %arg15[%c128, %c0_326] : memref<960x187xbf16, #tpu.memory_space<vmem>>, vector<64x187xbf16>
    tpu.vector_store %arg15[%c128, %c0_326], %293 {strides = array<i32>} : memref<960x187xbf16, #tpu.memory_space<vmem>>, vector<64x187xbf16>,
    %295 = vector.extract_strided_slice %288 {offsets = [0, 3], sizes = [64, 187], strides = [1, 1]} : vector<64x201xbf16> to vector<64x187xbf16>
    %c192 = arith.constant 192 : index
    %c0_327 = arith.constant 0 : index
    %296 = vector.load %arg15[%c192, %c0_327] : memref<960x187xbf16, #tpu.memory_space<vmem>>, vector<64x187xbf16>
    tpu.vector_store %arg15[%c192, %c0_327], %295 {strides = array<i32>} : memref<960x187xbf16, #tpu.memory_space<vmem>>, vector<64x187xbf16>,
    %297 = vector.extract_strided_slice %288 {offsets = [0, 4], sizes = [64, 187], strides = [1, 1]} : vector<64x201xbf16> to vector<64x187xbf16>
    %c256 = arith.constant 256 : index
    %c0_328 = arith.constant 0 : index
    %298 = vector.load %arg15[%c256, %c0_328] : memref<960x187xbf16, #tpu.memory_space<vmem>>, vector<64x187xbf16>
    tpu.vector_store %arg15[%c256, %c0_328], %297 {strides = array<i32>} : memref<960x187xbf16, #tpu.memory_space<vmem>>, vector<64x187xbf16>,
    %299 = vector.extract_strided_slice %288 {offsets = [0, 5], sizes = [64, 187], strides = [1, 1]} : vector<64x201xbf16> to vector<64x187xbf16>
    %c320 = arith.constant 320 : index
    %c0_329 = arith.constant 0 : index
    %300 = vector.load %arg15[%c320, %c0_329] : memref<960x187xbf16, #tpu.memory_space<vmem>>, vector<64x187xbf16>
    tpu.vector_store %arg15[%c320, %c0_329], %299 {strides = array<i32>} : memref<960x187xbf16, #tpu.memory_space<vmem>>, vector<64x187xbf16>,
    %301 = vector.extract_strided_slice %288 {offsets = [0, 6], sizes = [64, 187], strides = [1, 1]} : vector<64x201xbf16> to vector<64x187xbf16>
    %c384 = arith.constant 384 : index
    %c0_330 = arith.constant 0 : index
    %302 = vector.load %arg15[%c384, %c0_330] : memref<960x187xbf16, #tpu.memory_space<vmem>>, vector<64x187xbf16>
    tpu.vector_store %arg15[%c384, %c0_330], %301 {strides = array<i32>} : memref<960x187xbf16, #tpu.memory_space<vmem>>, vector<64x187xbf16>,
    %303 = vector.extract_strided_slice %288 {offsets = [0, 7], sizes = [64, 187], strides = [1, 1]} : vector<64x201xbf16> to vector<64x187xbf16>
    %c448 = arith.constant 448 : index
    %c0_331 = arith.constant 0 : index
    %304 = vector.load %arg15[%c448, %c0_331] : memref<960x187xbf16, #tpu.memory_space<vmem>>, vector<64x187xbf16>
    tpu.vector_store %arg15[%c448, %c0_331], %303 {strides = array<i32>} : memref<960x187xbf16, #tpu.memory_space<vmem>>, vector<64x187xbf16>,
    %305 = vector.extract_strided_slice %288 {offsets = [0, 8], sizes = [64, 187], strides = [1, 1]} : vector<64x201xbf16> to vector<64x187xbf16>
    %c512 = arith.constant 512 : index
    %c0_332 = arith.constant 0 : index
    %306 = vector.load %arg15[%c512, %c0_332] : memref<960x187xbf16, #tpu.memory_space<vmem>>, vector<64x187xbf16>
    tpu.vector_store %arg15[%c512, %c0_332], %305 {strides = array<i32>} : memref<960x187xbf16, #tpu.memory_space<vmem>>, vector<64x187xbf16>,
    %307 = vector.extract_strided_slice %288 {offsets = [0, 9], sizes = [64, 187], strides = [1, 1]} : vector<64x201xbf16> to vector<64x187xbf16>
    %c576 = arith.constant 576 : index
    %c0_333 = arith.constant 0 : index
    %308 = vector.load %arg15[%c576, %c0_333] : memref<960x187xbf16, #tpu.memory_space<vmem>>, vector<64x187xbf16>
    tpu.vector_store %arg15[%c576, %c0_333], %307 {strides = array<i32>} : memref<960x187xbf16, #tpu.memory_space<vmem>>, vector<64x187xbf16>,
    %309 = vector.extract_strided_slice %288 {offsets = [0, 10], sizes = [64, 187], strides = [1, 1]} : vector<64x201xbf16> to vector<64x187xbf16>
    %c640 = arith.constant 640 : index
    %c0_334 = arith.constant 0 : index
    %310 = vector.load %arg15[%c640, %c0_334] : memref<960x187xbf16, #tpu.memory_space<vmem>>, vector<64x187xbf16>
    tpu.vector_store %arg15[%c640, %c0_334], %309 {strides = array<i32>} : memref<960x187xbf16, #tpu.memory_space<vmem>>, vector<64x187xbf16>,
    %311 = vector.extract_strided_slice %288 {offsets = [0, 11], sizes = [64, 187], strides = [1, 1]} : vector<64x201xbf16> to vector<64x187xbf16>
    %c704 = arith.constant 704 : index
    %c0_335 = arith.constant 0 : index
    %312 = vector.load %arg15[%c704, %c0_335] : memref<960x187xbf16, #tpu.memory_space<vmem>>, vector<64x187xbf16>
    tpu.vector_store %arg15[%c704, %c0_335], %311 {strides = array<i32>} : memref<960x187xbf16, #tpu.memory_space<vmem>>, vector<64x187xbf16>,
    %313 = vector.extract_strided_slice %288 {offsets = [0, 12], sizes = [64, 187], strides = [1, 1]} : vector<64x201xbf16> to vector<64x187xbf16>
    %c768 = arith.constant 768 : index
    %c0_336 = arith.constant 0 : index
    %314 = vector.load %arg15[%c768, %c0_336] : memref<960x187xbf16, #tpu.memory_space<vmem>>, vector<64x187xbf16>
    tpu.vector_store %arg15[%c768, %c0_336], %313 {strides = array<i32>} : memref<960x187xbf16, #tpu.memory_space<vmem>>, vector<64x187xbf16>,
    %315 = vector.extract_strided_slice %288 {offsets = [0, 13], sizes = [64, 187], strides = [1, 1]} : vector<64x201xbf16> to vector<64x187xbf16>
    %c832 = arith.constant 832 : index
    %c0_337 = arith.constant 0 : index
    %316 = vector.load %arg15[%c832, %c0_337] : memref<960x187xbf16, #tpu.memory_space<vmem>>, vector<64x187xbf16>
    tpu.vector_store %arg15[%c832, %c0_337], %315 {strides = array<i32>} : memref<960x187xbf16, #tpu.memory_space<vmem>>, vector<64x187xbf16>,
    %317 = vector.extract_strided_slice %288 {offsets = [0, 14], sizes = [64, 187], strides = [1, 1]} : vector<64x201xbf16> to vector<64x187xbf16>
    %c896 = arith.constant 896 : index
    %c0_338 = arith.constant 0 : index
    %318 = vector.load %arg15[%c896, %c0_338] : memref<960x187xbf16, #tpu.memory_space<vmem>>, vector<64x187xbf16>
    tpu.vector_store %arg15[%c896, %c0_338], %317 {strides = array<i32>} : memref<960x187xbf16, #tpu.memory_space<vmem>>, vector<64x187xbf16>,
    %c0_339 = arith.constant 0 : index
    %c0_340 = arith.constant 0 : index
    %319 = vector.load %arg5[%c0_339, %c0_340] : memref<64x960xbf16, #tpu.memory_space<vmem>>, vector<64x960xbf16>
    %c0_341 = arith.constant 0 : index
    %c0_342 = arith.constant 0 : index
    %320 = vector.load %arg15[%c0_341, %c0_342] : memref<960x187xbf16, #tpu.memory_space<vmem>>, vector<960x187xbf16>
    %cst_343 = arith.constant dense<0.000000e+00> : vector<64x187xf32>
    %321 = tpu.matmul %319, %320, %cst_343 {dimension_numbers = #tpu.dot_dimension_numbers<[1], [0], [0], [1], [0, 0, 1, 1], [], []>} : vector<64x960xbf16>, vector<960x187xbf16>, vector<64x187xf32> -> vector<64x187xf32>
    %c0_344 = arith.constant 0 : index
    %c0_345 = arith.constant 0 : index
    %322 = vector.load %arg6[%c0_344, %c0_345] : memref<64x1xf32, #tpu.memory_space<vmem>>, vector<64x1xf32>
    %323 = vector.broadcast %322 : vector<64x1xf32> to vector<64x187xf32>
    %324 = arith.addf %321, %323 : vector<64x187xf32>
    %cst_346 = arith.constant 0.000000e+00 : f32
    %325 = vector.broadcast %cst_346 : f32 to vector<64x187xf32>
    %326 = arith.cmpf ogt, %324, %325 : vector<64x187xf32>
    %cst_347 = arith.constant 0.000000e+00 : f32
    %327 = vector.broadcast %cst_347 : f32 to vector<64x187xf32>
    %328 = arith.minimumf %324, %327 : vector<64x187xf32>
    %329 = math.exp %328 : vector<64x187xf32>
    %cst_348 = arith.constant 1.000000e+00 : f32
    %330 = vector.broadcast %cst_348 : f32 to vector<64x187xf32>
    %331 = arith.subf %329, %330 : vector<64x187xf32>
    %332 = arith.select %326, %324, %331 : vector<64x187xi1>, vector<64x187xf32>
    %333 = arith.truncf %332 : vector<64x187xf32> to vector<64x187xbf16>
    %c0_349 = arith.constant 0 : index
    %c0_350 = arith.constant 0 : index
    %334 = vector.load %arg8[%c0_349, %c0_350] : memref<187x23xbf16, #tpu.memory_space<vmem>>, vector<187x23xbf16>
    %cst_351 = arith.constant dense<0.000000e+00> : vector<64x23xf32>
    %335 = tpu.matmul %333, %334, %cst_351 {dimension_numbers = #tpu.dot_dimension_numbers<[1], [0], [0], [1], [0, 0, 1, 1], [], []>} : vector<64x187xbf16>, vector<187x23xbf16>, vector<64x23xf32> -> vector<64x23xf32>
    %c0_352 = arith.constant 0 : index
    %c0_353 = arith.constant 0 : index
    %336 = vector.load %arg9[%c0_352, %c0_353] : memref<128x23xf32, #tpu.memory_space<vmem>>, vector<64x23xf32>
    %337 = arith.mulf %335, %336 : vector<64x23xf32>
    %cst_354 = arith.constant dense<0.000000e+00> : vector<64xf32>
    %338 = vector.multi_reduction <add>, %337, %cst_354 [1] : vector<64x23xf32> to vector<64xf32>
    %339 = vector.shape_cast %338 : vector<64xf32> to vector<64x1xf32>
    %c64_355 = arith.constant 64 : index
    %c0_356 = arith.constant 0 : index
    %340 = vector.load %arg9[%c64_355, %c0_356] : memref<128x23xf32, #tpu.memory_space<vmem>>, vector<64x23xf32>
    %341 = arith.mulf %335, %340 : vector<64x23xf32>
    %cst_357 = arith.constant dense<0.000000e+00> : vector<64xf32>
    %342 = vector.multi_reduction <add>, %341, %cst_357 [1] : vector<64x23xf32> to vector<64xf32>
    %343 = vector.shape_cast %342 : vector<64xf32> to vector<64x1xf32>
    %344 = tpu.concatenate %339, %343 in 1 : vector<64x1xf32>, vector<64x1xf32> -> vector<64x2xf32>
    %345 = arith.truncf %344 : vector<64x2xf32> to vector<64x2xbf16>
    %c0_358 = arith.constant 0 : index
    %c0_359 = arith.constant 0 : index
    %346 = vector.load %arg10[%c0_358, %c0_359] : memref<2x64xbf16, #tpu.memory_space<vmem>>, vector<2x64xbf16>
    %cst_360 = arith.constant dense<0.000000e+00> : vector<2x2xf32>
    %347 = tpu.matmul %346, %345, %cst_360 {dimension_numbers = #tpu.dot_dimension_numbers<[1], [0], [0], [1], [0, 0, 1, 1], [], []>} : vector<2x64xbf16>, vector<64x2xbf16>, vector<2x2xf32> -> vector<2x2xf32>
    %c0_361 = arith.constant 0 : index
    %c0_362 = arith.constant 0 : index
    %348 = vector.load %arg11[%c0_361, %c0_362] : memref<1x2xf32, #tpu.memory_space<vmem>>, vector<1x2xf32>
    %349 = vector.broadcast %348 : vector<1x2xf32> to vector<2x2xf32>
    %350 = arith.addf %347, %349 : vector<2x2xf32>
    %c0_363 = arith.constant 0 : index
    %c0_364 = arith.constant 0 : index
    %351 = vector.load %arg12[%c0_363, %c0_364] : memref<2x2xf32, #tpu.memory_space<vmem>>, vector<2x2xf32>
    tpu.vector_store %arg12[%c0_363, %c0_364], %350 {strides = array<i32>} : memref<2x2xf32, #tpu.memory_space<vmem>>, vector<2x2xf32>,
    return
  }
  func.func @transform_0(%arg0: i32) -> (i32, i32) {
    %c0_i32 = arith.constant 0 : i32
    %c0_i32_0 = arith.constant 0 : i32
    return %arg0, %c0_i32 : i32, i32
  }
  func.func @transform_1(%arg0: i32) -> (i32, i32, i32) {
    %c0_i32 = arith.constant 0 : i32
    %c0_i32_0 = arith.constant 0 : i32
    %c0_i32_1 = arith.constant 0 : i32
    %c0_i32_2 = arith.constant 0 : i32
    return %c0_i32, %c0_i32_0, %c0_i32_1 : i32, i32, i32
  }
  func.func @transform_2(%arg0: i32) -> (i32, i32) {
    %c0_i32 = arith.constant 0 : i32
    %c0_i32_0 = arith.constant 0 : i32
    %c0_i32_1 = arith.constant 0 : i32
    return %c0_i32, %c0_i32_0 : i32, i32
  }
  func.func @transform_3(%arg0: i32) -> (i32, i32) {
    %c0_i32 = arith.constant 0 : i32
    %c0_i32_0 = arith.constant 0 : i32
    %c0_i32_1 = arith.constant 0 : i32
    return %c0_i32, %c0_i32_0 : i32, i32
  }
  func.func @transform_4(%arg0: i32) -> (i32, i32) {
    %c0_i32 = arith.constant 0 : i32
    %c0_i32_0 = arith.constant 0 : i32
    %c0_i32_1 = arith.constant 0 : i32
    return %c0_i32, %c0_i32_0 : i32, i32
  }
  func.func @transform_5(%arg0: i32) -> (i32, i32) {
    %c0_i32 = arith.constant 0 : i32
    %c0_i32_0 = arith.constant 0 : i32
    %c0_i32_1 = arith.constant 0 : i32
    return %c0_i32, %c0_i32_0 : i32, i32
  }
  func.func @transform_6(%arg0: i32) -> (i32, i32) {
    %c0_i32 = arith.constant 0 : i32
    %c0_i32_0 = arith.constant 0 : i32
    %c0_i32_1 = arith.constant 0 : i32
    return %c0_i32, %c0_i32_0 : i32, i32
  }
  func.func @transform_7(%arg0: i32) -> (i32, i32) {
    %c0_i32 = arith.constant 0 : i32
    %c0_i32_0 = arith.constant 0 : i32
    %c0_i32_1 = arith.constant 0 : i32
    return %c0_i32, %c0_i32_0 : i32, i32
  }
  func.func @transform_8(%arg0: i32) -> (i32, i32) {
    %c0_i32 = arith.constant 0 : i32
    %c0_i32_0 = arith.constant 0 : i32
    %c0_i32_1 = arith.constant 0 : i32
    return %c0_i32, %c0_i32_0 : i32, i32
  }
  func.func @transform_9(%arg0: i32) -> (i32, i32) {
    %c0_i32 = arith.constant 0 : i32
    %c0_i32_0 = arith.constant 0 : i32
    %c0_i32_1 = arith.constant 0 : i32
    return %c0_i32, %c0_i32_0 : i32, i32
  }
  func.func @transform_10(%arg0: i32) -> (i32, i32) {
    %c0_i32 = arith.constant 0 : i32
    %c0_i32_0 = arith.constant 0 : i32
    %c0_i32_1 = arith.constant 0 : i32
    return %c0_i32, %c0_i32_0 : i32, i32
  }
  func.func @transform_11(%arg0: i32) -> (i32, i32) {
    %c0_i32 = arith.constant 0 : i32
    %c0_i32_0 = arith.constant 0 : i32
    return %arg0, %c0_i32 : i32, i32
  }
}

</mosaic_0001>

<llo_original>
// kernel: tpu_custom_call.1
$region0: #{tpu_custom_call.1}
  #allocation0 [shape = 'u32[]', space=smem, size = 0x4, offset = 0x4, fixed_abs, tag = 'smem constant byte address 0x4 - core index']
  #allocation1 [shape = 'u32[72,128]{1,0:T(1,128)}', space=vmem, size = 0x9000, scoped, tag = 'internal scratch']
  #allocation2 [shape = 'f32[51,4,750]{2,1,0:T(4,128)}', space=vmem, size = 0x99000, scoped, tag = 'scratch operand']
  #allocation3 [shape = 'f32[64,750]{1,0:T(8,128)}', space=vmem, size = 0x30000, scoped, tag = 'scratch operand']
  #allocation4 [shape = 'bf16[960,187]{1,0:T(8,128)(2,1)}', space=vmem, size = 0x78000, scoped, tag = 'scratch operand']
  %s0 = inlined_call_operand.vmem [shape: f32[4,800], index: 0, kind: input, shape index: {}]
  %s1 = inlined_call_operand.vmem [shape: f32[51,1,16], index: 1, kind: input, shape index: {}]
  %s2 = inlined_call_operand.vmem [shape: bf16[64,64], index: 2, kind: input, shape index: {}]
  %s3 = inlined_call_operand.vmem [shape: f32[64,1], index: 3, kind: input, shape index: {}]
  %s4 = inlined_call_operand.vmem [shape: bf16[64,960], index: 4, kind: input, shape index: {}]
  %s5 = inlined_call_operand.vmem [shape: f32[64,1], index: 5, kind: input, shape index: {}]
  %s6 = inlined_call_operand.vmem [shape: bf16[750,187], index: 6, kind: input, shape index: {}]
  %s7 = inlined_call_operand.vmem [shape: bf16[187,23], index: 7, kind: input, shape index: {}]
  %s8 = inlined_call_operand.vmem [shape: f32[128,23], index: 8, kind: input, shape index: {}]
  %s9 = inlined_call_operand.vmem [shape: bf16[2,64], index: 9, kind: input, shape index: {}]
  %s10 = inlined_call_operand.vmem [shape: f32[1,2], index: 10, kind: input, shape index: {}]
  %s11 = inlined_call_operand.hbm [shape: f32[2,2], index: 11, kind: output, shape index: {}]
  %s12 = sld [smem:[#allocation0]]
  $region166: #{tpu_custom_call.1} parent=0
    _
  %s14 = ssub.s32 1, %s12
  %s15 = scalar_select 0, %s14, %s12
  $region1: #{tpu_custom_call.1} parent=0
    #allocation5 [shape = 'u8[1024]{0}', space=vmem, size = 0x400, scoped, tag = 'output window, operand 0, single buffered']
    #allocation6 [shape = 's32[1]{0}', space=sflag, size = 0x4, scoped, tag = 'scoped memory for tpu_custom_call.1']
    %16 = vsyncpa [#allocation6], 0
    // Predicated region
    $region2: #{tpu_custom_call.1} parent=1 // pred_check
      _
    $region3: #{tpu_custom_call.1} parent=1 // pred_check_branch
      %18 = sbr.rel (0) target = $region5
    $region4: #{tpu_custom_call.1} parent=1 // pred_region
      _
    $region5: #{tpu_custom_call.1} parent=1 // pred_fallthru
      _
    // Predicated region
    $region6: #{tpu_custom_call.1} parent=1 // pred_check
      _
    $region7: #{tpu_custom_call.1} parent=1 // pred_check_branch
      %20 = sbr.rel (0) target = $region9
    $region8: #{tpu_custom_call.1} parent=1 // pred_region
      _
    $region9: #{tpu_custom_call.1} parent=1 // pred_fallthru
      _
    // Predicated region
    $region10: #{tpu_custom_call.1} parent=1 // pred_check
      _
    $region11: #{tpu_custom_call.1} parent=1 // pred_check_branch
      %22 = sbr.rel (0) target = $region13
    $region12: #{tpu_custom_call.1} parent=1 // pred_region
      _
    $region13: #{tpu_custom_call.1} parent=1 // pred_fallthru
      _
    // Predicated region
    $region14: #{tpu_custom_call.1} parent=1 // pred_check
      _
    $region15: #{tpu_custom_call.1} parent=1 // pred_check_branch
      %24 = sbr.rel (0) target = $region17
    $region16: #{tpu_custom_call.1} parent=1 // pred_region
      _
    $region17: #{tpu_custom_call.1} parent=1 // pred_fallthru
      _
    // Predicated region
    $region18: #{tpu_custom_call.1} parent=1 // pred_check
      _
    $region19: #{tpu_custom_call.1} parent=1 // pred_check_branch
      %26 = sbr.rel (0) target = $region21
    $region20: #{tpu_custom_call.1} parent=1 // pred_region
      _
    $region21: #{tpu_custom_call.1} parent=1 // pred_fallthru
      _
    // Predicated region
    $region22: #{tpu_custom_call.1} parent=1 // pred_check
      _
    $region23: #{tpu_custom_call.1} parent=1 // pred_check_branch
      %28 = sbr.rel (0) target = $region25
    $region24: #{tpu_custom_call.1} parent=1 // pred_region
      _
    $region25: #{tpu_custom_call.1} parent=1 // pred_fallthru
      _
    // Predicated region
    $region26: #{tpu_custom_call.1} parent=1 // pred_check
      _
    $region27: #{tpu_custom_call.1} parent=1 // pred_check_branch
      %30 = sbr.rel (0) target = $region29
    $region28: #{tpu_custom_call.1} parent=1 // pred_region
      _
    $region29: #{tpu_custom_call.1} parent=1 // pred_fallthru
      _
    // Predicated region
    $region30: #{tpu_custom_call.1} parent=1 // pred_check
      _
    $region31: #{tpu_custom_call.1} parent=1 // pred_check_branch
      %32 = sbr.rel (0) target = $region33
    $region32: #{tpu_custom_call.1} parent=1 // pred_region
      _
    $region33: #{tpu_custom_call.1} parent=1 // pred_fallthru
      _
    // Predicated region
    $region34: #{tpu_custom_call.1} parent=1 // pred_check
      _
    $region35: #{tpu_custom_call.1} parent=1 // pred_check_branch
      %34 = sbr.rel (0) target = $region37
    $region36: #{tpu_custom_call.1} parent=1 // pred_region
      _
    $region37: #{tpu_custom_call.1} parent=1 // pred_fallthru
      _
    // Predicated region
    $region38: #{tpu_custom_call.1} parent=1 // pred_check
      _
    $region39: #{tpu_custom_call.1} parent=1 // pred_check_branch
      %36 = sbr.rel (0) target = $region41
    $region40: #{tpu_custom_call.1} parent=1 // pred_region
      _
    $region41: #{tpu_custom_call.1} parent=1 // pred_fallthru
      _
    // Predicated region
    $region42: #{tpu_custom_call.1} parent=1 // pred_check
      _
    $region43: #{tpu_custom_call.1} parent=1 // pred_check_branch
      %38 = sbr.rel (0) target = $region45
    $region44: #{tpu_custom_call.1} parent=1 // pred_region
      _
    $region45: #{tpu_custom_call.1} parent=1 // pred_fallthru
      _
    %v40 = vld [vmem:[%s0] sm:$0xff]
    %v41 = vld [vmem:[%s0 + $0x8] sm:$0xff]
    %v42 = vld [vmem:[%s0 + $0x10] sm:$0xff]
    %43 = vst [vmem:[#allocation2] sm:$0xff] %v40
    %44 = vst [vmem:[#allocation2 + $0x8] sm:$0xff] %v41
    %vm45 = vcmask 1043456
    %vm46 = vcmask 900100
    %vm47 = vmor %vm46, %vm45
    %48 = vst.msk [vmem:[#allocation2 + $0x10] sm:$0xff] %vm47, %v42
    %v49 = vld [vmem:[%s0] sm:$0xff]
    %v50 = vld [vmem:[%s0 + $0x8] sm:$0xff]
    %v51 = vld [vmem:[%s0 + $0x10] sm:$0xff]
    %55 = vrot.lane.b32.xlu0 %v49, 127
    %v56 = vpop.permute.xlu0 %55
    %57 = vrot.lane.b32.xlu0 %v50, 127
    %v58 = vpop.permute.xlu0 %57
    %59 = vrot.lane.b32.xlu0 %v51, 127
    %v60 = vpop.permute.xlu0 %59
    %v61 = vrot.slane %v56, 4
    %v62 = vrot.slane %v58, 4
    %v63 = vrot.slane %v60, 4
    %v64 = vsel %vm45, %v61, %v62
    %vm65 = vcmask 1039360
    %v66 = vsel %vm65, %v56, %v64
    %v67 = vsel %vm45, %v62, %v63
    %v68 = vsel %vm65, %v58, %v67
    %v69 = vsel %vm65, %v60, %v63
    %s73 = scalar_lea.vmem [#allocation2], 24
    %74 = vst [vmem:[%s73] sm:$0xff] %v66
    %75 = vst [vmem:[%s73 + $0x8] sm:$0xff] %v68
    %76 = vst.msk [vmem:[%s73 + $0x10] sm:$0xff] %vm47, %v69
    %v77 = vld [vmem:[%s0] sm:$0xff]
    %v78 = vld [vmem:[%s0 + $0x8] sm:$0xff]
    %v79 = vld [vmem:[%s0 + $0x10] sm:$0xff]
    %83 = vrot.lane.b32.xlu0 %v77, 126
    %v84 = vpop.permute.xlu0 %83
    %85 = vrot.lane.b32.xlu0 %v78, 126
    %v86 = vpop.permute.xlu0 %85
    %87 = vrot.lane.b32.xlu0 %v79, 126
    %v88 = vpop.permute.xlu0 %87
    %v89 = vrot.slane %v84, 4
    %v90 = vrot.slane %v86, 4
    %v91 = vrot.slane %v88, 4
    %v92 = vsel %vm45, %v89, %v90
    %vm93 = vcmask 1031168
    %v94 = vsel %vm93, %v84, %v92
    %v95 = vsel %vm45, %v90, %v91
    %v96 = vsel %vm93, %v86, %v95
    %v97 = vsel %vm93, %v88, %v91
    %s101 = scalar_lea.vmem [#allocation2], 48
    %102 = vst [vmem:[%s101] sm:$0xff] %v94
    %103 = vst [vmem:[%s101 + $0x8] sm:$0xff] %v96
    %104 = vst.msk [vmem:[%s101 + $0x10] sm:$0xff] %vm47, %v97
    %v105 = vld [vmem:[%s0] sm:$0xff]
    %v106 = vld [vmem:[%s0 + $0x8] sm:$0xff]
    %v107 = vld [vmem:[%s0 + $0x10] sm:$0xff]
    %111 = vrot.lane.b32.xlu0 %v105, 125
    %v112 = vpop.permute.xlu0 %111
    %113 = vrot.lane.b32.xlu0 %v106, 125
    %v114 = vpop.permute.xlu0 %113
    %115 = vrot.lane.b32.xlu0 %v107, 125
    %v116 = vpop.permute.xlu0 %115
    %v117 = vrot.slane %v112, 4
    %v118 = vrot.slane %v114, 4
    %v119 = vrot.slane %v116, 4
    %v120 = vsel %vm45, %v117, %v118
    %vm121 = vcmask 1022976
    %v122 = vsel %vm121, %v112, %v120
    %v123 = vsel %vm45, %v118, %v119
    %v124 = vsel %vm121, %v114, %v123
    %v125 = vsel %vm121, %v116, %v119
    %s129 = scalar_lea.vmem [#allocation2], 72
    %130 = vst [vmem:[%s129] sm:$0xff] %v122
    %131 = vst [vmem:[%s129 + $0x8] sm:$0xff] %v124
    %132 = vst.msk [vmem:[%s129 + $0x10] sm:$0xff] %vm47, %v125
    %v133 = vld [vmem:[%s0] sm:$0xff]
    %v134 = vld [vmem:[%s0 + $0x8] sm:$0xff]
    %v135 = vld [vmem:[%s0 + $0x10] sm:$0xff]
    %139 = vrot.lane.b32.xlu0 %v133, 124
    %v140 = vpop.permute.xlu0 %139
    %141 = vrot.lane.b32.xlu0 %v134, 124
    %v142 = vpop.permute.xlu0 %141
    %143 = vrot.lane.b32.xlu0 %v135, 124
    %v144 = vpop.permute.xlu0 %143
    %v145 = vrot.slane %v140, 4
    %v146 = vrot.slane %v142, 4
    %v147 = vrot.slane %v144, 4
    %v148 = vsel %vm45, %v145, %v146
    %vm149 = vcmask 1014784
    %v150 = vsel %vm149, %v140, %v148
    %v151 = vsel %vm45, %v146, %v147
    %v152 = vsel %vm149, %v142, %v151
    %v153 = vsel %vm149, %v144, %v147
    %s157 = scalar_lea.vmem [#allocation2], 96
    %158 = vst [vmem:[%s157] sm:$0xff] %v150
    %159 = vst [vmem:[%s157 + $0x8] sm:$0xff] %v152
    %160 = vst.msk [vmem:[%s157 + $0x10] sm:$0xff] %vm47, %v153
    %v161 = vld [vmem:[%s0] sm:$0xff]
    %v162 = vld [vmem:[%s0 + $0x8] sm:$0xff]
    %v163 = vld [vmem:[%s0 + $0x10] sm:$0xff]
    %167 = vrot.lane.b32.xlu0 %v161, 123
    %v168 = vpop.permute.xlu0 %167
    %169 = vrot.lane.b32.xlu0 %v162, 123
    %v170 = vpop.permute.xlu0 %169
    %171 = vrot.lane.b32.xlu0 %v163, 123
    %v172 = vpop.permute.xlu0 %171
    %v173 = vrot.slane %v168, 4
    %v174 = vrot.slane %v170, 4
    %v175 = vrot.slane %v172, 4
    %v176 = vsel %vm45, %v173, %v174
    %vm177 = vcmask 1006592
    %v178 = vsel %vm177, %v168, %v176
    %v179 = vsel %vm45, %v174, %v175
    %v180 = vsel %vm177, %v170, %v179
    %v181 = vsel %vm177, %v172, %v175
    %s185 = scalar_lea.vmem [#allocation2], 120
    %186 = vst [vmem:[%s185] sm:$0xff] %v178
    %187 = vst [vmem:[%s185 + $0x8] sm:$0xff] %v180
    %188 = vst.msk [vmem:[%s185 + $0x10] sm:$0xff] %vm47, %v181
    %v189 = vld [vmem:[%s0] sm:$0xff]
    %v190 = vld [vmem:[%s0 + $0x8] sm:$0xff]
    %v191 = vld [vmem:[%s0 + $0x10] sm:$0xff]
    %195 = vrot.lane.b32.xlu0 %v189, 122
    %v196 = vpop.permute.xlu0 %195
    %197 = vrot.lane.b32.xlu0 %v190, 122
    %v198 = vpop.permute.xlu0 %197
    %199 = vrot.lane.b32.xlu0 %v191, 122
    %v200 = vpop.permute.xlu0 %199
    %v201 = vrot.slane %v196, 4
    %v202 = vrot.slane %v198, 4
    %v203 = vrot.slane %v200, 4
    %v204 = vsel %vm45, %v201, %v202
    %vm205 = vcmask 998400
    %v206 = vsel %vm205, %v196, %v204
    %v207 = vsel %vm45, %v202, %v203
    %v208 = vsel %vm205, %v198, %v207
    %v209 = vsel %vm205, %v200, %v203
    %s213 = scalar_lea.vmem [#allocation2], 144
    %214 = vst [vmem:[%s213] sm:$0xff] %v206
    %215 = vst [vmem:[%s213 + $0x8] sm:$0xff] %v208
    %216 = vst.msk [vmem:[%s213 + $0x10] sm:$0xff] %vm47, %v209
    %v217 = vld [vmem:[%s0] sm:$0xff]
    %v218 = vld [vmem:[%s0 + $0x8] sm:$0xff]
    %v219 = vld [vmem:[%s0 + $0x10] sm:$0xff]
    %223 = vrot.lane.b32.xlu0 %v217, 121
    %v224 = vpop.permute.xlu0 %223
    %225 = vrot.lane.b32.xlu0 %v218, 121
    %v226 = vpop.permute.xlu0 %225
    %227 = vrot.lane.b32.xlu0 %v219, 121
    %v228 = vpop.permute.xlu0 %227
    %v229 = vrot.slane %v224, 4
    %v230 = vrot.slane %v226, 4
    %v231 = vrot.slane %v228, 4
    %v232 = vsel %vm45, %v229, %v230
    %vm233 = vcmask 990208
    %v234 = vsel %vm233, %v224, %v232
    %v235 = vsel %vm45, %v230, %v231
    %v236 = vsel %vm233, %v226, %v235
    %v237 = vsel %vm233, %v228, %v231
    %s241 = scalar_lea.vmem [#allocation2], 168
    %242 = vst [vmem:[%s241] sm:$0xff] %v234
    %243 = vst [vmem:[%s241 + $0x8] sm:$0xff] %v236
    %244 = vst.msk [vmem:[%s241 + $0x10] sm:$0xff] %vm47, %v237
    %v245 = vld [vmem:[%s0] sm:$0xff]
    %v246 = vld [vmem:[%s0 + $0x8] sm:$0xff]
    %v247 = vld [vmem:[%s0 + $0x10] sm:$0xff]
    %251 = vrot.lane.b32.xlu0 %v245, 120
    %v252 = vpop.permute.xlu0 %251
    %253 = vrot.lane.b32.xlu0 %v246, 120
    %v254 = vpop.permute.xlu0 %253
    %255 = vrot.lane.b32.xlu0 %v247, 120
    %v256 = vpop.permute.xlu0 %255
    %v257 = vrot.slane %v252, 4
    %v258 = vrot.slane %v254, 4
    %v259 = vrot.slane %v256, 4
    %v260 = vsel %vm45, %v257, %v258
    %vm261 = vcmask 982016
    %v262 = vsel %vm261, %v252, %v260
    %v263 = vsel %vm45, %v258, %v259
    %v264 = vsel %vm261, %v254, %v263
    %v265 = vsel %vm261, %v256, %v259
    %s269 = scalar_lea.vmem [#allocation2], 192
    %270 = vst [vmem:[%s269] sm:$0xff] %v262
    %271 = vst [vmem:[%s269 + $0x8] sm:$0xff] %v264
    %272 = vst.msk [vmem:[%s269 + $0x10] sm:$0xff] %vm47, %v265
    %v273 = vld [vmem:[%s0] sm:$0xff]
    %v274 = vld [vmem:[%s0 + $0x8] sm:$0xff]
    %v275 = vld [vmem:[%s0 + $0x10] sm:$0xff]
    %279 = vrot.lane.b32.xlu0 %v273, 119
    %v280 = vpop.permute.xlu0 %279
    %281 = vrot.lane.b32.xlu0 %v274, 119
    %v282 = vpop.permute.xlu0 %281
    %283 = vrot.lane.b32.xlu0 %v275, 119
    %v284 = vpop.permute.xlu0 %283
    %v285 = vrot.slane %v280, 4
    %v286 = vrot.slane %v282, 4
    %v287 = vrot.slane %v284, 4
    %v288 = vsel %vm45, %v285, %v286
    %vm289 = vcmask 973824
    %v290 = vsel %vm289, %v280, %v288
    %v291 = vsel %vm45, %v286, %v287
    %v292 = vsel %vm289, %v282, %v291
    %v293 = vsel %vm289, %v284, %v287
    %s297 = scalar_lea.vmem [#allocation2], 216
    %298 = vst [vmem:[%s297] sm:$0xff] %v290
    %299 = vst [vmem:[%s297 + $0x8] sm:$0xff] %v292
    %300 = vst.msk [vmem:[%s297 + $0x10] sm:$0xff] %vm47, %v293
    %v301 = vld [vmem:[%s0] sm:$0xff]
    %v302 = vld [vmem:[%s0 + $0x8] sm:$0xff]
    %v303 = vld [vmem:[%s0 + $0x10] sm:$0xff]
    %307 = vrot.lane.b32.xlu0 %v301, 118
    %v308 = vpop.permute.xlu0 %307
    %309 = vrot.lane.b32.xlu0 %v302, 118
    %v310 = vpop.permute.xlu0 %309
    %311 = vrot.lane.b32.xlu0 %v303, 118
    %v312 = vpop.permute.xlu0 %311
    %v313 = vrot.slane %v308, 4
    %v314 = vrot.slane %v310, 4
    %v315 = vrot.slane %v312, 4
    %v316 = vsel %vm45, %v313, %v314
    %vm317 = vcmask 965632
    %v318 = vsel %vm317, %v308, %v316
    %v319 = vsel %vm45, %v314, %v315
    %v320 = vsel %vm317, %v310, %v319
    %v321 = vsel %vm317, %v312, %v315
    %s325 = scalar_lea.vmem [#allocation2], 240
    %326 = vst [vmem:[%s325] sm:$0xff] %v318
    %327 = vst [vmem:[%s325 + $0x8] sm:$0xff] %v320
    %328 = vst.msk [vmem:[%s325 + $0x10] sm:$0xff] %vm47, %v321
    %v329 = vld [vmem:[%s0] sm:$0xff]
    %v330 = vld [vmem:[%s0 + $0x8] sm:$0xff]
    %v331 = vld [vmem:[%s0 + $0x10] sm:$0xff]
    %335 = vrot.lane.b32.xlu0 %v329, 117
    %v336 = vpop.permute.xlu0 %335
    %337 = vrot.lane.b32.xlu0 %v330, 117
    %v338 = vpop.permute.xlu0 %337
    %339 = vrot.lane.b32.xlu0 %v331, 117
    %v340 = vpop.permute.xlu0 %339
    %v341 = vrot.slane %v336, 4
    %v342 = vrot.slane %v338, 4
    %v343 = vrot.slane %v340, 4
    %v344 = vsel %vm45, %v341, %v342
    %vm345 = vcmask 957440
    %v346 = vsel %vm345, %v336, %v344
    %v347 = vsel %vm45, %v342, %v343
    %v348 = vsel %vm345, %v338, %v347
    %v349 = vsel %vm345, %v340, %v343
    %s353 = scalar_lea.vmem [#allocation2], 264
    %354 = vst [vmem:[%s353] sm:$0xff] %v346
    %355 = vst [vmem:[%s353 + $0x8] sm:$0xff] %v348
    %356 = vst.msk [vmem:[%s353 + $0x10] sm:$0xff] %vm47, %v349
    %v357 = vld [vmem:[%s0] sm:$0xff]
    %v358 = vld [vmem:[%s0 + $0x8] sm:$0xff]
    %v359 = vld [vmem:[%s0 + $0x10] sm:$0xff]
    %363 = vrot.lane.b32.xlu0 %v357, 116
    %v364 = vpop.permute.xlu0 %363
    %365 = vrot.lane.b32.xlu0 %v358, 116
    %v366 = vpop.permute.xlu0 %365
    %367 = vrot.lane.b32.xlu0 %v359, 116
    %v368 = vpop.permute.xlu0 %367
    %v369 = vrot.slane %v364, 4
    %v370 = vrot.slane %v366, 4
    %v371 = vrot.slane %v368, 4
    %v372 = vsel %vm45, %v369, %v370
    %vm373 = vcmask 949248
    %v374 = vsel %vm373, %v364, %v372
    %v375 = vsel %vm45, %v370, %v371
    %v376 = vsel %vm373, %v366, %v375
    %v377 = vsel %vm373, %v368, %v371
    %s381 = scalar_lea.vmem [#allocation2], 288
    %382 = vst [vmem:[%s381] sm:$0xff] %v374
    %383 = vst [vmem:[%s381 + $0x8] sm:$0xff] %v376
    %384 = vst.msk [vmem:[%s381 + $0x10] sm:$0xff] %vm47, %v377
    %v385 = vld [vmem:[%s0] sm:$0xff]
    %v386 = vld [vmem:[%s0 + $0x8] sm:$0xff]
    %v387 = vld [vmem:[%s0 + $0x10] sm:$0xff]
    %391 = vrot.lane.b32.xlu0 %v385, 115
    %v392 = vpop.permute.xlu0 %391
    %393 = vrot.lane.b32.xlu0 %v386, 115
    %v394 = vpop.permute.xlu0 %393
    %395 = vrot.lane.b32.xlu0 %v387, 115
    %v396 = vpop.permute.xlu0 %395
    %v397 = vrot.slane %v392, 4
    %v398 = vrot.slane %v394, 4
    %v399 = vrot.slane %v396, 4
    %v400 = vsel %vm45, %v397, %v398
    %vm401 = vcmask 941056
    %v402 = vsel %vm401, %v392, %v400
    %v403 = vsel %vm45, %v398, %v399
    %v404 = vsel %vm401, %v394, %v403
    %v405 = vsel %vm401, %v396, %v399
    %s409 = scalar_lea.vmem [#allocation2], 312
    %410 = vst [vmem:[%s409] sm:$0xff] %v402
    %411 = vst [vmem:[%s409 + $0x8] sm:$0xff] %v404
    %412 = vst.msk [vmem:[%s409 + $0x10] sm:$0xff] %vm47, %v405
    %v413 = vld [vmem:[%s0] sm:$0xff]
    %v414 = vld [vmem:[%s0 + $0x8] sm:$0xff]
    %v415 = vld [vmem:[%s0 + $0x10] sm:$0xff]
    %419 = vrot.lane.b32.xlu0 %v413, 114
    %v420 = vpop.permute.xlu0 %419
    %421 = vrot.lane.b32.xlu0 %v414, 114
    %v422 = vpop.permute.xlu0 %421
    %423 = vrot.lane.b32.xlu0 %v415, 114
    %v424 = vpop.permute.xlu0 %423
    %v425 = vrot.slane %v420, 4
    %v426 = vrot.slane %v422, 4
    %v427 = vrot.slane %v424, 4
    %v428 = vsel %vm45, %v425, %v426
    %vm429 = vcmask 932864
    %v430 = vsel %vm429, %v420, %v428
    %v431 = vsel %vm45, %v426, %v427
    %v432 = vsel %vm429, %v422, %v431
    %v433 = vsel %vm429, %v424, %v427
    %s437 = scalar_lea.vmem [#allocation2], 336
    %438 = vst [vmem:[%s437] sm:$0xff] %v430
    %439 = vst [vmem:[%s437 + $0x8] sm:$0xff] %v432
    %440 = vst.msk [vmem:[%s437 + $0x10] sm:$0xff] %vm47, %v433
    %v441 = vld [vmem:[%s0] sm:$0xff]
    %v442 = vld [vmem:[%s0 + $0x8] sm:$0xff]
    %v443 = vld [vmem:[%s0 + $0x10] sm:$0xff]
    %447 = vrot.lane.b32.xlu0 %v441, 113
    %v448 = vpop.permute.xlu0 %447
    %449 = vrot.lane.b32.xlu0 %v442, 113
    %v450 = vpop.permute.xlu0 %449
    %451 = vrot.lane.b32.xlu0 %v443, 113
    %v452 = vpop.permute.xlu0 %451
    %v453 = vrot.slane %v448, 4
    %v454 = vrot.slane %v450, 4
    %v455 = vrot.slane %v452, 4
    %v456 = vsel %vm45, %v453, %v454
    %vm457 = vcmask 924672
    %v458 = vsel %vm457, %v448, %v456
    %v459 = vsel %vm45, %v454, %v455
    %v460 = vsel %vm457, %v450, %v459
    %v461 = vsel %vm457, %v452, %v455
    %s465 = scalar_lea.vmem [#allocation2], 360
    %466 = vst [vmem:[%s465] sm:$0xff] %v458
    %467 = vst [vmem:[%s465 + $0x8] sm:$0xff] %v460
    %468 = vst.msk [vmem:[%s465 + $0x10] sm:$0xff] %vm47, %v461
    %v469 = vld [vmem:[%s0] sm:$0xff]
    %v470 = vld [vmem:[%s0 + $0x8] sm:$0xff]
    %v471 = vld [vmem:[%s0 + $0x10] sm:$0xff]
    %475 = vrot.lane.b32.xlu0 %v469, 112
    %v476 = vpop.permute.xlu0 %475
    %477 = vrot.lane.b32.xlu0 %v470, 112
    %v478 = vpop.permute.xlu0 %477
    %479 = vrot.lane.b32.xlu0 %v471, 112
    %v480 = vpop.permute.xlu0 %479
    %v481 = vrot.slane %v476, 4
    %v482 = vrot.slane %v478, 4
    %v483 = vrot.slane %v480, 4
    %v484 = vsel %vm45, %v481, %v482
    %vm485 = vcmask 916480
    %v486 = vsel %vm485, %v476, %v484
    %v487 = vsel %vm45, %v482, %v483
    %v488 = vsel %vm485, %v478, %v487
    %v489 = vsel %vm485, %v480, %v483
    %s493 = scalar_lea.vmem [#allocation2], 384
    %494 = vst [vmem:[%s493] sm:$0xff] %v486
    %495 = vst [vmem:[%s493 + $0x8] sm:$0xff] %v488
    %496 = vst.msk [vmem:[%s493 + $0x10] sm:$0xff] %vm47, %v489
    %v497 = vld [vmem:[%s0] sm:$0xff]
    %v498 = vld [vmem:[%s0 + $0x8] sm:$0xff]
    %v499 = vld [vmem:[%s0 + $0x10] sm:$0xff]
    %503 = vrot.lane.b32.xlu0 %v497, 111
    %v504 = vpop.permute.xlu0 %503
    %505 = vrot.lane.b32.xlu0 %v498, 111
    %v506 = vpop.permute.xlu0 %505
    %507 = vrot.lane.b32.xlu0 %v499, 111
    %v508 = vpop.permute.xlu0 %507
    %v509 = vrot.slane %v504, 4
    %v510 = vrot.slane %v506, 4
    %v511 = vrot.slane %v508, 4
    %v512 = vsel %vm45, %v509, %v510
    %vm513 = vcmask 908288
    %v514 = vsel %vm513, %v504, %v512
    %v515 = vsel %vm45, %v510, %v511
    %v516 = vsel %vm513, %v506, %v515
    %v517 = vsel %vm513, %v508, %v511
    %s521 = scalar_lea.vmem [#allocation2], 408
    %522 = vst [vmem:[%s521] sm:$0xff] %v514
    %523 = vst [vmem:[%s521 + $0x8] sm:$0xff] %v516
    %524 = vst.msk [vmem:[%s521 + $0x10] sm:$0xff] %vm47, %v517
    %v525 = vld [vmem:[%s0] sm:$0xff]
    %v526 = vld [vmem:[%s0 + $0x8] sm:$0xff]
    %v527 = vld [vmem:[%s0 + $0x10] sm:$0xff]
    %531 = vrot.lane.b32.xlu0 %v525, 110
    %v532 = vpop.permute.xlu0 %531
    %533 = vrot.lane.b32.xlu0 %v526, 110
    %v534 = vpop.permute.xlu0 %533
    %535 = vrot.lane.b32.xlu0 %v527, 110
    %v536 = vpop.permute.xlu0 %535
    %v537 = vrot.slane %v532, 4
    %v538 = vrot.slane %v534, 4
    %v539 = vrot.slane %v536, 4
    %v540 = vsel %vm45, %v537, %v538
    %vm541 = vcmask 900096
    %v542 = vsel %vm541, %v532, %v540
    %v543 = vsel %vm45, %v538, %v539
    %v544 = vsel %vm541, %v534, %v543
    %v545 = vsel %vm541, %v536, %v539
    %s549 = scalar_lea.vmem [#allocation2], 432
    %550 = vst [vmem:[%s549] sm:$0xff] %v542
    %551 = vst [vmem:[%s549 + $0x8] sm:$0xff] %v544
    %552 = vst.msk [vmem:[%s549 + $0x10] sm:$0xff] %vm47, %v545
    %v553 = vld [vmem:[%s0] sm:$0xff]
    %v554 = vld [vmem:[%s0 + $0x8] sm:$0xff]
    %v555 = vld [vmem:[%s0 + $0x10] sm:$0xff]
    %v556 = vld [vmem:[%s0 + $0x18] sm:$0xf]
    %561 = vrot.lane.b32.xlu0 %v553, 109
    %v562 = vpop.permute.xlu0 %561
    %563 = vrot.lane.b32.xlu0 %v554, 109
    %v564 = vpop.permute.xlu0 %563
    %565 = vrot.lane.b32.xlu0 %v555, 109
    %v566 = vpop.permute.xlu0 %565
    %567 = vrot.lane.b32.xlu0 %v556, 109
    %v568 = vpop.permute.xlu0 %567
    %v569 = vrot.slane %v562, 4
    %v570 = vrot.slane %v564, 4
    %v571 = vrot.slane %v566, 4
    %v572 = vrot.slane %v568, 4
    %v573 = vsel %vm45, %v569, %v570
    %vm574 = vcmask 891904
    %v575 = vsel %vm574, %v562, %v573
    %v576 = vsel %vm45, %v570, %v571
    %v577 = vsel %vm574, %v564, %v576
    %v578 = vsel %vm45, %v571, %v572
    %v579 = vsel %vm574, %v566, %v578
    %s583 = scalar_lea.vmem [#allocation2], 456
    %584 = vst [vmem:[%s583] sm:$0xff] %v575
    %585 = vst [vmem:[%s583 + $0x8] sm:$0xff] %v577
    %586 = vst.msk [vmem:[%s583 + $0x10] sm:$0xff] %vm47, %v579
    %v587 = vld [vmem:[%s0] sm:$0xff]
    %v588 = vld [vmem:[%s0 + $0x8] sm:$0xff]
    %v589 = vld [vmem:[%s0 + $0x10] sm:$0xff]
    %v590 = vld [vmem:[%s0 + $0x18] sm:$0xf]
    %595 = vrot.lane.b32.xlu0 %v587, 108
    %v596 = vpop.permute.xlu0 %595
    %597 = vrot.lane.b32.xlu0 %v588, 108
    %v598 = vpop.permute.xlu0 %597
    %599 = vrot.lane.b32.xlu0 %v589, 108
    %v600 = vpop.permute.xlu0 %599
    %601 = vrot.lane.b32.xlu0 %v590, 108
    %v602 = vpop.permute.xlu0 %601
    %v603 = vrot.slane %v596, 4
    %v604 = vrot.slane %v598, 4
    %v605 = vrot.slane %v600, 4
    %v606 = vrot.slane %v602, 4
    %v607 = vsel %vm45, %v603, %v604
    %vm608 = vcmask 883712
    %v609 = vsel %vm608, %v596, %v607
    %v610 = vsel %vm45, %v604, %v605
    %v611 = vsel %vm608, %v598, %v610
    %v612 = vsel %vm45, %v605, %v606
    %v613 = vsel %vm608, %v600, %v612
    %s617 = scalar_lea.vmem [#allocation2], 480
    %618 = vst [vmem:[%s617] sm:$0xff] %v609
    %619 = vst [vmem:[%s617 + $0x8] sm:$0xff] %v611
    %620 = vst.msk [vmem:[%s617 + $0x10] sm:$0xff] %vm47, %v613
    %v621 = vld [vmem:[%s0] sm:$0xff]
    %v622 = vld [vmem:[%s0 + $0x8] sm:$0xff]
    %v623 = vld [vmem:[%s0 + $0x10] sm:$0xff]
    %v624 = vld [vmem:[%s0 + $0x18] sm:$0xf]
    %629 = vrot.lane.b32.xlu0 %v621, 107
    %v630 = vpop.permute.xlu0 %629
    %631 = vrot.lane.b32.xlu0 %v622, 107
    %v632 = vpop.permute.xlu0 %631
    %633 = vrot.lane.b32.xlu0 %v623, 107
    %v634 = vpop.permute.xlu0 %633
    %635 = vrot.lane.b32.xlu0 %v624, 107
    %v636 = vpop.permute.xlu0 %635
    %v637 = vrot.slane %v630, 4
    %v638 = vrot.slane %v632, 4
    %v639 = vrot.slane %v634, 4
    %v640 = vrot.slane %v636, 4
    %v641 = vsel %vm45, %v637, %v638
    %vm642 = vcmask 875520
    %v643 = vsel %vm642, %v630, %v641
    %v644 = vsel %vm45, %v638, %v639
    %v645 = vsel %vm642, %v632, %v644
    %v646 = vsel %vm45, %v639, %v640
    %v647 = vsel %vm642, %v634, %v646
    %s651 = scalar_lea.vmem [#allocation2], 504
    %652 = vst [vmem:[%s651] sm:$0xff] %v643
    %653 = vst [vmem:[%s651 + $0x8] sm:$0xff] %v645
    %654 = vst.msk [vmem:[%s651 + $0x10] sm:$0xff] %vm47, %v647
    %v655 = vld [vmem:[%s0] sm:$0xff]
    %v656 = vld [vmem:[%s0 + $0x8] sm:$0xff]
    %v657 = vld [vmem:[%s0 + $0x10] sm:$0xff]
    %v658 = vld [vmem:[%s0 + $0x18] sm:$0xf]
    %663 = vrot.lane.b32.xlu0 %v655, 106
    %v664 = vpop.permute.xlu0 %663
    %665 = vrot.lane.b32.xlu0 %v656, 106
    %v666 = vpop.permute.xlu0 %665
    %667 = vrot.lane.b32.xlu0 %v657, 106
    %v668 = vpop.permute.xlu0 %667
    %669 = vrot.lane.b32.xlu0 %v658, 106
    %v670 = vpop.permute.xlu0 %669
    %v671 = vrot.slane %v664, 4
    %v672 = vrot.slane %v666, 4
    %v673 = vrot.slane %v668, 4
    %v674 = vrot.slane %v670, 4
    %v675 = vsel %vm45, %v671, %v672
    %vm676 = vcmask 867328
    %v677 = vsel %vm676, %v664, %v675
    %v678 = vsel %vm45, %v672, %v673
    %v679 = vsel %vm676, %v666, %v678
    %v680 = vsel %vm45, %v673, %v674
    %v681 = vsel %vm676, %v668, %v680
    %s685 = scalar_lea.vmem [#allocation2], 528
    %686 = vst [vmem:[%s685] sm:$0xff] %v677
    %687 = vst [vmem:[%s685 + $0x8] sm:$0xff] %v679
    %688 = vst.msk [vmem:[%s685 + $0x10] sm:$0xff] %vm47, %v681
    %v689 = vld [vmem:[%s0] sm:$0xff]
    %v690 = vld [vmem:[%s0 + $0x8] sm:$0xff]
    %v691 = vld [vmem:[%s0 + $0x10] sm:$0xff]
    %v692 = vld [vmem:[%s0 + $0x18] sm:$0xf]
    %697 = vrot.lane.b32.xlu0 %v689, 105
    %v698 = vpop.permute.xlu0 %697
    %699 = vrot.lane.b32.xlu0 %v690, 105
    %v700 = vpop.permute.xlu0 %699
    %701 = vrot.lane.b32.xlu0 %v691, 105
    %v702 = vpop.permute.xlu0 %701
    %703 = vrot.lane.b32.xlu0 %v692, 105
    %v704 = vpop.permute.xlu0 %703
    %v705 = vrot.slane %v698, 4
    %v706 = vrot.slane %v700, 4
    %v707 = vrot.slane %v702, 4
    %v708 = vrot.slane %v704, 4
    %v709 = vsel %vm45, %v705, %v706
    %vm710 = vcmask 859136
    %v711 = vsel %vm710, %v698, %v709
    %v712 = vsel %vm45, %v706, %v707
    %v713 = vsel %vm710, %v700, %v712
    %v714 = vsel %vm45, %v707, %v708
    %v715 = vsel %vm710, %v702, %v714
    %s719 = scalar_lea.vmem [#allocation2], 552
    %720 = vst [vmem:[%s719] sm:$0xff] %v711
    %721 = vst [vmem:[%s719 + $0x8] sm:$0xff] %v713
    %722 = vst.msk [vmem:[%s719 + $0x10] sm:$0xff] %vm47, %v715
    %v723 = vld [vmem:[%s0] sm:$0xff]
    %v724 = vld [vmem:[%s0 + $0x8] sm:$0xff]
    %v725 = vld [vmem:[%s0 + $0x10] sm:$0xff]
    %v726 = vld [vmem:[%s0 + $0x18] sm:$0xf]
    %731 = vrot.lane.b32.xlu0 %v723, 104
    %v732 = vpop.permute.xlu0 %731
    %733 = vrot.lane.b32.xlu0 %v724, 104
    %v734 = vpop.permute.xlu0 %733
    %735 = vrot.lane.b32.xlu0 %v725, 104
    %v736 = vpop.permute.xlu0 %735
    %737 = vrot.lane.b32.xlu0 %v726, 104
    %v738 = vpop.permute.xlu0 %737
    %v739 = vrot.slane %v732, 4
    %v740 = vrot.slane %v734, 4
    %v741 = vrot.slane %v736, 4
    %v742 = vrot.slane %v738, 4
    %v743 = vsel %vm45, %v739, %v740
    %vm744 = vcmask 850944
    %v745 = vsel %vm744, %v732, %v743
    %v746 = vsel %vm45, %v740, %v741
    %v747 = vsel %vm744, %v734, %v746
    %v748 = vsel %vm45, %v741, %v742
    %v749 = vsel %vm744, %v736, %v748
    %s753 = scalar_lea.vmem [#allocation2], 576
    %754 = vst [vmem:[%s753] sm:$0xff] %v745
    %755 = vst [vmem:[%s753 + $0x8] sm:$0xff] %v747
    %756 = vst.msk [vmem:[%s753 + $0x10] sm:$0xff] %vm47, %v749
    %v757 = vld [vmem:[%s0] sm:$0xff]
    %v758 = vld [vmem:[%s0 + $0x8] sm:$0xff]
    %v759 = vld [vmem:[%s0 + $0x10] sm:$0xff]
    %v760 = vld [vmem:[%s0 + $0x18] sm:$0xf]
    %765 = vrot.lane.b32.xlu0 %v757, 103
    %v766 = vpop.permute.xlu0 %765
    %767 = vrot.lane.b32.xlu0 %v758, 103
    %v768 = vpop.permute.xlu0 %767
    %769 = vrot.lane.b32.xlu0 %v759, 103
    %v770 = vpop.permute.xlu0 %769
    %771 = vrot.lane.b32.xlu0 %v760, 103
    %v772 = vpop.permute.xlu0 %771
    %v773 = vrot.slane %v766, 4
    %v774 = vrot.slane %v768, 4
    %v775 = vrot.slane %v770, 4
    %v776 = vrot.slane %v772, 4
    %v777 = vsel %vm45, %v773, %v774
    %vm778 = vcmask 842752
    %v779 = vsel %vm778, %v766, %v777
    %v780 = vsel %vm45, %v774, %v775
    %v781 = vsel %vm778, %v768, %v780
    %v782 = vsel %vm45, %v775, %v776
    %v783 = vsel %vm778, %v770, %v782
    %s787 = scalar_lea.vmem [#allocation2], 600
    %788 = vst [vmem:[%s787] sm:$0xff] %v779
    %789 = vst [vmem:[%s787 + $0x8] sm:$0xff] %v781
    %790 = vst.msk [vmem:[%s787 + $0x10] sm:$0xff] %vm47, %v783
    %v791 = vld [vmem:[%s0] sm:$0xff]
    %v792 = vld [vmem:[%s0 + $0x8] sm:$0xff]
    %v793 = vld [vmem:[%s0 + $0x10] sm:$0xff]
    %v794 = vld [vmem:[%s0 + $0x18] sm:$0xf]
    %799 = vrot.lane.b32.xlu0 %v791, 102
    %v800 = vpop.permute.xlu0 %799
    %801 = vrot.lane.b32.xlu0 %v792, 102
    %v802 = vpop.permute.xlu0 %801
    %803 = vrot.lane.b32.xlu0 %v793, 102
    %v804 = vpop.permute.xlu0 %803
    %805 = vrot.lane.b32.xlu0 %v794, 102
    %v806 = vpop.permute.xlu0 %805
    %v807 = vrot.slane %v800, 4
    %v808 = vrot.slane %v802, 4
    %v809 = vrot.slane %v804, 4
    %v810 = vrot.slane %v806, 4
    %v811 = vsel %vm45, %v807, %v808
    %vm812 = vcmask 834560
    %v813 = vsel %vm812, %v800, %v811
    %v814 = vsel %vm45, %v808, %v809
    %v815 = vsel %vm812, %v802, %v814
    %v816 = vsel %vm45, %v809, %v810
    %v817 = vsel %vm812, %v804, %v816
    %s821 = scalar_lea.vmem [#allocation2], 624
    %822 = vst [vmem:[%s821] sm:$0xff] %v813
    %823 = vst [vmem:[%s821 + $0x8] sm:$0xff] %v815
    %824 = vst.msk [vmem:[%s821 + $0x10] sm:$0xff] %vm47, %v817
    %v825 = vld [vmem:[%s0] sm:$0xff]
    %v826 = vld [vmem:[%s0 + $0x8] sm:$0xff]
    %v827 = vld [vmem:[%s0 + $0x10] sm:$0xff]
    %v828 = vld [vmem:[%s0 + $0x18] sm:$0xf]
    %833 = vrot.lane.b32.xlu0 %v825, 101
    %v834 = vpop.permute.xlu0 %833
    %835 = vrot.lane.b32.xlu0 %v826, 101
    %v836 = vpop.permute.xlu0 %835
    %837 = vrot.lane.b32.xlu0 %v827, 101
    %v838 = vpop.permute.xlu0 %837
    %839 = vrot.lane.b32.xlu0 %v828, 101
    %v840 = vpop.permute.xlu0 %839
    %v841 = vrot.slane %v834, 4
    %v842 = vrot.slane %v836, 4
    %v843 = vrot.slane %v838, 4
    %v844 = vrot.slane %v840, 4
    %v845 = vsel %vm45, %v841, %v842
    %vm846 = vcmask 826368
    %v847 = vsel %vm846, %v834, %v845
    %v848 = vsel %vm45, %v842, %v843
    %v849 = vsel %vm846, %v836, %v848
    %v850 = vsel %vm45, %v843, %v844
    %v851 = vsel %vm846, %v838, %v850
    %s855 = scalar_lea.vmem [#allocation2], 648
    %856 = vst [vmem:[%s855] sm:$0xff] %v847
    %857 = vst [vmem:[%s855 + $0x8] sm:$0xff] %v849
    %858 = vst.msk [vmem:[%s855 + $0x10] sm:$0xff] %vm47, %v851
    %v859 = vld [vmem:[%s0] sm:$0xff]
    %v860 = vld [vmem:[%s0 + $0x8] sm:$0xff]
    %v861 = vld [vmem:[%s0 + $0x10] sm:$0xff]
    %v862 = vld [vmem:[%s0 + $0x18] sm:$0xf]
    %867 = vrot.lane.b32.xlu0 %v859, 100
    %v868 = vpop.permute.xlu0 %867
    %869 = vrot.lane.b32.xlu0 %v860, 100
    %v870 = vpop.permute.xlu0 %869
    %871 = vrot.lane.b32.xlu0 %v861, 100
    %v872 = vpop.permute.xlu0 %871
    %873 = vrot.lane.b32.xlu0 %v862, 100
    %v874 = vpop.permute.xlu0 %873
    %v875 = vrot.slane %v868, 4
    %v876 = vrot.slane %v870, 4
    %v877 = vrot.slane %v872, 4
    %v878 = vrot.slane %v874, 4
    %v879 = vsel %vm45, %v875, %v876
    %vm880 = vcmask 818176
    %v881 = vsel %vm880, %v868, %v879
    %v882 = vsel %vm45, %v876, %v877
    %v883 = vsel %vm880, %v870, %v882
    %v884 = vsel %vm45, %v877, %v878
    %v885 = vsel %vm880, %v872, %v884
    %s889 = scalar_lea.vmem [#allocation2], 672
    %890 = vst [vmem:[%s889] sm:$0xff] %v881
    %891 = vst [vmem:[%s889 + $0x8] sm:$0xff] %v883
    %892 = vst.msk [vmem:[%s889 + $0x10] sm:$0xff] %vm47, %v885
    %v893 = vld [vmem:[%s0] sm:$0xff]
    %v894 = vld [vmem:[%s0 + $0x8] sm:$0xff]
    %v895 = vld [vmem:[%s0 + $0x10] sm:$0xff]
    %v896 = vld [vmem:[%s0 + $0x18] sm:$0xf]
    %901 = vrot.lane.b32.xlu0 %v893, 99
    %v902 = vpop.permute.xlu0 %901
    %903 = vrot.lane.b32.xlu0 %v894, 99
    %v904 = vpop.permute.xlu0 %903
    %905 = vrot.lane.b32.xlu0 %v895, 99
    %v906 = vpop.permute.xlu0 %905
    %907 = vrot.lane.b32.xlu0 %v896, 99
    %v908 = vpop.permute.xlu0 %907
    %v909 = vrot.slane %v902, 4
    %v910 = vrot.slane %v904, 4
    %v911 = vrot.slane %v906, 4
    %v912 = vrot.slane %v908, 4
    %v913 = vsel %vm45, %v909, %v910
    %vm914 = vcmask 809984
    %v915 = vsel %vm914, %v902, %v913
    %v916 = vsel %vm45, %v910, %v911
    %v917 = vsel %vm914, %v904, %v916
    %v918 = vsel %vm45, %v911, %v912
    %v919 = vsel %vm914, %v906, %v918
    %s923 = scalar_lea.vmem [#allocation2], 696
    %924 = vst [vmem:[%s923] sm:$0xff] %v915
    %925 = vst [vmem:[%s923 + $0x8] sm:$0xff] %v917
    %926 = vst.msk [vmem:[%s923 + $0x10] sm:$0xff] %vm47, %v919
    %v927 = vld [vmem:[%s0] sm:$0xff]
    %v928 = vld [vmem:[%s0 + $0x8] sm:$0xff]
    %v929 = vld [vmem:[%s0 + $0x10] sm:$0xff]
    %v930 = vld [vmem:[%s0 + $0x18] sm:$0xf]
    %935 = vrot.lane.b32.xlu0 %v927, 98
    %v936 = vpop.permute.xlu0 %935
    %937 = vrot.lane.b32.xlu0 %v928, 98
    %v938 = vpop.permute.xlu0 %937
    %939 = vrot.lane.b32.xlu0 %v929, 98
    %v940 = vpop.permute.xlu0 %939
    %941 = vrot.lane.b32.xlu0 %v930, 98
    %v942 = vpop.permute.xlu0 %941
    %v943 = vrot.slane %v936, 4
    %v944 = vrot.slane %v938, 4
    %v945 = vrot.slane %v940, 4
    %v946 = vrot.slane %v942, 4
    %v947 = vsel %vm45, %v943, %v944
    %vm948 = vcmask 801792
    %v949 = vsel %vm948, %v936, %v947
    %v950 = vsel %vm45, %v944, %v945
    %v951 = vsel %vm948, %v938, %v950
    %v952 = vsel %vm45, %v945, %v946
    %v953 = vsel %vm948, %v940, %v952
    %s957 = scalar_lea.vmem [#allocation2], 720
    %958 = vst [vmem:[%s957] sm:$0xff] %v949
    %959 = vst [vmem:[%s957 + $0x8] sm:$0xff] %v951
    %960 = vst.msk [vmem:[%s957 + $0x10] sm:$0xff] %vm47, %v953
    %v961 = vld [vmem:[%s0] sm:$0xff]
    %v962 = vld [vmem:[%s0 + $0x8] sm:$0xff]
    %v963 = vld [vmem:[%s0 + $0x10] sm:$0xff]
    %v964 = vld [vmem:[%s0 + $0x18] sm:$0xf]
    %969 = vrot.lane.b32.xlu0 %v961, 97
    %v970 = vpop.permute.xlu0 %969
    %971 = vrot.lane.b32.xlu0 %v962, 97
    %v972 = vpop.permute.xlu0 %971
    %973 = vrot.lane.b32.xlu0 %v963, 97
    %v974 = vpop.permute.xlu0 %973
    %975 = vrot.lane.b32.xlu0 %v964, 97
    %v976 = vpop.permute.xlu0 %975
    %v977 = vrot.slane %v970, 4
    %v978 = vrot.slane %v972, 4
    %v979 = vrot.slane %v974, 4
    %v980 = vrot.slane %v976, 4
    %v981 = vsel %vm45, %v977, %v978
    %vm982 = vcmask 793600
    %v983 = vsel %vm982, %v970, %v981
    %v984 = vsel %vm45, %v978, %v979
    %v985 = vsel %vm982, %v972, %v984
    %v986 = vsel %vm45, %v979, %v980
    %v987 = vsel %vm982, %v974, %v986
    %s991 = scalar_lea.vmem [#allocation2], 744
    %992 = vst [vmem:[%s991] sm:$0xff] %v983
    %993 = vst [vmem:[%s991 + $0x8] sm:$0xff] %v985
    %994 = vst.msk [vmem:[%s991 + $0x10] sm:$0xff] %vm47, %v987
    %v995 = vld [vmem:[%s0] sm:$0xff]
    %v996 = vld [vmem:[%s0 + $0x8] sm:$0xff]
    %v997 = vld [vmem:[%s0 + $0x10] sm:$0xff]
    %v998 = vld [vmem:[%s0 + $0x18] sm:$0xf]
    %1003 = vrot.lane.b32.xlu0 %v995, 96
    %v1004 = vpop.permute.xlu0 %1003
    %1005 = vrot.lane.b32.xlu0 %v996, 96
    %v1006 = vpop.permute.xlu0 %1005
    %1007 = vrot.lane.b32.xlu0 %v997, 96
    %v1008 = vpop.permute.xlu0 %1007
    %1009 = vrot.lane.b32.xlu0 %v998, 96
    %v1010 = vpop.permute.xlu0 %1009
    %v1011 = vrot.slane %v1004, 4
    %v1012 = vrot.slane %v1006, 4
    %v1013 = vrot.slane %v1008, 4
    %v1014 = vrot.slane %v1010, 4
    %v1015 = vsel %vm45, %v1011, %v1012
    %vm1016 = vcmask 785408
    %v1017 = vsel %vm1016, %v1004, %v1015
    %v1018 = vsel %vm45, %v1012, %v1013
    %v1019 = vsel %vm1016, %v1006, %v1018
    %v1020 = vsel %vm45, %v1013, %v1014
    %v1021 = vsel %vm1016, %v1008, %v1020
    %s1025 = scalar_lea.vmem [#allocation2], 768
    %1026 = vst [vmem:[%s1025] sm:$0xff] %v1017
    %1027 = vst [vmem:[%s1025 + $0x8] sm:$0xff] %v1019
    %1028 = vst.msk [vmem:[%s1025 + $0x10] sm:$0xff] %vm47, %v1021
    %v1029 = vld [vmem:[%s0] sm:$0xff]
    %v1030 = vld [vmem:[%s0 + $0x8] sm:$0xff]
    %v1031 = vld [vmem:[%s0 + $0x10] sm:$0xff]
    %v1032 = vld [vmem:[%s0 + $0x18] sm:$0xf]
    %1037 = vrot.lane.b32.xlu0 %v1029, 95
    %v1038 = vpop.permute.xlu0 %1037
    %1039 = vrot.lane.b32.xlu0 %v1030, 95
    %v1040 = vpop.permute.xlu0 %1039
    %1041 = vrot.lane.b32.xlu0 %v1031, 95
    %v1042 = vpop.permute.xlu0 %1041
    %1043 = vrot.lane.b32.xlu0 %v1032, 95
    %v1044 = vpop.permute.xlu0 %1043
    %v1045 = vrot.slane %v1038, 4
    %v1046 = vrot.slane %v1040, 4
    %v1047 = vrot.slane %v1042, 4
    %v1048 = vrot.slane %v1044, 4
    %v1049 = vsel %vm45, %v1045, %v1046
    %vm1050 = vcmask 777216
    %v1051 = vsel %vm1050, %v1038, %v1049
    %v1052 = vsel %vm45, %v1046, %v1047
    %v1053 = vsel %vm1050, %v1040, %v1052
    %v1054 = vsel %vm45, %v1047, %v1048
    %v1055 = vsel %vm1050, %v1042, %v1054
    %s1059 = scalar_lea.vmem [#allocation2], 792
    %1060 = vst [vmem:[%s1059] sm:$0xff] %v1051
    %1061 = vst [vmem:[%s1059 + $0x8] sm:$0xff] %v1053
    %1062 = vst.msk [vmem:[%s1059 + $0x10] sm:$0xff] %vm47, %v1055
    %v1063 = vld [vmem:[%s0] sm:$0xff]
    %v1064 = vld [vmem:[%s0 + $0x8] sm:$0xff]
    %v1065 = vld [vmem:[%s0 + $0x10] sm:$0xff]
    %v1066 = vld [vmem:[%s0 + $0x18] sm:$0xf]
    %1071 = vrot.lane.b32.xlu0 %v1063, 94
    %v1072 = vpop.permute.xlu0 %1071
    %1073 = vrot.lane.b32.xlu0 %v1064, 94
    %v1074 = vpop.permute.xlu0 %1073
    %1075 = vrot.lane.b32.xlu0 %v1065, 94
    %v1076 = vpop.permute.xlu0 %1075
    %1077 = vrot.lane.b32.xlu0 %v1066, 94
    %v1078 = vpop.permute.xlu0 %1077
    %v1079 = vrot.slane %v1072, 4
    %v1080 = vrot.slane %v1074, 4
    %v1081 = vrot.slane %v1076, 4
    %v1082 = vrot.slane %v1078, 4
    %v1083 = vsel %vm45, %v1079, %v1080
    %vm1084 = vcmask 769024
    %v1085 = vsel %vm1084, %v1072, %v1083
    %v1086 = vsel %vm45, %v1080, %v1081
    %v1087 = vsel %vm1084, %v1074, %v1086
    %v1088 = vsel %vm45, %v1081, %v1082
    %v1089 = vsel %vm1084, %v1076, %v1088
    %s1093 = scalar_lea.vmem [#allocation2], 816
    %1094 = vst [vmem:[%s1093] sm:$0xff] %v1085
    %1095 = vst [vmem:[%s1093 + $0x8] sm:$0xff] %v1087
    %1096 = vst.msk [vmem:[%s1093 + $0x10] sm:$0xff] %vm47, %v1089
    %v1097 = vld [vmem:[%s0] sm:$0xff]
    %v1098 = vld [vmem:[%s0 + $0x8] sm:$0xff]
    %v1099 = vld [vmem:[%s0 + $0x10] sm:$0xff]
    %v1100 = vld [vmem:[%s0 + $0x18] sm:$0xf]
    %1105 = vrot.lane.b32.xlu0 %v1097, 93
    %v1106 = vpop.permute.xlu0 %1105
    %1107 = vrot.lane.b32.xlu0 %v1098, 93
    %v1108 = vpop.permute.xlu0 %1107
    %1109 = vrot.lane.b32.xlu0 %v1099, 93
    %v1110 = vpop.permute.xlu0 %1109
    %1111 = vrot.lane.b32.xlu0 %v1100, 93
    %v1112 = vpop.permute.xlu0 %1111
    %v1113 = vrot.slane %v1106, 4
    %v1114 = vrot.slane %v1108, 4
    %v1115 = vrot.slane %v1110, 4
    %v1116 = vrot.slane %v1112, 4
    %v1117 = vsel %vm45, %v1113, %v1114
    %vm1118 = vcmask 760832
    %v1119 = vsel %vm1118, %v1106, %v1117
    %v1120 = vsel %vm45, %v1114, %v1115
    %v1121 = vsel %vm1118, %v1108, %v1120
    %v1122 = vsel %vm45, %v1115, %v1116
    %v1123 = vsel %vm1118, %v1110, %v1122
    %s1127 = scalar_lea.vmem [#allocation2], 840
    %1128 = vst [vmem:[%s1127] sm:$0xff] %v1119
    %1129 = vst [vmem:[%s1127 + $0x8] sm:$0xff] %v1121
    %1130 = vst.msk [vmem:[%s1127 + $0x10] sm:$0xff] %vm47, %v1123
    %v1131 = vld [vmem:[%s0] sm:$0xff]
    %v1132 = vld [vmem:[%s0 + $0x8] sm:$0xff]
    %v1133 = vld [vmem:[%s0 + $0x10] sm:$0xff]
    %v1134 = vld [vmem:[%s0 + $0x18] sm:$0xf]
    %1139 = vrot.lane.b32.xlu0 %v1131, 92
    %v1140 = vpop.permute.xlu0 %1139
    %1141 = vrot.lane.b32.xlu0 %v1132, 92
    %v1142 = vpop.permute.xlu0 %1141
    %1143 = vrot.lane.b32.xlu0 %v1133, 92
    %v1144 = vpop.permute.xlu0 %1143
    %1145 = vrot.lane.b32.xlu0 %v1134, 92
    %v1146 = vpop.permute.xlu0 %1145
    %v1147 = vrot.slane %v1140, 4
    %v1148 = vrot.slane %v1142, 4
    %v1149 = vrot.slane %v1144, 4
    %v1150 = vrot.slane %v1146, 4
    %v1151 = vsel %vm45, %v1147, %v1148
    %vm1152 = vcmask 752640
    %v1153 = vsel %vm1152, %v1140, %v1151
    %v1154 = vsel %vm45, %v1148, %v1149
    %v1155 = vsel %vm1152, %v1142, %v1154
    %v1156 = vsel %vm45, %v1149, %v1150
    %v1157 = vsel %vm1152, %v1144, %v1156
    %s1161 = scalar_lea.vmem [#allocation2], 864
    %1162 = vst [vmem:[%s1161] sm:$0xff] %v1153
    %1163 = vst [vmem:[%s1161 + $0x8] sm:$0xff] %v1155
    %1164 = vst.msk [vmem:[%s1161 + $0x10] sm:$0xff] %vm47, %v1157
    %v1165 = vld [vmem:[%s0] sm:$0xff]
    %v1166 = vld [vmem:[%s0 + $0x8] sm:$0xff]
    %v1167 = vld [vmem:[%s0 + $0x10] sm:$0xff]
    %v1168 = vld [vmem:[%s0 + $0x18] sm:$0xf]
    %1173 = vrot.lane.b32.xlu0 %v1165, 91
    %v1174 = vpop.permute.xlu0 %1173
    %1175 = vrot.lane.b32.xlu0 %v1166, 91
    %v1176 = vpop.permute.xlu0 %1175
    %1177 = vrot.lane.b32.xlu0 %v1167, 91
    %v1178 = vpop.permute.xlu0 %1177
    %1179 = vrot.lane.b32.xlu0 %v1168, 91
    %v1180 = vpop.permute.xlu0 %1179
    %v1181 = vrot.slane %v1174, 4
    %v1182 = vrot.slane %v1176, 4
    %v1183 = vrot.slane %v1178, 4
    %v1184 = vrot.slane %v1180, 4
    %v1185 = vsel %vm45, %v1181, %v1182
    %vm1186 = vcmask 744448
    %v1187 = vsel %vm1186, %v1174, %v1185
    %v1188 = vsel %vm45, %v1182, %v1183
    %v1189 = vsel %vm1186, %v1176, %v1188
    %v1190 = vsel %vm45, %v1183, %v1184
    %v1191 = vsel %vm1186, %v1178, %v1190
    %s1195 = scalar_lea.vmem [#allocation2], 888
    %1196 = vst [vmem:[%s1195] sm:$0xff] %v1187
    %1197 = vst [vmem:[%s1195 + $0x8] sm:$0xff] %v1189
    %1198 = vst.msk [vmem:[%s1195 + $0x10] sm:$0xff] %vm47, %v1191
    %v1199 = vld [vmem:[%s0] sm:$0xff]
    %v1200 = vld [vmem:[%s0 + $0x8] sm:$0xff]
    %v1201 = vld [vmem:[%s0 + $0x10] sm:$0xff]
    %v1202 = vld [vmem:[%s0 + $0x18] sm:$0xf]
    %1207 = vrot.lane.b32.xlu0 %v1199, 90
    %v1208 = vpop.permute.xlu0 %1207
    %1209 = vrot.lane.b32.xlu0 %v1200, 90
    %v1210 = vpop.permute.xlu0 %1209
    %1211 = vrot.lane.b32.xlu0 %v1201, 90
    %v1212 = vpop.permute.xlu0 %1211
    %1213 = vrot.lane.b32.xlu0 %v1202, 90
    %v1214 = vpop.permute.xlu0 %1213
    %v1215 = vrot.slane %v1208, 4
    %v1216 = vrot.slane %v1210, 4
    %v1217 = vrot.slane %v1212, 4
    %v1218 = vrot.slane %v1214, 4
    %v1219 = vsel %vm45, %v1215, %v1216
    %vm1220 = vcmask 736256
    %v1221 = vsel %vm1220, %v1208, %v1219
    %v1222 = vsel %vm45, %v1216, %v1217
    %v1223 = vsel %vm1220, %v1210, %v1222
    %v1224 = vsel %vm45, %v1217, %v1218
    %v1225 = vsel %vm1220, %v1212, %v1224
    %s1229 = scalar_lea.vmem [#allocation2], 912
    %1230 = vst [vmem:[%s1229] sm:$0xff] %v1221
    %1231 = vst [vmem:[%s1229 + $0x8] sm:$0xff] %v1223
    %1232 = vst.msk [vmem:[%s1229 + $0x10] sm:$0xff] %vm47, %v1225
    %v1233 = vld [vmem:[%s0] sm:$0xff]
    %v1234 = vld [vmem:[%s0 + $0x8] sm:$0xff]
    %v1235 = vld [vmem:[%s0 + $0x10] sm:$0xff]
    %v1236 = vld [vmem:[%s0 + $0x18] sm:$0xf]
    %1241 = vrot.lane.b32.xlu0 %v1233, 89
    %v1242 = vpop.permute.xlu0 %1241
    %1243 = vrot.lane.b32.xlu0 %v1234, 89
    %v1244 = vpop.permute.xlu0 %1243
    %1245 = vrot.lane.b32.xlu0 %v1235, 89
    %v1246 = vpop.permute.xlu0 %1245
    %1247 = vrot.lane.b32.xlu0 %v1236, 89
    %v1248 = vpop.permute.xlu0 %1247
    %v1249 = vrot.slane %v1242, 4
    %v1250 = vrot.slane %v1244, 4
    %v1251 = vrot.slane %v1246, 4
    %v1252 = vrot.slane %v1248, 4
    %v1253 = vsel %vm45, %v1249, %v1250
    %vm1254 = vcmask 728064
    %v1255 = vsel %vm1254, %v1242, %v1253
    %v1256 = vsel %vm45, %v1250, %v1251
    %v1257 = vsel %vm1254, %v1244, %v1256
    %v1258 = vsel %vm45, %v1251, %v1252
    %v1259 = vsel %vm1254, %v1246, %v1258
    %s1263 = scalar_lea.vmem [#allocation2], 936
    %1264 = vst [vmem:[%s1263] sm:$0xff] %v1255
    %1265 = vst [vmem:[%s1263 + $0x8] sm:$0xff] %v1257
    %1266 = vst.msk [vmem:[%s1263 + $0x10] sm:$0xff] %vm47, %v1259
    %v1267 = vld [vmem:[%s0] sm:$0xff]
    %v1268 = vld [vmem:[%s0 + $0x8] sm:$0xff]
    %v1269 = vld [vmem:[%s0 + $0x10] sm:$0xff]
    %v1270 = vld [vmem:[%s0 + $0x18] sm:$0xf]
    %1275 = vrot.lane.b32.xlu0 %v1267, 88
    %v1276 = vpop.permute.xlu0 %1275
    %1277 = vrot.lane.b32.xlu0 %v1268, 88
    %v1278 = vpop.permute.xlu0 %1277
    %1279 = vrot.lane.b32.xlu0 %v1269, 88
    %v1280 = vpop.permute.xlu0 %1279
    %1281 = vrot.lane.b32.xlu0 %v1270, 88
    %v1282 = vpop.permute.xlu0 %1281
    %v1283 = vrot.slane %v1276, 4
    %v1284 = vrot.slane %v1278, 4
    %v1285 = vrot.slane %v1280, 4
    %v1286 = vrot.slane %v1282, 4
    %v1287 = vsel %vm45, %v1283, %v1284
    %vm1288 = vcmask 719872
    %v1289 = vsel %vm1288, %v1276, %v1287
    %v1290 = vsel %vm45, %v1284, %v1285
    %v1291 = vsel %vm1288, %v1278, %v1290
    %v1292 = vsel %vm45, %v1285, %v1286
    %v1293 = vsel %vm1288, %v1280, %v1292
    %s1297 = scalar_lea.vmem [#allocation2], 960
    %1298 = vst [vmem:[%s1297] sm:$0xff] %v1289
    %1299 = vst [vmem:[%s1297 + $0x8] sm:$0xff] %v1291
    %1300 = vst.msk [vmem:[%s1297 + $0x10] sm:$0xff] %vm47, %v1293
    %v1301 = vld [vmem:[%s0] sm:$0xff]
    %v1302 = vld [vmem:[%s0 + $0x8] sm:$0xff]
    %v1303 = vld [vmem:[%s0 + $0x10] sm:$0xff]
    %v1304 = vld [vmem:[%s0 + $0x18] sm:$0xf]
    %1309 = vrot.lane.b32.xlu0 %v1301, 87
    %v1310 = vpop.permute.xlu0 %1309
    %1311 = vrot.lane.b32.xlu0 %v1302, 87
    %v1312 = vpop.permute.xlu0 %1311
    %1313 = vrot.lane.b32.xlu0 %v1303, 87
    %v1314 = vpop.permute.xlu0 %1313
    %1315 = vrot.lane.b32.xlu0 %v1304, 87
    %v1316 = vpop.permute.xlu0 %1315
    %v1317 = vrot.slane %v1310, 4
    %v1318 = vrot.slane %v1312, 4
    %v1319 = vrot.slane %v1314, 4
    %v1320 = vrot.slane %v1316, 4
    %v1321 = vsel %vm45, %v1317, %v1318
    %vm1322 = vcmask 711680
    %v1323 = vsel %vm1322, %v1310, %v1321
    %v1324 = vsel %vm45, %v1318, %v1319
    %v1325 = vsel %vm1322, %v1312, %v1324
    %v1326 = vsel %vm45, %v1319, %v1320
    %v1327 = vsel %vm1322, %v1314, %v1326
    %s1331 = scalar_lea.vmem [#allocation2], 984
    %1332 = vst [vmem:[%s1331] sm:$0xff] %v1323
    %1333 = vst [vmem:[%s1331 + $0x8] sm:$0xff] %v1325
    %1334 = vst.msk [vmem:[%s1331 + $0x10] sm:$0xff] %vm47, %v1327
    %v1335 = vld [vmem:[%s0] sm:$0xff]
    %v1336 = vld [vmem:[%s0 + $0x8] sm:$0xff]
    %v1337 = vld [vmem:[%s0 + $0x10] sm:$0xff]
    %v1338 = vld [vmem:[%s0 + $0x18] sm:$0xf]
    %1343 = vrot.lane.b32.xlu0 %v1335, 86
    %v1344 = vpop.permute.xlu0 %1343
    %1345 = vrot.lane.b32.xlu0 %v1336, 86
    %v1346 = vpop.permute.xlu0 %1345
    %1347 = vrot.lane.b32.xlu0 %v1337, 86
    %v1348 = vpop.permute.xlu0 %1347
    %1349 = vrot.lane.b32.xlu0 %v1338, 86
    %v1350 = vpop.permute.xlu0 %1349
    %v1351 = vrot.slane %v1344, 4
    %v1352 = vrot.slane %v1346, 4
    %v1353 = vrot.slane %v1348, 4
    %v1354 = vrot.slane %v1350, 4
    %v1355 = vsel %vm45, %v1351, %v1352
    %vm1356 = vcmask 703488
    %v1357 = vsel %vm1356, %v1344, %v1355
    %v1358 = vsel %vm45, %v1352, %v1353
    %v1359 = vsel %vm1356, %v1346, %v1358
    %v1360 = vsel %vm45, %v1353, %v1354
    %v1361 = vsel %vm1356, %v1348, %v1360
    %s1365 = scalar_lea.vmem [#allocation2], 1008
    %1366 = vst [vmem:[%s1365] sm:$0xff] %v1357
    %1367 = vst [vmem:[%s1365 + $0x8] sm:$0xff] %v1359
    %1368 = vst.msk [vmem:[%s1365 + $0x10] sm:$0xff] %vm47, %v1361
    %v1369 = vld [vmem:[%s0] sm:$0xff]
    %v1370 = vld [vmem:[%s0 + $0x8] sm:$0xff]
    %v1371 = vld [vmem:[%s0 + $0x10] sm:$0xff]
    %v1372 = vld [vmem:[%s0 + $0x18] sm:$0xf]
    %1377 = vrot.lane.b32.xlu0 %v1369, 85
    %v1378 = vpop.permute.xlu0 %1377
    %1379 = vrot.lane.b32.xlu0 %v1370, 85
    %v1380 = vpop.permute.xlu0 %1379
    %1381 = vrot.lane.b32.xlu0 %v1371, 85
    %v1382 = vpop.permute.xlu0 %1381
    %1383 = vrot.lane.b32.xlu0 %v1372, 85
    %v1384 = vpop.permute.xlu0 %1383
    %v1385 = vrot.slane %v1378, 4
    %v1386 = vrot.slane %v1380, 4
    %v1387 = vrot.slane %v1382, 4
    %v1388 = vrot.slane %v1384, 4
    %v1389 = vsel %vm45, %v1385, %v1386
    %vm1390 = vcmask 695296
    %v1391 = vsel %vm1390, %v1378, %v1389
    %v1392 = vsel %vm45, %v1386, %v1387
    %v1393 = vsel %vm1390, %v1380, %v1392
    %v1394 = vsel %vm45, %v1387, %v1388
    %v1395 = vsel %vm1390, %v1382, %v1394
    %s1399 = scalar_lea.vmem [#allocation2], 1032
    %1400 = vst [vmem:[%s1399] sm:$0xff] %v1391
    %1401 = vst [vmem:[%s1399 + $0x8] sm:$0xff] %v1393
    %1402 = vst.msk [vmem:[%s1399 + $0x10] sm:$0xff] %vm47, %v1395
    %v1403 = vld [vmem:[%s0] sm:$0xff]
    %v1404 = vld [vmem:[%s0 + $0x8] sm:$0xff]
    %v1405 = vld [vmem:[%s0 + $0x10] sm:$0xff]
    %v1406 = vld [vmem:[%s0 + $0x18] sm:$0xf]
    %1411 = vrot.lane.b32.xlu0 %v1403, 84
    %v1412 = vpop.permute.xlu0 %1411
    %1413 = vrot.lane.b32.xlu0 %v1404, 84
    %v1414 = vpop.permute.xlu0 %1413
    %1415 = vrot.lane.b32.xlu0 %v1405, 84
    %v1416 = vpop.permute.xlu0 %1415
    %1417 = vrot.lane.b32.xlu0 %v1406, 84
    %v1418 = vpop.permute.xlu0 %1417
    %v1419 = vrot.slane %v1412, 4
    %v1420 = vrot.slane %v1414, 4
    %v1421 = vrot.slane %v1416, 4
    %v1422 = vrot.slane %v1418, 4
    %v1423 = vsel %vm45, %v1419, %v1420
    %vm1424 = vcmask 687104
    %v1425 = vsel %vm1424, %v1412, %v1423
    %v1426 = vsel %vm45, %v1420, %v1421
    %v1427 = vsel %vm1424, %v1414, %v1426
    %v1428 = vsel %vm45, %v1421, %v1422
    %v1429 = vsel %vm1424, %v1416, %v1428
    %s1433 = scalar_lea.vmem [#allocation2], 1056
    %1434 = vst [vmem:[%s1433] sm:$0xff] %v1425
    %1435 = vst [vmem:[%s1433 + $0x8] sm:$0xff] %v1427
    %1436 = vst.msk [vmem:[%s1433 + $0x10] sm:$0xff] %vm47, %v1429
    %v1437 = vld [vmem:[%s0] sm:$0xff]
    %v1438 = vld [vmem:[%s0 + $0x8] sm:$0xff]
    %v1439 = vld [vmem:[%s0 + $0x10] sm:$0xff]
    %v1440 = vld [vmem:[%s0 + $0x18] sm:$0xf]
    %1445 = vrot.lane.b32.xlu0 %v1437, 83
    %v1446 = vpop.permute.xlu0 %1445
    %1447 = vrot.lane.b32.xlu0 %v1438, 83
    %v1448 = vpop.permute.xlu0 %1447
    %1449 = vrot.lane.b32.xlu0 %v1439, 83
    %v1450 = vpop.permute.xlu0 %1449
    %1451 = vrot.lane.b32.xlu0 %v1440, 83
    %v1452 = vpop.permute.xlu0 %1451
    %v1453 = vrot.slane %v1446, 4
    %v1454 = vrot.slane %v1448, 4
    %v1455 = vrot.slane %v1450, 4
    %v1456 = vrot.slane %v1452, 4
    %v1457 = vsel %vm45, %v1453, %v1454
    %vm1458 = vcmask 678912
    %v1459 = vsel %vm1458, %v1446, %v1457
    %v1460 = vsel %vm45, %v1454, %v1455
    %v1461 = vsel %vm1458, %v1448, %v1460
    %v1462 = vsel %vm45, %v1455, %v1456
    %v1463 = vsel %vm1458, %v1450, %v1462
    %s1467 = scalar_lea.vmem [#allocation2], 1080
    %1468 = vst [vmem:[%s1467] sm:$0xff] %v1459
    %1469 = vst [vmem:[%s1467 + $0x8] sm:$0xff] %v1461
    %1470 = vst.msk [vmem:[%s1467 + $0x10] sm:$0xff] %vm47, %v1463
    %v1471 = vld [vmem:[%s0] sm:$0xff]
    %v1472 = vld [vmem:[%s0 + $0x8] sm:$0xff]
    %v1473 = vld [vmem:[%s0 + $0x10] sm:$0xff]
    %v1474 = vld [vmem:[%s0 + $0x18] sm:$0xf]
    %1479 = vrot.lane.b32.xlu0 %v1471, 82
    %v1480 = vpop.permute.xlu0 %1479
    %1481 = vrot.lane.b32.xlu0 %v1472, 82
    %v1482 = vpop.permute.xlu0 %1481
    %1483 = vrot.lane.b32.xlu0 %v1473, 82
    %v1484 = vpop.permute.xlu0 %1483
    %1485 = vrot.lane.b32.xlu0 %v1474, 82
    %v1486 = vpop.permute.xlu0 %1485
    %v1487 = vrot.slane %v1480, 4
    %v1488 = vrot.slane %v1482, 4
    %v1489 = vrot.slane %v1484, 4
    %v1490 = vrot.slane %v1486, 4
    %v1491 = vsel %vm45, %v1487, %v1488
    %vm1492 = vcmask 670720
    %v1493 = vsel %vm1492, %v1480, %v1491
    %v1494 = vsel %vm45, %v1488, %v1489
    %v1495 = vsel %vm1492, %v1482, %v1494
    %v1496 = vsel %vm45, %v1489, %v1490
    %v1497 = vsel %vm1492, %v1484, %v1496
    %s1501 = scalar_lea.vmem [#allocation2], 1104
    %1502 = vst [vmem:[%s1501] sm:$0xff] %v1493
    %1503 = vst [vmem:[%s1501 + $0x8] sm:$0xff] %v1495
    %1504 = vst.msk [vmem:[%s1501 + $0x10] sm:$0xff] %vm47, %v1497
    %v1505 = vld [vmem:[%s0] sm:$0xff]
    %v1506 = vld [vmem:[%s0 + $0x8] sm:$0xff]
    %v1507 = vld [vmem:[%s0 + $0x10] sm:$0xff]
    %v1508 = vld [vmem:[%s0 + $0x18] sm:$0xf]
    %1513 = vrot.lane.b32.xlu0 %v1505, 81
    %v1514 = vpop.permute.xlu0 %1513
    %1515 = vrot.lane.b32.xlu0 %v1506, 81
    %v1516 = vpop.permute.xlu0 %1515
    %1517 = vrot.lane.b32.xlu0 %v1507, 81
    %v1518 = vpop.permute.xlu0 %1517
    %1519 = vrot.lane.b32.xlu0 %v1508, 81
    %v1520 = vpop.permute.xlu0 %1519
    %v1521 = vrot.slane %v1514, 4
    %v1522 = vrot.slane %v1516, 4
    %v1523 = vrot.slane %v1518, 4
    %v1524 = vrot.slane %v1520, 4
    %v1525 = vsel %vm45, %v1521, %v1522
    %vm1526 = vcmask 662528
    %v1527 = vsel %vm1526, %v1514, %v1525
    %v1528 = vsel %vm45, %v1522, %v1523
    %v1529 = vsel %vm1526, %v1516, %v1528
    %v1530 = vsel %vm45, %v1523, %v1524
    %v1531 = vsel %vm1526, %v1518, %v1530
    %s1535 = scalar_lea.vmem [#allocation2], 1128
    %1536 = vst [vmem:[%s1535] sm:$0xff] %v1527
    %1537 = vst [vmem:[%s1535 + $0x8] sm:$0xff] %v1529
    %1538 = vst.msk [vmem:[%s1535 + $0x10] sm:$0xff] %vm47, %v1531
    %v1539 = vld [vmem:[%s0] sm:$0xff]
    %v1540 = vld [vmem:[%s0 + $0x8] sm:$0xff]
    %v1541 = vld [vmem:[%s0 + $0x10] sm:$0xff]
    %v1542 = vld [vmem:[%s0 + $0x18] sm:$0xf]
    %1547 = vrot.lane.b32.xlu0 %v1539, 80
    %v1548 = vpop.permute.xlu0 %1547
    %1549 = vrot.lane.b32.xlu0 %v1540, 80
    %v1550 = vpop.permute.xlu0 %1549
    %1551 = vrot.lane.b32.xlu0 %v1541, 80
    %v1552 = vpop.permute.xlu0 %1551
    %1553 = vrot.lane.b32.xlu0 %v1542, 80
    %v1554 = vpop.permute.xlu0 %1553
    %v1555 = vrot.slane %v1548, 4
    %v1556 = vrot.slane %v1550, 4
    %v1557 = vrot.slane %v1552, 4
    %v1558 = vrot.slane %v1554, 4
    %v1559 = vsel %vm45, %v1555, %v1556
    %vm1560 = vcmask 654336
    %v1561 = vsel %vm1560, %v1548, %v1559
    %v1562 = vsel %vm45, %v1556, %v1557
    %v1563 = vsel %vm1560, %v1550, %v1562
    %v1564 = vsel %vm45, %v1557, %v1558
    %v1565 = vsel %vm1560, %v1552, %v1564
    %s1569 = scalar_lea.vmem [#allocation2], 1152
    %1570 = vst [vmem:[%s1569] sm:$0xff] %v1561
    %1571 = vst [vmem:[%s1569 + $0x8] sm:$0xff] %v1563
    %1572 = vst.msk [vmem:[%s1569 + $0x10] sm:$0xff] %vm47, %v1565
    %v1573 = vld [vmem:[%s0] sm:$0xff]
    %v1574 = vld [vmem:[%s0 + $0x8] sm:$0xff]
    %v1575 = vld [vmem:[%s0 + $0x10] sm:$0xff]
    %v1576 = vld [vmem:[%s0 + $0x18] sm:$0xf]
    %1581 = vrot.lane.b32.xlu0 %v1573, 79
    %v1582 = vpop.permute.xlu0 %1581
    %1583 = vrot.lane.b32.xlu0 %v1574, 79
    %v1584 = vpop.permute.xlu0 %1583
    %1585 = vrot.lane.b32.xlu0 %v1575, 79
    %v1586 = vpop.permute.xlu0 %1585
    %1587 = vrot.lane.b32.xlu0 %v1576, 79
    %v1588 = vpop.permute.xlu0 %1587
    %v1589 = vrot.slane %v1582, 4
    %v1590 = vrot.slane %v1584, 4
    %v1591 = vrot.slane %v1586, 4
    %v1592 = vrot.slane %v1588, 4
    %v1593 = vsel %vm45, %v1589, %v1590
    %vm1594 = vcmask 646144
    %v1595 = vsel %vm1594, %v1582, %v1593
    %v1596 = vsel %vm45, %v1590, %v1591
    %v1597 = vsel %vm1594, %v1584, %v1596
    %v1598 = vsel %vm45, %v1591, %v1592
    %v1599 = vsel %vm1594, %v1586, %v1598
    %s1603 = scalar_lea.vmem [#allocation2], 1176
    %1604 = vst [vmem:[%s1603] sm:$0xff] %v1595
    %1605 = vst [vmem:[%s1603 + $0x8] sm:$0xff] %v1597
    %1606 = vst.msk [vmem:[%s1603 + $0x10] sm:$0xff] %vm47, %v1599
    %v1607 = vld [vmem:[%s0] sm:$0xff]
    %v1608 = vld [vmem:[%s0 + $0x8] sm:$0xff]
    %v1609 = vld [vmem:[%s0 + $0x10] sm:$0xff]
    %v1610 = vld [vmem:[%s0 + $0x18] sm:$0xf]
    %1615 = vrot.lane.b32.xlu0 %v1607, 78
    %v1616 = vpop.permute.xlu0 %1615
    %1617 = vrot.lane.b32.xlu0 %v1608, 78
    %v1618 = vpop.permute.xlu0 %1617
    %1619 = vrot.lane.b32.xlu0 %v1609, 78
    %v1620 = vpop.permute.xlu0 %1619
    %1621 = vrot.lane.b32.xlu0 %v1610, 78
    %v1622 = vpop.permute.xlu0 %1621
    %v1623 = vrot.slane %v1616, 4
    %v1624 = vrot.slane %v1618, 4
    %v1625 = vrot.slane %v1620, 4
    %v1626 = vrot.slane %v1622, 4
    %v1627 = vsel %vm45, %v1623, %v1624
    %vm1628 = vcmask 637952
    %v1629 = vsel %vm1628, %v1616, %v1627
    %v1630 = vsel %vm45, %v1624, %v1625
    %v1631 = vsel %vm1628, %v1618, %v1630
    %v1632 = vsel %vm45, %v1625, %v1626
    %v1633 = vsel %vm1628, %v1620, %v1632
    %s1637 = scalar_lea.vmem [#allocation2], 1200
    %1638 = vst [vmem:[%s1637] sm:$0xff] %v1629
    %1639 = vst [vmem:[%s1637 + $0x8] sm:$0xff] %v1631
    %1640 = vst.msk [vmem:[%s1637 + $0x10] sm:$0xff] %vm47, %v1633
    loop: start=0, step=1, limit=17
    $region46: #{tpu_custom_call.1} parent=1 // loop_pre_header
      _
    $region47: #{tpu_custom_call.1} parent=1 // loop_header
      %s1642 = sphi 0, %s1646
      %p1643 = scmp.ge.s32.totalorder %s1642, 17
      %v1647 = vphi 0.0, %v1710
      %v1648 = vphi 0.0, %v1711
      %v1649 = vphi 0.0, %v1712
    $region48: #{tpu_custom_call.1} parent=1 // loop_header_branch
      %1645 = sbr.rel (%p1643) target = $region52
    $region49: #{tpu_custom_call.1} parent=1 // loop_body
      %s1650 = smul.u32 %s1642, 3
      %s1651 = scalar_lea.vmem %s1, %s1650
      %v1652 = vld [vmem:[%s1651] sm:$0x1]
      %s1653 = smul.u32 %s1650, 6
      %s1654 = smul.addr %s1653, 4
      %s1655 = scalar_lea.vmem [#allocation2], %s1654
      %v1656 = vld [vmem:[%s1655] sm:$0xff]
      %v1657 = vld [vmem:[%s1655 + $0x8] sm:$0xff]
      %v1658 = vld [vmem:[%s1655 + $0x10] sm:$0xff]
      %v1660 = vperm.slane %v1652, 0
      %1661 = vset.pattern.permute.xlu0 0
      %1662 = vperm.xlu0 %1661, %v1660
      %v1663 = vpop.permute.xlu0 %1662
      %v1665 = vmul.f32 %v1663, %v1656
      %v1666 = vmul.f32 %v1663, %v1657
      %v1667 = vmul.f32 %v1663, %v1658
      %v1668 = vadd.f32 %v1647, %v1665
      %v1669 = vadd.f32 %v1648, %v1666
      %v1670 = vadd.f32 %v1649, %v1667
      %s1671 = sadd.s32 %s1650, 1
      %s1672 = scalar_lea.vmem %s1, %s1671
      %v1673 = vld [vmem:[%s1672] sm:$0x1]
      %s1674 = smul.u32 %s1671, 6
      %s1675 = smul.addr %s1674, 4
      %s1676 = scalar_lea.vmem [#allocation2], %s1675
      %v1677 = vld [vmem:[%s1676] sm:$0xff]
      %v1678 = vld [vmem:[%s1676 + $0x8] sm:$0xff]
      %v1679 = vld [vmem:[%s1676 + $0x10] sm:$0xff]
      %v1681 = vperm.slane %v1673, 0
      %1682 = vset.pattern.permute.xlu0 0
      %1683 = vperm.xlu0 %1682, %v1681
      %v1684 = vpop.permute.xlu0 %1683
      %v1686 = vmul.f32 %v1684, %v1677
      %v1687 = vmul.f32 %v1684, %v1678
      %v1688 = vmul.f32 %v1684, %v1679
      %v1689 = vadd.f32 %v1668, %v1686
      %v1690 = vadd.f32 %v1669, %v1687
      %v1691 = vadd.f32 %v1670, %v1688
      %s1692 = sadd.s32 %s1650, 2
      %s1693 = scalar_lea.vmem %s1, %s1692
      %v1694 = vld [vmem:[%s1693] sm:$0x1]
      %s1695 = smul.u32 %s1692, 6
      %s1696 = smul.addr %s1695, 4
      %s1697 = scalar_lea.vmem [#allocation2], %s1696
      %v1698 = vld [vmem:[%s1697] sm:$0xff]
      %v1699 = vld [vmem:[%s1697 + $0x8] sm:$0xff]
      %v1700 = vld [vmem:[%s1697 + $0x10] sm:$0xff]
      %v1702 = vperm.slane %v1694, 0
      %1703 = vset.pattern.permute.xlu0 0
      %1704 = vperm.xlu0 %1703, %v1702
      %v1705 = vpop.permute.xlu0 %1704
      %v1707 = vmul.f32 %v1705, %v1698
      %v1708 = vmul.f32 %v1705, %v1699
      %v1709 = vmul.f32 %v1705, %v1700
      %v1710 = vadd.f32 %v1689, %v1707
      %v1711 = vadd.f32 %v1690, %v1708
      %v1712 = vadd.f32 %v1691, %v1709
    $region50: #{tpu_custom_call.1} parent=1 // loop_footer
      %s1646 = sadd.s32 1, %s1642
    $region51: #{tpu_custom_call.1} parent=1 // loop_footer_branch
      %1641 = sbr.rel target = $region47
    $region52: #{tpu_custom_call.1} parent=1 // loop_exit
      _
    %1716 = vst [vmem:[#allocation1] ss:$2 sm:$0xff] %v1647
    %s1717 = scalar_lea.vmem [#allocation1], 16
    %1718 = vst [vmem:[%s1717] ss:$2 sm:$0xff] %v1648
    %s1719 = scalar_lea.vmem [#allocation1], 32
    %1720 = vst [vmem:[%s1719] ss:$2 sm:$0xff] %v1649
    %v1721 = vld.sshfl [vmem:[#allocation1] sm:$0xff pattern:$0x75316420]
    %v1722 = vld.sshfl [vmem:[#allocation1 + $0x8] sm:$0xff pattern:$0x75316420]
    %v1723 = vld.sshfl [vmem:[#allocation1 + $0x10] sm:$0xff pattern:$0x75316420]
    %v1724 = vld.sshfl [vmem:[#allocation1 + $0x18] sm:$0xff pattern:$0x75316420]
    %v1725 = vld.sshfl [vmem:[#allocation1 + $0x20] sm:$0xff pattern:$0x75316420]
    %v1726 = vld.sshfl [vmem:[#allocation1 + $0x28] sm:$0xff pattern:$0x75316420]
    %1733 = vst [vmem:[#allocation3] sm:$0xf] %v1721
    %1734 = vst [vmem:[#allocation3 + $0x8] sm:$0xf] %v1722
    %1735 = vst [vmem:[#allocation3 + $0x10] sm:$0xf] %v1723
    %1736 = vst [vmem:[#allocation3 + $0x18] sm:$0xf] %v1724
    %1737 = vst [vmem:[#allocation3 + $0x20] sm:$0xf] %v1725
    %vm1738 = vcmask 896000
    %1739 = vst.msk [vmem:[#allocation3 + $0x28] sm:$0xf] %vm1738, %v1726
    loop: start=0, step=1, limit=17
    $region53: #{tpu_custom_call.1} parent=1 // loop_pre_header
      _
    $region54: #{tpu_custom_call.1} parent=1 // loop_header
      %s1741 = sphi 0, %s1745
      %p1742 = scmp.ge.s32.totalorder %s1741, 17
      %v1746 = vphi 0.0, %v1809
      %v1747 = vphi 0.0, %v1810
      %v1748 = vphi 0.0, %v1811
    $region55: #{tpu_custom_call.1} parent=1 // loop_header_branch
      %1744 = sbr.rel (%p1742) target = $region59
    $region56: #{tpu_custom_call.1} parent=1 // loop_body
      %s1749 = smul.u32 %s1741, 3
      %s1750 = scalar_lea.vmem %s1, %s1749
      %v1751 = vld [vmem:[%s1750] sm:$0x1]
      %s1752 = smul.u32 %s1749, 6
      %s1753 = smul.addr %s1752, 4
      %s1754 = scalar_lea.vmem [#allocation2], %s1753
      %v1755 = vld [vmem:[%s1754] sm:$0xff]
      %v1756 = vld [vmem:[%s1754 + $0x8] sm:$0xff]
      %v1757 = vld [vmem:[%s1754 + $0x10] sm:$0xff]
      %v1759 = vperm.slane %v1751, 0
      %1760 = vset.pattern.permute.xlu0 1
      %1761 = vperm.xlu0 %1760, %v1759
      %v1762 = vpop.permute.xlu0 %1761
      %v1764 = vmul.f32 %v1762, %v1755
      %v1765 = vmul.f32 %v1762, %v1756
      %v1766 = vmul.f32 %v1762, %v1757
      %v1767 = vadd.f32 %v1746, %v1764
      %v1768 = vadd.f32 %v1747, %v1765
      %v1769 = vadd.f32 %v1748, %v1766
      %s1770 = sadd.s32 %s1749, 1
      %s1771 = scalar_lea.vmem %s1, %s1770
      %v1772 = vld [vmem:[%s1771] sm:$0x1]
      %s1773 = smul.u32 %s1770, 6
      %s1774 = smul.addr %s1773, 4
      %s1775 = scalar_lea.vmem [#allocation2], %s1774
      %v1776 = vld [vmem:[%s1775] sm:$0xff]
      %v1777 = vld [vmem:[%s1775 + $0x8] sm:$0xff]
      %v1778 = vld [vmem:[%s1775 + $0x10] sm:$0xff]
      %v1780 = vperm.slane %v1772, 0
      %1781 = vset.pattern.permute.xlu0 1
      %1782 = vperm.xlu0 %1781, %v1780
      %v1783 = vpop.permute.xlu0 %1782
      %v1785 = vmul.f32 %v1783, %v1776
      %v1786 = vmul.f32 %v1783, %v1777
      %v1787 = vmul.f32 %v1783, %v1778
      %v1788 = vadd.f32 %v1767, %v1785
      %v1789 = vadd.f32 %v1768, %v1786
      %v1790 = vadd.f32 %v1769, %v1787
      %s1791 = sadd.s32 %s1749, 2
      %s1792 = scalar_lea.vmem %s1, %s1791
      %v1793 = vld [vmem:[%s1792] sm:$0x1]
      %s1794 = smul.u32 %s1791, 6
      %s1795 = smul.addr %s1794, 4
      %s1796 = scalar_lea.vmem [#allocation2], %s1795
      %v1797 = vld [vmem:[%s1796] sm:$0xff]
      %v1798 = vld [vmem:[%s1796 + $0x8] sm:$0xff]
      %v1799 = vld [vmem:[%s1796 + $0x10] sm:$0xff]
      %v1801 = vperm.slane %v1793, 0
      %1802 = vset.pattern.permute.xlu0 1
      %1803 = vperm.xlu0 %1802, %v1801
      %v1804 = vpop.permute.xlu0 %1803
      %v1806 = vmul.f32 %v1804, %v1797
      %v1807 = vmul.f32 %v1804, %v1798
      %v1808 = vmul.f32 %v1804, %v1799
      %v1809 = vadd.f32 %v1788, %v1806
      %v1810 = vadd.f32 %v1789, %v1807
      %v1811 = vadd.f32 %v1790, %v1808
    $region57: #{tpu_custom_call.1} parent=1 // loop_footer
      %s1745 = sadd.s32 1, %s1741
    $region58: #{tpu_custom_call.1} parent=1 // loop_footer_branch
      %1740 = sbr.rel target = $region54
    $region59: #{tpu_custom_call.1} parent=1 // loop_exit
      _
    %s1815 = scalar_lea.vmem [#allocation1], 1
    %1816 = vst [vmem:[%s1815] ss:$2 sm:$0xff] %v1746
    %s1817 = scalar_lea.vmem [#allocation1], 17
    %1818 = vst [vmem:[%s1817] ss:$2 sm:$0xff] %v1747
    %s1819 = scalar_lea.vmem [#allocation1], 33
    %1820 = vst [vmem:[%s1819] ss:$2 sm:$0xff] %v1748
    %v1821 = vld.sshfl [vmem:[#allocation1] sm:$0xff pattern:$0x75316420]
    %v1822 = vld.sshfl [vmem:[#allocation1 + $0x8] sm:$0xff pattern:$0x75316420]
    %v1823 = vld.sshfl [vmem:[#allocation1 + $0x10] sm:$0xff pattern:$0x75316420]
    %v1824 = vld.sshfl [vmem:[#allocation1 + $0x18] sm:$0xff pattern:$0x75316420]
    %v1825 = vld.sshfl [vmem:[#allocation1 + $0x20] sm:$0xff pattern:$0x75316420]
    %v1826 = vld.sshfl [vmem:[#allocation1 + $0x28] sm:$0xff pattern:$0x75316420]
    %1833 = vst [vmem:[#allocation3] sm:$0xf0] %v1821
    %1834 = vst [vmem:[#allocation3 + $0x8] sm:$0xf0] %v1822
    %1835 = vst [vmem:[#allocation3 + $0x10] sm:$0xf0] %v1823
    %1836 = vst [vmem:[#allocation3 + $0x18] sm:$0xf0] %v1824
    %1837 = vst [vmem:[#allocation3 + $0x20] sm:$0xf0] %v1825
    %1838 = vst.msk [vmem:[#allocation3 + $0x28] sm:$0xf0] %vm46, %v1826
    loop: start=0, step=1, limit=17
    $region60: #{tpu_custom_call.1} parent=1 // loop_pre_header
      _
    $region61: #{tpu_custom_call.1} parent=1 // loop_header
      %s1840 = sphi 0, %s1844
      %p1841 = scmp.ge.s32.totalorder %s1840, 17
      %v1845 = vphi 0.0, %v1908
      %v1846 = vphi 0.0, %v1909
      %v1847 = vphi 0.0, %v1910
    $region62: #{tpu_custom_call.1} parent=1 // loop_header_branch
      %1843 = sbr.rel (%p1841) target = $region66
    $region63: #{tpu_custom_call.1} parent=1 // loop_body
      %s1848 = smul.u32 %s1840, 3
      %s1849 = scalar_lea.vmem %s1, %s1848
      %v1850 = vld [vmem:[%s1849] sm:$0x1]
      %s1851 = smul.u32 %s1848, 6
      %s1852 = smul.addr %s1851, 4
      %s1853 = scalar_lea.vmem [#allocation2], %s1852
      %v1854 = vld [vmem:[%s1853] sm:$0xff]
      %v1855 = vld [vmem:[%s1853 + $0x8] sm:$0xff]
      %v1856 = vld [vmem:[%s1853 + $0x10] sm:$0xff]
      %v1858 = vperm.slane %v1850, 0
      %1859 = vset.pattern.permute.xlu0 2
      %1860 = vperm.xlu0 %1859, %v1858
      %v1861 = vpop.permute.xlu0 %1860
      %v1863 = vmul.f32 %v1861, %v1854
      %v1864 = vmul.f32 %v1861, %v1855
      %v1865 = vmul.f32 %v1861, %v1856
      %v1866 = vadd.f32 %v1845, %v1863
      %v1867 = vadd.f32 %v1846, %v1864
      %v1868 = vadd.f32 %v1847, %v1865
      %s1869 = sadd.s32 %s1848, 1
      %s1870 = scalar_lea.vmem %s1, %s1869
      %v1871 = vld [vmem:[%s1870] sm:$0x1]
      %s1872 = smul.u32 %s1869, 6
      %s1873 = smul.addr %s1872, 4
      %s1874 = scalar_lea.vmem [#allocation2], %s1873
      %v1875 = vld [vmem:[%s1874] sm:$0xff]
      %v1876 = vld [vmem:[%s1874 + $0x8] sm:$0xff]
      %v1877 = vld [vmem:[%s1874 + $0x10] sm:$0xff]
      %v1879 = vperm.slane %v1871, 0
      %1880 = vset.pattern.permute.xlu0 2
      %1881 = vperm.xlu0 %1880, %v1879
      %v1882 = vpop.permute.xlu0 %1881
      %v1884 = vmul.f32 %v1882, %v1875
      %v1885 = vmul.f32 %v1882, %v1876
      %v1886 = vmul.f32 %v1882, %v1877
      %v1887 = vadd.f32 %v1866, %v1884
      %v1888 = vadd.f32 %v1867, %v1885
      %v1889 = vadd.f32 %v1868, %v1886
      %s1890 = sadd.s32 %s1848, 2
      %s1891 = scalar_lea.vmem %s1, %s1890
      %v1892 = vld [vmem:[%s1891] sm:$0x1]
      %s1893 = smul.u32 %s1890, 6
      %s1894 = smul.addr %s1893, 4
      %s1895 = scalar_lea.vmem [#allocation2], %s1894
      %v1896 = vld [vmem:[%s1895] sm:$0xff]
      %v1897 = vld [vmem:[%s1895 + $0x8] sm:$0xff]
      %v1898 = vld [vmem:[%s1895 + $0x10] sm:$0xff]
      %v1900 = vperm.slane %v1892, 0
      %1901 = vset.pattern.permute.xlu0 2
      %1902 = vperm.xlu0 %1901, %v1900
      %v1903 = vpop.permute.xlu0 %1902
      %v1905 = vmul.f32 %v1903, %v1896
      %v1906 = vmul.f32 %v1903, %v1897
      %v1907 = vmul.f32 %v1903, %v1898
      %v1908 = vadd.f32 %v1887, %v1905
      %v1909 = vadd.f32 %v1888, %v1906
      %v1910 = vadd.f32 %v1889, %v1907
    $region64: #{tpu_custom_call.1} parent=1 // loop_footer
      %s1844 = sadd.s32 1, %s1840
    $region65: #{tpu_custom_call.1} parent=1 // loop_footer_branch
      %1839 = sbr.rel target = $region61
    $region66: #{tpu_custom_call.1} parent=1 // loop_exit
      _
    %1914 = vst [vmem:[#allocation1] ss:$2 sm:$0xff] %v1845
    %s1915 = scalar_lea.vmem [#allocation1], 16
    %1916 = vst [vmem:[%s1915] ss:$2 sm:$0xff] %v1846
    %s1917 = scalar_lea.vmem [#allocation1], 32
    %1918 = vst [vmem:[%s1917] ss:$2 sm:$0xff] %v1847
    %v1919 = vld.sshfl [vmem:[#allocation1] sm:$0xff pattern:$0x75316420]
    %v1920 = vld.sshfl [vmem:[#allocation1 + $0x8] sm:$0xff pattern:$0x75316420]
    %v1921 = vld.sshfl [vmem:[#allocation1 + $0x10] sm:$0xff pattern:$0x75316420]
    %v1922 = vld.sshfl [vmem:[#allocation1 + $0x18] sm:$0xff pattern:$0x75316420]
    %v1923 = vld.sshfl [vmem:[#allocation1 + $0x20] sm:$0xff pattern:$0x75316420]
    %v1924 = vld.sshfl [vmem:[#allocation1 + $0x28] sm:$0xff pattern:$0x75316420]
    %1931 = vst [vmem:[#allocation3 + $0x30] sm:$0xf] %v1919
    %1932 = vst [vmem:[#allocation3 + $0x38] sm:$0xf] %v1920
    %1933 = vst [vmem:[#allocation3 + $0x40] sm:$0xf] %v1921
    %1934 = vst [vmem:[#allocation3 + $0x48] sm:$0xf] %v1922
    %1935 = vst [vmem:[#allocation3 + $0x50] sm:$0xf] %v1923
    %1936 = vst.msk [vmem:[#allocation3 + $0x58] sm:$0xf] %vm1738, %v1924
    loop: start=0, step=1, limit=17
    $region67: #{tpu_custom_call.1} parent=1 // loop_pre_header
      _
    $region68: #{tpu_custom_call.1} parent=1 // loop_header
      %s1938 = sphi 0, %s1942
      %p1939 = scmp.ge.s32.totalorder %s1938, 17
      %v1943 = vphi 0.0, %v2006
      %v1944 = vphi 0.0, %v2007
      %v1945 = vphi 0.0, %v2008
    $region69: #{tpu_custom_call.1} parent=1 // loop_header_branch
      %1941 = sbr.rel (%p1939) target = $region73
    $region70: #{tpu_custom_call.1} parent=1 // loop_body
      %s1946 = smul.u32 %s1938, 3
      %s1947 = scalar_lea.vmem %s1, %s1946
      %v1948 = vld [vmem:[%s1947] sm:$0x1]
      %s1949 = smul.u32 %s1946, 6
      %s1950 = smul.addr %s1949, 4
      %s1951 = scalar_lea.vmem [#allocation2], %s1950
      %v1952 = vld [vmem:[%s1951] sm:$0xff]
      %v1953 = vld [vmem:[%s1951 + $0x8] sm:$0xff]
      %v1954 = vld [vmem:[%s1951 + $0x10] sm:$0xff]
      %v1956 = vperm.slane %v1948, 0
      %1957 = vset.pattern.permute.xlu0 3
      %1958 = vperm.xlu0 %1957, %v1956
      %v1959 = vpop.permute.xlu0 %1958
      %v1961 = vmul.f32 %v1959, %v1952
      %v1962 = vmul.f32 %v1959, %v1953
      %v1963 = vmul.f32 %v1959, %v1954
      %v1964 = vadd.f32 %v1943, %v1961
      %v1965 = vadd.f32 %v1944, %v1962
      %v1966 = vadd.f32 %v1945, %v1963
      %s1967 = sadd.s32 %s1946, 1
      %s1968 = scalar_lea.vmem %s1, %s1967
      %v1969 = vld [vmem:[%s1968] sm:$0x1]
      %s1970 = smul.u32 %s1967, 6
      %s1971 = smul.addr %s1970, 4
      %s1972 = scalar_lea.vmem [#allocation2], %s1971
      %v1973 = vld [vmem:[%s1972] sm:$0xff]
      %v1974 = vld [vmem:[%s1972 + $0x8] sm:$0xff]
      %v1975 = vld [vmem:[%s1972 + $0x10] sm:$0xff]
      %v1977 = vperm.slane %v1969, 0
      %1978 = vset.pattern.permute.xlu0 3
      %1979 = vperm.xlu0 %1978, %v1977
      %v1980 = vpop.permute.xlu0 %1979
      %v1982 = vmul.f32 %v1980, %v1973
      %v1983 = vmul.f32 %v1980, %v1974
      %v1984 = vmul.f32 %v1980, %v1975
      %v1985 = vadd.f32 %v1964, %v1982
      %v1986 = vadd.f32 %v1965, %v1983
      %v1987 = vadd.f32 %v1966, %v1984
      %s1988 = sadd.s32 %s1946, 2
      %s1989 = scalar_lea.vmem %s1, %s1988
      %v1990 = vld [vmem:[%s1989] sm:$0x1]
      %s1991 = smul.u32 %s1988, 6
      %s1992 = smul.addr %s1991, 4
      %s1993 = scalar_lea.vmem [#allocation2], %s1992
      %v1994 = vld [vmem:[%s1993] sm:$0xff]
      %v1995 = vld [vmem:[%s1993 + $0x8] sm:$0xff]
      %v1996 = vld [vmem:[%s1993 + $0x10] sm:$0xff]
      %v1998 = vperm.slane %v1990, 0
      %1999 = vset.pattern.permute.xlu0 3
      %2000 = vperm.xlu0 %1999, %v1998
      %v2001 = vpop.permute.xlu0 %2000
      %v2003 = vmul.f32 %v2001, %v1994
      %v2004 = vmul.f32 %v2001, %v1995
      %v2005 = vmul.f32 %v2001, %v1996
      %v2006 = vadd.f32 %v1985, %v2003
      %v2007 = vadd.f32 %v1986, %v2004
      %v2008 = vadd.f32 %v1987, %v2005
    $region71: #{tpu_custom_call.1} parent=1 // loop_footer
      %s1942 = sadd.s32 1, %s1938
    $region72: #{tpu_custom_call.1} parent=1 // loop_footer_branch
      %1937 = sbr.rel target = $region68
    $region73: #{tpu_custom_call.1} parent=1 // loop_exit
      _
    %s2012 = scalar_lea.vmem [#allocation1], 1
    %2013 = vst [vmem:[%s2012] ss:$2 sm:$0xff] %v1943
    %s2014 = scalar_lea.vmem [#allocation1], 17
    %2015 = vst [vmem:[%s2014] ss:$2 sm:$0xff] %v1944
    %s2016 = scalar_lea.vmem [#allocation1], 33
    %2017 = vst [vmem:[%s2016] ss:$2 sm:$0xff] %v1945
    %v2018 = vld.sshfl [vmem:[#allocation1] sm:$0xff pattern:$0x75316420]
    %v2019 = vld.sshfl [vmem:[#allocation1 + $0x8] sm:$0xff pattern:$0x75316420]
    %v2020 = vld.sshfl [vmem:[#allocation1 + $0x10] sm:$0xff pattern:$0x75316420]
    %v2021 = vld.sshfl [vmem:[#allocation1 + $0x18] sm:$0xff pattern:$0x75316420]
    %v2022 = vld.sshfl [vmem:[#allocation1 + $0x20] sm:$0xff pattern:$0x75316420]
    %v2023 = vld.sshfl [vmem:[#allocation1 + $0x28] sm:$0xff pattern:$0x75316420]
    %2030 = vst [vmem:[#allocation3 + $0x30] sm:$0xf0] %v2018
    %2031 = vst [vmem:[#allocation3 + $0x38] sm:$0xf0] %v2019
    %2032 = vst [vmem:[#allocation3 + $0x40] sm:$0xf0] %v2020
    %2033 = vst [vmem:[#allocation3 + $0x48] sm:$0xf0] %v2021
    %2034 = vst [vmem:[#allocation3 + $0x50] sm:$0xf0] %v2022
    %2035 = vst.msk [vmem:[#allocation3 + $0x58] sm:$0xf0] %vm46, %v2023
    loop: start=0, step=1, limit=17
    $region74: #{tpu_custom_call.1} parent=1 // loop_pre_header
      _
    $region75: #{tpu_custom_call.1} parent=1 // loop_header
      %s2037 = sphi 0, %s2041
      %p2038 = scmp.ge.s32.totalorder %s2037, 17
      %v2042 = vphi 0.0, %v2105
      %v2043 = vphi 0.0, %v2106
      %v2044 = vphi 0.0, %v2107
    $region76: #{tpu_custom_call.1} parent=1 // loop_header_branch
      %2040 = sbr.rel (%p2038) target = $region80
    $region77: #{tpu_custom_call.1} parent=1 // loop_body
      %s2045 = smul.u32 %s2037, 3
      %s2046 = scalar_lea.vmem %s1, %s2045
      %v2047 = vld [vmem:[%s2046] sm:$0x1]
      %s2048 = smul.u32 %s2045, 6
      %s2049 = smul.addr %s2048, 4
      %s2050 = scalar_lea.vmem [#allocation2], %s2049
      %v2051 = vld [vmem:[%s2050] sm:$0xff]
      %v2052 = vld [vmem:[%s2050 + $0x8] sm:$0xff]
      %v2053 = vld [vmem:[%s2050 + $0x10] sm:$0xff]
      %v2055 = vperm.slane %v2047, 0
      %2056 = vset.pattern.permute.xlu0 4
      %2057 = vperm.xlu0 %2056, %v2055
      %v2058 = vpop.permute.xlu0 %2057
      %v2060 = vmul.f32 %v2058, %v2051
      %v2061 = vmul.f32 %v2058, %v2052
      %v2062 = vmul.f32 %v2058, %v2053
      %v2063 = vadd.f32 %v2042, %v2060
      %v2064 = vadd.f32 %v2043, %v2061
      %v2065 = vadd.f32 %v2044, %v2062
      %s2066 = sadd.s32 %s2045, 1
      %s2067 = scalar_lea.vmem %s1, %s2066
      %v2068 = vld [vmem:[%s2067] sm:$0x1]
      %s2069 = smul.u32 %s2066, 6
      %s2070 = smul.addr %s2069, 4
      %s2071 = scalar_lea.vmem [#allocation2], %s2070
      %v2072 = vld [vmem:[%s2071] sm:$0xff]
      %v2073 = vld [vmem:[%s2071 + $0x8] sm:$0xff]
      %v2074 = vld [vmem:[%s2071 + $0x10] sm:$0xff]
      %v2076 = vperm.slane %v2068, 0
      %2077 = vset.pattern.permute.xlu0 4
      %2078 = vperm.xlu0 %2077, %v2076
      %v2079 = vpop.permute.xlu0 %2078
      %v2081 = vmul.f32 %v2079, %v2072
      %v2082 = vmul.f32 %v2079, %v2073
      %v2083 = vmul.f32 %v2079, %v2074
      %v2084 = vadd.f32 %v2063, %v2081
      %v2085 = vadd.f32 %v2064, %v2082
      %v2086 = vadd.f32 %v2065, %v2083
      %s2087 = sadd.s32 %s2045, 2
      %s2088 = scalar_lea.vmem %s1, %s2087
      %v2089 = vld [vmem:[%s2088] sm:$0x1]
      %s2090 = smul.u32 %s2087, 6
      %s2091 = smul.addr %s2090, 4
      %s2092 = scalar_lea.vmem [#allocation2], %s2091
      %v2093 = vld [vmem:[%s2092] sm:$0xff]
      %v2094 = vld [vmem:[%s2092 + $0x8] sm:$0xff]
      %v2095 = vld [vmem:[%s2092 + $0x10] sm:$0xff]
      %v2097 = vperm.slane %v2089, 0
      %2098 = vset.pattern.permute.xlu0 4
      %2099 = vperm.xlu0 %2098, %v2097
      %v2100 = vpop.permute.xlu0 %2099
      %v2102 = vmul.f32 %v2100, %v2093
      %v2103 = vmul.f32 %v2100, %v2094
      %v2104 = vmul.f32 %v2100, %v2095
      %v2105 = vadd.f32 %v2084, %v2102
      %v2106 = vadd.f32 %v2085, %v2103
      %v2107 = vadd.f32 %v2086, %v2104
    $region78: #{tpu_custom_call.1} parent=1 // loop_footer
      %s2041 = sadd.s32 1, %s2037
    $region79: #{tpu_custom_call.1} parent=1 // loop_footer_branch
      %2036 = sbr.rel target = $region75
    $region80: #{tpu_custom_call.1} parent=1 // loop_exit
      _
    %2111 = vst [vmem:[#allocation1] ss:$2 sm:$0xff] %v2042
    %s2112 = scalar_lea.vmem [#allocation1], 16
    %2113 = vst [vmem:[%s2112] ss:$2 sm:$0xff] %v2043
    %s2114 = scalar_lea.vmem [#allocation1], 32
    %2115 = vst [vmem:[%s2114] ss:$2 sm:$0xff] %v2044
    %v2116 = vld.sshfl [vmem:[#allocation1] sm:$0xff pattern:$0x75316420]
    %v2117 = vld.sshfl [vmem:[#allocation1 + $0x8] sm:$0xff pattern:$0x75316420]
    %v2118 = vld.sshfl [vmem:[#allocation1 + $0x10] sm:$0xff pattern:$0x75316420]
    %v2119 = vld.sshfl [vmem:[#allocation1 + $0x18] sm:$0xff pattern:$0x75316420]
    %v2120 = vld.sshfl [vmem:[#allocation1 + $0x20] sm:$0xff pattern:$0x75316420]
    %v2121 = vld.sshfl [vmem:[#allocation1 + $0x28] sm:$0xff pattern:$0x75316420]
    %2128 = vst [vmem:[#allocation3 + $0x60] sm:$0xf] %v2116
    %2129 = vst [vmem:[#allocation3 + $0x68] sm:$0xf] %v2117
    %2130 = vst [vmem:[#allocation3 + $0x70] sm:$0xf] %v2118
    %2131 = vst [vmem:[#allocation3 + $0x78] sm:$0xf] %v2119
    %2132 = vst [vmem:[#allocation3 + $0x80] sm:$0xf] %v2120
    %2133 = vst.msk [vmem:[#allocation3 + $0x88] sm:$0xf] %vm1738, %v2121
    loop: start=0, step=1, limit=17
    $region81: #{tpu_custom_call.1} parent=1 // loop_pre_header
      _
    $region82: #{tpu_custom_call.1} parent=1 // loop_header
      %s2135 = sphi 0, %s2139
      %p2136 = scmp.ge.s32.totalorder %s2135, 17
      %v2140 = vphi 0.0, %v2203
      %v2141 = vphi 0.0, %v2204
      %v2142 = vphi 0.0, %v2205
    $region83: #{tpu_custom_call.1} parent=1 // loop_header_branch
      %2138 = sbr.rel (%p2136) target = $region87
    $region84: #{tpu_custom_call.1} parent=1 // loop_body
      %s2143 = smul.u32 %s2135, 3
      %s2144 = scalar_lea.vmem %s1, %s2143
      %v2145 = vld [vmem:[%s2144] sm:$0x1]
      %s2146 = smul.u32 %s2143, 6
      %s2147 = smul.addr %s2146, 4
      %s2148 = scalar_lea.vmem [#allocation2], %s2147
      %v2149 = vld [vmem:[%s2148] sm:$0xff]
      %v2150 = vld [vmem:[%s2148 + $0x8] sm:$0xff]
      %v2151 = vld [vmem:[%s2148 + $0x10] sm:$0xff]
      %v2153 = vperm.slane %v2145, 0
      %2154 = vset.pattern.permute.xlu0 5
      %2155 = vperm.xlu0 %2154, %v2153
      %v2156 = vpop.permute.xlu0 %2155
      %v2158 = vmul.f32 %v2156, %v2149
      %v2159 = vmul.f32 %v2156, %v2150
      %v2160 = vmul.f32 %v2156, %v2151
      %v2161 = vadd.f32 %v2140, %v2158
      %v2162 = vadd.f32 %v2141, %v2159
      %v2163 = vadd.f32 %v2142, %v2160
      %s2164 = sadd.s32 %s2143, 1
      %s2165 = scalar_lea.vmem %s1, %s2164
      %v2166 = vld [vmem:[%s2165] sm:$0x1]
      %s2167 = smul.u32 %s2164, 6
      %s2168 = smul.addr %s2167, 4
      %s2169 = scalar_lea.vmem [#allocation2], %s2168
      %v2170 = vld [vmem:[%s2169] sm:$0xff]
      %v2171 = vld [vmem:[%s2169 + $0x8] sm:$0xff]
      %v2172 = vld [vmem:[%s2169 + $0x10] sm:$0xff]
      %v2174 = vperm.slane %v2166, 0
      %2175 = vset.pattern.permute.xlu0 5
      %2176 = vperm.xlu0 %2175, %v2174
      %v2177 = vpop.permute.xlu0 %2176
      %v2179 = vmul.f32 %v2177, %v2170
      %v2180 = vmul.f32 %v2177, %v2171
      %v2181 = vmul.f32 %v2177, %v2172
      %v2182 = vadd.f32 %v2161, %v2179
      %v2183 = vadd.f32 %v2162, %v2180
      %v2184 = vadd.f32 %v2163, %v2181
      %s2185 = sadd.s32 %s2143, 2
      %s2186 = scalar_lea.vmem %s1, %s2185
      %v2187 = vld [vmem:[%s2186] sm:$0x1]
      %s2188 = smul.u32 %s2185, 6
      %s2189 = smul.addr %s2188, 4
      %s2190 = scalar_lea.vmem [#allocation2], %s2189
      %v2191 = vld [vmem:[%s2190] sm:$0xff]
      %v2192 = vld [vmem:[%s2190 + $0x8] sm:$0xff]
      %v2193 = vld [vmem:[%s2190 + $0x10] sm:$0xff]
      %v2195 = vperm.slane %v2187, 0
      %2196 = vset.pattern.permute.xlu0 5
      %2197 = vperm.xlu0 %2196, %v2195
      %v2198 = vpop.permute.xlu0 %2197
      %v2200 = vmul.f32 %v2198, %v2191
      %v2201 = vmul.f32 %v2198, %v2192
      %v2202 = vmul.f32 %v2198, %v2193
      %v2203 = vadd.f32 %v2182, %v2200
      %v2204 = vadd.f32 %v2183, %v2201
      %v2205 = vadd.f32 %v2184, %v2202
    $region85: #{tpu_custom_call.1} parent=1 // loop_footer
      %s2139 = sadd.s32 1, %s2135
    $region86: #{tpu_custom_call.1} parent=1 // loop_footer_branch
      %2134 = sbr.rel target = $region82
    $region87: #{tpu_custom_call.1} parent=1 // loop_exit
      _
    %s2209 = scalar_lea.vmem [#allocation1], 1
    %2210 = vst [vmem:[%s2209] ss:$2 sm:$0xff] %v2140
    %s2211 = scalar_lea.vmem [#allocation1], 17
    %2212 = vst [vmem:[%s2211] ss:$2 sm:$0xff] %v2141
    %s2213 = scalar_lea.vmem [#allocation1], 33
    %2214 = vst [vmem:[%s2213] ss:$2 sm:$0xff] %v2142
    %v2215 = vld.sshfl [vmem:[#allocation1] sm:$0xff pattern:$0x75316420]
    %v2216 = vld.sshfl [vmem:[#allocation1 + $0x8] sm:$0xff pattern:$0x75316420]
    %v2217 = vld.sshfl [vmem:[#allocation1 + $0x10] sm:$0xff pattern:$0x75316420]
    %v2218 = vld.sshfl [vmem:[#allocation1 + $0x18] sm:$0xff pattern:$0x75316420]
    %v2219 = vld.sshfl [vmem:[#allocation1 + $0x20] sm:$0xff pattern:$0x75316420]
    %v2220 = vld.sshfl [vmem:[#allocation1 + $0x28] sm:$0xff pattern:$0x75316420]
    %2227 = vst [vmem:[#allocation3 + $0x60] sm:$0xf0] %v2215
    %2228 = vst [vmem:[#allocation3 + $0x68] sm:$0xf0] %v2216
    %2229 = vst [vmem:[#allocation3 + $0x70] sm:$0xf0] %v2217
    %2230 = vst [vmem:[#allocation3 + $0x78] sm:$0xf0] %v2218
    %2231 = vst [vmem:[#allocation3 + $0x80] sm:$0xf0] %v2219
    %2232 = vst.msk [vmem:[#allocation3 + $0x88] sm:$0xf0] %vm46, %v2220
    loop: start=0, step=1, limit=17
    $region88: #{tpu_custom_call.1} parent=1 // loop_pre_header
      _
    $region89: #{tpu_custom_call.1} parent=1 // loop_header
      %s2234 = sphi 0, %s2238
      %p2235 = scmp.ge.s32.totalorder %s2234, 17
      %v2239 = vphi 0.0, %v2302
      %v2240 = vphi 0.0, %v2303
      %v2241 = vphi 0.0, %v2304
    $region90: #{tpu_custom_call.1} parent=1 // loop_header_branch
      %2237 = sbr.rel (%p2235) target = $region94
    $region91: #{tpu_custom_call.1} parent=1 // loop_body
      %s2242 = smul.u32 %s2234, 3
      %s2243 = scalar_lea.vmem %s1, %s2242
      %v2244 = vld [vmem:[%s2243] sm:$0x1]
      %s2245 = smul.u32 %s2242, 6
      %s2246 = smul.addr %s2245, 4
      %s2247 = scalar_lea.vmem [#allocation2], %s2246
      %v2248 = vld [vmem:[%s2247] sm:$0xff]
      %v2249 = vld [vmem:[%s2247 + $0x8] sm:$0xff]
      %v2250 = vld [vmem:[%s2247 + $0x10] sm:$0xff]
      %v2252 = vperm.slane %v2244, 0
      %2253 = vset.pattern.permute.xlu0 6
      %2254 = vperm.xlu0 %2253, %v2252
      %v2255 = vpop.permute.xlu0 %2254
      %v2257 = vmul.f32 %v2255, %v2248
      %v2258 = vmul.f32 %v2255, %v2249
      %v2259 = vmul.f32 %v2255, %v2250
      %v2260 = vadd.f32 %v2239, %v2257
      %v2261 = vadd.f32 %v2240, %v2258
      %v2262 = vadd.f32 %v2241, %v2259
      %s2263 = sadd.s32 %s2242, 1
      %s2264 = scalar_lea.vmem %s1, %s2263
      %v2265 = vld [vmem:[%s2264] sm:$0x1]
      %s2266 = smul.u32 %s2263, 6
      %s2267 = smul.addr %s2266, 4
      %s2268 = scalar_lea.vmem [#allocation2], %s2267
      %v2269 = vld [vmem:[%s2268] sm:$0xff]
      %v2270 = vld [vmem:[%s2268 + $0x8] sm:$0xff]
      %v2271 = vld [vmem:[%s2268 + $0x10] sm:$0xff]
      %v2273 = vperm.slane %v2265, 0
      %2274 = vset.pattern.permute.xlu0 6
      %2275 = vperm.xlu0 %2274, %v2273
      %v2276 = vpop.permute.xlu0 %2275
      %v2278 = vmul.f32 %v2276, %v2269
      %v2279 = vmul.f32 %v2276, %v2270
      %v2280 = vmul.f32 %v2276, %v2271
      %v2281 = vadd.f32 %v2260, %v2278
      %v2282 = vadd.f32 %v2261, %v2279
      %v2283 = vadd.f32 %v2262, %v2280
      %s2284 = sadd.s32 %s2242, 2
      %s2285 = scalar_lea.vmem %s1, %s2284
      %v2286 = vld [vmem:[%s2285] sm:$0x1]
      %s2287 = smul.u32 %s2284, 6
      %s2288 = smul.addr %s2287, 4
      %s2289 = scalar_lea.vmem [#allocation2], %s2288
      %v2290 = vld [vmem:[%s2289] sm:$0xff]
      %v2291 = vld [vmem:[%s2289 + $0x8] sm:$0xff]
      %v2292 = vld [vmem:[%s2289 + $0x10] sm:$0xff]
      %v2294 = vperm.slane %v2286, 0
      %2295 = vset.pattern.permute.xlu0 6
      %2296 = vperm.xlu0 %2295, %v2294
      %v2297 = vpop.permute.xlu0 %2296
      %v2299 = vmul.f32 %v2297, %v2290
      %v2300 = vmul.f32 %v2297, %v2291
      %v2301 = vmul.f32 %v2297, %v2292
      %v2302 = vadd.f32 %v2281, %v2299
      %v2303 = vadd.f32 %v2282, %v2300
      %v2304 = vadd.f32 %v2283, %v2301
    $region92: #{tpu_custom_call.1} parent=1 // loop_footer
      %s2238 = sadd.s32 1, %s2234
    $region93: #{tpu_custom_call.1} parent=1 // loop_footer_branch
      %2233 = sbr.rel target = $region89
    $region94: #{tpu_custom_call.1} parent=1 // loop_exit
      _
    %2308 = vst [vmem:[#allocation1] ss:$2 sm:$0xff] %v2239
    %s2309 = scalar_lea.vmem [#allocation1], 16
    %2310 = vst [vmem:[%s2309] ss:$2 sm:$0xff] %v2240
    %s2311 = scalar_lea.vmem [#allocation1], 32
    %2312 = vst [vmem:[%s2311] ss:$2 sm:$0xff] %v2241
    %v2313 = vld.sshfl [vmem:[#allocation1] sm:$0xff pattern:$0x75316420]
    %v2314 = vld.sshfl [vmem:[#allocation1 + $0x8] sm:$0xff pattern:$0x75316420]
    %v2315 = vld.sshfl [vmem:[#allocation1 + $0x10] sm:$0xff pattern:$0x75316420]
    %v2316 = vld.sshfl [vmem:[#allocation1 + $0x18] sm:$0xff pattern:$0x75316420]
    %v2317 = vld.sshfl [vmem:[#allocation1 + $0x20] sm:$0xff pattern:$0x75316420]
    %v2318 = vld.sshfl [vmem:[#allocation1 + $0x28] sm:$0xff pattern:$0x75316420]
    %2325 = vst [vmem:[#allocation3 + $0x90] sm:$0xf] %v2313
    %2326 = vst [vmem:[#allocation3 + $0x98] sm:$0xf] %v2314
    %2327 = vst [vmem:[#allocation3 + $0xa0] sm:$0xf] %v2315
    %2328 = vst [vmem:[#allocation3 + $0xa8] sm:$0xf] %v2316
    %2329 = vst [vmem:[#allocation3 + $0xb0] sm:$0xf] %v2317
    %2330 = vst.msk [vmem:[#allocation3 + $0xb8] sm:$0xf] %vm1738, %v2318
    loop: start=0, step=1, limit=17
    $region95: #{tpu_custom_call.1} parent=1 // loop_pre_header
      _
    $region96: #{tpu_custom_call.1} parent=1 // loop_header
      %s2332 = sphi 0, %s2336
      %p2333 = scmp.ge.s32.totalorder %s2332, 17
      %v2337 = vphi 0.0, %v2400
      %v2338 = vphi 0.0, %v2401
      %v2339 = vphi 0.0, %v2402
    $region97: #{tpu_custom_call.1} parent=1 // loop_header_branch
      %2335 = sbr.rel (%p2333) target = $region101
    $region98: #{tpu_custom_call.1} parent=1 // loop_body
      %s2340 = smul.u32 %s2332, 3
      %s2341 = scalar_lea.vmem %s1, %s2340
      %v2342 = vld [vmem:[%s2341] sm:$0x1]
      %s2343 = smul.u32 %s2340, 6
      %s2344 = smul.addr %s2343, 4
      %s2345 = scalar_lea.vmem [#allocation2], %s2344
      %v2346 = vld [vmem:[%s2345] sm:$0xff]
      %v2347 = vld [vmem:[%s2345 + $0x8] sm:$0xff]
      %v2348 = vld [vmem:[%s2345 + $0x10] sm:$0xff]
      %v2350 = vperm.slane %v2342, 0
      %2351 = vset.pattern.permute.xlu0 7
      %2352 = vperm.xlu0 %2351, %v2350
      %v2353 = vpop.permute.xlu0 %2352
      %v2355 = vmul.f32 %v2353, %v2346
      %v2356 = vmul.f32 %v2353, %v2347
      %v2357 = vmul.f32 %v2353, %v2348
      %v2358 = vadd.f32 %v2337, %v2355
      %v2359 = vadd.f32 %v2338, %v2356
      %v2360 = vadd.f32 %v2339, %v2357
      %s2361 = sadd.s32 %s2340, 1
      %s2362 = scalar_lea.vmem %s1, %s2361
      %v2363 = vld [vmem:[%s2362] sm:$0x1]
      %s2364 = smul.u32 %s2361, 6
      %s2365 = smul.addr %s2364, 4
      %s2366 = scalar_lea.vmem [#allocation2], %s2365
      %v2367 = vld [vmem:[%s2366] sm:$0xff]
      %v2368 = vld [vmem:[%s2366 + $0x8] sm:$0xff]
      %v2369 = vld [vmem:[%s2366 + $0x10] sm:$0xff]
      %v2371 = vperm.slane %v2363, 0
      %2372 = vset.pattern.permute.xlu0 7
      %2373 = vperm.xlu0 %2372, %v2371
      %v2374 = vpop.permute.xlu0 %2373
      %v2376 = vmul.f32 %v2374, %v2367
      %v2377 = vmul.f32 %v2374, %v2368
      %v2378 = vmul.f32 %v2374, %v2369
      %v2379 = vadd.f32 %v2358, %v2376
      %v2380 = vadd.f32 %v2359, %v2377
      %v2381 = vadd.f32 %v2360, %v2378
      %s2382 = sadd.s32 %s2340, 2
      %s2383 = scalar_lea.vmem %s1, %s2382
      %v2384 = vld [vmem:[%s2383] sm:$0x1]
      %s2385 = smul.u32 %s2382, 6
      %s2386 = smul.addr %s2385, 4
      %s2387 = scalar_lea.vmem [#allocation2], %s2386
      %v2388 = vld [vmem:[%s2387] sm:$0xff]
      %v2389 = vld [vmem:[%s2387 + $0x8] sm:$0xff]
      %v2390 = vld [vmem:[%s2387 + $0x10] sm:$0xff]
      %v2392 = vperm.slane %v2384, 0
      %2393 = vset.pattern.permute.xlu0 7
      %2394 = vperm.xlu0 %2393, %v2392
      %v2395 = vpop.permute.xlu0 %2394
      %v2397 = vmul.f32 %v2395, %v2388
      %v2398 = vmul.f32 %v2395, %v2389
      %v2399 = vmul.f32 %v2395, %v2390
      %v2400 = vadd.f32 %v2379, %v2397
      %v2401 = vadd.f32 %v2380, %v2398
      %v2402 = vadd.f32 %v2381, %v2399
    $region99: #{tpu_custom_call.1} parent=1 // loop_footer
      %s2336 = sadd.s32 1, %s2332
    $region100: #{tpu_custom_call.1} parent=1 // loop_footer_branch
      %2331 = sbr.rel target = $region96
    $region101: #{tpu_custom_call.1} parent=1 // loop_exit
      _
    %s2406 = scalar_lea.vmem [#allocation1], 1
    %2407 = vst [vmem:[%s2406] ss:$2 sm:$0xff] %v2337
    %s2408 = scalar_lea.vmem [#allocation1], 17
    %2409 = vst [vmem:[%s2408] ss:$2 sm:$0xff] %v2338
    %s2410 = scalar_lea.vmem [#allocation1], 33
    %2411 = vst [vmem:[%s2410] ss:$2 sm:$0xff] %v2339
    %v2412 = vld.sshfl [vmem:[#allocation1] sm:$0xff pattern:$0x75316420]
    %v2413 = vld.sshfl [vmem:[#allocation1 + $0x8] sm:$0xff pattern:$0x75316420]
    %v2414 = vld.sshfl [vmem:[#allocation1 + $0x10] sm:$0xff pattern:$0x75316420]
    %v2415 = vld.sshfl [vmem:[#allocation1 + $0x18] sm:$0xff pattern:$0x75316420]
    %v2416 = vld.sshfl [vmem:[#allocation1 + $0x20] sm:$0xff pattern:$0x75316420]
    %v2417 = vld.sshfl [vmem:[#allocation1 + $0x28] sm:$0xff pattern:$0x75316420]
    %2424 = vst [vmem:[#allocation3 + $0x90] sm:$0xf0] %v2412
    %2425 = vst [vmem:[#allocation3 + $0x98] sm:$0xf0] %v2413
    %2426 = vst [vmem:[#allocation3 + $0xa0] sm:$0xf0] %v2414
    %2427 = vst [vmem:[#allocation3 + $0xa8] sm:$0xf0] %v2415
    %2428 = vst [vmem:[#allocation3 + $0xb0] sm:$0xf0] %v2416
    %2429 = vst.msk [vmem:[#allocation3 + $0xb8] sm:$0xf0] %vm46, %v2417
    loop: start=0, step=1, limit=17
    $region102: #{tpu_custom_call.1} parent=1 // loop_pre_header
      _
    $region103: #{tpu_custom_call.1} parent=1 // loop_header
      %s2431 = sphi 0, %s2435
      %p2432 = scmp.ge.s32.totalorder %s2431, 17
      %v2436 = vphi 0.0, %v2499
      %v2437 = vphi 0.0, %v2500
      %v2438 = vphi 0.0, %v2501
    $region104: #{tpu_custom_call.1} parent=1 // loop_header_branch
      %2434 = sbr.rel (%p2432) target = $region108
    $region105: #{tpu_custom_call.1} parent=1 // loop_body
      %s2439 = smul.u32 %s2431, 3
      %s2440 = scalar_lea.vmem %s1, %s2439
      %v2441 = vld [vmem:[%s2440] sm:$0x1]
      %s2442 = smul.u32 %s2439, 6
      %s2443 = smul.addr %s2442, 4
      %s2444 = scalar_lea.vmem [#allocation2], %s2443
      %v2445 = vld [vmem:[%s2444] sm:$0xff]
      %v2446 = vld [vmem:[%s2444 + $0x8] sm:$0xff]
      %v2447 = vld [vmem:[%s2444 + $0x10] sm:$0xff]
      %v2449 = vperm.slane %v2441, 0
      %2450 = vset.pattern.permute.xlu0 8
      %2451 = vperm.xlu0 %2450, %v2449
      %v2452 = vpop.permute.xlu0 %2451
      %v2454 = vmul.f32 %v2452, %v2445
      %v2455 = vmul.f32 %v2452, %v2446
      %v2456 = vmul.f32 %v2452, %v2447
      %v2457 = vadd.f32 %v2436, %v2454
      %v2458 = vadd.f32 %v2437, %v2455
      %v2459 = vadd.f32 %v2438, %v2456
      %s2460 = sadd.s32 %s2439, 1
      %s2461 = scalar_lea.vmem %s1, %s2460
      %v2462 = vld [vmem:[%s2461] sm:$0x1]
      %s2463 = smul.u32 %s2460, 6
      %s2464 = smul.addr %s2463, 4
      %s2465 = scalar_lea.vmem [#allocation2], %s2464
      %v2466 = vld [vmem:[%s2465] sm:$0xff]
      %v2467 = vld [vmem:[%s2465 + $0x8] sm:$0xff]
      %v2468 = vld [vmem:[%s2465 + $0x10] sm:$0xff]
      %v2470 = vperm.slane %v2462, 0
      %2471 = vset.pattern.permute.xlu0 8
      %2472 = vperm.xlu0 %2471, %v2470
      %v2473 = vpop.permute.xlu0 %2472
      %v2475 = vmul.f32 %v2473, %v2466
      %v2476 = vmul.f32 %v2473, %v2467
      %v2477 = vmul.f32 %v2473, %v2468
      %v2478 = vadd.f32 %v2457, %v2475
      %v2479 = vadd.f32 %v2458, %v2476
      %v2480 = vadd.f32 %v2459, %v2477
      %s2481 = sadd.s32 %s2439, 2
      %s2482 = scalar_lea.vmem %s1, %s2481
      %v2483 = vld [vmem:[%s2482] sm:$0x1]
      %s2484 = smul.u32 %s2481, 6
      %s2485 = smul.addr %s2484, 4
      %s2486 = scalar_lea.vmem [#allocation2], %s2485
      %v2487 = vld [vmem:[%s2486] sm:$0xff]
      %v2488 = vld [vmem:[%s2486 + $0x8] sm:$0xff]
      %v2489 = vld [vmem:[%s2486 + $0x10] sm:$0xff]
      %v2491 = vperm.slane %v2483, 0
      %2492 = vset.pattern.permute.xlu0 8
      %2493 = vperm.xlu0 %2492, %v2491
      %v2494 = vpop.permute.xlu0 %2493
      %v2496 = vmul.f32 %v2494, %v2487
      %v2497 = vmul.f32 %v2494, %v2488
      %v2498 = vmul.f32 %v2494, %v2489
      %v2499 = vadd.f32 %v2478, %v2496
      %v2500 = vadd.f32 %v2479, %v2497
      %v2501 = vadd.f32 %v2480, %v2498
    $region106: #{tpu_custom_call.1} parent=1 // loop_footer
      %s2435 = sadd.s32 1, %s2431
    $region107: #{tpu_custom_call.1} parent=1 // loop_footer_branch
      %2430 = sbr.rel target = $region103
    $region108: #{tpu_custom_call.1} parent=1 // loop_exit
      _
    %2505 = vst [vmem:[#allocation1] ss:$2 sm:$0xff] %v2436
    %s2506 = scalar_lea.vmem [#allocation1], 16
    %2507 = vst [vmem:[%s2506] ss:$2 sm:$0xff] %v2437
    %s2508 = scalar_lea.vmem [#allocation1], 32
    %2509 = vst [vmem:[%s2508] ss:$2 sm:$0xff] %v2438
    %v2510 = vld.sshfl [vmem:[#allocation1] sm:$0xff pattern:$0x75316420]
    %v2511 = vld.sshfl [vmem:[#allocation1 + $0x8] sm:$0xff pattern:$0x75316420]
    %v2512 = vld.sshfl [vmem:[#allocation1 + $0x10] sm:$0xff pattern:$0x75316420]
    %v2513 = vld.sshfl [vmem:[#allocation1 + $0x18] sm:$0xff pattern:$0x75316420]
    %v2514 = vld.sshfl [vmem:[#allocation1 + $0x20] sm:$0xff pattern:$0x75316420]
    %v2515 = vld.sshfl [vmem:[#allocation1 + $0x28] sm:$0xff pattern:$0x75316420]
    %2522 = vst [vmem:[#allocation3 + $0xc0] sm:$0xf] %v2510
    %2523 = vst [vmem:[#allocation3 + $0xc8] sm:$0xf] %v2511
    %2524 = vst [vmem:[#allocation3 + $0xd0] sm:$0xf] %v2512
    %2525 = vst [vmem:[#allocation3 + $0xd8] sm:$0xf] %v2513
    %2526 = vst [vmem:[#allocation3 + $0xe0] sm:$0xf] %v2514
    %2527 = vst.msk [vmem:[#allocation3 + $0xe8] sm:$0xf] %vm1738, %v2515
    loop: start=0, step=1, limit=17
    $region109: #{tpu_custom_call.1} parent=1 // loop_pre_header
      _
    $region110: #{tpu_custom_call.1} parent=1 // loop_header
      %s2529 = sphi 0, %s2533
      %p2530 = scmp.ge.s32.totalorder %s2529, 17
      %v2534 = vphi 0.0, %v2597
      %v2535 = vphi 0.0, %v2598
      %v2536 = vphi 0.0, %v2599
    $region111: #{tpu_custom_call.1} parent=1 // loop_header_branch
      %2532 = sbr.rel (%p2530) target = $region115
    $region112: #{tpu_custom_call.1} parent=1 // loop_body
      %s2537 = smul.u32 %s2529, 3
      %s2538 = scalar_lea.vmem %s1, %s2537
      %v2539 = vld [vmem:[%s2538] sm:$0x1]
      %s2540 = smul.u32 %s2537, 6
      %s2541 = smul.addr %s2540, 4
      %s2542 = scalar_lea.vmem [#allocation2], %s2541
      %v2543 = vld [vmem:[%s2542] sm:$0xff]
      %v2544 = vld [vmem:[%s2542 + $0x8] sm:$0xff]
      %v2545 = vld [vmem:[%s2542 + $0x10] sm:$0xff]
      %v2547 = vperm.slane %v2539, 0
      %2548 = vset.pattern.permute.xlu0 9
      %2549 = vperm.xlu0 %2548, %v2547
      %v2550 = vpop.permute.xlu0 %2549
      %v2552 = vmul.f32 %v2550, %v2543
      %v2553 = vmul.f32 %v2550, %v2544
      %v2554 = vmul.f32 %v2550, %v2545
      %v2555 = vadd.f32 %v2534, %v2552
      %v2556 = vadd.f32 %v2535, %v2553
      %v2557 = vadd.f32 %v2536, %v2554
      %s2558 = sadd.s32 %s2537, 1
      %s2559 = scalar_lea.vmem %s1, %s2558
      %v2560 = vld [vmem:[%s2559] sm:$0x1]
      %s2561 = smul.u32 %s2558, 6
      %s2562 = smul.addr %s2561, 4
      %s2563 = scalar_lea.vmem [#allocation2], %s2562
      %v2564 = vld [vmem:[%s2563] sm:$0xff]
      %v2565 = vld [vmem:[%s2563 + $0x8] sm:$0xff]
      %v2566 = vld [vmem:[%s2563 + $0x10] sm:$0xff]
      %v2568 = vperm.slane %v2560, 0
      %2569 = vset.pattern.permute.xlu0 9
      %2570 = vperm.xlu0 %2569, %v2568
      %v2571 = vpop.permute.xlu0 %2570
      %v2573 = vmul.f32 %v2571, %v2564
      %v2574 = vmul.f32 %v2571, %v2565
      %v2575 = vmul.f32 %v2571, %v2566
      %v2576 = vadd.f32 %v2555, %v2573
      %v2577 = vadd.f32 %v2556, %v2574
      %v2578 = vadd.f32 %v2557, %v2575
      %s2579 = sadd.s32 %s2537, 2
      %s2580 = scalar_lea.vmem %s1, %s2579
      %v2581 = vld [vmem:[%s2580] sm:$0x1]
      %s2582 = smul.u32 %s2579, 6
      %s2583 = smul.addr %s2582, 4
      %s2584 = scalar_lea.vmem [#allocation2], %s2583
      %v2585 = vld [vmem:[%s2584] sm:$0xff]
      %v2586 = vld [vmem:[%s2584 + $0x8] sm:$0xff]
      %v2587 = vld [vmem:[%s2584 + $0x10] sm:$0xff]
      %v2589 = vperm.slane %v2581, 0
      %2590 = vset.pattern.permute.xlu0 9
      %2591 = vperm.xlu0 %2590, %v2589
      %v2592 = vpop.permute.xlu0 %2591
      %v2594 = vmul.f32 %v2592, %v2585
      %v2595 = vmul.f32 %v2592, %v2586
      %v2596 = vmul.f32 %v2592, %v2587
      %v2597 = vadd.f32 %v2576, %v2594
      %v2598 = vadd.f32 %v2577, %v2595
      %v2599 = vadd.f32 %v2578, %v2596
    $region113: #{tpu_custom_call.1} parent=1 // loop_footer
      %s2533 = sadd.s32 1, %s2529
    $region114: #{tpu_custom_call.1} parent=1 // loop_footer_branch
      %2528 = sbr.rel target = $region110
    $region115: #{tpu_custom_call.1} parent=1 // loop_exit
      _
    %s2603 = scalar_lea.vmem [#allocation1], 1
    %2604 = vst [vmem:[%s2603] ss:$2 sm:$0xff] %v2534
    %s2605 = scalar_lea.vmem [#allocation1], 17
    %2606 = vst [vmem:[%s2605] ss:$2 sm:$0xff] %v2535
    %s2607 = scalar_lea.vmem [#allocation1], 33
    %2608 = vst [vmem:[%s2607] ss:$2 sm:$0xff] %v2536
    %v2609 = vld.sshfl [vmem:[#allocation1] sm:$0xff pattern:$0x75316420]
    %v2610 = vld.sshfl [vmem:[#allocation1 + $0x8] sm:$0xff pattern:$0x75316420]
    %v2611 = vld.sshfl [vmem:[#allocation1 + $0x10] sm:$0xff pattern:$0x75316420]
    %v2612 = vld.sshfl [vmem:[#allocation1 + $0x18] sm:$0xff pattern:$0x75316420]
    %v2613 = vld.sshfl [vmem:[#allocation1 + $0x20] sm:$0xff pattern:$0x75316420]
    %v2614 = vld.sshfl [vmem:[#allocation1 + $0x28] sm:$0xff pattern:$0x75316420]
    %2621 = vst [vmem:[#allocation3 + $0xc0] sm:$0xf0] %v2609
    %2622 = vst [vmem:[#allocation3 + $0xc8] sm:$0xf0] %v2610
    %2623 = vst [vmem:[#allocation3 + $0xd0] sm:$0xf0] %v2611
    %2624 = vst [vmem:[#allocation3 + $0xd8] sm:$0xf0] %v2612
    %2625 = vst [vmem:[#allocation3 + $0xe0] sm:$0xf0] %v2613
    %2626 = vst.msk [vmem:[#allocation3 + $0xe8] sm:$0xf0] %vm46, %v2614
    loop: start=0, step=1, limit=17
    $region116: #{tpu_custom_call.1} parent=1 // loop_pre_header
      _
    $region117: #{tpu_custom_call.1} parent=1 // loop_header
      %s2628 = sphi 0, %s2632
      %p2629 = scmp.ge.s32.totalorder %s2628, 17
      %v2633 = vphi 0.0, %v2696
      %v2634 = vphi 0.0, %v2697
      %v2635 = vphi 0.0, %v2698
    $region118: #{tpu_custom_call.1} parent=1 // loop_header_branch
      %2631 = sbr.rel (%p2629) target = $region122
    $region119: #{tpu_custom_call.1} parent=1 // loop_body
      %s2636 = smul.u32 %s2628, 3
      %s2637 = scalar_lea.vmem %s1, %s2636
      %v2638 = vld [vmem:[%s2637] sm:$0x1]
      %s2639 = smul.u32 %s2636, 6
      %s2640 = smul.addr %s2639, 4
      %s2641 = scalar_lea.vmem [#allocation2], %s2640
      %v2642 = vld [vmem:[%s2641] sm:$0xff]
      %v2643 = vld [vmem:[%s2641 + $0x8] sm:$0xff]
      %v2644 = vld [vmem:[%s2641 + $0x10] sm:$0xff]
      %v2646 = vperm.slane %v2638, 0
      %2647 = vset.pattern.permute.xlu0 10
      %2648 = vperm.xlu0 %2647, %v2646
      %v2649 = vpop.permute.xlu0 %2648
      %v2651 = vmul.f32 %v2649, %v2642
      %v2652 = vmul.f32 %v2649, %v2643
      %v2653 = vmul.f32 %v2649, %v2644
      %v2654 = vadd.f32 %v2633, %v2651
      %v2655 = vadd.f32 %v2634, %v2652
      %v2656 = vadd.f32 %v2635, %v2653
      %s2657 = sadd.s32 %s2636, 1
      %s2658 = scalar_lea.vmem %s1, %s2657
      %v2659 = vld [vmem:[%s2658] sm:$0x1]
      %s2660 = smul.u32 %s2657, 6
      %s2661 = smul.addr %s2660, 4
      %s2662 = scalar_lea.vmem [#allocation2], %s2661
      %v2663 = vld [vmem:[%s2662] sm:$0xff]
      %v2664 = vld [vmem:[%s2662 + $0x8] sm:$0xff]
      %v2665 = vld [vmem:[%s2662 + $0x10] sm:$0xff]
      %v2667 = vperm.slane %v2659, 0
      %2668 = vset.pattern.permute.xlu0 10
      %2669 = vperm.xlu0 %2668, %v2667
      %v2670 = vpop.permute.xlu0 %2669
      %v2672 = vmul.f32 %v2670, %v2663
      %v2673 = vmul.f32 %v2670, %v2664
      %v2674 = vmul.f32 %v2670, %v2665
      %v2675 = vadd.f32 %v2654, %v2672
      %v2676 = vadd.f32 %v2655, %v2673
      %v2677 = vadd.f32 %v2656, %v2674
      %s2678 = sadd.s32 %s2636, 2
      %s2679 = scalar_lea.vmem %s1, %s2678
      %v2680 = vld [vmem:[%s2679] sm:$0x1]
      %s2681 = smul.u32 %s2678, 6
      %s2682 = smul.addr %s2681, 4
      %s2683 = scalar_lea.vmem [#allocation2], %s2682
      %v2684 = vld [vmem:[%s2683] sm:$0xff]
      %v2685 = vld [vmem:[%s2683 + $0x8] sm:$0xff]
      %v2686 = vld [vmem:[%s2683 + $0x10] sm:$0xff]
      %v2688 = vperm.slane %v2680, 0
      %2689 = vset.pattern.permute.xlu0 10
      %2690 = vperm.xlu0 %2689, %v2688
      %v2691 = vpop.permute.xlu0 %2690
      %v2693 = vmul.f32 %v2691, %v2684
      %v2694 = vmul.f32 %v2691, %v2685
      %v2695 = vmul.f32 %v2691, %v2686
      %v2696 = vadd.f32 %v2675, %v2693
      %v2697 = vadd.f32 %v2676, %v2694
      %v2698 = vadd.f32 %v2677, %v2695
    $region120: #{tpu_custom_call.1} parent=1 // loop_footer
      %s2632 = sadd.s32 1, %s2628
    $region121: #{tpu_custom_call.1} parent=1 // loop_footer_branch
      %2627 = sbr.rel target = $region117
    $region122: #{tpu_custom_call.1} parent=1 // loop_exit
      _
    %2702 = vst [vmem:[#allocation1] ss:$2 sm:$0xff] %v2633
    %s2703 = scalar_lea.vmem [#allocation1], 16
    %2704 = vst [vmem:[%s2703] ss:$2 sm:$0xff] %v2634
    %s2705 = scalar_lea.vmem [#allocation1], 32
    %2706 = vst [vmem:[%s2705] ss:$2 sm:$0xff] %v2635
    %v2707 = vld.sshfl [vmem:[#allocation1] sm:$0xff pattern:$0x75316420]
    %v2708 = vld.sshfl [vmem:[#allocation1 + $0x8] sm:$0xff pattern:$0x75316420]
    %v2709 = vld.sshfl [vmem:[#allocation1 + $0x10] sm:$0xff pattern:$0x75316420]
    %v2710 = vld.sshfl [vmem:[#allocation1 + $0x18] sm:$0xff pattern:$0x75316420]
    %v2711 = vld.sshfl [vmem:[#allocation1 + $0x20] sm:$0xff pattern:$0x75316420]
    %v2712 = vld.sshfl [vmem:[#allocation1 + $0x28] sm:$0xff pattern:$0x75316420]
    %2719 = vst [vmem:[#allocation3 + $0xf0] sm:$0xf] %v2707
    %2720 = vst [vmem:[#allocation3 + $0xf8] sm:$0xf] %v2708
    %2721 = vst [vmem:[#allocation3 + $0x100] sm:$0xf] %v2709
    %2722 = vst [vmem:[#allocation3 + $0x108] sm:$0xf] %v2710
    %2723 = vst [vmem:[#allocation3 + $0x110] sm:$0xf] %v2711
    %2724 = vst.msk [vmem:[#allocation3 + $0x118] sm:$0xf] %vm1738, %v2712
    loop: start=0, step=1, limit=17
    $region123: #{tpu_custom_call.1} parent=1 // loop_pre_header
      _
    $region124: #{tpu_custom_call.1} parent=1 // loop_header
      %s2726 = sphi 0, %s2730
      %p2727 = scmp.ge.s32.totalorder %s2726, 17
      %v2731 = vphi 0.0, %v2794
      %v2732 = vphi 0.0, %v2795
      %v2733 = vphi 0.0, %v2796
    $region125: #{tpu_custom_call.1} parent=1 // loop_header_branch
      %2729 = sbr.rel (%p2727) target = $region129
    $region126: #{tpu_custom_call.1} parent=1 // loop_body
      %s2734 = smul.u32 %s2726, 3
      %s2735 = scalar_lea.vmem %s1, %s2734
      %v2736 = vld [vmem:[%s2735] sm:$0x1]
      %s2737 = smul.u32 %s2734, 6
      %s2738 = smul.addr %s2737, 4
      %s2739 = scalar_lea.vmem [#allocation2], %s2738
      %v2740 = vld [vmem:[%s2739] sm:$0xff]
      %v2741 = vld [vmem:[%s2739 + $0x8] sm:$0xff]
      %v2742 = vld [vmem:[%s2739 + $0x10] sm:$0xff]
      %v2744 = vperm.slane %v2736, 0
      %2745 = vset.pattern.permute.xlu0 11
      %2746 = vperm.xlu0 %2745, %v2744
      %v2747 = vpop.permute.xlu0 %2746
      %v2749 = vmul.f32 %v2747, %v2740
      %v2750 = vmul.f32 %v2747, %v2741
      %v2751 = vmul.f32 %v2747, %v2742
      %v2752 = vadd.f32 %v2731, %v2749
      %v2753 = vadd.f32 %v2732, %v2750
      %v2754 = vadd.f32 %v2733, %v2751
      %s2755 = sadd.s32 %s2734, 1
      %s2756 = scalar_lea.vmem %s1, %s2755
      %v2757 = vld [vmem:[%s2756] sm:$0x1]
      %s2758 = smul.u32 %s2755, 6
      %s2759 = smul.addr %s2758, 4
      %s2760 = scalar_lea.vmem [#allocation2], %s2759
      %v2761 = vld [vmem:[%s2760] sm:$0xff]
      %v2762 = vld [vmem:[%s2760 + $0x8] sm:$0xff]
      %v2763 = vld [vmem:[%s2760 + $0x10] sm:$0xff]
      %v2765 = vperm.slane %v2757, 0
      %2766 = vset.pattern.permute.xlu0 11
      %2767 = vperm.xlu0 %2766, %v2765
      %v2768 = vpop.permute.xlu0 %2767
      %v2770 = vmul.f32 %v2768, %v2761
      %v2771 = vmul.f32 %v2768, %v2762
      %v2772 = vmul.f32 %v2768, %v2763
      %v2773 = vadd.f32 %v2752, %v2770
      %v2774 = vadd.f32 %v2753, %v2771
      %v2775 = vadd.f32 %v2754, %v2772
      %s2776 = sadd.s32 %s2734, 2
      %s2777 = scalar_lea.vmem %s1, %s2776
      %v2778 = vld [vmem:[%s2777] sm:$0x1]
      %s2779 = smul.u32 %s2776, 6
      %s2780 = smul.addr %s2779, 4
      %s2781 = scalar_lea.vmem [#allocation2], %s2780
      %v2782 = vld [vmem:[%s2781] sm:$0xff]
      %v2783 = vld [vmem:[%s2781 + $0x8] sm:$0xff]
      %v2784 = vld [vmem:[%s2781 + $0x10] sm:$0xff]
      %v2786 = vperm.slane %v2778, 0
      %2787 = vset.pattern.permute.xlu0 11
      %2788 = vperm.xlu0 %2787, %v2786
      %v2789 = vpop.permute.xlu0 %2788
      %v2791 = vmul.f32 %v2789, %v2782
      %v2792 = vmul.f32 %v2789, %v2783
      %v2793 = vmul.f32 %v2789, %v2784
      %v2794 = vadd.f32 %v2773, %v2791
      %v2795 = vadd.f32 %v2774, %v2792
      %v2796 = vadd.f32 %v2775, %v2793
    $region127: #{tpu_custom_call.1} parent=1 // loop_footer
      %s2730 = sadd.s32 1, %s2726
    $region128: #{tpu_custom_call.1} parent=1 // loop_footer_branch
      %2725 = sbr.rel target = $region124
    $region129: #{tpu_custom_call.1} parent=1 // loop_exit
      _
    %s2800 = scalar_lea.vmem [#allocation1], 1
    %2801 = vst [vmem:[%s2800] ss:$2 sm:$0xff] %v2731
    %s2802 = scalar_lea.vmem [#allocation1], 17
    %2803 = vst [vmem:[%s2802] ss:$2 sm:$0xff] %v2732
    %s2804 = scalar_lea.vmem [#allocation1], 33
    %2805 = vst [vmem:[%s2804] ss:$2 sm:$0xff] %v2733
    %v2806 = vld.sshfl [vmem:[#allocation1] sm:$0xff pattern:$0x75316420]
    %v2807 = vld.sshfl [vmem:[#allocation1 + $0x8] sm:$0xff pattern:$0x75316420]
    %v2808 = vld.sshfl [vmem:[#allocation1 + $0x10] sm:$0xff pattern:$0x75316420]
    %v2809 = vld.sshfl [vmem:[#allocation1 + $0x18] sm:$0xff pattern:$0x75316420]
    %v2810 = vld.sshfl [vmem:[#allocation1 + $0x20] sm:$0xff pattern:$0x75316420]
    %v2811 = vld.sshfl [vmem:[#allocation1 + $0x28] sm:$0xff pattern:$0x75316420]
    %2818 = vst [vmem:[#allocation3 + $0xf0] sm:$0xf0] %v2806
    %2819 = vst [vmem:[#allocation3 + $0xf8] sm:$0xf0] %v2807
    %2820 = vst [vmem:[#allocation3 + $0x100] sm:$0xf0] %v2808
    %2821 = vst [vmem:[#allocation3 + $0x108] sm:$0xf0] %v2809
    %2822 = vst [vmem:[#allocation3 + $0x110] sm:$0xf0] %v2810
    %2823 = vst.msk [vmem:[#allocation3 + $0x118] sm:$0xf0] %vm46, %v2811
    loop: start=0, step=1, limit=17
    $region130: #{tpu_custom_call.1} parent=1 // loop_pre_header
      _
    $region131: #{tpu_custom_call.1} parent=1 // loop_header
      %s2825 = sphi 0, %s2829
      %p2826 = scmp.ge.s32.totalorder %s2825, 17
      %v2830 = vphi 0.0, %v2893
      %v2831 = vphi 0.0, %v2894
      %v2832 = vphi 0.0, %v2895
    $region132: #{tpu_custom_call.1} parent=1 // loop_header_branch
      %2828 = sbr.rel (%p2826) target = $region136
    $region133: #{tpu_custom_call.1} parent=1 // loop_body
      %s2833 = smul.u32 %s2825, 3
      %s2834 = scalar_lea.vmem %s1, %s2833
      %v2835 = vld [vmem:[%s2834] sm:$0x1]
      %s2836 = smul.u32 %s2833, 6
      %s2837 = smul.addr %s2836, 4
      %s2838 = scalar_lea.vmem [#allocation2], %s2837
      %v2839 = vld [vmem:[%s2838] sm:$0xff]
      %v2840 = vld [vmem:[%s2838 + $0x8] sm:$0xff]
      %v2841 = vld [vmem:[%s2838 + $0x10] sm:$0xff]
      %v2843 = vperm.slane %v2835, 0
      %2844 = vset.pattern.permute.xlu0 12
      %2845 = vperm.xlu0 %2844, %v2843
      %v2846 = vpop.permute.xlu0 %2845
      %v2848 = vmul.f32 %v2846, %v2839
      %v2849 = vmul.f32 %v2846, %v2840
      %v2850 = vmul.f32 %v2846, %v2841
      %v2851 = vadd.f32 %v2830, %v2848
      %v2852 = vadd.f32 %v2831, %v2849
      %v2853 = vadd.f32 %v2832, %v2850
      %s2854 = sadd.s32 %s2833, 1
      %s2855 = scalar_lea.vmem %s1, %s2854
      %v2856 = vld [vmem:[%s2855] sm:$0x1]
      %s2857 = smul.u32 %s2854, 6
      %s2858 = smul.addr %s2857, 4
      %s2859 = scalar_lea.vmem [#allocation2], %s2858
      %v2860 = vld [vmem:[%s2859] sm:$0xff]
      %v2861 = vld [vmem:[%s2859 + $0x8] sm:$0xff]
      %v2862 = vld [vmem:[%s2859 + $0x10] sm:$0xff]
      %v2864 = vperm.slane %v2856, 0
      %2865 = vset.pattern.permute.xlu0 12
      %2866 = vperm.xlu0 %2865, %v2864
      %v2867 = vpop.permute.xlu0 %2866
      %v2869 = vmul.f32 %v2867, %v2860
      %v2870 = vmul.f32 %v2867, %v2861
      %v2871 = vmul.f32 %v2867, %v2862
      %v2872 = vadd.f32 %v2851, %v2869
      %v2873 = vadd.f32 %v2852, %v2870
      %v2874 = vadd.f32 %v2853, %v2871
      %s2875 = sadd.s32 %s2833, 2
      %s2876 = scalar_lea.vmem %s1, %s2875
      %v2877 = vld [vmem:[%s2876] sm:$0x1]
      %s2878 = smul.u32 %s2875, 6
      %s2879 = smul.addr %s2878, 4
      %s2880 = scalar_lea.vmem [#allocation2], %s2879
      %v2881 = vld [vmem:[%s2880] sm:$0xff]
      %v2882 = vld [vmem:[%s2880 + $0x8] sm:$0xff]
      %v2883 = vld [vmem:[%s2880 + $0x10] sm:$0xff]
      %v2885 = vperm.slane %v2877, 0
      %2886 = vset.pattern.permute.xlu0 12
      %2887 = vperm.xlu0 %2886, %v2885
      %v2888 = vpop.permute.xlu0 %2887
      %v2890 = vmul.f32 %v2888, %v2881
      %v2891 = vmul.f32 %v2888, %v2882
      %v2892 = vmul.f32 %v2888, %v2883
      %v2893 = vadd.f32 %v2872, %v2890
      %v2894 = vadd.f32 %v2873, %v2891
      %v2895 = vadd.f32 %v2874, %v2892
    $region134: #{tpu_custom_call.1} parent=1 // loop_footer
      %s2829 = sadd.s32 1, %s2825
    $region135: #{tpu_custom_call.1} parent=1 // loop_footer_branch
      %2824 = sbr.rel target = $region131
    $region136: #{tpu_custom_call.1} parent=1 // loop_exit
      _
    %2899 = vst [vmem:[#allocation1] ss:$2 sm:$0xff] %v2830
    %s2900 = scalar_lea.vmem [#allocation1], 16
    %2901 = vst [vmem:[%s2900] ss:$2 sm:$0xff] %v2831
    %s2902 = scalar_lea.vmem [#allocation1], 32
    %2903 = vst [vmem:[%s2902] ss:$2 sm:$0xff] %v2832
    %v2904 = vld.sshfl [vmem:[#allocation1] sm:$0xff pattern:$0x75316420]
    %v2905 = vld.sshfl [vmem:[#allocation1 + $0x8] sm:$0xff pattern:$0x75316420]
    %v2906 = vld.sshfl [vmem:[#allocation1 + $0x10] sm:$0xff pattern:$0x75316420]
    %v2907 = vld.sshfl [vmem:[#allocation1 + $0x18] sm:$0xff pattern:$0x75316420]
    %v2908 = vld.sshfl [vmem:[#allocation1 + $0x20] sm:$0xff pattern:$0x75316420]
    %v2909 = vld.sshfl [vmem:[#allocation1 + $0x28] sm:$0xff pattern:$0x75316420]
    %2916 = vst [vmem:[#allocation3 + $0x120] sm:$0xf] %v2904
    %2917 = vst [vmem:[#allocation3 + $0x128] sm:$0xf] %v2905
    %2918 = vst [vmem:[#allocation3 + $0x130] sm:$0xf] %v2906
    %2919 = vst [vmem:[#allocation3 + $0x138] sm:$0xf] %v2907
    %2920 = vst [vmem:[#allocation3 + $0x140] sm:$0xf] %v2908
    %2921 = vst.msk [vmem:[#allocation3 + $0x148] sm:$0xf] %vm1738, %v2909
    loop: start=0, step=1, limit=17
    $region137: #{tpu_custom_call.1} parent=1 // loop_pre_header
      _
    $region138: #{tpu_custom_call.1} parent=1 // loop_header
      %s2923 = sphi 0, %s2927
      %p2924 = scmp.ge.s32.totalorder %s2923, 17
      %v2928 = vphi 0.0, %v2991
      %v2929 = vphi 0.0, %v2992
      %v2930 = vphi 0.0, %v2993
    $region139: #{tpu_custom_call.1} parent=1 // loop_header_branch
      %2926 = sbr.rel (%p2924) target = $region143
    $region140: #{tpu_custom_call.1} parent=1 // loop_body
      %s2931 = smul.u32 %s2923, 3
      %s2932 = scalar_lea.vmem %s1, %s2931
      %v2933 = vld [vmem:[%s2932] sm:$0x1]
      %s2934 = smul.u32 %s2931, 6
      %s2935 = smul.addr %s2934, 4
      %s2936 = scalar_lea.vmem [#allocation2], %s2935
      %v2937 = vld [vmem:[%s2936] sm:$0xff]
      %v2938 = vld [vmem:[%s2936 + $0x8] sm:$0xff]
      %v2939 = vld [vmem:[%s2936 + $0x10] sm:$0xff]
      %v2941 = vperm.slane %v2933, 0
      %2942 = vset.pattern.permute.xlu0 13
      %2943 = vperm.xlu0 %2942, %v2941
      %v2944 = vpop.permute.xlu0 %2943
      %v2946 = vmul.f32 %v2944, %v2937
      %v2947 = vmul.f32 %v2944, %v2938
      %v2948 = vmul.f32 %v2944, %v2939
      %v2949 = vadd.f32 %v2928, %v2946
      %v2950 = vadd.f32 %v2929, %v2947
      %v2951 = vadd.f32 %v2930, %v2948
      %s2952 = sadd.s32 %s2931, 1
      %s2953 = scalar_lea.vmem %s1, %s2952
      %v2954 = vld [vmem:[%s2953] sm:$0x1]
      %s2955 = smul.u32 %s2952, 6
      %s2956 = smul.addr %s2955, 4
      %s2957 = scalar_lea.vmem [#allocation2], %s2956
      %v2958 = vld [vmem:[%s2957] sm:$0xff]
      %v2959 = vld [vmem:[%s2957 + $0x8] sm:$0xff]
      %v2960 = vld [vmem:[%s2957 + $0x10] sm:$0xff]
      %v2962 = vperm.slane %v2954, 0
      %2963 = vset.pattern.permute.xlu0 13
      %2964 = vperm.xlu0 %2963, %v2962
      %v2965 = vpop.permute.xlu0 %2964
      %v2967 = vmul.f32 %v2965, %v2958
      %v2968 = vmul.f32 %v2965, %v2959
      %v2969 = vmul.f32 %v2965, %v2960
      %v2970 = vadd.f32 %v2949, %v2967
      %v2971 = vadd.f32 %v2950, %v2968
      %v2972 = vadd.f32 %v2951, %v2969
      %s2973 = sadd.s32 %s2931, 2
      %s2974 = scalar_lea.vmem %s1, %s2973
      %v2975 = vld [vmem:[%s2974] sm:$0x1]
      %s2976 = smul.u32 %s2973, 6
      %s2977 = smul.addr %s2976, 4
      %s2978 = scalar_lea.vmem [#allocation2], %s2977
      %v2979 = vld [vmem:[%s2978] sm:$0xff]
      %v2980 = vld [vmem:[%s2978 + $0x8] sm:$0xff]
      %v2981 = vld [vmem:[%s2978 + $0x10] sm:$0xff]
      %v2983 = vperm.slane %v2975, 0
      %2984 = vset.pattern.permute.xlu0 13
      %2985 = vperm.xlu0 %2984, %v2983
      %v2986 = vpop.permute.xlu0 %2985
      %v2988 = vmul.f32 %v2986, %v2979
      %v2989 = vmul.f32 %v2986, %v2980
      %v2990 = vmul.f32 %v2986, %v2981
      %v2991 = vadd.f32 %v2970, %v2988
      %v2992 = vadd.f32 %v2971, %v2989
      %v2993 = vadd.f32 %v2972, %v2990
    $region141: #{tpu_custom_call.1} parent=1 // loop_footer
      %s2927 = sadd.s32 1, %s2923
    $region142: #{tpu_custom_call.1} parent=1 // loop_footer_branch
      %2922 = sbr.rel target = $region138
    $region143: #{tpu_custom_call.1} parent=1 // loop_exit
      _
    %s2997 = scalar_lea.vmem [#allocation1], 1
    %2998 = vst [vmem:[%s2997] ss:$2 sm:$0xff] %v2928
    %s2999 = scalar_lea.vmem [#allocation1], 17
    %3000 = vst [vmem:[%s2999] ss:$2 sm:$0xff] %v2929
    %s3001 = scalar_lea.vmem [#allocation1], 33
    %3002 = vst [vmem:[%s3001] ss:$2 sm:$0xff] %v2930
    %v3003 = vld.sshfl [vmem:[#allocation1] sm:$0xff pattern:$0x75316420]
    %v3004 = vld.sshfl [vmem:[#allocation1 + $0x8] sm:$0xff pattern:$0x75316420]
    %v3005 = vld.sshfl [vmem:[#allocation1 + $0x10] sm:$0xff pattern:$0x75316420]
    %v3006 = vld.sshfl [vmem:[#allocation1 + $0x18] sm:$0xff pattern:$0x75316420]
    %v3007 = vld.sshfl [vmem:[#allocation1 + $0x20] sm:$0xff pattern:$0x75316420]
    %v3008 = vld.sshfl [vmem:[#allocation1 + $0x28] sm:$0xff pattern:$0x75316420]
    %3015 = vst [vmem:[#allocation3 + $0x120] sm:$0xf0] %v3003
    %3016 = vst [vmem:[#allocation3 + $0x128] sm:$0xf0] %v3004
    %3017 = vst [vmem:[#allocation3 + $0x130] sm:$0xf0] %v3005
    %3018 = vst [vmem:[#allocation3 + $0x138] sm:$0xf0] %v3006
    %3019 = vst [vmem:[#allocation3 + $0x140] sm:$0xf0] %v3007
    %3020 = vst.msk [vmem:[#allocation3 + $0x148] sm:$0xf0] %vm46, %v3008
    loop: start=0, step=1, limit=17
    $region144: #{tpu_custom_call.1} parent=1 // loop_pre_header
      _
    $region145: #{tpu_custom_call.1} parent=1 // loop_header
      %s3022 = sphi 0, %s3026
      %p3023 = scmp.ge.s32.totalorder %s3022, 17
      %v3027 = vphi 0.0, %v3090
      %v3028 = vphi 0.0, %v3091
      %v3029 = vphi 0.0, %v3092
    $region146: #{tpu_custom_call.1} parent=1 // loop_header_branch
      %3025 = sbr.rel (%p3023) target = $region150
    $region147: #{tpu_custom_call.1} parent=1 // loop_body
      %s3030 = smul.u32 %s3022, 3
      %s3031 = scalar_lea.vmem %s1, %s3030
      %v3032 = vld [vmem:[%s3031] sm:$0x1]
      %s3033 = smul.u32 %s3030, 6
      %s3034 = smul.addr %s3033, 4
      %s3035 = scalar_lea.vmem [#allocation2], %s3034
      %v3036 = vld [vmem:[%s3035] sm:$0xff]
      %v3037 = vld [vmem:[%s3035 + $0x8] sm:$0xff]
      %v3038 = vld [vmem:[%s3035 + $0x10] sm:$0xff]
      %v3040 = vperm.slane %v3032, 0
      %3041 = vset.pattern.permute.xlu0 14
      %3042 = vperm.xlu0 %3041, %v3040
      %v3043 = vpop.permute.xlu0 %3042
      %v3045 = vmul.f32 %v3043, %v3036
      %v3046 = vmul.f32 %v3043, %v3037
      %v3047 = vmul.f32 %v3043, %v3038
      %v3048 = vadd.f32 %v3027, %v3045
      %v3049 = vadd.f32 %v3028, %v3046
      %v3050 = vadd.f32 %v3029, %v3047
      %s3051 = sadd.s32 %s3030, 1
      %s3052 = scalar_lea.vmem %s1, %s3051
      %v3053 = vld [vmem:[%s3052] sm:$0x1]
      %s3054 = smul.u32 %s3051, 6
      %s3055 = smul.addr %s3054, 4
      %s3056 = scalar_lea.vmem [#allocation2], %s3055
      %v3057 = vld [vmem:[%s3056] sm:$0xff]
      %v3058 = vld [vmem:[%s3056 + $0x8] sm:$0xff]
      %v3059 = vld [vmem:[%s3056 + $0x10] sm:$0xff]
      %v3061 = vperm.slane %v3053, 0
      %3062 = vset.pattern.permute.xlu0 14
      %3063 = vperm.xlu0 %3062, %v3061
      %v3064 = vpop.permute.xlu0 %3063
      %v3066 = vmul.f32 %v3064, %v3057
      %v3067 = vmul.f32 %v3064, %v3058
      %v3068 = vmul.f32 %v3064, %v3059
      %v3069 = vadd.f32 %v3048, %v3066
      %v3070 = vadd.f32 %v3049, %v3067
      %v3071 = vadd.f32 %v3050, %v3068
      %s3072 = sadd.s32 %s3030, 2
      %s3073 = scalar_lea.vmem %s1, %s3072
      %v3074 = vld [vmem:[%s3073] sm:$0x1]
      %s3075 = smul.u32 %s3072, 6
      %s3076 = smul.addr %s3075, 4
      %s3077 = scalar_lea.vmem [#allocation2], %s3076
      %v3078 = vld [vmem:[%s3077] sm:$0xff]
      %v3079 = vld [vmem:[%s3077 + $0x8] sm:$0xff]
      %v3080 = vld [vmem:[%s3077 + $0x10] sm:$0xff]
      %v3082 = vperm.slane %v3074, 0
      %3083 = vset.pattern.permute.xlu0 14
      %3084 = vperm.xlu0 %3083, %v3082
      %v3085 = vpop.permute.xlu0 %3084
      %v3087 = vmul.f32 %v3085, %v3078
      %v3088 = vmul.f32 %v3085, %v3079
      %v3089 = vmul.f32 %v3085, %v3080
      %v3090 = vadd.f32 %v3069, %v3087
      %v3091 = vadd.f32 %v3070, %v3088
      %v3092 = vadd.f32 %v3071, %v3089
    $region148: #{tpu_custom_call.1} parent=1 // loop_footer
      %s3026 = sadd.s32 1, %s3022
    $region149: #{tpu_custom_call.1} parent=1 // loop_footer_branch
      %3021 = sbr.rel target = $region145
    $region150: #{tpu_custom_call.1} parent=1 // loop_exit
      _
    %3096 = vst [vmem:[#allocation1] ss:$2 sm:$0xff] %v3027
    %s3097 = scalar_lea.vmem [#allocation1], 16
    %3098 = vst [vmem:[%s3097] ss:$2 sm:$0xff] %v3028
    %s3099 = scalar_lea.vmem [#allocation1], 32
    %3100 = vst [vmem:[%s3099] ss:$2 sm:$0xff] %v3029
    %v3101 = vld.sshfl [vmem:[#allocation1] sm:$0xff pattern:$0x75316420]
    %v3102 = vld.sshfl [vmem:[#allocation1 + $0x8] sm:$0xff pattern:$0x75316420]
    %v3103 = vld.sshfl [vmem:[#allocation1 + $0x10] sm:$0xff pattern:$0x75316420]
    %v3104 = vld.sshfl [vmem:[#allocation1 + $0x18] sm:$0xff pattern:$0x75316420]
    %v3105 = vld.sshfl [vmem:[#allocation1 + $0x20] sm:$0xff pattern:$0x75316420]
    %v3106 = vld.sshfl [vmem:[#allocation1 + $0x28] sm:$0xff pattern:$0x75316420]
    %3113 = vst [vmem:[#allocation3 + $0x150] sm:$0xf] %v3101
    %3114 = vst [vmem:[#allocation3 + $0x158] sm:$0xf] %v3102
    %3115 = vst [vmem:[#allocation3 + $0x160] sm:$0xf] %v3103
    %3116 = vst [vmem:[#allocation3 + $0x168] sm:$0xf] %v3104
    %3117 = vst [vmem:[#allocation3 + $0x170] sm:$0xf] %v3105
    %3118 = vst.msk [vmem:[#allocation3 + $0x178] sm:$0xf] %vm1738, %v3106
    loop: start=0, step=1, limit=17
    $region151: #{tpu_custom_call.1} parent=1 // loop_pre_header
      _
    $region152: #{tpu_custom_call.1} parent=1 // loop_header
      %s3120 = sphi 0, %s3124
      %p3121 = scmp.ge.s32.totalorder %s3120, 17
      %v3125 = vphi 0.0, %v3188
      %v3126 = vphi 0.0, %v3189
      %v3127 = vphi 0.0, %v3190
    $region153: #{tpu_custom_call.1} parent=1 // loop_header_branch
      %3123 = sbr.rel (%p3121) target = $region157
    $region154: #{tpu_custom_call.1} parent=1 // loop_body
      %s3128 = smul.u32 %s3120, 3
      %s3129 = scalar_lea.vmem %s1, %s3128
      %v3130 = vld [vmem:[%s3129] sm:$0x1]
      %s3131 = smul.u32 %s3128, 6
      %s3132 = smul.addr %s3131, 4
      %s3133 = scalar_lea.vmem [#allocation2], %s3132
      %v3134 = vld [vmem:[%s3133] sm:$0xff]
      %v3135 = vld [vmem:[%s3133 + $0x8] sm:$0xff]
      %v3136 = vld [vmem:[%s3133 + $0x10] sm:$0xff]
      %v3138 = vperm.slane %v3130, 0
      %3139 = vset.pattern.permute.xlu0 15
      %3140 = vperm.xlu0 %3139, %v3138
      %v3141 = vpop.permute.xlu0 %3140
      %v3143 = vmul.f32 %v3141, %v3134
      %v3144 = vmul.f32 %v3141, %v3135
      %v3145 = vmul.f32 %v3141, %v3136
      %v3146 = vadd.f32 %v3125, %v3143
      %v3147 = vadd.f32 %v3126, %v3144
      %v3148 = vadd.f32 %v3127, %v3145
      %s3149 = sadd.s32 %s3128, 1
      %s3150 = scalar_lea.vmem %s1, %s3149
      %v3151 = vld [vmem:[%s3150] sm:$0x1]
      %s3152 = smul.u32 %s3149, 6
      %s3153 = smul.addr %s3152, 4
      %s3154 = scalar_lea.vmem [#allocation2], %s3153
      %v3155 = vld [vmem:[%s3154] sm:$0xff]
      %v3156 = vld [vmem:[%s3154 + $0x8] sm:$0xff]
      %v3157 = vld [vmem:[%s3154 + $0x10] sm:$0xff]
      %v3159 = vperm.slane %v3151, 0
      %3160 = vset.pattern.permute.xlu0 15
      %3161 = vperm.xlu0 %3160, %v3159
      %v3162 = vpop.permute.xlu0 %3161
      %v3164 = vmul.f32 %v3162, %v3155
      %v3165 = vmul.f32 %v3162, %v3156
      %v3166 = vmul.f32 %v3162, %v3157
      %v3167 = vadd.f32 %v3146, %v3164
      %v3168 = vadd.f32 %v3147, %v3165
      %v3169 = vadd.f32 %v3148, %v3166
      %s3170 = sadd.s32 %s3128, 2
      %s3171 = scalar_lea.vmem %s1, %s3170
      %v3172 = vld [vmem:[%s3171] sm:$0x1]
      %s3173 = smul.u32 %s3170, 6
      %s3174 = smul.addr %s3173, 4
      %s3175 = scalar_lea.vmem [#allocation2], %s3174
      %v3176 = vld [vmem:[%s3175] sm:$0xff]
      %v3177 = vld [vmem:[%s3175 + $0x8] sm:$0xff]
      %v3178 = vld [vmem:[%s3175 + $0x10] sm:$0xff]
      %v3180 = vperm.slane %v3172, 0
      %3181 = vset.pattern.permute.xlu0 15
      %3182 = vperm.xlu0 %3181, %v3180
      %v3183 = vpop.permute.xlu0 %3182
      %v3185 = vmul.f32 %v3183, %v3176
      %v3186 = vmul.f32 %v3183, %v3177
      %v3187 = vmul.f32 %v3183, %v3178
      %v3188 = vadd.f32 %v3167, %v3185
      %v3189 = vadd.f32 %v3168, %v3186
      %v3190 = vadd.f32 %v3169, %v3187
    $region155: #{tpu_custom_call.1} parent=1 // loop_footer
      %s3124 = sadd.s32 1, %s3120
    $region156: #{tpu_custom_call.1} parent=1 // loop_footer_branch
      %3119 = sbr.rel target = $region152
    $region157: #{tpu_custom_call.1} parent=1 // loop_exit
      _
    %s3194 = scalar_lea.vmem [#allocation1], 1
    %3195 = vst [vmem:[%s3194] ss:$2 sm:$0xff] %v3125
    %s3196 = scalar_lea.vmem [#allocation1], 17
    %3197 = vst [vmem:[%s3196] ss:$2 sm:$0xff] %v3126
    %s3198 = scalar_lea.vmem [#allocation1], 33
    %3199 = vst [vmem:[%s3198] ss:$2 sm:$0xff] %v3127
    %v3200 = vld.sshfl [vmem:[#allocation1] sm:$0xff pattern:$0x75316420]
    %v3201 = vld.sshfl [vmem:[#allocation1 + $0x8] sm:$0xff pattern:$0x75316420]
    %v3202 = vld.sshfl [vmem:[#allocation1 + $0x10] sm:$0xff pattern:$0x75316420]
    %v3203 = vld.sshfl [vmem:[#allocation1 + $0x18] sm:$0xff pattern:$0x75316420]
    %v3204 = vld.sshfl [vmem:[#allocation1 + $0x20] sm:$0xff pattern:$0x75316420]
    %v3205 = vld.sshfl [vmem:[#allocation1 + $0x28] sm:$0xff pattern:$0x75316420]
    %3212 = vst [vmem:[#allocation3 + $0x150] sm:$0xf0] %v3200
    %3213 = vst [vmem:[#allocation3 + $0x158] sm:$0xf0] %v3201
    %3214 = vst [vmem:[#allocation3 + $0x160] sm:$0xf0] %v3202
    %3215 = vst [vmem:[#allocation3 + $0x168] sm:$0xf0] %v3203
    %3216 = vst [vmem:[#allocation3 + $0x170] sm:$0xf0] %v3204
    %3217 = vst.msk [vmem:[#allocation3 + $0x178] sm:$0xf0] %vm46, %v3205
    %v3218 = vld [vmem:[#allocation3] sm:$0xff]
    %v3219 = vld [vmem:[#allocation3 + $0x8] sm:$0xff]
    %v3220 = vld [vmem:[#allocation3 + $0x10] sm:$0xff]
    %v3221 = vld [vmem:[#allocation3 + $0x18] sm:$0xff]
    %v3222 = vld [vmem:[#allocation3 + $0x20] sm:$0xff]
    %v3223 = vld [vmem:[#allocation3 + $0x28] sm:$0xff]
    %v3224 = vld [vmem:[#allocation3 + $0x30] sm:$0xff]
    %v3225 = vld [vmem:[#allocation3 + $0x38] sm:$0xff]
    %v3226 = vld [vmem:[#allocation3 + $0x40] sm:$0xff]
    %v3227 = vld [vmem:[#allocation3 + $0x48] sm:$0xff]
    %v3228 = vld [vmem:[#allocation3 + $0x50] sm:$0xff]
    %v3229 = vld [vmem:[#allocation3 + $0x58] sm:$0xff]
    %v3230 = vld [vmem:[#allocation3 + $0x60] sm:$0xff]
    %v3231 = vld [vmem:[#allocation3 + $0x68] sm:$0xff]
    %v3232 = vld [vmem:[#allocation3 + $0x70] sm:$0xff]
    %v3233 = vld [vmem:[#allocation3 + $0x78] sm:$0xff]
    %v3234 = vld [vmem:[#allocation3 + $0x80] sm:$0xff]
    %v3235 = vld [vmem:[#allocation3 + $0x88] sm:$0xff]
    %v3236 = vld [vmem:[#allocation3 + $0x90] sm:$0xff]
    %v3237 = vld [vmem:[#allocation3 + $0x98] sm:$0xff]
    %v3238 = vld [vmem:[#allocation3 + $0xa0] sm:$0xff]
    %v3239 = vld [vmem:[#allocation3 + $0xa8] sm:$0xff]
    %v3240 = vld [vmem:[#allocation3 + $0xb0] sm:$0xff]
    %v3241 = vld [vmem:[#allocation3 + $0xb8] sm:$0xff]
    %v3242 = vld [vmem:[#allocation3 + $0xc0] sm:$0xff]
    %v3243 = vld [vmem:[#allocation3 + $0xc8] sm:$0xff]
    %v3244 = vld [vmem:[#allocation3 + $0xd0] sm:$0xff]
    %v3245 = vld [vmem:[#allocation3 + $0xd8] sm:$0xff]
    %v3246 = vld [vmem:[#allocation3 + $0xe0] sm:$0xff]
    %v3247 = vld [vmem:[#allocation3 + $0xe8] sm:$0xff]
    %v3248 = vld [vmem:[#allocation3 + $0xf0] sm:$0xff]
    %v3249 = vld [vmem:[#allocation3 + $0xf8] sm:$0xff]
    %v3250 = vld [vmem:[#allocation3 + $0x100] sm:$0xff]
    %v3251 = vld [vmem:[#allocation3 + $0x108] sm:$0xff]
    %v3252 = vld [vmem:[#allocation3 + $0x110] sm:$0xff]
    %v3253 = vld [vmem:[#allocation3 + $0x118] sm:$0xff]
    %v3254 = vld [vmem:[#allocation3 + $0x120] sm:$0xff]
    %v3255 = vld [vmem:[#allocation3 + $0x128] sm:$0xff]
    %v3256 = vld [vmem:[#allocation3 + $0x130] sm:$0xff]
    %v3257 = vld [vmem:[#allocation3 + $0x138] sm:$0xff]
    %v3258 = vld [vmem:[#allocation3 + $0x140] sm:$0xff]
    %v3259 = vld [vmem:[#allocation3 + $0x148] sm:$0xff]
    %v3260 = vld [vmem:[#allocation3 + $0x150] sm:$0xff]
    %v3261 = vld [vmem:[#allocation3 + $0x158] sm:$0xff]
    %v3262 = vld [vmem:[#allocation3 + $0x160] sm:$0xff]
    %v3263 = vld [vmem:[#allocation3 + $0x168] sm:$0xff]
    %v3264 = vld [vmem:[#allocation3 + $0x170] sm:$0xff]
    %v3265 = vld [vmem:[#allocation3 + $0x178] sm:$0xff]
    %v3266 = vpack.c.bf16 %v3224, %v3218
    %v3267 = vpack.c.bf16 %v3225, %v3219
    %v3268 = vpack.c.bf16 %v3226, %v3220
    %v3269 = vpack.c.bf16 %v3227, %v3221
    %v3270 = vpack.c.bf16 %v3228, %v3222
    %v3271 = vpack.c.bf16 %v3229, %v3223
    %v3272 = vpack.c.bf16 %v3236, %v3230
    %v3273 = vpack.c.bf16 %v3237, %v3231
    %v3274 = vpack.c.bf16 %v3238, %v3232
    %v3275 = vpack.c.bf16 %v3239, %v3233
    %v3276 = vpack.c.bf16 %v3240, %v3234
    %v3277 = vpack.c.bf16 %v3241, %v3235
    %v3278 = vpack.c.bf16 %v3248, %v3242
    %v3279 = vpack.c.bf16 %v3249, %v3243
    %v3280 = vpack.c.bf16 %v3250, %v3244
    %v3281 = vpack.c.bf16 %v3251, %v3245
    %v3282 = vpack.c.bf16 %v3252, %v3246
    %v3283 = vpack.c.bf16 %v3253, %v3247
    %v3284 = vpack.c.bf16 %v3260, %v3254
    %v3285 = vpack.c.bf16 %v3261, %v3255
    %v3286 = vpack.c.bf16 %v3262, %v3256
    %v3287 = vpack.c.bf16 %v3263, %v3257
    %v3288 = vpack.c.bf16 %v3264, %v3258
    %v3289 = vpack.c.bf16 %v3265, %v3259
    %v3290 = vld [vmem:[%s2] sm:$0xf]
    %v3291 = vld [vmem:[%s2 + $0x4] sm:$0xf]
    %v3292 = vld [vmem:[%s2 + $0x8] sm:$0xf]
    %v3293 = vld [vmem:[%s2 + $0xc] sm:$0xf]
    %v3294 = vld [vmem:[%s2 + $0x10] sm:$0xf]
    %v3295 = vld [vmem:[%s2 + $0x14] sm:$0xf]
    %v3296 = vld [vmem:[%s2 + $0x18] sm:$0xf]
    %v3297 = vld [vmem:[%s2 + $0x1c] sm:$0xf]
    %v3298 = vld [vmem:[%s3] sm:$0xff]
    %v3299 = vld [vmem:[%s3 + $0x8] sm:$0xff]
    %v3300 = vld [vmem:[%s3 + $0x10] sm:$0xff]
    %v3301 = vld [vmem:[%s3 + $0x18] sm:$0xff]
    %v3302 = vld [vmem:[%s3 + $0x20] sm:$0xff]
    %v3303 = vld [vmem:[%s3 + $0x28] sm:$0xff]
    %v3304 = vld [vmem:[%s3 + $0x30] sm:$0xff]
    %v3305 = vld [vmem:[%s3 + $0x38] sm:$0xff]
    %3307 = vset.pattern.permute.xlu0 0
    %3308 = vperm.xlu0 %3307, %v3298
    %v3309 = vpop.permute.xlu0 %3308
    %3312 = vset.pattern.permute.xlu0 0
    %3313 = vperm.xlu0 %3312, %v3299
    %v3314 = vpop.permute.xlu0 %3313
    %3317 = vset.pattern.permute.xlu0 0
    %3318 = vperm.xlu0 %3317, %v3300
    %v3319 = vpop.permute.xlu0 %3318
    %3322 = vset.pattern.permute.xlu0 0
    %3323 = vperm.xlu0 %3322, %v3301
    %v3324 = vpop.permute.xlu0 %3323
    %3327 = vset.pattern.permute.xlu0 0
    %3328 = vperm.xlu0 %3327, %v3302
    %v3329 = vpop.permute.xlu0 %3328
    %3332 = vset.pattern.permute.xlu0 0
    %3333 = vperm.xlu0 %3332, %v3303
    %v3334 = vpop.permute.xlu0 %3333
    %3337 = vset.pattern.permute.xlu0 0
    %3338 = vperm.xlu0 %3337, %v3304
    %v3339 = vpop.permute.xlu0 %3338
    %3342 = vset.pattern.permute.xlu0 0
    %3343 = vperm.xlu0 %3342, %v3305
    %v3344 = vpop.permute.xlu0 %3343
    %v3354 = vunpack.c.l.b16 %v3290
    %v3355 = vunpack.c.l.b16 %v3291
    %v3356 = vunpack.c.l.b16 %v3292
    %v3357 = vunpack.c.l.b16 %v3293
    %v3358 = vunpack.c.l.b16 %v3294
    %v3359 = vunpack.c.l.b16 %v3295
    %v3360 = vunpack.c.l.b16 %v3296
    %v3361 = vunpack.c.l.b16 %v3297
    %v3362 = vpack.c.b16 %v3355, %v3354
    %v3363 = vpack.c.b16 %v3357, %v3356
    %v3364 = vpack.c.b16 %v3359, %v3358
    %v3365 = vpack.c.b16 %v3361, %v3360
    %vm3366 = vcmask 523264
    %v3368 = vsel %vm3366, %v3362, 0
    %v3371 = vsel %vm3366, %v3363, 0
    %v3374 = vsel %vm3366, %v3364, 0
    %v3377 = vsel %vm3366, %v3365, 0
    %3379 = vmatpush.bf16.msra.mxu0 0
    %3380 = vmatpush.bf16.msra.mxu0 0
    %3381 = vmatpush.bf16.msra.mxu0 0
    %3382 = vmatpush.bf16.msra.mxu0 0
    %3383 = vmatpush.bf16.msra.mxu0 %v3284
    %3384 = vmatpush.bf16.msra.mxu0 %v3278
    %3385 = vmatpush.bf16.msra.mxu0 %v3272
    %3386 = vmatpush.bf16.msra.mxu0 %v3266
    %3387 = vmatmul.bf16.gmra.mxu0 %v3368
    %v3388 = vpop.f32.mrf.mxu0
    %v3389 = vadd.f32 %v3309, %v3388
    %v3390 = vpop.f32.mrf.mxu0
    %v3391 = vadd.f32 %v3314, %v3390
    %3392 = vmatmul.bf16.gmra.mxu0 %v3371
    %v3393 = vpop.f32.mrf.mxu0
    %v3394 = vadd.f32 %v3319, %v3393
    %v3395 = vpop.f32.mrf.mxu0
    %v3396 = vadd.f32 %v3324, %v3395
    %3397 = vmatmul.bf16.gmra.mxu0 %v3374
    %v3398 = vpop.f32.mrf.mxu0
    %v3399 = vadd.f32 %v3329, %v3398
    %v3400 = vpop.f32.mrf.mxu0
    %v3401 = vadd.f32 %v3334, %v3400
    %3402 = vmatmul.bf16.gmra.mxu0 %v3377
    %v3403 = vpop.f32.mrf.mxu0
    %v3404 = vadd.f32 %v3339, %v3403
    %v3405 = vpop.f32.mrf.mxu0
    %v3406 = vadd.f32 %v3344, %v3405
    %3407 = vdwg.mxu0
    %3408 = vmatpush.bf16.msra.mxu0 0
    %3409 = vmatpush.bf16.msra.mxu0 0
    %3410 = vmatpush.bf16.msra.mxu0 0
    %3411 = vmatpush.bf16.msra.mxu0 0
    %3412 = vmatpush.bf16.msra.mxu0 %v3285
    %3413 = vmatpush.bf16.msra.mxu0 %v3279
    %3414 = vmatpush.bf16.msra.mxu0 %v3273
    %3415 = vmatpush.bf16.msra.mxu0 %v3267
    %3416 = vmatmul.bf16.gmra.mxu0 %v3368
    %v3417 = vpop.f32.mrf.mxu0
    %v3418 = vadd.f32 %v3309, %v3417
    %v3419 = vpop.f32.mrf.mxu0
    %v3420 = vadd.f32 %v3314, %v3419
    %3421 = vmatmul.bf16.gmra.mxu0 %v3371
    %v3422 = vpop.f32.mrf.mxu0
    %v3423 = vadd.f32 %v3319, %v3422
    %v3424 = vpop.f32.mrf.mxu0
    %v3425 = vadd.f32 %v3324, %v3424
    %3426 = vmatmul.bf16.gmra.mxu0 %v3374
    %v3427 = vpop.f32.mrf.mxu0
    %v3428 = vadd.f32 %v3329, %v3427
    %v3429 = vpop.f32.mrf.mxu0
    %v3430 = vadd.f32 %v3334, %v3429
    %3431 = vmatmul.bf16.gmra.mxu0 %v3377
    %v3432 = vpop.f32.mrf.mxu0
    %v3433 = vadd.f32 %v3339, %v3432
    %v3434 = vpop.f32.mrf.mxu0
    %v3435 = vadd.f32 %v3344, %v3434
    %3436 = vdwg.mxu0
    %3437 = vmatpush.bf16.msra.mxu0 0
    %3438 = vmatpush.bf16.msra.mxu0 0
    %3439 = vmatpush.bf16.msra.mxu0 0
    %3440 = vmatpush.bf16.msra.mxu0 0
    %3441 = vmatpush.bf16.msra.mxu0 %v3286
    %3442 = vmatpush.bf16.msra.mxu0 %v3280
    %3443 = vmatpush.bf16.msra.mxu0 %v3274
    %3444 = vmatpush.bf16.msra.mxu0 %v3268
    %3445 = vmatmul.bf16.gmra.mxu0 %v3368
    %v3446 = vpop.f32.mrf.mxu0
    %v3447 = vadd.f32 %v3309, %v3446
    %v3448 = vpop.f32.mrf.mxu0
    %v3449 = vadd.f32 %v3314, %v3448
    %3450 = vmatmul.bf16.gmra.mxu0 %v3371
    %v3451 = vpop.f32.mrf.mxu0
    %v3452 = vadd.f32 %v3319, %v3451
    %v3453 = vpop.f32.mrf.mxu0
    %v3454 = vadd.f32 %v3324, %v3453
    %3455 = vmatmul.bf16.gmra.mxu0 %v3374
    %v3456 = vpop.f32.mrf.mxu0
    %v3457 = vadd.f32 %v3329, %v3456
    %v3458 = vpop.f32.mrf.mxu0
    %v3459 = vadd.f32 %v3334, %v3458
    %3460 = vmatmul.bf16.gmra.mxu0 %v3377
    %v3461 = vpop.f32.mrf.mxu0
    %v3462 = vadd.f32 %v3339, %v3461
    %v3463 = vpop.f32.mrf.mxu0
    %v3464 = vadd.f32 %v3344, %v3463
    %3465 = vdwg.mxu0
    %3466 = vmatpush.bf16.msra.mxu0 0
    %3467 = vmatpush.bf16.msra.mxu0 0
    %3468 = vmatpush.bf16.msra.mxu0 0
    %3469 = vmatpush.bf16.msra.mxu0 0
    %3470 = vmatpush.bf16.msra.mxu0 %v3287
    %3471 = vmatpush.bf16.msra.mxu0 %v3281
    %3472 = vmatpush.bf16.msra.mxu0 %v3275
    %3473 = vmatpush.bf16.msra.mxu0 %v3269
    %3474 = vmatmul.bf16.gmra.mxu0 %v3368
    %v3475 = vpop.f32.mrf.mxu0
    %v3476 = vadd.f32 %v3309, %v3475
    %v3477 = vpop.f32.mrf.mxu0
    %v3478 = vadd.f32 %v3314, %v3477
    %3479 = vmatmul.bf16.gmra.mxu0 %v3371
    %v3480 = vpop.f32.mrf.mxu0
    %v3481 = vadd.f32 %v3319, %v3480
    %v3482 = vpop.f32.mrf.mxu0
    %v3483 = vadd.f32 %v3324, %v3482
    %3484 = vmatmul.bf16.gmra.mxu0 %v3374
    %v3485 = vpop.f32.mrf.mxu0
    %v3486 = vadd.f32 %v3329, %v3485
    %v3487 = vpop.f32.mrf.mxu0
    %v3488 = vadd.f32 %v3334, %v3487
    %3489 = vmatmul.bf16.gmra.mxu0 %v3377
    %v3490 = vpop.f32.mrf.mxu0
    %v3491 = vadd.f32 %v3339, %v3490
    %v3492 = vpop.f32.mrf.mxu0
    %v3493 = vadd.f32 %v3344, %v3492
    %3494 = vdwg.mxu0
    %3495 = vmatpush.bf16.msra.mxu0 0
    %3496 = vmatpush.bf16.msra.mxu0 0
    %3497 = vmatpush.bf16.msra.mxu0 0
    %3498 = vmatpush.bf16.msra.mxu0 0
    %3499 = vmatpush.bf16.msra.mxu0 %v3288
    %3500 = vmatpush.bf16.msra.mxu0 %v3282
    %3501 = vmatpush.bf16.msra.mxu0 %v3276
    %3502 = vmatpush.bf16.msra.mxu0 %v3270
    %3503 = vmatmul.bf16.gmra.mxu0 %v3368
    %v3504 = vpop.f32.mrf.mxu0
    %v3505 = vadd.f32 %v3309, %v3504
    %v3506 = vpop.f32.mrf.mxu0
    %v3507 = vadd.f32 %v3314, %v3506
    %3508 = vmatmul.bf16.gmra.mxu0 %v3371
    %v3509 = vpop.f32.mrf.mxu0
    %v3510 = vadd.f32 %v3319, %v3509
    %v3511 = vpop.f32.mrf.mxu0
    %v3512 = vadd.f32 %v3324, %v3511
    %3513 = vmatmul.bf16.gmra.mxu0 %v3374
    %v3514 = vpop.f32.mrf.mxu0
    %v3515 = vadd.f32 %v3329, %v3514
    %v3516 = vpop.f32.mrf.mxu0
    %v3517 = vadd.f32 %v3334, %v3516
    %3518 = vmatmul.bf16.gmra.mxu0 %v3377
    %v3519 = vpop.f32.mrf.mxu0
    %v3520 = vadd.f32 %v3339, %v3519
    %v3521 = vpop.f32.mrf.mxu0
    %v3522 = vadd.f32 %v3344, %v3521
    %3523 = vdwg.mxu0
    %3524 = vmatpush.bf16.msra.mxu0 0
    %3525 = vmatpush.bf16.msra.mxu0 0
    %3526 = vmatpush.bf16.msra.mxu0 0
    %3527 = vmatpush.bf16.msra.mxu0 0
    %3528 = vmatpush.bf16.msra.mxu0 %v3289
    %3529 = vmatpush.bf16.msra.mxu0 %v3283
    %3530 = vmatpush.bf16.msra.mxu0 %v3277
    %3531 = vmatpush.bf16.msra.mxu0 %v3271
    %3532 = vmatmul.bf16.gmra.mxu0 %v3368
    %v3533 = vpop.f32.mrf.mxu0
    %v3534 = vadd.f32 %v3309, %v3533
    %v3535 = vpop.f32.mrf.mxu0
    %v3536 = vadd.f32 %v3314, %v3535
    %3537 = vmatmul.bf16.gmra.mxu0 %v3371
    %v3538 = vpop.f32.mrf.mxu0
    %v3539 = vadd.f32 %v3319, %v3538
    %v3540 = vpop.f32.mrf.mxu0
    %v3541 = vadd.f32 %v3324, %v3540
    %3542 = vmatmul.bf16.gmra.mxu0 %v3374
    %v3543 = vpop.f32.mrf.mxu0
    %v3544 = vadd.f32 %v3329, %v3543
    %v3545 = vpop.f32.mrf.mxu0
    %v3546 = vadd.f32 %v3334, %v3545
    %3547 = vmatmul.bf16.gmra.mxu0 %v3377
    %v3548 = vpop.f32.mrf.mxu0
    %v3549 = vadd.f32 %v3339, %v3548
    %v3550 = vpop.f32.mrf.mxu0
    %v3551 = vadd.f32 %v3344, %v3550
    %3552 = vdwg.mxu0
    %vm3553 = vcmp.gt.f32.partialorder %v3389, 0.0
    %vm3554 = vcmp.gt.f32.partialorder %v3418, 0.0
    %vm3555 = vcmp.gt.f32.partialorder %v3447, 0.0
    %vm3556 = vcmp.gt.f32.partialorder %v3476, 0.0
    %vm3557 = vcmp.gt.f32.partialorder %v3505, 0.0
    %vm3558 = vcmp.gt.f32.partialorder %v3534, 0.0
    %vm3559 = vcmp.gt.f32.partialorder %v3391, 0.0
    %vm3560 = vcmp.gt.f32.partialorder %v3420, 0.0
    %vm3561 = vcmp.gt.f32.partialorder %v3449, 0.0
    %vm3562 = vcmp.gt.f32.partialorder %v3478, 0.0
    %vm3563 = vcmp.gt.f32.partialorder %v3507, 0.0
    %vm3564 = vcmp.gt.f32.partialorder %v3536, 0.0
    %vm3565 = vcmp.gt.f32.partialorder %v3394, 0.0
    %vm3566 = vcmp.gt.f32.partialorder %v3423, 0.0
    %vm3567 = vcmp.gt.f32.partialorder %v3452, 0.0
    %vm3568 = vcmp.gt.f32.partialorder %v3481, 0.0
    %vm3569 = vcmp.gt.f32.partialorder %v3510, 0.0
    %vm3570 = vcmp.gt.f32.partialorder %v3539, 0.0
    %vm3571 = vcmp.gt.f32.partialorder %v3396, 0.0
    %vm3572 = vcmp.gt.f32.partialorder %v3425, 0.0
    %vm3573 = vcmp.gt.f32.partialorder %v3454, 0.0
    %vm3574 = vcmp.gt.f32.partialorder %v3483, 0.0
    %vm3575 = vcmp.gt.f32.partialorder %v3512, 0.0
    %vm3576 = vcmp.gt.f32.partialorder %v3541, 0.0
    %vm3577 = vcmp.gt.f32.partialorder %v3399, 0.0
    %vm3578 = vcmp.gt.f32.partialorder %v3428, 0.0
    %vm3579 = vcmp.gt.f32.partialorder %v3457, 0.0
    %vm3580 = vcmp.gt.f32.partialorder %v3486, 0.0
    %vm3581 = vcmp.gt.f32.partialorder %v3515, 0.0
    %vm3582 = vcmp.gt.f32.partialorder %v3544, 0.0
    %vm3583 = vcmp.gt.f32.partialorder %v3401, 0.0
    %vm3584 = vcmp.gt.f32.partialorder %v3430, 0.0
    %vm3585 = vcmp.gt.f32.partialorder %v3459, 0.0
    %vm3586 = vcmp.gt.f32.partialorder %v3488, 0.0
    %vm3587 = vcmp.gt.f32.partialorder %v3517, 0.0
    %vm3588 = vcmp.gt.f32.partialorder %v3546, 0.0
    %vm3589 = vcmp.gt.f32.partialorder %v3404, 0.0
    %vm3590 = vcmp.gt.f32.partialorder %v3433, 0.0
    %vm3591 = vcmp.gt.f32.partialorder %v3462, 0.0
    %vm3592 = vcmp.gt.f32.partialorder %v3491, 0.0
    %vm3593 = vcmp.gt.f32.partialorder %v3520, 0.0
    %vm3594 = vcmp.gt.f32.partialorder %v3549, 0.0
    %vm3595 = vcmp.gt.f32.partialorder %v3406, 0.0
    %vm3596 = vcmp.gt.f32.partialorder %v3435, 0.0
    %vm3597 = vcmp.gt.f32.partialorder %v3464, 0.0
    %vm3598 = vcmp.gt.f32.partialorder %v3493, 0.0
    %vm3599 = vcmp.gt.f32.partialorder %v3522, 0.0
    %vm3600 = vcmp.gt.f32.partialorder %v3551, 0.0
    %v3601 = vmin.f32 %v3389, 0.0
    %v3602 = vmin.f32 %v3418, 0.0
    %v3603 = vmin.f32 %v3447, 0.0
    %v3604 = vmin.f32 %v3476, 0.0
    %v3605 = vmin.f32 %v3505, 0.0
    %v3606 = vmin.f32 %v3534, 0.0
    %v3607 = vmin.f32 %v3391, 0.0
    %v3608 = vmin.f32 %v3420, 0.0
    %v3609 = vmin.f32 %v3449, 0.0
    %v3610 = vmin.f32 %v3478, 0.0
    %v3611 = vmin.f32 %v3507, 0.0
    %v3612 = vmin.f32 %v3536, 0.0
    %v3613 = vmin.f32 %v3394, 0.0
    %v3614 = vmin.f32 %v3423, 0.0
    %v3615 = vmin.f32 %v3452, 0.0
    %v3616 = vmin.f32 %v3481, 0.0
    %v3617 = vmin.f32 %v3510, 0.0
    %v3618 = vmin.f32 %v3539, 0.0
    %v3619 = vmin.f32 %v3396, 0.0
    %v3620 = vmin.f32 %v3425, 0.0
    %v3621 = vmin.f32 %v3454, 0.0
    %v3622 = vmin.f32 %v3483, 0.0
    %v3623 = vmin.f32 %v3512, 0.0
    %v3624 = vmin.f32 %v3541, 0.0
    %v3625 = vmin.f32 %v3399, 0.0
    %v3626 = vmin.f32 %v3428, 0.0
    %v3627 = vmin.f32 %v3457, 0.0
    %v3628 = vmin.f32 %v3486, 0.0
    %v3629 = vmin.f32 %v3515, 0.0
    %v3630 = vmin.f32 %v3544, 0.0
    %v3631 = vmin.f32 %v3401, 0.0
    %v3632 = vmin.f32 %v3430, 0.0
    %v3633 = vmin.f32 %v3459, 0.0
    %v3634 = vmin.f32 %v3488, 0.0
    %v3635 = vmin.f32 %v3517, 0.0
    %v3636 = vmin.f32 %v3546, 0.0
    %v3637 = vmin.f32 %v3404, 0.0
    %v3638 = vmin.f32 %v3433, 0.0
    %v3639 = vmin.f32 %v3462, 0.0
    %v3640 = vmin.f32 %v3491, 0.0
    %v3641 = vmin.f32 %v3520, 0.0
    %v3642 = vmin.f32 %v3549, 0.0
    %v3643 = vmin.f32 %v3406, 0.0
    %v3644 = vmin.f32 %v3435, 0.0
    %v3645 = vmin.f32 %v3464, 0.0
    %v3646 = vmin.f32 %v3493, 0.0
    %v3647 = vmin.f32 %v3522, 0.0
    %v3648 = vmin.f32 %v3551, 0.0
    %v3649 = vmul.f32 %v3601, 1.442695
    %v3650 = vpow.pop %v3649
    %v3651 = vmul.f32 %v3602, 1.442695
    %v3652 = vpow.pop %v3651
    %v3653 = vmul.f32 %v3603, 1.442695
    %v3654 = vpow.pop %v3653
    %v3655 = vmul.f32 %v3604, 1.442695
    %v3656 = vpow.pop %v3655
    %v3657 = vmul.f32 %v3605, 1.442695
    %v3658 = vpow.pop %v3657
    %v3659 = vmul.f32 %v3606, 1.442695
    %v3660 = vpow.pop %v3659
    %v3661 = vmul.f32 %v3607, 1.442695
    %v3662 = vpow.pop %v3661
    %v3663 = vmul.f32 %v3608, 1.442695
    %v3664 = vpow.pop %v3663
    %v3665 = vmul.f32 %v3609, 1.442695
    %v3666 = vpow.pop %v3665
    %v3667 = vmul.f32 %v3610, 1.442695
    %v3668 = vpow.pop %v3667
    %v3669 = vmul.f32 %v3611, 1.442695
    %v3670 = vpow.pop %v3669
    %v3671 = vmul.f32 %v3612, 1.442695
    %v3672 = vpow.pop %v3671
    %v3673 = vmul.f32 %v3613, 1.442695
    %v3674 = vpow.pop %v3673
    %v3675 = vmul.f32 %v3614, 1.442695
    %v3676 = vpow.pop %v3675
    %v3677 = vmul.f32 %v3615, 1.442695
    %v3678 = vpow.pop %v3677
    %v3679 = vmul.f32 %v3616, 1.442695
    %v3680 = vpow.pop %v3679
    %v3681 = vmul.f32 %v3617, 1.442695
    %v3682 = vpow.pop %v3681
    %v3683 = vmul.f32 %v3618, 1.442695
    %v3684 = vpow.pop %v3683
    %v3685 = vmul.f32 %v3619, 1.442695
    %v3686 = vpow.pop %v3685
    %v3687 = vmul.f32 %v3620, 1.442695
    %v3688 = vpow.pop %v3687
    %v3689 = vmul.f32 %v3621, 1.442695
    %v3690 = vpow.pop %v3689
    %v3691 = vmul.f32 %v3622, 1.442695
    %v3692 = vpow.pop %v3691
    %v3693 = vmul.f32 %v3623, 1.442695
    %v3694 = vpow.pop %v3693
    %v3695 = vmul.f32 %v3624, 1.442695
    %v3696 = vpow.pop %v3695
    %v3697 = vmul.f32 %v3625, 1.442695
    %v3698 = vpow.pop %v3697
    %v3699 = vmul.f32 %v3626, 1.442695
    %v3700 = vpow.pop %v3699
    %v3701 = vmul.f32 %v3627, 1.442695
    %v3702 = vpow.pop %v3701
    %v3703 = vmul.f32 %v3628, 1.442695
    %v3704 = vpow.pop %v3703
    %v3705 = vmul.f32 %v3629, 1.442695
    %v3706 = vpow.pop %v3705
    %v3707 = vmul.f32 %v3630, 1.442695
    %v3708 = vpow.pop %v3707
    %v3709 = vmul.f32 %v3631, 1.442695
    %v3710 = vpow.pop %v3709
    %v3711 = vmul.f32 %v3632, 1.442695
    %v3712 = vpow.pop %v3711
    %v3713 = vmul.f32 %v3633, 1.442695
    %v3714 = vpow.pop %v3713
    %v3715 = vmul.f32 %v3634, 1.442695
    %v3716 = vpow.pop %v3715
    %v3717 = vmul.f32 %v3635, 1.442695
    %v3718 = vpow.pop %v3717
    %v3719 = vmul.f32 %v3636, 1.442695
    %v3720 = vpow.pop %v3719
    %v3721 = vmul.f32 %v3637, 1.442695
    %v3722 = vpow.pop %v3721
    %v3723 = vmul.f32 %v3638, 1.442695
    %v3724 = vpow.pop %v3723
    %v3725 = vmul.f32 %v3639, 1.442695
    %v3726 = vpow.pop %v3725
    %v3727 = vmul.f32 %v3640, 1.442695
    %v3728 = vpow.pop %v3727
    %v3729 = vmul.f32 %v3641, 1.442695
    %v3730 = vpow.pop %v3729
    %v3731 = vmul.f32 %v3642, 1.442695
    %v3732 = vpow.pop %v3731
    %v3733 = vmul.f32 %v3643, 1.442695
    %v3734 = vpow.pop %v3733
    %v3735 = vmul.f32 %v3644, 1.442695
    %v3736 = vpow.pop %v3735
    %v3737 = vmul.f32 %v3645, 1.442695
    %v3738 = vpow.pop %v3737
    %v3739 = vmul.f32 %v3646, 1.442695
    %v3740 = vpow.pop %v3739
    %v3741 = vmul.f32 %v3647, 1.442695
    %v3742 = vpow.pop %v3741
    %v3743 = vmul.f32 %v3648, 1.442695
    %v3744 = vpow.pop %v3743
    %v3745 = vsub.f32 %v3650, 1.0
    %v3746 = vsub.f32 %v3652, 1.0
    %v3747 = vsub.f32 %v3654, 1.0
    %v3748 = vsub.f32 %v3656, 1.0
    %v3749 = vsub.f32 %v3658, 1.0
    %v3750 = vsub.f32 %v3660, 1.0
    %v3751 = vsub.f32 %v3662, 1.0
    %v3752 = vsub.f32 %v3664, 1.0
    %v3753 = vsub.f32 %v3666, 1.0
    %v3754 = vsub.f32 %v3668, 1.0
    %v3755 = vsub.f32 %v3670, 1.0
    %v3756 = vsub.f32 %v3672, 1.0
    %v3757 = vsub.f32 %v3674, 1.0
    %v3758 = vsub.f32 %v3676, 1.0
    %v3759 = vsub.f32 %v3678, 1.0
    %v3760 = vsub.f32 %v3680, 1.0
    %v3761 = vsub.f32 %v3682, 1.0
    %v3762 = vsub.f32 %v3684, 1.0
    %v3763 = vsub.f32 %v3686, 1.0
    %v3764 = vsub.f32 %v3688, 1.0
    %v3765 = vsub.f32 %v3690, 1.0
    %v3766 = vsub.f32 %v3692, 1.0
    %v3767 = vsub.f32 %v3694, 1.0
    %v3768 = vsub.f32 %v3696, 1.0
    %v3769 = vsub.f32 %v3698, 1.0
    %v3770 = vsub.f32 %v3700, 1.0
    %v3771 = vsub.f32 %v3702, 1.0
    %v3772 = vsub.f32 %v3704, 1.0
    %v3773 = vsub.f32 %v3706, 1.0
    %v3774 = vsub.f32 %v3708, 1.0
    %v3775 = vsub.f32 %v3710, 1.0
    %v3776 = vsub.f32 %v3712, 1.0
    %v3777 = vsub.f32 %v3714, 1.0
    %v3778 = vsub.f32 %v3716, 1.0
    %v3779 = vsub.f32 %v3718, 1.0
    %v3780 = vsub.f32 %v3720, 1.0
    %v3781 = vsub.f32 %v3722, 1.0
    %v3782 = vsub.f32 %v3724, 1.0
    %v3783 = vsub.f32 %v3726, 1.0
    %v3784 = vsub.f32 %v3728, 1.0
    %v3785 = vsub.f32 %v3730, 1.0
    %v3786 = vsub.f32 %v3732, 1.0
    %v3787 = vsub.f32 %v3734, 1.0
    %v3788 = vsub.f32 %v3736, 1.0
    %v3789 = vsub.f32 %v3738, 1.0
    %v3790 = vsub.f32 %v3740, 1.0
    %v3791 = vsub.f32 %v3742, 1.0
    %v3792 = vsub.f32 %v3744, 1.0
    %v3793 = vsel %vm3553, %v3389, %v3745
    %v3794 = vsel %vm3554, %v3418, %v3746
    %v3795 = vsel %vm3555, %v3447, %v3747
    %v3796 = vsel %vm3556, %v3476, %v3748
    %v3797 = vsel %vm3557, %v3505, %v3749
    %v3798 = vsel %vm3558, %v3534, %v3750
    %v3799 = vsel %vm3559, %v3391, %v3751
    %v3800 = vsel %vm3560, %v3420, %v3752
    %v3801 = vsel %vm3561, %v3449, %v3753
    %v3802 = vsel %vm3562, %v3478, %v3754
    %v3803 = vsel %vm3563, %v3507, %v3755
    %v3804 = vsel %vm3564, %v3536, %v3756
    %v3805 = vsel %vm3565, %v3394, %v3757
    %v3806 = vsel %vm3566, %v3423, %v3758
    %v3807 = vsel %vm3567, %v3452, %v3759
    %v3808 = vsel %vm3568, %v3481, %v3760
    %v3809 = vsel %vm3569, %v3510, %v3761
    %v3810 = vsel %vm3570, %v3539, %v3762
    %v3811 = vsel %vm3571, %v3396, %v3763
    %v3812 = vsel %vm3572, %v3425, %v3764
    %v3813 = vsel %vm3573, %v3454, %v3765
    %v3814 = vsel %vm3574, %v3483, %v3766
    %v3815 = vsel %vm3575, %v3512, %v3767
    %v3816 = vsel %vm3576, %v3541, %v3768
    %v3817 = vsel %vm3577, %v3399, %v3769
    %v3818 = vsel %vm3578, %v3428, %v3770
    %v3819 = vsel %vm3579, %v3457, %v3771
    %v3820 = vsel %vm3580, %v3486, %v3772
    %v3821 = vsel %vm3581, %v3515, %v3773
    %v3822 = vsel %vm3582, %v3544, %v3774
    %v3823 = vsel %vm3583, %v3401, %v3775
    %v3824 = vsel %vm3584, %v3430, %v3776
    %v3825 = vsel %vm3585, %v3459, %v3777
    %v3826 = vsel %vm3586, %v3488, %v3778
    %v3827 = vsel %vm3587, %v3517, %v3779
    %v3828 = vsel %vm3588, %v3546, %v3780
    %v3829 = vsel %vm3589, %v3404, %v3781
    %v3830 = vsel %vm3590, %v3433, %v3782
    %v3831 = vsel %vm3591, %v3462, %v3783
    %v3832 = vsel %vm3592, %v3491, %v3784
    %v3833 = vsel %vm3593, %v3520, %v3785
    %v3834 = vsel %vm3594, %v3549, %v3786
    %v3835 = vsel %vm3595, %v3406, %v3787
    %v3836 = vsel %vm3596, %v3435, %v3788
    %v3837 = vsel %vm3597, %v3464, %v3789
    %v3838 = vsel %vm3598, %v3493, %v3790
    %v3839 = vsel %vm3599, %v3522, %v3791
    %v3840 = vsel %vm3600, %v3551, %v3792
    %v3841 = vpack.c.bf16 %v3799, %v3793
    %v3842 = vpack.c.bf16 %v3800, %v3794
    %v3843 = vpack.c.bf16 %v3801, %v3795
    %v3844 = vpack.c.bf16 %v3802, %v3796
    %v3845 = vpack.c.bf16 %v3803, %v3797
    %v3846 = vpack.c.bf16 %v3804, %v3798
    %v3847 = vpack.c.bf16 %v3811, %v3805
    %v3848 = vpack.c.bf16 %v3812, %v3806
    %v3849 = vpack.c.bf16 %v3813, %v3807
    %v3850 = vpack.c.bf16 %v3814, %v3808
    %v3851 = vpack.c.bf16 %v3815, %v3809
    %v3852 = vpack.c.bf16 %v3816, %v3810
    %v3853 = vpack.c.bf16 %v3823, %v3817
    %v3854 = vpack.c.bf16 %v3824, %v3818
    %v3855 = vpack.c.bf16 %v3825, %v3819
    %v3856 = vpack.c.bf16 %v3826, %v3820
    %v3857 = vpack.c.bf16 %v3827, %v3821
    %v3858 = vpack.c.bf16 %v3828, %v3822
    %v3859 = vpack.c.bf16 %v3835, %v3829
    %v3860 = vpack.c.bf16 %v3836, %v3830
    %v3861 = vpack.c.bf16 %v3837, %v3831
    %v3862 = vpack.c.bf16 %v3838, %v3832
    %v3863 = vpack.c.bf16 %v3839, %v3833
    %v3864 = vpack.c.bf16 %v3840, %v3834
    %v3865 = vld [vmem:[%s6] sm:$0xff]
    %v3866 = vld [vmem:[%s6 + $0x8] sm:$0xff]
    %v3867 = vld [vmem:[%s6 + $0x10] sm:$0xff]
    %v3868 = vld [vmem:[%s6 + $0x18] sm:$0xff]
    %v3869 = vld [vmem:[%s6 + $0x20] sm:$0xff]
    %v3870 = vld [vmem:[%s6 + $0x28] sm:$0xff]
    %v3871 = vld [vmem:[%s6 + $0x30] sm:$0xff]
    %v3872 = vld [vmem:[%s6 + $0x38] sm:$0xff]
    %v3873 = vld [vmem:[%s6 + $0x40] sm:$0xff]
    %v3874 = vld [vmem:[%s6 + $0x48] sm:$0xff]
    %v3875 = vld [vmem:[%s6 + $0x50] sm:$0xff]
    %v3876 = vld [vmem:[%s6 + $0x58] sm:$0xff]
    %v3877 = vld [vmem:[%s6 + $0x60] sm:$0xff]
    %v3878 = vld [vmem:[%s6 + $0x68] sm:$0xff]
    %v3879 = vld [vmem:[%s6 + $0x70] sm:$0xff]
    %v3880 = vld [vmem:[%s6 + $0x78] sm:$0xff]
    %v3881 = vld [vmem:[%s6 + $0x80] sm:$0xff]
    %v3882 = vld [vmem:[%s6 + $0x88] sm:$0xff]
    %v3883 = vld [vmem:[%s6 + $0x90] sm:$0xff]
    %v3884 = vld [vmem:[%s6 + $0x98] sm:$0xff]
    %v3885 = vld [vmem:[%s6 + $0xa0] sm:$0xff]
    %v3886 = vld [vmem:[%s6 + $0xa8] sm:$0xff]
    %v3887 = vld [vmem:[%s6 + $0xb0] sm:$0xff]
    %v3888 = vld [vmem:[%s6 + $0xb8] sm:$0xff]
    %v3889 = vld [vmem:[%s6 + $0xc0] sm:$0xff]
    %v3890 = vld [vmem:[%s6 + $0xc8] sm:$0xff]
    %v3891 = vld [vmem:[%s6 + $0xd0] sm:$0xff]
    %v3892 = vld [vmem:[%s6 + $0xd8] sm:$0xff]
    %v3893 = vld [vmem:[%s6 + $0xe0] sm:$0xff]
    %v3894 = vld [vmem:[%s6 + $0xe8] sm:$0xff]
    %v3895 = vld [vmem:[%s6 + $0xf0] sm:$0xff]
    %v3896 = vld [vmem:[%s6 + $0xf8] sm:$0xff]
    %v3897 = vld [vmem:[%s6 + $0x100] sm:$0xff]
    %v3898 = vld [vmem:[%s6 + $0x108] sm:$0xff]
    %v3899 = vld [vmem:[%s6 + $0x110] sm:$0xff]
    %v3900 = vld [vmem:[%s6 + $0x118] sm:$0xff]
    %v3901 = vld [vmem:[%s6 + $0x120] sm:$0xff]
    %v3902 = vld [vmem:[%s6 + $0x128] sm:$0xff]
    %v3903 = vld [vmem:[%s6 + $0x130] sm:$0xff]
    %v3904 = vld [vmem:[%s6 + $0x138] sm:$0xff]
    %v3905 = vld [vmem:[%s6 + $0x140] sm:$0xff]
    %v3906 = vld [vmem:[%s6 + $0x148] sm:$0xff]
    %v3907 = vld [vmem:[%s6 + $0x150] sm:$0xff]
    %v3908 = vld [vmem:[%s6 + $0x158] sm:$0xff]
    %v3909 = vld [vmem:[%s6 + $0x160] sm:$0xff]
    %v3910 = vld [vmem:[%s6 + $0x168] sm:$0xff]
    %v3911 = vld [vmem:[%s6 + $0x170] sm:$0xff]
    %v3912 = vld [vmem:[%s6 + $0x178] sm:$0xff]
    %v3913 = vld [vmem:[%s6 + $0x180] sm:$0xff]
    %v3914 = vld [vmem:[%s6 + $0x188] sm:$0xff]
    %v3915 = vld [vmem:[%s6 + $0x190] sm:$0xff]
    %v3916 = vld [vmem:[%s6 + $0x198] sm:$0xff]
    %v3917 = vld [vmem:[%s6 + $0x1a0] sm:$0xff]
    %v3918 = vld [vmem:[%s6 + $0x1a8] sm:$0xff]
    %v3919 = vld [vmem:[%s6 + $0x1b0] sm:$0xff]
    %v3920 = vld [vmem:[%s6 + $0x1b8] sm:$0xff]
    %v3921 = vld [vmem:[%s6 + $0x1c0] sm:$0xff]
    %v3922 = vld [vmem:[%s6 + $0x1c8] sm:$0xff]
    %v3923 = vld [vmem:[%s6 + $0x1d0] sm:$0xff]
    %v3924 = vld [vmem:[%s6 + $0x1d8] sm:$0xff]
    %v3925 = vld [vmem:[%s6 + $0x1e0] sm:$0xff]
    %v3926 = vld [vmem:[%s6 + $0x1e8] sm:$0xff]
    %v3927 = vld [vmem:[%s6 + $0x1f0] sm:$0xff]
    %v3928 = vld [vmem:[%s6 + $0x1f8] sm:$0xff]
    %v3929 = vld [vmem:[%s6 + $0x200] sm:$0xff]
    %v3930 = vld [vmem:[%s6 + $0x208] sm:$0xff]
    %v3931 = vld [vmem:[%s6 + $0x210] sm:$0xff]
    %v3932 = vld [vmem:[%s6 + $0x218] sm:$0xff]
    %v3933 = vld [vmem:[%s6 + $0x220] sm:$0xff]
    %v3934 = vld [vmem:[%s6 + $0x228] sm:$0xff]
    %v3935 = vld [vmem:[%s6 + $0x230] sm:$0xff]
    %v3936 = vld [vmem:[%s6 + $0x238] sm:$0xff]
    %v3937 = vld [vmem:[%s6 + $0x240] sm:$0xff]
    %v3938 = vld [vmem:[%s6 + $0x248] sm:$0xff]
    %v3939 = vld [vmem:[%s6 + $0x250] sm:$0xff]
    %v3940 = vld [vmem:[%s6 + $0x258] sm:$0xff]
    %v3941 = vld [vmem:[%s6 + $0x260] sm:$0xff]
    %v3942 = vld [vmem:[%s6 + $0x268] sm:$0xff]
    %v3943 = vld [vmem:[%s6 + $0x270] sm:$0xff]
    %v3944 = vld [vmem:[%s6 + $0x278] sm:$0xff]
    %v3945 = vld [vmem:[%s6 + $0x280] sm:$0xff]
    %v3946 = vld [vmem:[%s6 + $0x288] sm:$0xff]
    %v3947 = vld [vmem:[%s6 + $0x290] sm:$0xff]
    %v3948 = vld [vmem:[%s6 + $0x298] sm:$0xff]
    %v3949 = vld [vmem:[%s6 + $0x2a0] sm:$0xff]
    %v3950 = vld [vmem:[%s6 + $0x2a8] sm:$0xff]
    %v3951 = vld [vmem:[%s6 + $0x2b0] sm:$0xff]
    %v3952 = vld [vmem:[%s6 + $0x2b8] sm:$0xff]
    %v3953 = vld [vmem:[%s6 + $0x2c0] sm:$0xff]
    %v3954 = vld [vmem:[%s6 + $0x2c8] sm:$0xff]
    %v3955 = vld [vmem:[%s6 + $0x2d0] sm:$0xff]
    %v3956 = vld [vmem:[%s6 + $0x2d8] sm:$0xff]
    %v3957 = vld [vmem:[%s6 + $0x2e0] sm:$0xff]
    %v3958 = vld [vmem:[%s6 + $0x2e8] sm:$0x77]
    %v4053 = vunpack.c.l.b16 %v3865
    %v4054 = vunpack.c.h.b16 %v3865
    %v4055 = vunpack.c.l.b16 %v3866
    %v4056 = vunpack.c.h.b16 %v3866
    %v4057 = vunpack.c.l.b16 %v3867
    %v4058 = vunpack.c.h.b16 %v3867
    %v4059 = vunpack.c.l.b16 %v3868
    %v4060 = vunpack.c.h.b16 %v3868
    %v4061 = vunpack.c.l.b16 %v3869
    %v4062 = vunpack.c.h.b16 %v3869
    %v4063 = vunpack.c.l.b16 %v3870
    %v4064 = vunpack.c.h.b16 %v3870
    %v4065 = vunpack.c.l.b16 %v3871
    %v4066 = vunpack.c.h.b16 %v3871
    %v4067 = vunpack.c.l.b16 %v3872
    %v4068 = vunpack.c.h.b16 %v3872
    %v4069 = vunpack.c.l.b16 %v3873
    %v4070 = vunpack.c.h.b16 %v3873
    %v4071 = vunpack.c.l.b16 %v3874
    %v4072 = vunpack.c.h.b16 %v3874
    %v4073 = vunpack.c.l.b16 %v3875
    %v4074 = vunpack.c.h.b16 %v3875
    %v4075 = vunpack.c.l.b16 %v3876
    %v4076 = vunpack.c.h.b16 %v3876
    %v4077 = vunpack.c.l.b16 %v3877
    %v4078 = vunpack.c.h.b16 %v3877
    %v4079 = vunpack.c.l.b16 %v3878
    %v4080 = vunpack.c.h.b16 %v3878
    %v4081 = vunpack.c.l.b16 %v3879
    %v4082 = vunpack.c.h.b16 %v3879
    %v4083 = vunpack.c.l.b16 %v3880
    %v4084 = vunpack.c.h.b16 %v3880
    %v4085 = vunpack.c.l.b16 %v3881
    %v4086 = vunpack.c.h.b16 %v3881
    %v4087 = vunpack.c.l.b16 %v3882
    %v4088 = vunpack.c.h.b16 %v3882
    %v4089 = vunpack.c.l.b16 %v3883
    %v4090 = vunpack.c.h.b16 %v3883
    %v4091 = vunpack.c.l.b16 %v3884
    %v4092 = vunpack.c.h.b16 %v3884
    %v4093 = vunpack.c.l.b16 %v3885
    %v4094 = vunpack.c.h.b16 %v3885
    %v4095 = vunpack.c.l.b16 %v3886
    %v4096 = vunpack.c.h.b16 %v3886
    %v4097 = vunpack.c.l.b16 %v3887
    %v4098 = vunpack.c.h.b16 %v3887
    %v4099 = vunpack.c.l.b16 %v3888
    %v4100 = vunpack.c.h.b16 %v3888
    %v4101 = vunpack.c.l.b16 %v3889
    %v4102 = vunpack.c.h.b16 %v3889
    %v4103 = vunpack.c.l.b16 %v3890
    %v4104 = vunpack.c.h.b16 %v3890
    %v4105 = vunpack.c.l.b16 %v3891
    %v4106 = vunpack.c.h.b16 %v3891
    %v4107 = vunpack.c.l.b16 %v3892
    %v4108 = vunpack.c.h.b16 %v3892
    %v4109 = vunpack.c.l.b16 %v3893
    %v4110 = vunpack.c.h.b16 %v3893
    %v4111 = vunpack.c.l.b16 %v3894
    %v4112 = vunpack.c.h.b16 %v3894
    %v4113 = vunpack.c.l.b16 %v3895
    %v4114 = vunpack.c.h.b16 %v3895
    %v4115 = vunpack.c.l.b16 %v3896
    %v4116 = vunpack.c.h.b16 %v3896
    %v4117 = vunpack.c.l.b16 %v3897
    %v4118 = vunpack.c.h.b16 %v3897
    %v4119 = vunpack.c.l.b16 %v3898
    %v4120 = vunpack.c.h.b16 %v3898
    %v4121 = vunpack.c.l.b16 %v3899
    %v4122 = vunpack.c.h.b16 %v3899
    %v4123 = vunpack.c.l.b16 %v3900
    %v4124 = vunpack.c.h.b16 %v3900
    %v4125 = vunpack.c.l.b16 %v3901
    %v4126 = vunpack.c.h.b16 %v3901
    %v4127 = vunpack.c.l.b16 %v3902
    %v4128 = vunpack.c.h.b16 %v3902
    %v4129 = vunpack.c.l.b16 %v3903
    %v4130 = vunpack.c.h.b16 %v3903
    %v4131 = vunpack.c.l.b16 %v3904
    %v4132 = vunpack.c.h.b16 %v3904
    %v4133 = vunpack.c.l.b16 %v3905
    %v4134 = vunpack.c.h.b16 %v3905
    %v4135 = vunpack.c.l.b16 %v3906
    %v4136 = vunpack.c.h.b16 %v3906
    %v4137 = vunpack.c.l.b16 %v3907
    %v4138 = vunpack.c.h.b16 %v3907
    %v4139 = vunpack.c.l.b16 %v3908
    %v4140 = vunpack.c.h.b16 %v3908
    %v4141 = vunpack.c.l.b16 %v3909
    %v4142 = vunpack.c.h.b16 %v3909
    %v4143 = vunpack.c.l.b16 %v3910
    %v4144 = vunpack.c.h.b16 %v3910
    %v4145 = vunpack.c.l.b16 %v3911
    %v4146 = vunpack.c.h.b16 %v3911
    %v4147 = vunpack.c.l.b16 %v3912
    %v4148 = vunpack.c.h.b16 %v3912
    %v4149 = vunpack.c.l.b16 %v3913
    %v4150 = vunpack.c.h.b16 %v3913
    %v4151 = vunpack.c.l.b16 %v3914
    %v4152 = vunpack.c.h.b16 %v3914
    %v4153 = vunpack.c.l.b16 %v3915
    %v4154 = vunpack.c.h.b16 %v3915
    %v4155 = vunpack.c.l.b16 %v3916
    %v4156 = vunpack.c.h.b16 %v3916
    %v4157 = vunpack.c.l.b16 %v3917
    %v4158 = vunpack.c.h.b16 %v3917
    %v4159 = vunpack.c.l.b16 %v3918
    %v4160 = vunpack.c.h.b16 %v3918
    %v4161 = vunpack.c.l.b16 %v3919
    %v4162 = vunpack.c.h.b16 %v3919
    %v4163 = vunpack.c.l.b16 %v3920
    %v4164 = vunpack.c.h.b16 %v3920
    %v4165 = vunpack.c.l.b16 %v3921
    %v4166 = vunpack.c.h.b16 %v3921
    %v4167 = vunpack.c.l.b16 %v3922
    %v4168 = vunpack.c.h.b16 %v3922
    %v4169 = vunpack.c.l.b16 %v3923
    %v4170 = vunpack.c.h.b16 %v3923
    %v4171 = vunpack.c.l.b16 %v3924
    %v4172 = vunpack.c.h.b16 %v3924
    %v4173 = vunpack.c.l.b16 %v3925
    %v4174 = vunpack.c.h.b16 %v3925
    %v4175 = vunpack.c.l.b16 %v3926
    %v4176 = vunpack.c.h.b16 %v3926
    %v4177 = vunpack.c.l.b16 %v3927
    %v4178 = vunpack.c.h.b16 %v3927
    %v4179 = vunpack.c.l.b16 %v3928
    %v4180 = vunpack.c.h.b16 %v3928
    %v4181 = vunpack.c.l.b16 %v3929
    %v4182 = vunpack.c.h.b16 %v3929
    %v4183 = vunpack.c.l.b16 %v3930
    %v4184 = vunpack.c.h.b16 %v3930
    %v4185 = vunpack.c.l.b16 %v3931
    %v4186 = vunpack.c.h.b16 %v3931
    %v4187 = vunpack.c.l.b16 %v3932
    %v4188 = vunpack.c.h.b16 %v3932
    %v4189 = vunpack.c.l.b16 %v3933
    %v4190 = vunpack.c.h.b16 %v3933
    %v4191 = vunpack.c.l.b16 %v3934
    %v4192 = vunpack.c.h.b16 %v3934
    %v4193 = vunpack.c.l.b16 %v3935
    %v4194 = vunpack.c.h.b16 %v3935
    %v4195 = vunpack.c.l.b16 %v3936
    %v4196 = vunpack.c.h.b16 %v3936
    %v4197 = vunpack.c.l.b16 %v3937
    %v4198 = vunpack.c.h.b16 %v3937
    %v4199 = vunpack.c.l.b16 %v3938
    %v4200 = vunpack.c.h.b16 %v3938
    %v4201 = vunpack.c.l.b16 %v3939
    %v4202 = vunpack.c.h.b16 %v3939
    %v4203 = vunpack.c.l.b16 %v3940
    %v4204 = vunpack.c.h.b16 %v3940
    %v4205 = vunpack.c.l.b16 %v3941
    %v4206 = vunpack.c.h.b16 %v3941
    %v4207 = vunpack.c.l.b16 %v3942
    %v4208 = vunpack.c.h.b16 %v3942
    %v4209 = vunpack.c.l.b16 %v3943
    %v4210 = vunpack.c.h.b16 %v3943
    %v4211 = vunpack.c.l.b16 %v3944
    %v4212 = vunpack.c.h.b16 %v3944
    %v4213 = vunpack.c.l.b16 %v3945
    %v4214 = vunpack.c.h.b16 %v3945
    %v4215 = vunpack.c.l.b16 %v3946
    %v4216 = vunpack.c.h.b16 %v3946
    %v4217 = vunpack.c.l.b16 %v3947
    %v4218 = vunpack.c.h.b16 %v3947
    %v4219 = vunpack.c.l.b16 %v3948
    %v4220 = vunpack.c.h.b16 %v3948
    %v4221 = vunpack.c.l.b16 %v3949
    %v4222 = vunpack.c.h.b16 %v3949
    %v4223 = vunpack.c.l.b16 %v3950
    %v4224 = vunpack.c.h.b16 %v3950
    %v4225 = vunpack.c.l.b16 %v3951
    %v4226 = vunpack.c.h.b16 %v3951
    %v4227 = vunpack.c.l.b16 %v3952
    %v4228 = vunpack.c.h.b16 %v3952
    %v4229 = vunpack.c.l.b16 %v3953
    %v4230 = vunpack.c.h.b16 %v3953
    %v4231 = vunpack.c.l.b16 %v3954
    %v4232 = vunpack.c.h.b16 %v3954
    %v4233 = vunpack.c.l.b16 %v3955
    %v4234 = vunpack.c.h.b16 %v3955
    %v4235 = vunpack.c.l.b16 %v3956
    %v4236 = vunpack.c.h.b16 %v3956
    %v4237 = vunpack.c.l.b16 %v3957
    %v4238 = vunpack.c.h.b16 %v3957
    %v4239 = vunpack.c.l.b16 %v3958
    %v4240 = vunpack.c.h.b16 %v3958
    %v4241 = vpack.c.b16 %v4055, %v4053
    %v4242 = vpack.c.b16 %v4056, %v4054
    %v4243 = vpack.c.b16 %v4059, %v4057
    %v4244 = vpack.c.b16 %v4060, %v4058
    %v4245 = vpack.c.b16 %v4063, %v4061
    %v4246 = vpack.c.b16 %v4064, %v4062
    %v4247 = vpack.c.b16 %v4067, %v4065
    %v4248 = vpack.c.b16 %v4068, %v4066
    %v4249 = vpack.c.b16 %v4071, %v4069
    %v4250 = vpack.c.b16 %v4072, %v4070
    %v4251 = vpack.c.b16 %v4075, %v4073
    %v4252 = vpack.c.b16 %v4076, %v4074
    %v4253 = vpack.c.b16 %v4079, %v4077
    %v4254 = vpack.c.b16 %v4080, %v4078
    %v4255 = vpack.c.b16 %v4083, %v4081
    %v4256 = vpack.c.b16 %v4084, %v4082
    %v4257 = vpack.c.b16 %v4087, %v4085
    %v4258 = vpack.c.b16 %v4088, %v4086
    %v4259 = vpack.c.b16 %v4091, %v4089
    %v4260 = vpack.c.b16 %v4092, %v4090
    %v4261 = vpack.c.b16 %v4095, %v4093
    %v4262 = vpack.c.b16 %v4096, %v4094
    %v4263 = vpack.c.b16 %v4099, %v4097
    %v4264 = vpack.c.b16 %v4100, %v4098
    %v4265 = vpack.c.b16 %v4103, %v4101
    %v4266 = vpack.c.b16 %v4104, %v4102
    %v4267 = vpack.c.b16 %v4107, %v4105
    %v4268 = vpack.c.b16 %v4108, %v4106
    %v4269 = vpack.c.b16 %v4111, %v4109
    %v4270 = vpack.c.b16 %v4112, %v4110
    %v4271 = vpack.c.b16 %v4115, %v4113
    %v4272 = vpack.c.b16 %v4116, %v4114
    %v4273 = vpack.c.b16 %v4119, %v4117
    %v4274 = vpack.c.b16 %v4120, %v4118
    %v4275 = vpack.c.b16 %v4123, %v4121
    %v4276 = vpack.c.b16 %v4124, %v4122
    %v4277 = vpack.c.b16 %v4127, %v4125
    %v4278 = vpack.c.b16 %v4128, %v4126
    %v4279 = vpack.c.b16 %v4131, %v4129
    %v4280 = vpack.c.b16 %v4132, %v4130
    %v4281 = vpack.c.b16 %v4135, %v4133
    %v4282 = vpack.c.b16 %v4136, %v4134
    %v4283 = vpack.c.b16 %v4139, %v4137
    %v4284 = vpack.c.b16 %v4140, %v4138
    %v4285 = vpack.c.b16 %v4143, %v4141
    %v4286 = vpack.c.b16 %v4144, %v4142
    %v4287 = vpack.c.b16 %v4147, %v4145
    %v4288 = vpack.c.b16 %v4148, %v4146
    %v4289 = vpack.c.b16 %v4151, %v4149
    %v4290 = vpack.c.b16 %v4152, %v4150
    %v4291 = vpack.c.b16 %v4155, %v4153
    %v4292 = vpack.c.b16 %v4156, %v4154
    %v4293 = vpack.c.b16 %v4159, %v4157
    %v4294 = vpack.c.b16 %v4160, %v4158
    %v4295 = vpack.c.b16 %v4163, %v4161
    %v4296 = vpack.c.b16 %v4164, %v4162
    %v4297 = vpack.c.b16 %v4167, %v4165
    %v4298 = vpack.c.b16 %v4168, %v4166
    %v4299 = vpack.c.b16 %v4171, %v4169
    %v4300 = vpack.c.b16 %v4172, %v4170
    %v4301 = vpack.c.b16 %v4175, %v4173
    %v4302 = vpack.c.b16 %v4176, %v4174
    %v4303 = vpack.c.b16 %v4179, %v4177
    %v4304 = vpack.c.b16 %v4180, %v4178
    %v4305 = vpack.c.b16 %v4183, %v4181
    %v4306 = vpack.c.b16 %v4184, %v4182
    %v4307 = vpack.c.b16 %v4187, %v4185
    %v4308 = vpack.c.b16 %v4188, %v4186
    %v4309 = vpack.c.b16 %v4191, %v4189
    %v4310 = vpack.c.b16 %v4192, %v4190
    %v4311 = vpack.c.b16 %v4195, %v4193
    %v4312 = vpack.c.b16 %v4196, %v4194
    %v4313 = vpack.c.b16 %v4199, %v4197
    %v4314 = vpack.c.b16 %v4200, %v4198
    %v4315 = vpack.c.b16 %v4203, %v4201
    %v4316 = vpack.c.b16 %v4204, %v4202
    %v4317 = vpack.c.b16 %v4207, %v4205
    %v4318 = vpack.c.b16 %v4208, %v4206
    %v4319 = vpack.c.b16 %v4211, %v4209
    %v4320 = vpack.c.b16 %v4212, %v4210
    %v4321 = vpack.c.b16 %v4215, %v4213
    %v4322 = vpack.c.b16 %v4216, %v4214
    %v4323 = vpack.c.b16 %v4219, %v4217
    %v4324 = vpack.c.b16 %v4220, %v4218
    %v4325 = vpack.c.b16 %v4223, %v4221
    %v4326 = vpack.c.b16 %v4224, %v4222
    %v4327 = vpack.c.b16 %v4227, %v4225
    %v4328 = vpack.c.b16 %v4228, %v4226
    %v4329 = vpack.c.b16 %v4231, %v4229
    %v4330 = vpack.c.b16 %v4232, %v4230
    %v4331 = vpack.c.b16 %v4235, %v4233
    %v4332 = vpack.c.b16 %v4236, %v4234
    %v4333 = vpack.c.b16 %v4239, %v4237
    %v4334 = vpack.c.b16 %v4240, %v4238
    %v4428 = vsel %vm541, %v3846, 0
    %v4431 = vsel %vm541, %v3852, 0
    %v4434 = vsel %vm541, %v3858, 0
    %v4437 = vsel %vm541, %v3864, 0
    %vm4439 = vcmask 1046528
    %v4441 = vsel %vm4439, %v4333, 0
    %v4444 = vsel %vm4439, %v4334, 0
    %4446 = vmatpush.bf16.msra.mxu0 %v4255
    %4447 = vmatpush.bf16.msra.mxu0 %v4253
    %4448 = vmatpush.bf16.msra.mxu0 %v4251
    %4449 = vmatpush.bf16.msra.mxu0 %v4249
    %4450 = vmatpush.bf16.msra.mxu0 %v4247
    %4451 = vmatpush.bf16.msra.mxu0 %v4245
    %4452 = vmatpush.bf16.msra.mxu0 %v4243
    %4453 = vmatpush.bf16.msra.mxu0 %v4241
    %4454 = vmatmul.bf16.gmra.mxu0 %v3841
    %v4455 = vpop.f32.mrf.mxu0
    %v4456 = vadd.f32 0.0, %v4455
    %v4457 = vpop.f32.mrf.mxu0
    %v4458 = vadd.f32 0.0, %v4457
    %4459 = vmatmul.bf16.gmra.mxu0 %v3847
    %v4460 = vpop.f32.mrf.mxu0
    %v4461 = vadd.f32 0.0, %v4460
    %v4462 = vpop.f32.mrf.mxu0
    %v4463 = vadd.f32 0.0, %v4462
    %4464 = vmatmul.bf16.gmra.mxu0 %v3853
    %v4465 = vpop.f32.mrf.mxu0
    %v4466 = vadd.f32 0.0, %v4465
    %v4467 = vpop.f32.mrf.mxu0
    %v4468 = vadd.f32 0.0, %v4467
    %4469 = vmatmul.bf16.gmra.mxu0 %v3859
    %v4470 = vpop.f32.mrf.mxu0
    %v4471 = vadd.f32 0.0, %v4470
    %v4472 = vpop.f32.mrf.mxu0
    %v4473 = vadd.f32 0.0, %v4472
    %4474 = vdwg.mxu0
    %4475 = vmatpush.bf16.msra.mxu0 %v4271
    %4476 = vmatpush.bf16.msra.mxu0 %v4269
    %4477 = vmatpush.bf16.msra.mxu0 %v4267
    %4478 = vmatpush.bf16.msra.mxu0 %v4265
    %4479 = vmatpush.bf16.msra.mxu0 %v4263
    %4480 = vmatpush.bf16.msra.mxu0 %v4261
    %4481 = vmatpush.bf16.msra.mxu0 %v4259
    %4482 = vmatpush.bf16.msra.mxu0 %v4257
    %4483 = vmatmul.bf16.gmra.mxu0 %v3842
    %v4484 = vpop.f32.mrf.mxu0
    %v4485 = vadd.f32 %v4456, %v4484
    %v4486 = vpop.f32.mrf.mxu0
    %v4487 = vadd.f32 %v4458, %v4486
    %4488 = vmatmul.bf16.gmra.mxu0 %v3848
    %v4489 = vpop.f32.mrf.mxu0
    %v4490 = vadd.f32 %v4461, %v4489
    %v4491 = vpop.f32.mrf.mxu0
    %v4492 = vadd.f32 %v4463, %v4491
    %4493 = vmatmul.bf16.gmra.mxu0 %v3854
    %v4494 = vpop.f32.mrf.mxu0
    %v4495 = vadd.f32 %v4466, %v4494
    %v4496 = vpop.f32.mrf.mxu0
    %v4497 = vadd.f32 %v4468, %v4496
    %4498 = vmatmul.bf16.gmra.mxu0 %v3860
    %v4499 = vpop.f32.mrf.mxu0
    %v4500 = vadd.f32 %v4471, %v4499
    %v4501 = vpop.f32.mrf.mxu0
    %v4502 = vadd.f32 %v4473, %v4501
    %4503 = vdwg.mxu0
    %4504 = vmatpush.bf16.msra.mxu0 %v4287
    %4505 = vmatpush.bf16.msra.mxu0 %v4285
    %4506 = vmatpush.bf16.msra.mxu0 %v4283
    %4507 = vmatpush.bf16.msra.mxu0 %v4281
    %4508 = vmatpush.bf16.msra.mxu0 %v4279
    %4509 = vmatpush.bf16.msra.mxu0 %v4277
    %4510 = vmatpush.bf16.msra.mxu0 %v4275
    %4511 = vmatpush.bf16.msra.mxu0 %v4273
    %4512 = vmatmul.bf16.gmra.mxu0 %v3843
    %v4513 = vpop.f32.mrf.mxu0
    %v4514 = vadd.f32 %v4485, %v4513
    %v4515 = vpop.f32.mrf.mxu0
    %v4516 = vadd.f32 %v4487, %v4515
    %4517 = vmatmul.bf16.gmra.mxu0 %v3849
    %v4518 = vpop.f32.mrf.mxu0
    %v4519 = vadd.f32 %v4490, %v4518
    %v4520 = vpop.f32.mrf.mxu0
    %v4521 = vadd.f32 %v4492, %v4520
    %4522 = vmatmul.bf16.gmra.mxu0 %v3855
    %v4523 = vpop.f32.mrf.mxu0
    %v4524 = vadd.f32 %v4495, %v4523
    %v4525 = vpop.f32.mrf.mxu0
    %v4526 = vadd.f32 %v4497, %v4525
    %4527 = vmatmul.bf16.gmra.mxu0 %v3861
    %v4528 = vpop.f32.mrf.mxu0
    %v4529 = vadd.f32 %v4500, %v4528
    %v4530 = vpop.f32.mrf.mxu0
    %v4531 = vadd.f32 %v4502, %v4530
    %4532 = vdwg.mxu0
    %4533 = vmatpush.bf16.msra.mxu0 %v4303
    %4534 = vmatpush.bf16.msra.mxu0 %v4301
    %4535 = vmatpush.bf16.msra.mxu0 %v4299
    %4536 = vmatpush.bf16.msra.mxu0 %v4297
    %4537 = vmatpush.bf16.msra.mxu0 %v4295
    %4538 = vmatpush.bf16.msra.mxu0 %v4293
    %4539 = vmatpush.bf16.msra.mxu0 %v4291
    %4540 = vmatpush.bf16.msra.mxu0 %v4289
    %4541 = vmatmul.bf16.gmra.mxu0 %v3844
    %v4542 = vpop.f32.mrf.mxu0
    %v4543 = vadd.f32 %v4514, %v4542
    %v4544 = vpop.f32.mrf.mxu0
    %v4545 = vadd.f32 %v4516, %v4544
    %4546 = vmatmul.bf16.gmra.mxu0 %v3850
    %v4547 = vpop.f32.mrf.mxu0
    %v4548 = vadd.f32 %v4519, %v4547
    %v4549 = vpop.f32.mrf.mxu0
    %v4550 = vadd.f32 %v4521, %v4549
    %4551 = vmatmul.bf16.gmra.mxu0 %v3856
    %v4552 = vpop.f32.mrf.mxu0
    %v4553 = vadd.f32 %v4524, %v4552
    %v4554 = vpop.f32.mrf.mxu0
    %v4555 = vadd.f32 %v4526, %v4554
    %4556 = vmatmul.bf16.gmra.mxu0 %v3862
    %v4557 = vpop.f32.mrf.mxu0
    %v4558 = vadd.f32 %v4529, %v4557
    %v4559 = vpop.f32.mrf.mxu0
    %v4560 = vadd.f32 %v4531, %v4559
    %4561 = vdwg.mxu0
    %4562 = vmatpush.bf16.msra.mxu0 %v4319
    %4563 = vmatpush.bf16.msra.mxu0 %v4317
    %4564 = vmatpush.bf16.msra.mxu0 %v4315
    %4565 = vmatpush.bf16.msra.mxu0 %v4313
    %4566 = vmatpush.bf16.msra.mxu0 %v4311
    %4567 = vmatpush.bf16.msra.mxu0 %v4309
    %4568 = vmatpush.bf16.msra.mxu0 %v4307
    %4569 = vmatpush.bf16.msra.mxu0 %v4305
    %4570 = vmatmul.bf16.gmra.mxu0 %v3845
    %v4571 = vpop.f32.mrf.mxu0
    %v4572 = vadd.f32 %v4543, %v4571
    %v4573 = vpop.f32.mrf.mxu0
    %v4574 = vadd.f32 %v4545, %v4573
    %4575 = vmatmul.bf16.gmra.mxu0 %v3851
    %v4576 = vpop.f32.mrf.mxu0
    %v4577 = vadd.f32 %v4548, %v4576
    %v4578 = vpop.f32.mrf.mxu0
    %v4579 = vadd.f32 %v4550, %v4578
    %4580 = vmatmul.bf16.gmra.mxu0 %v3857
    %v4581 = vpop.f32.mrf.mxu0
    %v4582 = vadd.f32 %v4553, %v4581
    %v4583 = vpop.f32.mrf.mxu0
    %v4584 = vadd.f32 %v4555, %v4583
    %4585 = vmatmul.bf16.gmra.mxu0 %v3863
    %v4586 = vpop.f32.mrf.mxu0
    %v4587 = vadd.f32 %v4558, %v4586
    %v4588 = vpop.f32.mrf.mxu0
    %v4589 = vadd.f32 %v4560, %v4588
    %4590 = vdwg.mxu0
    %4591 = vmatpush.bf16.msra.mxu0 0
    %4592 = vmatpush.bf16.msra.mxu0 %v4441
    %4593 = vmatpush.bf16.msra.mxu0 %v4331
    %4594 = vmatpush.bf16.msra.mxu0 %v4329
    %4595 = vmatpush.bf16.msra.mxu0 %v4327
    %4596 = vmatpush.bf16.msra.mxu0 %v4325
    %4597 = vmatpush.bf16.msra.mxu0 %v4323
    %4598 = vmatpush.bf16.msra.mxu0 %v4321
    %4599 = vmatmul.bf16.gmra.mxu0 %v4428
    %v4600 = vpop.f32.mrf.mxu0
    %v4601 = vadd.f32 %v4572, %v4600
    %v4602 = vpop.f32.mrf.mxu0
    %v4603 = vadd.f32 %v4574, %v4602
    %4604 = vmatmul.bf16.gmra.mxu0 %v4431
    %v4605 = vpop.f32.mrf.mxu0
    %v4606 = vadd.f32 %v4577, %v4605
    %v4607 = vpop.f32.mrf.mxu0
    %v4608 = vadd.f32 %v4579, %v4607
    %4609 = vmatmul.bf16.gmra.mxu0 %v4434
    %v4610 = vpop.f32.mrf.mxu0
    %v4611 = vadd.f32 %v4582, %v4610
    %v4612 = vpop.f32.mrf.mxu0
    %v4613 = vadd.f32 %v4584, %v4612
    %4614 = vmatmul.bf16.gmra.mxu0 %v4437
    %v4615 = vpop.f32.mrf.mxu0
    %v4616 = vadd.f32 %v4587, %v4615
    %v4617 = vpop.f32.mrf.mxu0
    %v4618 = vadd.f32 %v4589, %v4617
    %4619 = vdwg.mxu0
    %4620 = vmatpush.bf16.msra.mxu0 %v4256
    %4621 = vmatpush.bf16.msra.mxu0 %v4254
    %4622 = vmatpush.bf16.msra.mxu0 %v4252
    %4623 = vmatpush.bf16.msra.mxu0 %v4250
    %4624 = vmatpush.bf16.msra.mxu0 %v4248
    %4625 = vmatpush.bf16.msra.mxu0 %v4246
    %4626 = vmatpush.bf16.msra.mxu0 %v4244
    %4627 = vmatpush.bf16.msra.mxu0 %v4242
    %4628 = vmatmul.bf16.gmra.mxu0 %v3841
    %v4629 = vpop.f32.mrf.mxu0
    %v4630 = vadd.f32 0.0, %v4629
    %v4631 = vpop.f32.mrf.mxu0
    %v4632 = vadd.f32 0.0, %v4631
    %4633 = vmatmul.bf16.gmra.mxu0 %v3847
    %v4634 = vpop.f32.mrf.mxu0
    %v4635 = vadd.f32 0.0, %v4634
    %v4636 = vpop.f32.mrf.mxu0
    %v4637 = vadd.f32 0.0, %v4636
    %4638 = vmatmul.bf16.gmra.mxu0 %v3853
    %v4639 = vpop.f32.mrf.mxu0
    %v4640 = vadd.f32 0.0, %v4639
    %v4641 = vpop.f32.mrf.mxu0
    %v4642 = vadd.f32 0.0, %v4641
    %4643 = vmatmul.bf16.gmra.mxu0 %v3859
    %v4644 = vpop.f32.mrf.mxu0
    %v4645 = vadd.f32 0.0, %v4644
    %v4646 = vpop.f32.mrf.mxu0
    %v4647 = vadd.f32 0.0, %v4646
    %4648 = vdwg.mxu0
    %4649 = vmatpush.bf16.msra.mxu0 %v4272
    %4650 = vmatpush.bf16.msra.mxu0 %v4270
    %4651 = vmatpush.bf16.msra.mxu0 %v4268
    %4652 = vmatpush.bf16.msra.mxu0 %v4266
    %4653 = vmatpush.bf16.msra.mxu0 %v4264
    %4654 = vmatpush.bf16.msra.mxu0 %v4262
    %4655 = vmatpush.bf16.msra.mxu0 %v4260
    %4656 = vmatpush.bf16.msra.mxu0 %v4258
    %4657 = vmatmul.bf16.gmra.mxu0 %v3842
    %v4658 = vpop.f32.mrf.mxu0
    %v4659 = vadd.f32 %v4630, %v4658
    %v4660 = vpop.f32.mrf.mxu0
    %v4661 = vadd.f32 %v4632, %v4660
    %4662 = vmatmul.bf16.gmra.mxu0 %v3848
    %v4663 = vpop.f32.mrf.mxu0
    %v4664 = vadd.f32 %v4635, %v4663
    %v4665 = vpop.f32.mrf.mxu0
    %v4666 = vadd.f32 %v4637, %v4665
    %4667 = vmatmul.bf16.gmra.mxu0 %v3854
    %v4668 = vpop.f32.mrf.mxu0
    %v4669 = vadd.f32 %v4640, %v4668
    %v4670 = vpop.f32.mrf.mxu0
    %v4671 = vadd.f32 %v4642, %v4670
    %4672 = vmatmul.bf16.gmra.mxu0 %v3860
    %v4673 = vpop.f32.mrf.mxu0
    %v4674 = vadd.f32 %v4645, %v4673
    %v4675 = vpop.f32.mrf.mxu0
    %v4676 = vadd.f32 %v4647, %v4675
    %4677 = vdwg.mxu0
    %4678 = vmatpush.bf16.msra.mxu0 %v4288
    %4679 = vmatpush.bf16.msra.mxu0 %v4286
    %4680 = vmatpush.bf16.msra.mxu0 %v4284
    %4681 = vmatpush.bf16.msra.mxu0 %v4282
    %4682 = vmatpush.bf16.msra.mxu0 %v4280
    %4683 = vmatpush.bf16.msra.mxu0 %v4278
    %4684 = vmatpush.bf16.msra.mxu0 %v4276
    %4685 = vmatpush.bf16.msra.mxu0 %v4274
    %4686 = vmatmul.bf16.gmra.mxu0 %v3843
    %v4687 = vpop.f32.mrf.mxu0
    %v4688 = vadd.f32 %v4659, %v4687
    %v4689 = vpop.f32.mrf.mxu0
    %v4690 = vadd.f32 %v4661, %v4689
    %4691 = vmatmul.bf16.gmra.mxu0 %v3849
    %v4692 = vpop.f32.mrf.mxu0
    %v4693 = vadd.f32 %v4664, %v4692
    %v4694 = vpop.f32.mrf.mxu0
    %v4695 = vadd.f32 %v4666, %v4694
    %4696 = vmatmul.bf16.gmra.mxu0 %v3855
    %v4697 = vpop.f32.mrf.mxu0
    %v4698 = vadd.f32 %v4669, %v4697
    %v4699 = vpop.f32.mrf.mxu0
    %v4700 = vadd.f32 %v4671, %v4699
    %4701 = vmatmul.bf16.gmra.mxu0 %v3861
    %v4702 = vpop.f32.mrf.mxu0
    %v4703 = vadd.f32 %v4674, %v4702
    %v4704 = vpop.f32.mrf.mxu0
    %v4705 = vadd.f32 %v4676, %v4704
    %4706 = vdwg.mxu0
    %4707 = vmatpush.bf16.msra.mxu0 %v4304
    %4708 = vmatpush.bf16.msra.mxu0 %v4302
    %4709 = vmatpush.bf16.msra.mxu0 %v4300
    %4710 = vmatpush.bf16.msra.mxu0 %v4298
    %4711 = vmatpush.bf16.msra.mxu0 %v4296
    %4712 = vmatpush.bf16.msra.mxu0 %v4294
    %4713 = vmatpush.bf16.msra.mxu0 %v4292
    %4714 = vmatpush.bf16.msra.mxu0 %v4290
    %4715 = vmatmul.bf16.gmra.mxu0 %v3844
    %v4716 = vpop.f32.mrf.mxu0
    %v4717 = vadd.f32 %v4688, %v4716
    %v4718 = vpop.f32.mrf.mxu0
    %v4719 = vadd.f32 %v4690, %v4718
    %4720 = vmatmul.bf16.gmra.mxu0 %v3850
    %v4721 = vpop.f32.mrf.mxu0
    %v4722 = vadd.f32 %v4693, %v4721
    %v4723 = vpop.f32.mrf.mxu0
    %v4724 = vadd.f32 %v4695, %v4723
    %4725 = vmatmul.bf16.gmra.mxu0 %v3856
    %v4726 = vpop.f32.mrf.mxu0
    %v4727 = vadd.f32 %v4698, %v4726
    %v4728 = vpop.f32.mrf.mxu0
    %v4729 = vadd.f32 %v4700, %v4728
    %4730 = vmatmul.bf16.gmra.mxu0 %v3862
    %v4731 = vpop.f32.mrf.mxu0
    %v4732 = vadd.f32 %v4703, %v4731
    %v4733 = vpop.f32.mrf.mxu0
    %v4734 = vadd.f32 %v4705, %v4733
    %4735 = vdwg.mxu0
    %4736 = vmatpush.bf16.msra.mxu0 %v4320
    %4737 = vmatpush.bf16.msra.mxu0 %v4318
    %4738 = vmatpush.bf16.msra.mxu0 %v4316
    %4739 = vmatpush.bf16.msra.mxu0 %v4314
    %4740 = vmatpush.bf16.msra.mxu0 %v4312
    %4741 = vmatpush.bf16.msra.mxu0 %v4310
    %4742 = vmatpush.bf16.msra.mxu0 %v4308
    %4743 = vmatpush.bf16.msra.mxu0 %v4306
    %4744 = vmatmul.bf16.gmra.mxu0 %v3845
    %v4745 = vpop.f32.mrf.mxu0
    %v4746 = vadd.f32 %v4717, %v4745
    %v4747 = vpop.f32.mrf.mxu0
    %v4748 = vadd.f32 %v4719, %v4747
    %4749 = vmatmul.bf16.gmra.mxu0 %v3851
    %v4750 = vpop.f32.mrf.mxu0
    %v4751 = vadd.f32 %v4722, %v4750
    %v4752 = vpop.f32.mrf.mxu0
    %v4753 = vadd.f32 %v4724, %v4752
    %4754 = vmatmul.bf16.gmra.mxu0 %v3857
    %v4755 = vpop.f32.mrf.mxu0
    %v4756 = vadd.f32 %v4727, %v4755
    %v4757 = vpop.f32.mrf.mxu0
    %v4758 = vadd.f32 %v4729, %v4757
    %4759 = vmatmul.bf16.gmra.mxu0 %v3863
    %v4760 = vpop.f32.mrf.mxu0
    %v4761 = vadd.f32 %v4732, %v4760
    %v4762 = vpop.f32.mrf.mxu0
    %v4763 = vadd.f32 %v4734, %v4762
    %4764 = vdwg.mxu0
    %4765 = vmatpush.bf16.msra.mxu0 0
    %4766 = vmatpush.bf16.msra.mxu0 %v4444
    %4767 = vmatpush.bf16.msra.mxu0 %v4332
    %4768 = vmatpush.bf16.msra.mxu0 %v4330
    %4769 = vmatpush.bf16.msra.mxu0 %v4328
    %4770 = vmatpush.bf16.msra.mxu0 %v4326
    %4771 = vmatpush.bf16.msra.mxu0 %v4324
    %4772 = vmatpush.bf16.msra.mxu0 %v4322
    %4773 = vmatmul.bf16.gmra.mxu0 %v4428
    %v4774 = vpop.f32.mrf.mxu0
    %v4775 = vadd.f32 %v4746, %v4774
    %v4776 = vpop.f32.mrf.mxu0
    %v4777 = vadd.f32 %v4748, %v4776
    %4778 = vmatmul.bf16.gmra.mxu0 %v4431
    %v4779 = vpop.f32.mrf.mxu0
    %v4780 = vadd.f32 %v4751, %v4779
    %v4781 = vpop.f32.mrf.mxu0
    %v4782 = vadd.f32 %v4753, %v4781
    %4783 = vmatmul.bf16.gmra.mxu0 %v4434
    %v4784 = vpop.f32.mrf.mxu0
    %v4785 = vadd.f32 %v4756, %v4784
    %v4786 = vpop.f32.mrf.mxu0
    %v4787 = vadd.f32 %v4758, %v4786
    %4788 = vmatmul.bf16.gmra.mxu0 %v4437
    %v4789 = vpop.f32.mrf.mxu0
    %v4790 = vadd.f32 %v4761, %v4789
    %v4791 = vpop.f32.mrf.mxu0
    %v4792 = vadd.f32 %v4763, %v4791
    %4793 = vdwg.mxu0
    %4810 = vrot.lane.b32.xlu0 %v4601, 7
    %v4811 = vpop.permute.xlu0 %4810
    %4812 = vrot.lane.b32.xlu0 %v4775, 7
    %v4813 = vpop.permute.xlu0 %4812
    %4814 = vrot.lane.b32.xlu0 %v4603, 7
    %v4815 = vpop.permute.xlu0 %4814
    %4816 = vrot.lane.b32.xlu0 %v4777, 7
    %v4817 = vpop.permute.xlu0 %4816
    %4818 = vrot.lane.b32.xlu0 %v4606, 7
    %v4819 = vpop.permute.xlu0 %4818
    %4820 = vrot.lane.b32.xlu0 %v4780, 7
    %v4821 = vpop.permute.xlu0 %4820
    %4822 = vrot.lane.b32.xlu0 %v4608, 7
    %v4823 = vpop.permute.xlu0 %4822
    %4824 = vrot.lane.b32.xlu0 %v4782, 7
    %v4825 = vpop.permute.xlu0 %4824
    %4826 = vrot.lane.b32.xlu0 %v4611, 7
    %v4827 = vpop.permute.xlu0 %4826
    %4828 = vrot.lane.b32.xlu0 %v4785, 7
    %v4829 = vpop.permute.xlu0 %4828
    %4830 = vrot.lane.b32.xlu0 %v4613, 7
    %v4831 = vpop.permute.xlu0 %4830
    %4832 = vrot.lane.b32.xlu0 %v4787, 7
    %v4833 = vpop.permute.xlu0 %4832
    %4834 = vrot.lane.b32.xlu0 %v4616, 7
    %v4835 = vpop.permute.xlu0 %4834
    %4836 = vrot.lane.b32.xlu0 %v4790, 7
    %v4837 = vpop.permute.xlu0 %4836
    %4838 = vrot.lane.b32.xlu0 %v4618, 7
    %v4839 = vpop.permute.xlu0 %4838
    %4840 = vrot.lane.b32.xlu0 %v4792, 7
    %v4841 = vpop.permute.xlu0 %4840
    %vm4842 = vcmask 56320
    %v4843 = vsel %vm4842, %v4811, %v4813
    %v4844 = vsel %vm4842, %v4815, %v4817
    %v4845 = vsel %vm4842, %v4819, %v4821
    %v4846 = vsel %vm4842, %v4823, %v4825
    %v4847 = vsel %vm4842, %v4827, %v4829
    %v4848 = vsel %vm4842, %v4831, %v4833
    %v4849 = vsel %vm4842, %v4835, %v4837
    %v4850 = vsel %vm4842, %v4839, %v4841
    %v4867 = vsel %vm4842, 0.0, %v4811
    %v4868 = vsel %vm4842, 0.0, %v4815
    %v4869 = vsel %vm4842, 0.0, %v4819
    %v4870 = vsel %vm4842, 0.0, %v4823
    %v4871 = vsel %vm4842, 0.0, %v4827
    %v4872 = vsel %vm4842, 0.0, %v4831
    %v4873 = vsel %vm4842, 0.0, %v4835
    %v4874 = vsel %vm4842, 0.0, %v4839
    %vm4875 = vcmask 539648
    %v4876 = vsel %vm4875, %v4843, 0.0
    %v4877 = vsel %vm4875, %v4844, 0.0
    %v4878 = vsel %vm4875, %v4845, 0.0
    %v4879 = vsel %vm4875, %v4846, 0.0
    %v4880 = vsel %vm4875, %v4847, 0.0
    %v4881 = vsel %vm4875, %v4848, 0.0
    %v4882 = vsel %vm4875, %v4849, 0.0
    %v4883 = vsel %vm4875, %v4850, 0.0
    %v4884 = vpack.c.bf16 %v4876, %v4867
    %v4885 = vpack.c.bf16 %v4877, %v4868
    %v4886 = vpack.c.bf16 %v4878, %v4869
    %v4887 = vpack.c.bf16 %v4879, %v4870
    %v4888 = vpack.c.bf16 %v4880, %v4871
    %v4889 = vpack.c.bf16 %v4881, %v4872
    %v4890 = vpack.c.bf16 %v4882, %v4873
    %v4891 = vpack.c.bf16 %v4883, %v4874
    %vm4892 = vcmask 482308
    %vm4893 = vmor %vm4892, %vm45
    %4894 = vst.msk [vmem:[#allocation4] sm:$0xff] %vm4893, %v4884
    %4895 = vst.msk [vmem:[#allocation4 + $0x8] sm:$0xff] %vm4893, %v4885
    %4896 = vst.msk [vmem:[#allocation4 + $0x10] sm:$0xff] %vm4893, %v4886
    %4897 = vst.msk [vmem:[#allocation4 + $0x18] sm:$0xff] %vm4893, %v4887
    %4898 = vst.msk [vmem:[#allocation4 + $0x20] sm:$0xff] %vm4893, %v4888
    %4899 = vst.msk [vmem:[#allocation4 + $0x28] sm:$0xff] %vm4893, %v4889
    %4900 = vst.msk [vmem:[#allocation4 + $0x30] sm:$0xff] %vm4893, %v4890
    %4901 = vst.msk [vmem:[#allocation4 + $0x38] sm:$0xff] %vm4893, %v4891
    %4910 = vrot.lane.b32.xlu0 %v4884, 127
    %v4911 = vpop.permute.xlu0 %4910
    %4912 = vrot.lane.b32.xlu0 %v4885, 127
    %v4913 = vpop.permute.xlu0 %4912
    %4914 = vrot.lane.b32.xlu0 %v4886, 127
    %v4915 = vpop.permute.xlu0 %4914
    %4916 = vrot.lane.b32.xlu0 %v4887, 127
    %v4917 = vpop.permute.xlu0 %4916
    %4918 = vrot.lane.b32.xlu0 %v4888, 127
    %v4919 = vpop.permute.xlu0 %4918
    %4920 = vrot.lane.b32.xlu0 %v4889, 127
    %v4921 = vpop.permute.xlu0 %4920
    %4922 = vrot.lane.b32.xlu0 %v4890, 127
    %v4923 = vpop.permute.xlu0 %4922
    %4924 = vrot.lane.b32.xlu0 %v4891, 127
    %v4925 = vpop.permute.xlu0 %4924
    %v4926 = vrot.slane %v4911, 4
    %v4927 = vrot.slane %v4913, 4
    %v4928 = vrot.slane %v4915, 4
    %v4929 = vrot.slane %v4917, 4
    %v4930 = vrot.slane %v4919, 4
    %v4931 = vrot.slane %v4921, 4
    %v4932 = vrot.slane %v4923, 4
    %v4933 = vrot.slane %v4925, 4
    %vm4934 = vcmask 1039360
    %v4935 = vsel %vm4934, %v4911, %v4926
    %v4936 = vsel %vm4934, %v4913, %v4927
    %v4937 = vsel %vm4934, %v4915, %v4928
    %v4938 = vsel %vm4934, %v4917, %v4929
    %v4939 = vsel %vm4934, %v4919, %v4930
    %v4940 = vsel %vm4934, %v4921, %v4931
    %v4941 = vsel %vm4934, %v4923, %v4932
    %v4942 = vsel %vm4934, %v4925, %v4933
    %4951 = vst.msk [vmem:[#allocation4 + $0x40] sm:$0xff] %vm4893, %v4935
    %4952 = vst.msk [vmem:[#allocation4 + $0x48] sm:$0xff] %vm4893, %v4936
    %4953 = vst.msk [vmem:[#allocation4 + $0x50] sm:$0xff] %vm4893, %v4937
    %4954 = vst.msk [vmem:[#allocation4 + $0x58] sm:$0xff] %vm4893, %v4938
    %4955 = vst.msk [vmem:[#allocation4 + $0x60] sm:$0xff] %vm4893, %v4939
    %4956 = vst.msk [vmem:[#allocation4 + $0x68] sm:$0xff] %vm4893, %v4940
    %4957 = vst.msk [vmem:[#allocation4 + $0x70] sm:$0xff] %vm4893, %v4941
    %4958 = vst.msk [vmem:[#allocation4 + $0x78] sm:$0xff] %vm4893, %v4942
    %4959 = vrot.lane.b32.xlu0 %v4884, 126
    %v4960 = vpop.permute.xlu0 %4959
    %4961 = vrot.lane.b32.xlu0 %v4885, 126
    %v4962 = vpop.permute.xlu0 %4961
    %4963 = vrot.lane.b32.xlu0 %v4886, 126
    %v4964 = vpop.permute.xlu0 %4963
    %4965 = vrot.lane.b32.xlu0 %v4887, 126
    %v4966 = vpop.permute.xlu0 %4965
    %4967 = vrot.lane.b32.xlu0 %v4888, 126
    %v4968 = vpop.permute.xlu0 %4967
    %4969 = vrot.lane.b32.xlu0 %v4889, 126
    %v4970 = vpop.permute.xlu0 %4969
    %4971 = vrot.lane.b32.xlu0 %v4890, 126
    %v4972 = vpop.permute.xlu0 %4971
    %4973 = vrot.lane.b32.xlu0 %v4891, 126
    %v4974 = vpop.permute.xlu0 %4973
    %v4975 = vrot.slane %v4960, 4
    %v4976 = vrot.slane %v4962, 4
    %v4977 = vrot.slane %v4964, 4
    %v4978 = vrot.slane %v4966, 4
    %v4979 = vrot.slane %v4968, 4
    %v4980 = vrot.slane %v4970, 4
    %v4981 = vrot.slane %v4972, 4
    %v4982 = vrot.slane %v4974, 4
    %vm4983 = vcmask 1031168
    %v4984 = vsel %vm4983, %v4960, %v4975
    %v4985 = vsel %vm4983, %v4962, %v4976
    %v4986 = vsel %vm4983, %v4964, %v4977
    %v4987 = vsel %vm4983, %v4966, %v4978
    %v4988 = vsel %vm4983, %v4968, %v4979
    %v4989 = vsel %vm4983, %v4970, %v4980
    %v4990 = vsel %vm4983, %v4972, %v4981
    %v4991 = vsel %vm4983, %v4974, %v4982
    %5000 = vst.msk [vmem:[#allocation4 + $0x80] sm:$0xff] %vm4893, %v4984
    %5001 = vst.msk [vmem:[#allocation4 + $0x88] sm:$0xff] %vm4893, %v4985
    %5002 = vst.msk [vmem:[#allocation4 + $0x90] sm:$0xff] %vm4893, %v4986
    %5003 = vst.msk [vmem:[#allocation4 + $0x98] sm:$0xff] %vm4893, %v4987
    %5004 = vst.msk [vmem:[#allocation4 + $0xa0] sm:$0xff] %vm4893, %v4988
    %5005 = vst.msk [vmem:[#allocation4 + $0xa8] sm:$0xff] %vm4893, %v4989
    %5006 = vst.msk [vmem:[#allocation4 + $0xb0] sm:$0xff] %vm4893, %v4990
    %5007 = vst.msk [vmem:[#allocation4 + $0xb8] sm:$0xff] %vm4893, %v4991
    %5008 = vrot.lane.b32.xlu0 %v4884, 125
    %v5009 = vpop.permute.xlu0 %5008
    %5010 = vrot.lane.b32.xlu0 %v4885, 125
    %v5011 = vpop.permute.xlu0 %5010
    %5012 = vrot.lane.b32.xlu0 %v4886, 125
    %v5013 = vpop.permute.xlu0 %5012
    %5014 = vrot.lane.b32.xlu0 %v4887, 125
    %v5015 = vpop.permute.xlu0 %5014
    %5016 = vrot.lane.b32.xlu0 %v4888, 125
    %v5017 = vpop.permute.xlu0 %5016
    %5018 = vrot.lane.b32.xlu0 %v4889, 125
    %v5019 = vpop.permute.xlu0 %5018
    %5020 = vrot.lane.b32.xlu0 %v4890, 125
    %v5021 = vpop.permute.xlu0 %5020
    %5022 = vrot.lane.b32.xlu0 %v4891, 125
    %v5023 = vpop.permute.xlu0 %5022
    %v5024 = vrot.slane %v5009, 4
    %v5025 = vrot.slane %v5011, 4
    %v5026 = vrot.slane %v5013, 4
    %v5027 = vrot.slane %v5015, 4
    %v5028 = vrot.slane %v5017, 4
    %v5029 = vrot.slane %v5019, 4
    %v5030 = vrot.slane %v5021, 4
    %v5031 = vrot.slane %v5023, 4
    %vm5032 = vcmask 1022976
    %v5033 = vsel %vm5032, %v5009, %v5024
    %v5034 = vsel %vm5032, %v5011, %v5025
    %v5035 = vsel %vm5032, %v5013, %v5026
    %v5036 = vsel %vm5032, %v5015, %v5027
    %v5037 = vsel %vm5032, %v5017, %v5028
    %v5038 = vsel %vm5032, %v5019, %v5029
    %v5039 = vsel %vm5032, %v5021, %v5030
    %v5040 = vsel %vm5032, %v5023, %v5031
    %5049 = vst.msk [vmem:[#allocation4 + $0xc0] sm:$0xff] %vm4893, %v5033
    %5050 = vst.msk [vmem:[#allocation4 + $0xc8] sm:$0xff] %vm4893, %v5034
    %5051 = vst.msk [vmem:[#allocation4 + $0xd0] sm:$0xff] %vm4893, %v5035
    %5052 = vst.msk [vmem:[#allocation4 + $0xd8] sm:$0xff] %vm4893, %v5036
    %5053 = vst.msk [vmem:[#allocation4 + $0xe0] sm:$0xff] %vm4893, %v5037
    %5054 = vst.msk [vmem:[#allocation4 + $0xe8] sm:$0xff] %vm4893, %v5038
    %5055 = vst.msk [vmem:[#allocation4 + $0xf0] sm:$0xff] %vm4893, %v5039
    %5056 = vst.msk [vmem:[#allocation4 + $0xf8] sm:$0xff] %vm4893, %v5040
    %5057 = vrot.lane.b32.xlu0 %v4884, 124
    %v5058 = vpop.permute.xlu0 %5057
    %5059 = vrot.lane.b32.xlu0 %v4885, 124
    %v5060 = vpop.permute.xlu0 %5059
    %5061 = vrot.lane.b32.xlu0 %v4886, 124
    %v5062 = vpop.permute.xlu0 %5061
    %5063 = vrot.lane.b32.xlu0 %v4887, 124
    %v5064 = vpop.permute.xlu0 %5063
    %5065 = vrot.lane.b32.xlu0 %v4888, 124
    %v5066 = vpop.permute.xlu0 %5065
    %5067 = vrot.lane.b32.xlu0 %v4889, 124
    %v5068 = vpop.permute.xlu0 %5067
    %5069 = vrot.lane.b32.xlu0 %v4890, 124
    %v5070 = vpop.permute.xlu0 %5069
    %5071 = vrot.lane.b32.xlu0 %v4891, 124
    %v5072 = vpop.permute.xlu0 %5071
    %v5073 = vrot.slane %v5058, 4
    %v5074 = vrot.slane %v5060, 4
    %v5075 = vrot.slane %v5062, 4
    %v5076 = vrot.slane %v5064, 4
    %v5077 = vrot.slane %v5066, 4
    %v5078 = vrot.slane %v5068, 4
    %v5079 = vrot.slane %v5070, 4
    %v5080 = vrot.slane %v5072, 4
    %vm5081 = vcmask 1014784
    %v5082 = vsel %vm5081, %v5058, %v5073
    %v5083 = vsel %vm5081, %v5060, %v5074
    %v5084 = vsel %vm5081, %v5062, %v5075
    %v5085 = vsel %vm5081, %v5064, %v5076
    %v5086 = vsel %vm5081, %v5066, %v5077
    %v5087 = vsel %vm5081, %v5068, %v5078
    %v5088 = vsel %vm5081, %v5070, %v5079
    %v5089 = vsel %vm5081, %v5072, %v5080
    %5098 = vst.msk [vmem:[#allocation4 + $0x100] sm:$0xff] %vm4893, %v5082
    %5099 = vst.msk [vmem:[#allocation4 + $0x108] sm:$0xff] %vm4893, %v5083
    %5100 = vst.msk [vmem:[#allocation4 + $0x110] sm:$0xff] %vm4893, %v5084
    %5101 = vst.msk [vmem:[#allocation4 + $0x118] sm:$0xff] %vm4893, %v5085
    %5102 = vst.msk [vmem:[#allocation4 + $0x120] sm:$0xff] %vm4893, %v5086
    %5103 = vst.msk [vmem:[#allocation4 + $0x128] sm:$0xff] %vm4893, %v5087
    %5104 = vst.msk [vmem:[#allocation4 + $0x130] sm:$0xff] %vm4893, %v5088
    %5105 = vst.msk [vmem:[#allocation4 + $0x138] sm:$0xff] %vm4893, %v5089
    %5106 = vrot.lane.b32.xlu0 %v4884, 123
    %v5107 = vpop.permute.xlu0 %5106
    %5108 = vrot.lane.b32.xlu0 %v4885, 123
    %v5109 = vpop.permute.xlu0 %5108
    %5110 = vrot.lane.b32.xlu0 %v4886, 123
    %v5111 = vpop.permute.xlu0 %5110
    %5112 = vrot.lane.b32.xlu0 %v4887, 123
    %v5113 = vpop.permute.xlu0 %5112
    %5114 = vrot.lane.b32.xlu0 %v4888, 123
    %v5115 = vpop.permute.xlu0 %5114
    %5116 = vrot.lane.b32.xlu0 %v4889, 123
    %v5117 = vpop.permute.xlu0 %5116
    %5118 = vrot.lane.b32.xlu0 %v4890, 123
    %v5119 = vpop.permute.xlu0 %5118
    %5120 = vrot.lane.b32.xlu0 %v4891, 123
    %v5121 = vpop.permute.xlu0 %5120
    %v5122 = vrot.slane %v5107, 4
    %v5123 = vrot.slane %v5109, 4
    %v5124 = vrot.slane %v5111, 4
    %v5125 = vrot.slane %v5113, 4
    %v5126 = vrot.slane %v5115, 4
    %v5127 = vrot.slane %v5117, 4
    %v5128 = vrot.slane %v5119, 4
    %v5129 = vrot.slane %v5121, 4
    %vm5130 = vcmask 1006592
    %v5131 = vsel %vm5130, %v5107, %v5122
    %v5132 = vsel %vm5130, %v5109, %v5123
    %v5133 = vsel %vm5130, %v5111, %v5124
    %v5134 = vsel %vm5130, %v5113, %v5125
    %v5135 = vsel %vm5130, %v5115, %v5126
    %v5136 = vsel %vm5130, %v5117, %v5127
    %v5137 = vsel %vm5130, %v5119, %v5128
    %v5138 = vsel %vm5130, %v5121, %v5129
    %5147 = vst.msk [vmem:[#allocation4 + $0x140] sm:$0xff] %vm4893, %v5131
    %5148 = vst.msk [vmem:[#allocation4 + $0x148] sm:$0xff] %vm4893, %v5132
    %5149 = vst.msk [vmem:[#allocation4 + $0x150] sm:$0xff] %vm4893, %v5133
    %5150 = vst.msk [vmem:[#allocation4 + $0x158] sm:$0xff] %vm4893, %v5134
    %5151 = vst.msk [vmem:[#allocation4 + $0x160] sm:$0xff] %vm4893, %v5135
    %5152 = vst.msk [vmem:[#allocation4 + $0x168] sm:$0xff] %vm4893, %v5136
    %5153 = vst.msk [vmem:[#allocation4 + $0x170] sm:$0xff] %vm4893, %v5137
    %5154 = vst.msk [vmem:[#allocation4 + $0x178] sm:$0xff] %vm4893, %v5138
    %5155 = vrot.lane.b32.xlu0 %v4884, 122
    %v5156 = vpop.permute.xlu0 %5155
    %5157 = vrot.lane.b32.xlu0 %v4885, 122
    %v5158 = vpop.permute.xlu0 %5157
    %5159 = vrot.lane.b32.xlu0 %v4886, 122
    %v5160 = vpop.permute.xlu0 %5159
    %5161 = vrot.lane.b32.xlu0 %v4887, 122
    %v5162 = vpop.permute.xlu0 %5161
    %5163 = vrot.lane.b32.xlu0 %v4888, 122
    %v5164 = vpop.permute.xlu0 %5163
    %5165 = vrot.lane.b32.xlu0 %v4889, 122
    %v5166 = vpop.permute.xlu0 %5165
    %5167 = vrot.lane.b32.xlu0 %v4890, 122
    %v5168 = vpop.permute.xlu0 %5167
    %5169 = vrot.lane.b32.xlu0 %v4891, 122
    %v5170 = vpop.permute.xlu0 %5169
    %v5171 = vrot.slane %v5156, 4
    %v5172 = vrot.slane %v5158, 4
    %v5173 = vrot.slane %v5160, 4
    %v5174 = vrot.slane %v5162, 4
    %v5175 = vrot.slane %v5164, 4
    %v5176 = vrot.slane %v5166, 4
    %v5177 = vrot.slane %v5168, 4
    %v5178 = vrot.slane %v5170, 4
    %vm5179 = vcmask 998400
    %v5180 = vsel %vm5179, %v5156, %v5171
    %v5181 = vsel %vm5179, %v5158, %v5172
    %v5182 = vsel %vm5179, %v5160, %v5173
    %v5183 = vsel %vm5179, %v5162, %v5174
    %v5184 = vsel %vm5179, %v5164, %v5175
    %v5185 = vsel %vm5179, %v5166, %v5176
    %v5186 = vsel %vm5179, %v5168, %v5177
    %v5187 = vsel %vm5179, %v5170, %v5178
    %5196 = vst.msk [vmem:[#allocation4 + $0x180] sm:$0xff] %vm4893, %v5180
    %5197 = vst.msk [vmem:[#allocation4 + $0x188] sm:$0xff] %vm4893, %v5181
    %5198 = vst.msk [vmem:[#allocation4 + $0x190] sm:$0xff] %vm4893, %v5182
    %5199 = vst.msk [vmem:[#allocation4 + $0x198] sm:$0xff] %vm4893, %v5183
    %5200 = vst.msk [vmem:[#allocation4 + $0x1a0] sm:$0xff] %vm4893, %v5184
    %5201 = vst.msk [vmem:[#allocation4 + $0x1a8] sm:$0xff] %vm4893, %v5185
    %5202 = vst.msk [vmem:[#allocation4 + $0x1b0] sm:$0xff] %vm4893, %v5186
    %5203 = vst.msk [vmem:[#allocation4 + $0x1b8] sm:$0xff] %vm4893, %v5187
    %5204 = vrot.lane.b32.xlu0 %v4884, 121
    %v5205 = vpop.permute.xlu0 %5204
    %5206 = vrot.lane.b32.xlu0 %v4885, 121
    %v5207 = vpop.permute.xlu0 %5206
    %5208 = vrot.lane.b32.xlu0 %v4886, 121
    %v5209 = vpop.permute.xlu0 %5208
    %5210 = vrot.lane.b32.xlu0 %v4887, 121
    %v5211 = vpop.permute.xlu0 %5210
    %5212 = vrot.lane.b32.xlu0 %v4888, 121
    %v5213 = vpop.permute.xlu0 %5212
    %5214 = vrot.lane.b32.xlu0 %v4889, 121
    %v5215 = vpop.permute.xlu0 %5214
    %5216 = vrot.lane.b32.xlu0 %v4890, 121
    %v5217 = vpop.permute.xlu0 %5216
    %5218 = vrot.lane.b32.xlu0 %v4891, 121
    %v5219 = vpop.permute.xlu0 %5218
    %v5220 = vrot.slane %v5205, 4
    %v5221 = vrot.slane %v5207, 4
    %v5222 = vrot.slane %v5209, 4
    %v5223 = vrot.slane %v5211, 4
    %v5224 = vrot.slane %v5213, 4
    %v5225 = vrot.slane %v5215, 4
    %v5226 = vrot.slane %v5217, 4
    %v5227 = vrot.slane %v5219, 4
    %vm5228 = vcmask 990208
    %v5229 = vsel %vm5228, %v5205, %v5220
    %v5230 = vsel %vm5228, %v5207, %v5221
    %v5231 = vsel %vm5228, %v5209, %v5222
    %v5232 = vsel %vm5228, %v5211, %v5223
    %v5233 = vsel %vm5228, %v5213, %v5224
    %v5234 = vsel %vm5228, %v5215, %v5225
    %v5235 = vsel %vm5228, %v5217, %v5226
    %v5236 = vsel %vm5228, %v5219, %v5227
    %5245 = vst.msk [vmem:[#allocation4 + $0x1c0] sm:$0xff] %vm4893, %v5229
    %5246 = vst.msk [vmem:[#allocation4 + $0x1c8] sm:$0xff] %vm4893, %v5230
    %5247 = vst.msk [vmem:[#allocation4 + $0x1d0] sm:$0xff] %vm4893, %v5231
    %5248 = vst.msk [vmem:[#allocation4 + $0x1d8] sm:$0xff] %vm4893, %v5232
    %5249 = vst.msk [vmem:[#allocation4 + $0x1e0] sm:$0xff] %vm4893, %v5233
    %5250 = vst.msk [vmem:[#allocation4 + $0x1e8] sm:$0xff] %vm4893, %v5234
    %5251 = vst.msk [vmem:[#allocation4 + $0x1f0] sm:$0xff] %vm4893, %v5235
    %5252 = vst.msk [vmem:[#allocation4 + $0x1f8] sm:$0xff] %vm4893, %v5236
    %5253 = vrot.lane.b32.xlu0 %v4884, 120
    %v5254 = vpop.permute.xlu0 %5253
    %5255 = vrot.lane.b32.xlu0 %v4885, 120
    %v5256 = vpop.permute.xlu0 %5255
    %5257 = vrot.lane.b32.xlu0 %v4886, 120
    %v5258 = vpop.permute.xlu0 %5257
    %5259 = vrot.lane.b32.xlu0 %v4887, 120
    %v5260 = vpop.permute.xlu0 %5259
    %5261 = vrot.lane.b32.xlu0 %v4888, 120
    %v5262 = vpop.permute.xlu0 %5261
    %5263 = vrot.lane.b32.xlu0 %v4889, 120
    %v5264 = vpop.permute.xlu0 %5263
    %5265 = vrot.lane.b32.xlu0 %v4890, 120
    %v5266 = vpop.permute.xlu0 %5265
    %5267 = vrot.lane.b32.xlu0 %v4891, 120
    %v5268 = vpop.permute.xlu0 %5267
    %v5269 = vrot.slane %v5254, 4
    %v5270 = vrot.slane %v5256, 4
    %v5271 = vrot.slane %v5258, 4
    %v5272 = vrot.slane %v5260, 4
    %v5273 = vrot.slane %v5262, 4
    %v5274 = vrot.slane %v5264, 4
    %v5275 = vrot.slane %v5266, 4
    %v5276 = vrot.slane %v5268, 4
    %vm5277 = vcmask 982016
    %v5278 = vsel %vm5277, %v5254, %v5269
    %v5279 = vsel %vm5277, %v5256, %v5270
    %v5280 = vsel %vm5277, %v5258, %v5271
    %v5281 = vsel %vm5277, %v5260, %v5272
    %v5282 = vsel %vm5277, %v5262, %v5273
    %v5283 = vsel %vm5277, %v5264, %v5274
    %v5284 = vsel %vm5277, %v5266, %v5275
    %v5285 = vsel %vm5277, %v5268, %v5276
    %5294 = vst.msk [vmem:[#allocation4 + $0x200] sm:$0xff] %vm4893, %v5278
    %5295 = vst.msk [vmem:[#allocation4 + $0x208] sm:$0xff] %vm4893, %v5279
    %5296 = vst.msk [vmem:[#allocation4 + $0x210] sm:$0xff] %vm4893, %v5280
    %5297 = vst.msk [vmem:[#allocation4 + $0x218] sm:$0xff] %vm4893, %v5281
    %5298 = vst.msk [vmem:[#allocation4 + $0x220] sm:$0xff] %vm4893, %v5282
    %5299 = vst.msk [vmem:[#allocation4 + $0x228] sm:$0xff] %vm4893, %v5283
    %5300 = vst.msk [vmem:[#allocation4 + $0x230] sm:$0xff] %vm4893, %v5284
    %5301 = vst.msk [vmem:[#allocation4 + $0x238] sm:$0xff] %vm4893, %v5285
    %5302 = vrot.lane.b32.xlu0 %v4884, 119
    %v5303 = vpop.permute.xlu0 %5302
    %5304 = vrot.lane.b32.xlu0 %v4885, 119
    %v5305 = vpop.permute.xlu0 %5304
    %5306 = vrot.lane.b32.xlu0 %v4886, 119
    %v5307 = vpop.permute.xlu0 %5306
    %5308 = vrot.lane.b32.xlu0 %v4887, 119
    %v5309 = vpop.permute.xlu0 %5308
    %5310 = vrot.lane.b32.xlu0 %v4888, 119
    %v5311 = vpop.permute.xlu0 %5310
    %5312 = vrot.lane.b32.xlu0 %v4889, 119
    %v5313 = vpop.permute.xlu0 %5312
    %5314 = vrot.lane.b32.xlu0 %v4890, 119
    %v5315 = vpop.permute.xlu0 %5314
    %5316 = vrot.lane.b32.xlu0 %v4891, 119
    %v5317 = vpop.permute.xlu0 %5316
    %v5318 = vrot.slane %v5303, 4
    %v5319 = vrot.slane %v5305, 4
    %v5320 = vrot.slane %v5307, 4
    %v5321 = vrot.slane %v5309, 4
    %v5322 = vrot.slane %v5311, 4
    %v5323 = vrot.slane %v5313, 4
    %v5324 = vrot.slane %v5315, 4
    %v5325 = vrot.slane %v5317, 4
    %vm5326 = vcmask 973824
    %v5327 = vsel %vm5326, %v5303, %v5318
    %v5328 = vsel %vm5326, %v5305, %v5319
    %v5329 = vsel %vm5326, %v5307, %v5320
    %v5330 = vsel %vm5326, %v5309, %v5321
    %v5331 = vsel %vm5326, %v5311, %v5322
    %v5332 = vsel %vm5326, %v5313, %v5323
    %v5333 = vsel %vm5326, %v5315, %v5324
    %v5334 = vsel %vm5326, %v5317, %v5325
    %5343 = vst.msk [vmem:[#allocation4 + $0x240] sm:$0xff] %vm4893, %v5327
    %5344 = vst.msk [vmem:[#allocation4 + $0x248] sm:$0xff] %vm4893, %v5328
    %5345 = vst.msk [vmem:[#allocation4 + $0x250] sm:$0xff] %vm4893, %v5329
    %5346 = vst.msk [vmem:[#allocation4 + $0x258] sm:$0xff] %vm4893, %v5330
    %5347 = vst.msk [vmem:[#allocation4 + $0x260] sm:$0xff] %vm4893, %v5331
    %5348 = vst.msk [vmem:[#allocation4 + $0x268] sm:$0xff] %vm4893, %v5332
    %5349 = vst.msk [vmem:[#allocation4 + $0x270] sm:$0xff] %vm4893, %v5333
    %5350 = vst.msk [vmem:[#allocation4 + $0x278] sm:$0xff] %vm4893, %v5334
    %5351 = vrot.lane.b32.xlu0 %v4884, 118
    %v5352 = vpop.permute.xlu0 %5351
    %5353 = vrot.lane.b32.xlu0 %v4885, 118
    %v5354 = vpop.permute.xlu0 %5353
    %5355 = vrot.lane.b32.xlu0 %v4886, 118
    %v5356 = vpop.permute.xlu0 %5355
    %5357 = vrot.lane.b32.xlu0 %v4887, 118
    %v5358 = vpop.permute.xlu0 %5357
    %5359 = vrot.lane.b32.xlu0 %v4888, 118
    %v5360 = vpop.permute.xlu0 %5359
    %5361 = vrot.lane.b32.xlu0 %v4889, 118
    %v5362 = vpop.permute.xlu0 %5361
    %5363 = vrot.lane.b32.xlu0 %v4890, 118
    %v5364 = vpop.permute.xlu0 %5363
    %5365 = vrot.lane.b32.xlu0 %v4891, 118
    %v5366 = vpop.permute.xlu0 %5365
    %v5367 = vrot.slane %v5352, 4
    %v5368 = vrot.slane %v5354, 4
    %v5369 = vrot.slane %v5356, 4
    %v5370 = vrot.slane %v5358, 4
    %v5371 = vrot.slane %v5360, 4
    %v5372 = vrot.slane %v5362, 4
    %v5373 = vrot.slane %v5364, 4
    %v5374 = vrot.slane %v5366, 4
    %vm5375 = vcmask 965632
    %v5376 = vsel %vm5375, %v5352, %v5367
    %v5377 = vsel %vm5375, %v5354, %v5368
    %v5378 = vsel %vm5375, %v5356, %v5369
    %v5379 = vsel %vm5375, %v5358, %v5370
    %v5380 = vsel %vm5375, %v5360, %v5371
    %v5381 = vsel %vm5375, %v5362, %v5372
    %v5382 = vsel %vm5375, %v5364, %v5373
    %v5383 = vsel %vm5375, %v5366, %v5374
    %5392 = vst.msk [vmem:[#allocation4 + $0x280] sm:$0xff] %vm4893, %v5376
    %5393 = vst.msk [vmem:[#allocation4 + $0x288] sm:$0xff] %vm4893, %v5377
    %5394 = vst.msk [vmem:[#allocation4 + $0x290] sm:$0xff] %vm4893, %v5378
    %5395 = vst.msk [vmem:[#allocation4 + $0x298] sm:$0xff] %vm4893, %v5379
    %5396 = vst.msk [vmem:[#allocation4 + $0x2a0] sm:$0xff] %vm4893, %v5380
    %5397 = vst.msk [vmem:[#allocation4 + $0x2a8] sm:$0xff] %vm4893, %v5381
    %5398 = vst.msk [vmem:[#allocation4 + $0x2b0] sm:$0xff] %vm4893, %v5382
    %5399 = vst.msk [vmem:[#allocation4 + $0x2b8] sm:$0xff] %vm4893, %v5383
    %5400 = vrot.lane.b32.xlu0 %v4884, 117
    %v5401 = vpop.permute.xlu0 %5400
    %5402 = vrot.lane.b32.xlu0 %v4885, 117
    %v5403 = vpop.permute.xlu0 %5402
    %5404 = vrot.lane.b32.xlu0 %v4886, 117
    %v5405 = vpop.permute.xlu0 %5404
    %5406 = vrot.lane.b32.xlu0 %v4887, 117
    %v5407 = vpop.permute.xlu0 %5406
    %5408 = vrot.lane.b32.xlu0 %v4888, 117
    %v5409 = vpop.permute.xlu0 %5408
    %5410 = vrot.lane.b32.xlu0 %v4889, 117
    %v5411 = vpop.permute.xlu0 %5410
    %5412 = vrot.lane.b32.xlu0 %v4890, 117
    %v5413 = vpop.permute.xlu0 %5412
    %5414 = vrot.lane.b32.xlu0 %v4891, 117
    %v5415 = vpop.permute.xlu0 %5414
    %v5416 = vrot.slane %v5401, 4
    %v5417 = vrot.slane %v5403, 4
    %v5418 = vrot.slane %v5405, 4
    %v5419 = vrot.slane %v5407, 4
    %v5420 = vrot.slane %v5409, 4
    %v5421 = vrot.slane %v5411, 4
    %v5422 = vrot.slane %v5413, 4
    %v5423 = vrot.slane %v5415, 4
    %vm5424 = vcmask 957440
    %v5425 = vsel %vm5424, %v5401, %v5416
    %v5426 = vsel %vm5424, %v5403, %v5417
    %v5427 = vsel %vm5424, %v5405, %v5418
    %v5428 = vsel %vm5424, %v5407, %v5419
    %v5429 = vsel %vm5424, %v5409, %v5420
    %v5430 = vsel %vm5424, %v5411, %v5421
    %v5431 = vsel %vm5424, %v5413, %v5422
    %v5432 = vsel %vm5424, %v5415, %v5423
    %5441 = vst.msk [vmem:[#allocation4 + $0x2c0] sm:$0xff] %vm4893, %v5425
    %5442 = vst.msk [vmem:[#allocation4 + $0x2c8] sm:$0xff] %vm4893, %v5426
    %5443 = vst.msk [vmem:[#allocation4 + $0x2d0] sm:$0xff] %vm4893, %v5427
    %5444 = vst.msk [vmem:[#allocation4 + $0x2d8] sm:$0xff] %vm4893, %v5428
    %5445 = vst.msk [vmem:[#allocation4 + $0x2e0] sm:$0xff] %vm4893, %v5429
    %5446 = vst.msk [vmem:[#allocation4 + $0x2e8] sm:$0xff] %vm4893, %v5430
    %5447 = vst.msk [vmem:[#allocation4 + $0x2f0] sm:$0xff] %vm4893, %v5431
    %5448 = vst.msk [vmem:[#allocation4 + $0x2f8] sm:$0xff] %vm4893, %v5432
    %5449 = vrot.lane.b32.xlu0 %v4884, 116
    %v5450 = vpop.permute.xlu0 %5449
    %5451 = vrot.lane.b32.xlu0 %v4885, 116
    %v5452 = vpop.permute.xlu0 %5451
    %5453 = vrot.lane.b32.xlu0 %v4886, 116
    %v5454 = vpop.permute.xlu0 %5453
    %5455 = vrot.lane.b32.xlu0 %v4887, 116
    %v5456 = vpop.permute.xlu0 %5455
    %5457 = vrot.lane.b32.xlu0 %v4888, 116
    %v5458 = vpop.permute.xlu0 %5457
    %5459 = vrot.lane.b32.xlu0 %v4889, 116
    %v5460 = vpop.permute.xlu0 %5459
    %5461 = vrot.lane.b32.xlu0 %v4890, 116
    %v5462 = vpop.permute.xlu0 %5461
    %5463 = vrot.lane.b32.xlu0 %v4891, 116
    %v5464 = vpop.permute.xlu0 %5463
    %v5465 = vrot.slane %v5450, 4
    %v5466 = vrot.slane %v5452, 4
    %v5467 = vrot.slane %v5454, 4
    %v5468 = vrot.slane %v5456, 4
    %v5469 = vrot.slane %v5458, 4
    %v5470 = vrot.slane %v5460, 4
    %v5471 = vrot.slane %v5462, 4
    %v5472 = vrot.slane %v5464, 4
    %vm5473 = vcmask 949248
    %v5474 = vsel %vm5473, %v5450, %v5465
    %v5475 = vsel %vm5473, %v5452, %v5466
    %v5476 = vsel %vm5473, %v5454, %v5467
    %v5477 = vsel %vm5473, %v5456, %v5468
    %v5478 = vsel %vm5473, %v5458, %v5469
    %v5479 = vsel %vm5473, %v5460, %v5470
    %v5480 = vsel %vm5473, %v5462, %v5471
    %v5481 = vsel %vm5473, %v5464, %v5472
    %5490 = vst.msk [vmem:[#allocation4 + $0x300] sm:$0xff] %vm4893, %v5474
    %5491 = vst.msk [vmem:[#allocation4 + $0x308] sm:$0xff] %vm4893, %v5475
    %5492 = vst.msk [vmem:[#allocation4 + $0x310] sm:$0xff] %vm4893, %v5476
    %5493 = vst.msk [vmem:[#allocation4 + $0x318] sm:$0xff] %vm4893, %v5477
    %5494 = vst.msk [vmem:[#allocation4 + $0x320] sm:$0xff] %vm4893, %v5478
    %5495 = vst.msk [vmem:[#allocation4 + $0x328] sm:$0xff] %vm4893, %v5479
    %5496 = vst.msk [vmem:[#allocation4 + $0x330] sm:$0xff] %vm4893, %v5480
    %5497 = vst.msk [vmem:[#allocation4 + $0x338] sm:$0xff] %vm4893, %v5481
    %5498 = vrot.lane.b32.xlu0 %v4884, 115
    %v5499 = vpop.permute.xlu0 %5498
    %5500 = vrot.lane.b32.xlu0 %v4885, 115
    %v5501 = vpop.permute.xlu0 %5500
    %5502 = vrot.lane.b32.xlu0 %v4886, 115
    %v5503 = vpop.permute.xlu0 %5502
    %5504 = vrot.lane.b32.xlu0 %v4887, 115
    %v5505 = vpop.permute.xlu0 %5504
    %5506 = vrot.lane.b32.xlu0 %v4888, 115
    %v5507 = vpop.permute.xlu0 %5506
    %5508 = vrot.lane.b32.xlu0 %v4889, 115
    %v5509 = vpop.permute.xlu0 %5508
    %5510 = vrot.lane.b32.xlu0 %v4890, 115
    %v5511 = vpop.permute.xlu0 %5510
    %5512 = vrot.lane.b32.xlu0 %v4891, 115
    %v5513 = vpop.permute.xlu0 %5512
    %v5514 = vrot.slane %v5499, 4
    %v5515 = vrot.slane %v5501, 4
    %v5516 = vrot.slane %v5503, 4
    %v5517 = vrot.slane %v5505, 4
    %v5518 = vrot.slane %v5507, 4
    %v5519 = vrot.slane %v5509, 4
    %v5520 = vrot.slane %v5511, 4
    %v5521 = vrot.slane %v5513, 4
    %vm5522 = vcmask 941056
    %v5523 = vsel %vm5522, %v5499, %v5514
    %v5524 = vsel %vm5522, %v5501, %v5515
    %v5525 = vsel %vm5522, %v5503, %v5516
    %v5526 = vsel %vm5522, %v5505, %v5517
    %v5527 = vsel %vm5522, %v5507, %v5518
    %v5528 = vsel %vm5522, %v5509, %v5519
    %v5529 = vsel %vm5522, %v5511, %v5520
    %v5530 = vsel %vm5522, %v5513, %v5521
    %5539 = vst.msk [vmem:[#allocation4 + $0x340] sm:$0xff] %vm4893, %v5523
    %5540 = vst.msk [vmem:[#allocation4 + $0x348] sm:$0xff] %vm4893, %v5524
    %5541 = vst.msk [vmem:[#allocation4 + $0x350] sm:$0xff] %vm4893, %v5525
    %5542 = vst.msk [vmem:[#allocation4 + $0x358] sm:$0xff] %vm4893, %v5526
    %5543 = vst.msk [vmem:[#allocation4 + $0x360] sm:$0xff] %vm4893, %v5527
    %5544 = vst.msk [vmem:[#allocation4 + $0x368] sm:$0xff] %vm4893, %v5528
    %5545 = vst.msk [vmem:[#allocation4 + $0x370] sm:$0xff] %vm4893, %v5529
    %5546 = vst.msk [vmem:[#allocation4 + $0x378] sm:$0xff] %vm4893, %v5530
    %5547 = vrot.lane.b32.xlu0 %v4884, 114
    %v5548 = vpop.permute.xlu0 %5547
    %5549 = vrot.lane.b32.xlu0 %v4885, 114
    %v5550 = vpop.permute.xlu0 %5549
    %5551 = vrot.lane.b32.xlu0 %v4886, 114
    %v5552 = vpop.permute.xlu0 %5551
    %5553 = vrot.lane.b32.xlu0 %v4887, 114
    %v5554 = vpop.permute.xlu0 %5553
    %5555 = vrot.lane.b32.xlu0 %v4888, 114
    %v5556 = vpop.permute.xlu0 %5555
    %5557 = vrot.lane.b32.xlu0 %v4889, 114
    %v5558 = vpop.permute.xlu0 %5557
    %5559 = vrot.lane.b32.xlu0 %v4890, 114
    %v5560 = vpop.permute.xlu0 %5559
    %5561 = vrot.lane.b32.xlu0 %v4891, 114
    %v5562 = vpop.permute.xlu0 %5561
    %v5563 = vrot.slane %v5548, 4
    %v5564 = vrot.slane %v5550, 4
    %v5565 = vrot.slane %v5552, 4
    %v5566 = vrot.slane %v5554, 4
    %v5567 = vrot.slane %v5556, 4
    %v5568 = vrot.slane %v5558, 4
    %v5569 = vrot.slane %v5560, 4
    %v5570 = vrot.slane %v5562, 4
    %vm5571 = vcmask 932864
    %v5572 = vsel %vm5571, %v5548, %v5563
    %v5573 = vsel %vm5571, %v5550, %v5564
    %v5574 = vsel %vm5571, %v5552, %v5565
    %v5575 = vsel %vm5571, %v5554, %v5566
    %v5576 = vsel %vm5571, %v5556, %v5567
    %v5577 = vsel %vm5571, %v5558, %v5568
    %v5578 = vsel %vm5571, %v5560, %v5569
    %v5579 = vsel %vm5571, %v5562, %v5570
    %5588 = vst.msk [vmem:[#allocation4 + $0x380] sm:$0xff] %vm4893, %v5572
    %5589 = vst.msk [vmem:[#allocation4 + $0x388] sm:$0xff] %vm4893, %v5573
    %5590 = vst.msk [vmem:[#allocation4 + $0x390] sm:$0xff] %vm4893, %v5574
    %5591 = vst.msk [vmem:[#allocation4 + $0x398] sm:$0xff] %vm4893, %v5575
    %5592 = vst.msk [vmem:[#allocation4 + $0x3a0] sm:$0xff] %vm4893, %v5576
    %5593 = vst.msk [vmem:[#allocation4 + $0x3a8] sm:$0xff] %vm4893, %v5577
    %5594 = vst.msk [vmem:[#allocation4 + $0x3b0] sm:$0xff] %vm4893, %v5578
    %5595 = vst.msk [vmem:[#allocation4 + $0x3b8] sm:$0xff] %vm4893, %v5579
    %v5596 = vld [vmem:[%s4] sm:$0xff]
    %v5597 = vld [vmem:[%s4 + $0x8] sm:$0xff]
    %v5598 = vld [vmem:[%s4 + $0x10] sm:$0xff]
    %v5599 = vld [vmem:[%s4 + $0x18] sm:$0xff]
    %v5600 = vld [vmem:[%s4 + $0x20] sm:$0xff]
    %v5601 = vld [vmem:[%s4 + $0x28] sm:$0xff]
    %v5602 = vld [vmem:[%s4 + $0x30] sm:$0xff]
    %v5603 = vld [vmem:[%s4 + $0x38] sm:$0xff]
    %v5604 = vld [vmem:[%s4 + $0x40] sm:$0xff]
    %v5605 = vld [vmem:[%s4 + $0x48] sm:$0xff]
    %v5606 = vld [vmem:[%s4 + $0x50] sm:$0xff]
    %v5607 = vld [vmem:[%s4 + $0x58] sm:$0xff]
    %v5608 = vld [vmem:[%s4 + $0x60] sm:$0xff]
    %v5609 = vld [vmem:[%s4 + $0x68] sm:$0xff]
    %v5610 = vld [vmem:[%s4 + $0x70] sm:$0xff]
    %v5611 = vld [vmem:[%s4 + $0x78] sm:$0xff]
    %v5612 = vld [vmem:[%s4 + $0x80] sm:$0xff]
    %v5613 = vld [vmem:[%s4 + $0x88] sm:$0xff]
    %v5614 = vld [vmem:[%s4 + $0x90] sm:$0xff]
    %v5615 = vld [vmem:[%s4 + $0x98] sm:$0xff]
    %v5616 = vld [vmem:[%s4 + $0xa0] sm:$0xff]
    %v5617 = vld [vmem:[%s4 + $0xa8] sm:$0xff]
    %v5618 = vld [vmem:[%s4 + $0xb0] sm:$0xff]
    %v5619 = vld [vmem:[%s4 + $0xb8] sm:$0xff]
    %v5620 = vld [vmem:[%s4 + $0xc0] sm:$0xff]
    %v5621 = vld [vmem:[%s4 + $0xc8] sm:$0xff]
    %v5622 = vld [vmem:[%s4 + $0xd0] sm:$0xff]
    %v5623 = vld [vmem:[%s4 + $0xd8] sm:$0xff]
    %v5624 = vld [vmem:[%s4 + $0xe0] sm:$0xff]
    %v5625 = vld [vmem:[%s4 + $0xe8] sm:$0xff]
    %v5626 = vld [vmem:[%s4 + $0xf0] sm:$0xff]
    %v5627 = vld [vmem:[%s4 + $0xf8] sm:$0xff]
    %v5628 = vld [vmem:[#allocation4] sm:$0xff]
    %v5629 = vld [vmem:[#allocation4 + $0x8] sm:$0xff]
    %v5630 = vld [vmem:[#allocation4 + $0x10] sm:$0xff]
    %v5631 = vld [vmem:[#allocation4 + $0x18] sm:$0xff]
    %v5632 = vld [vmem:[#allocation4 + $0x20] sm:$0xff]
    %v5633 = vld [vmem:[#allocation4 + $0x28] sm:$0xff]
    %v5634 = vld [vmem:[#allocation4 + $0x30] sm:$0xff]
    %v5635 = vld [vmem:[#allocation4 + $0x38] sm:$0xff]
    %v5636 = vld [vmem:[#allocation4 + $0x40] sm:$0xff]
    %v5637 = vld [vmem:[#allocation4 + $0x48] sm:$0xff]
    %v5638 = vld [vmem:[#allocation4 + $0x50] sm:$0xff]
    %v5639 = vld [vmem:[#allocation4 + $0x58] sm:$0xff]
    %v5640 = vld [vmem:[#allocation4 + $0x60] sm:$0xff]
    %v5641 = vld [vmem:[#allocation4 + $0x68] sm:$0xff]
    %v5642 = vld [vmem:[#allocation4 + $0x70] sm:$0xff]
    %v5643 = vld [vmem:[#allocation4 + $0x78] sm:$0xff]
    %v5644 = vld [vmem:[#allocation4 + $0x80] sm:$0xff]
    %v5645 = vld [vmem:[#allocation4 + $0x88] sm:$0xff]
    %v5646 = vld [vmem:[#allocation4 + $0x90] sm:$0xff]
    %v5647 = vld [vmem:[#allocation4 + $0x98] sm:$0xff]
    %v5648 = vld [vmem:[#allocation4 + $0xa0] sm:$0xff]
    %v5649 = vld [vmem:[#allocation4 + $0xa8] sm:$0xff]
    %v5650 = vld [vmem:[#allocation4 + $0xb0] sm:$0xff]
    %v5651 = vld [vmem:[#allocation4 + $0xb8] sm:$0xff]
    %v5652 = vld [vmem:[#allocation4 + $0xc0] sm:$0xff]
    %v5653 = vld [vmem:[#allocation4 + $0xc8] sm:$0xff]
    %v5654 = vld [vmem:[#allocation4 + $0xd0] sm:$0xff]
    %v5655 = vld [vmem:[#allocation4 + $0xd8] sm:$0xff]
    %v5656 = vld [vmem:[#allocation4 + $0xe0] sm:$0xff]
    %v5657 = vld [vmem:[#allocation4 + $0xe8] sm:$0xff]
    %v5658 = vld [vmem:[#allocation4 + $0xf0] sm:$0xff]
    %v5659 = vld [vmem:[#allocation4 + $0xf8] sm:$0xff]
    %v5660 = vld [vmem:[#allocation4 + $0x100] sm:$0xff]
    %v5661 = vld [vmem:[#allocation4 + $0x108] sm:$0xff]
    %v5662 = vld [vmem:[#allocation4 + $0x110] sm:$0xff]
    %v5663 = vld [vmem:[#allocation4 + $0x118] sm:$0xff]
    %v5664 = vld [vmem:[#allocation4 + $0x120] sm:$0xff]
    %v5665 = vld [vmem:[#allocation4 + $0x128] sm:$0xff]
    %v5666 = vld [vmem:[#allocation4 + $0x130] sm:$0xff]
    %v5667 = vld [vmem:[#allocation4 + $0x138] sm:$0xff]
    %v5668 = vld [vmem:[#allocation4 + $0x140] sm:$0xff]
    %v5669 = vld [vmem:[#allocation4 + $0x148] sm:$0xff]
    %v5670 = vld [vmem:[#allocation4 + $0x150] sm:$0xff]
    %v5671 = vld [vmem:[#allocation4 + $0x158] sm:$0xff]
    %v5672 = vld [vmem:[#allocation4 + $0x160] sm:$0xff]
    %v5673 = vld [vmem:[#allocation4 + $0x168] sm:$0xff]
    %v5674 = vld [vmem:[#allocation4 + $0x170] sm:$0xff]
    %v5675 = vld [vmem:[#allocation4 + $0x178] sm:$0xff]
    %v5676 = vld [vmem:[#allocation4 + $0x180] sm:$0xff]
    %v5677 = vld [vmem:[#allocation4 + $0x188] sm:$0xff]
    %v5678 = vld [vmem:[#allocation4 + $0x190] sm:$0xff]
    %v5679 = vld [vmem:[#allocation4 + $0x198] sm:$0xff]
    %v5680 = vld [vmem:[#allocation4 + $0x1a0] sm:$0xff]
    %v5681 = vld [vmem:[#allocation4 + $0x1a8] sm:$0xff]
    %v5682 = vld [vmem:[#allocation4 + $0x1b0] sm:$0xff]
    %v5683 = vld [vmem:[#allocation4 + $0x1b8] sm:$0xff]
    %v5684 = vld [vmem:[#allocation4 + $0x1c0] sm:$0xff]
    %v5685 = vld [vmem:[#allocation4 + $0x1c8] sm:$0xff]
    %v5686 = vld [vmem:[#allocation4 + $0x1d0] sm:$0xff]
    %v5687 = vld [vmem:[#allocation4 + $0x1d8] sm:$0xff]
    %v5688 = vld [vmem:[#allocation4 + $0x1e0] sm:$0xff]
    %v5689 = vld [vmem:[#allocation4 + $0x1e8] sm:$0xff]
    %v5690 = vld [vmem:[#allocation4 + $0x1f0] sm:$0xff]
    %v5691 = vld [vmem:[#allocation4 + $0x1f8] sm:$0xff]
    %v5692 = vld [vmem:[#allocation4 + $0x200] sm:$0xff]
    %v5693 = vld [vmem:[#allocation4 + $0x208] sm:$0xff]
    %v5694 = vld [vmem:[#allocation4 + $0x210] sm:$0xff]
    %v5695 = vld [vmem:[#allocation4 + $0x218] sm:$0xff]
    %v5696 = vld [vmem:[#allocation4 + $0x220] sm:$0xff]
    %v5697 = vld [vmem:[#allocation4 + $0x228] sm:$0xff]
    %v5698 = vld [vmem:[#allocation4 + $0x230] sm:$0xff]
    %v5699 = vld [vmem:[#allocation4 + $0x238] sm:$0xff]
    %v5700 = vld [vmem:[#allocation4 + $0x240] sm:$0xff]
    %v5701 = vld [vmem:[#allocation4 + $0x248] sm:$0xff]
    %v5702 = vld [vmem:[#allocation4 + $0x250] sm:$0xff]
    %v5703 = vld [vmem:[#allocation4 + $0x258] sm:$0xff]
    %v5704 = vld [vmem:[#allocation4 + $0x260] sm:$0xff]
    %v5705 = vld [vmem:[#allocation4 + $0x268] sm:$0xff]
    %v5706 = vld [vmem:[#allocation4 + $0x270] sm:$0xff]
    %v5707 = vld [vmem:[#allocation4 + $0x278] sm:$0xff]
    %v5708 = vld [vmem:[#allocation4 + $0x280] sm:$0xff]
    %v5709 = vld [vmem:[#allocation4 + $0x288] sm:$0xff]
    %v5710 = vld [vmem:[#allocation4 + $0x290] sm:$0xff]
    %v5711 = vld [vmem:[#allocation4 + $0x298] sm:$0xff]
    %v5712 = vld [vmem:[#allocation4 + $0x2a0] sm:$0xff]
    %v5713 = vld [vmem:[#allocation4 + $0x2a8] sm:$0xff]
    %v5714 = vld [vmem:[#allocation4 + $0x2b0] sm:$0xff]
    %v5715 = vld [vmem:[#allocation4 + $0x2b8] sm:$0xff]
    %v5716 = vld [vmem:[#allocation4 + $0x2c0] sm:$0xff]
    %v5717 = vld [vmem:[#allocation4 + $0x2c8] sm:$0xff]
    %v5718 = vld [vmem:[#allocation4 + $0x2d0] sm:$0xff]
    %v5719 = vld [vmem:[#allocation4 + $0x2d8] sm:$0xff]
    %v5720 = vld [vmem:[#allocation4 + $0x2e0] sm:$0xff]
    %v5721 = vld [vmem:[#allocation4 + $0x2e8] sm:$0xff]
    %v5722 = vld [vmem:[#allocation4 + $0x2f0] sm:$0xff]
    %v5723 = vld [vmem:[#allocation4 + $0x2f8] sm:$0xff]
    %v5724 = vld [vmem:[#allocation4 + $0x300] sm:$0xff]
    %v5725 = vld [vmem:[#allocation4 + $0x308] sm:$0xff]
    %v5726 = vld [vmem:[#allocation4 + $0x310] sm:$0xff]
    %v5727 = vld [vmem:[#allocation4 + $0x318] sm:$0xff]
    %v5728 = vld [vmem:[#allocation4 + $0x320] sm:$0xff]
    %v5729 = vld [vmem:[#allocation4 + $0x328] sm:$0xff]
    %v5730 = vld [vmem:[#allocation4 + $0x330] sm:$0xff]
    %v5731 = vld [vmem:[#allocation4 + $0x338] sm:$0xff]
    %v5732 = vld [vmem:[#allocation4 + $0x340] sm:$0xff]
    %v5733 = vld [vmem:[#allocation4 + $0x348] sm:$0xff]
    %v5734 = vld [vmem:[#allocation4 + $0x350] sm:$0xff]
    %v5735 = vld [vmem:[#allocation4 + $0x358] sm:$0xff]
    %v5736 = vld [vmem:[#allocation4 + $0x360] sm:$0xff]
    %v5737 = vld [vmem:[#allocation4 + $0x368] sm:$0xff]
    %v5738 = vld [vmem:[#allocation4 + $0x370] sm:$0xff]
    %v5739 = vld [vmem:[#allocation4 + $0x378] sm:$0xff]
    %v5740 = vld [vmem:[#allocation4 + $0x380] sm:$0xff]
    %v5741 = vld [vmem:[#allocation4 + $0x388] sm:$0xff]
    %v5742 = vld [vmem:[#allocation4 + $0x390] sm:$0xff]
    %v5743 = vld [vmem:[#allocation4 + $0x398] sm:$0xff]
    %v5744 = vld [vmem:[#allocation4 + $0x3a0] sm:$0xff]
    %v5745 = vld [vmem:[#allocation4 + $0x3a8] sm:$0xff]
    %v5746 = vld [vmem:[#allocation4 + $0x3b0] sm:$0xff]
    %v5747 = vld [vmem:[#allocation4 + $0x3b8] sm:$0xff]
    %v5748 = vld [vmem:[%s5] sm:$0xff]
    %v5749 = vld [vmem:[%s5 + $0x8] sm:$0xff]
    %v5750 = vld [vmem:[%s5 + $0x10] sm:$0xff]
    %v5751 = vld [vmem:[%s5 + $0x18] sm:$0xff]
    %v5752 = vld [vmem:[%s5 + $0x20] sm:$0xff]
    %v5753 = vld [vmem:[%s5 + $0x28] sm:$0xff]
    %v5754 = vld [vmem:[%s5 + $0x30] sm:$0xff]
    %v5755 = vld [vmem:[%s5 + $0x38] sm:$0xff]
    %5757 = vset.pattern.permute.xlu0 0
    %5758 = vperm.xlu0 %5757, %v5748
    %v5759 = vpop.permute.xlu0 %5758
    %5762 = vset.pattern.permute.xlu0 0
    %5763 = vperm.xlu0 %5762, %v5749
    %v5764 = vpop.permute.xlu0 %5763
    %5767 = vset.pattern.permute.xlu0 0
    %5768 = vperm.xlu0 %5767, %v5750
    %v5769 = vpop.permute.xlu0 %5768
    %5772 = vset.pattern.permute.xlu0 0
    %5773 = vperm.xlu0 %5772, %v5751
    %v5774 = vpop.permute.xlu0 %5773
    %5777 = vset.pattern.permute.xlu0 0
    %5778 = vperm.xlu0 %5777, %v5752
    %v5779 = vpop.permute.xlu0 %5778
    %5782 = vset.pattern.permute.xlu0 0
    %5783 = vperm.xlu0 %5782, %v5753
    %v5784 = vpop.permute.xlu0 %5783
    %5787 = vset.pattern.permute.xlu0 0
    %5788 = vperm.xlu0 %5787, %v5754
    %v5789 = vpop.permute.xlu0 %5788
    %5792 = vset.pattern.permute.xlu0 0
    %5793 = vperm.xlu0 %5792, %v5755
    %v5794 = vpop.permute.xlu0 %5793
    %v5828 = vunpack.c.l.b16 %v5596
    %v5829 = vunpack.c.h.b16 %v5596
    %v5830 = vunpack.c.l.b16 %v5597
    %v5831 = vunpack.c.h.b16 %v5597
    %v5832 = vunpack.c.l.b16 %v5598
    %v5833 = vunpack.c.h.b16 %v5598
    %v5834 = vunpack.c.l.b16 %v5599
    %v5835 = vunpack.c.h.b16 %v5599
    %v5836 = vunpack.c.l.b16 %v5600
    %v5837 = vunpack.c.h.b16 %v5600
    %v5838 = vunpack.c.l.b16 %v5601
    %v5839 = vunpack.c.h.b16 %v5601
    %v5840 = vunpack.c.l.b16 %v5602
    %v5841 = vunpack.c.h.b16 %v5602
    %v5842 = vunpack.c.l.b16 %v5603
    %v5843 = vunpack.c.h.b16 %v5603
    %v5844 = vunpack.c.l.b16 %v5604
    %v5845 = vunpack.c.h.b16 %v5604
    %v5846 = vunpack.c.l.b16 %v5605
    %v5847 = vunpack.c.h.b16 %v5605
    %v5848 = vunpack.c.l.b16 %v5606
    %v5849 = vunpack.c.h.b16 %v5606
    %v5850 = vunpack.c.l.b16 %v5607
    %v5851 = vunpack.c.h.b16 %v5607
    %v5852 = vunpack.c.l.b16 %v5608
    %v5853 = vunpack.c.h.b16 %v5608
    %v5854 = vunpack.c.l.b16 %v5609
    %v5855 = vunpack.c.h.b16 %v5609
    %v5856 = vunpack.c.l.b16 %v5610
    %v5857 = vunpack.c.h.b16 %v5610
    %v5858 = vunpack.c.l.b16 %v5611
    %v5859 = vunpack.c.h.b16 %v5611
    %v5860 = vunpack.c.l.b16 %v5612
    %v5861 = vunpack.c.h.b16 %v5612
    %v5862 = vunpack.c.l.b16 %v5613
    %v5863 = vunpack.c.h.b16 %v5613
    %v5864 = vunpack.c.l.b16 %v5614
    %v5865 = vunpack.c.h.b16 %v5614
    %v5866 = vunpack.c.l.b16 %v5615
    %v5867 = vunpack.c.h.b16 %v5615
    %v5868 = vunpack.c.l.b16 %v5616
    %v5869 = vunpack.c.h.b16 %v5616
    %v5870 = vunpack.c.l.b16 %v5617
    %v5871 = vunpack.c.h.b16 %v5617
    %v5872 = vunpack.c.l.b16 %v5618
    %v5873 = vunpack.c.h.b16 %v5618
    %v5874 = vunpack.c.l.b16 %v5619
    %v5875 = vunpack.c.h.b16 %v5619
    %v5876 = vunpack.c.l.b16 %v5620
    %v5877 = vunpack.c.h.b16 %v5620
    %v5878 = vunpack.c.l.b16 %v5621
    %v5879 = vunpack.c.h.b16 %v5621
    %v5880 = vunpack.c.l.b16 %v5622
    %v5881 = vunpack.c.h.b16 %v5622
    %v5882 = vunpack.c.l.b16 %v5623
    %v5883 = vunpack.c.h.b16 %v5623
    %v5884 = vunpack.c.l.b16 %v5624
    %v5885 = vunpack.c.h.b16 %v5624
    %v5886 = vunpack.c.l.b16 %v5625
    %v5887 = vunpack.c.h.b16 %v5625
    %v5888 = vunpack.c.l.b16 %v5626
    %v5889 = vunpack.c.h.b16 %v5626
    %v5890 = vunpack.c.l.b16 %v5627
    %v5891 = vunpack.c.h.b16 %v5627
    %v5892 = vpack.c.b16 %v5836, %v5828
    %v5893 = vpack.c.b16 %v5837, %v5829
    %v5894 = vpack.c.b16 %v5838, %v5830
    %v5895 = vpack.c.b16 %v5839, %v5831
    %v5896 = vpack.c.b16 %v5840, %v5832
    %v5897 = vpack.c.b16 %v5841, %v5833
    %v5898 = vpack.c.b16 %v5842, %v5834
    %v5899 = vpack.c.b16 %v5843, %v5835
    %v5900 = vpack.c.b16 %v5852, %v5844
    %v5901 = vpack.c.b16 %v5853, %v5845
    %v5902 = vpack.c.b16 %v5854, %v5846
    %v5903 = vpack.c.b16 %v5855, %v5847
    %v5904 = vpack.c.b16 %v5856, %v5848
    %v5905 = vpack.c.b16 %v5857, %v5849
    %v5906 = vpack.c.b16 %v5858, %v5850
    %v5907 = vpack.c.b16 %v5859, %v5851
    %v5908 = vpack.c.b16 %v5868, %v5860
    %v5909 = vpack.c.b16 %v5869, %v5861
    %v5910 = vpack.c.b16 %v5870, %v5862
    %v5911 = vpack.c.b16 %v5871, %v5863
    %v5912 = vpack.c.b16 %v5872, %v5864
    %v5913 = vpack.c.b16 %v5873, %v5865
    %v5914 = vpack.c.b16 %v5874, %v5866
    %v5915 = vpack.c.b16 %v5875, %v5867
    %v5916 = vpack.c.b16 %v5884, %v5876
    %v5917 = vpack.c.b16 %v5885, %v5877
    %v5918 = vpack.c.b16 %v5886, %v5878
    %v5919 = vpack.c.b16 %v5887, %v5879
    %v5920 = vpack.c.b16 %v5888, %v5880
    %v5921 = vpack.c.b16 %v5889, %v5881
    %v5922 = vpack.c.b16 %v5890, %v5882
    %v5923 = vpack.c.b16 %v5891, %v5883
    %v6072 = vunpack.c.l.b16 %v5628
    %v6073 = vunpack.c.h.b16 %v5628
    %v6074 = vunpack.c.l.b16 %v5629
    %v6075 = vunpack.c.h.b16 %v5629
    %v6076 = vunpack.c.l.b16 %v5630
    %v6077 = vunpack.c.h.b16 %v5630
    %v6078 = vunpack.c.l.b16 %v5631
    %v6079 = vunpack.c.h.b16 %v5631
    %v6080 = vunpack.c.l.b16 %v5632
    %v6081 = vunpack.c.h.b16 %v5632
    %v6082 = vunpack.c.l.b16 %v5633
    %v6083 = vunpack.c.h.b16 %v5633
    %v6084 = vunpack.c.l.b16 %v5634
    %v6085 = vunpack.c.h.b16 %v5634
    %v6086 = vunpack.c.l.b16 %v5635
    %v6087 = vunpack.c.h.b16 %v5635
    %v6088 = vunpack.c.l.b16 %v5636
    %v6089 = vunpack.c.h.b16 %v5636
    %v6090 = vunpack.c.l.b16 %v5637
    %v6091 = vunpack.c.h.b16 %v5637
    %v6092 = vunpack.c.l.b16 %v5638
    %v6093 = vunpack.c.h.b16 %v5638
    %v6094 = vunpack.c.l.b16 %v5639
    %v6095 = vunpack.c.h.b16 %v5639
    %v6096 = vunpack.c.l.b16 %v5640
    %v6097 = vunpack.c.h.b16 %v5640
    %v6098 = vunpack.c.l.b16 %v5641
    %v6099 = vunpack.c.h.b16 %v5641
    %v6100 = vunpack.c.l.b16 %v5642
    %v6101 = vunpack.c.h.b16 %v5642
    %v6102 = vunpack.c.l.b16 %v5643
    %v6103 = vunpack.c.h.b16 %v5643
    %v6104 = vunpack.c.l.b16 %v5644
    %v6105 = vunpack.c.h.b16 %v5644
    %v6106 = vunpack.c.l.b16 %v5645
    %v6107 = vunpack.c.h.b16 %v5645
    %v6108 = vunpack.c.l.b16 %v5646
    %v6109 = vunpack.c.h.b16 %v5646
    %v6110 = vunpack.c.l.b16 %v5647
    %v6111 = vunpack.c.h.b16 %v5647
    %v6112 = vunpack.c.l.b16 %v5648
    %v6113 = vunpack.c.h.b16 %v5648
    %v6114 = vunpack.c.l.b16 %v5649
    %v6115 = vunpack.c.h.b16 %v5649
    %v6116 = vunpack.c.l.b16 %v5650
    %v6117 = vunpack.c.h.b16 %v5650
    %v6118 = vunpack.c.l.b16 %v5651
    %v6119 = vunpack.c.h.b16 %v5651
    %v6120 = vunpack.c.l.b16 %v5652
    %v6121 = vunpack.c.h.b16 %v5652
    %v6122 = vunpack.c.l.b16 %v5653
    %v6123 = vunpack.c.h.b16 %v5653
    %v6124 = vunpack.c.l.b16 %v5654
    %v6125 = vunpack.c.h.b16 %v5654
    %v6126 = vunpack.c.l.b16 %v5655
    %v6127 = vunpack.c.h.b16 %v5655
    %v6128 = vunpack.c.l.b16 %v5656
    %v6129 = vunpack.c.h.b16 %v5656
    %v6130 = vunpack.c.l.b16 %v5657
    %v6131 = vunpack.c.h.b16 %v5657
    %v6132 = vunpack.c.l.b16 %v5658
    %v6133 = vunpack.c.h.b16 %v5658
    %v6134 = vunpack.c.l.b16 %v5659
    %v6135 = vunpack.c.h.b16 %v5659
    %v6136 = vunpack.c.l.b16 %v5660
    %v6137 = vunpack.c.h.b16 %v5660
    %v6138 = vunpack.c.l.b16 %v5661
    %v6139 = vunpack.c.h.b16 %v5661
    %v6140 = vunpack.c.l.b16 %v5662
    %v6141 = vunpack.c.h.b16 %v5662
    %v6142 = vunpack.c.l.b16 %v5663
    %v6143 = vunpack.c.h.b16 %v5663
    %v6144 = vunpack.c.l.b16 %v5664
    %v6145 = vunpack.c.h.b16 %v5664
    %v6146 = vunpack.c.l.b16 %v5665
    %v6147 = vunpack.c.h.b16 %v5665
    %v6148 = vunpack.c.l.b16 %v5666
    %v6149 = vunpack.c.h.b16 %v5666
    %v6150 = vunpack.c.l.b16 %v5667
    %v6151 = vunpack.c.h.b16 %v5667
    %v6152 = vunpack.c.l.b16 %v5668
    %v6153 = vunpack.c.h.b16 %v5668
    %v6154 = vunpack.c.l.b16 %v5669
    %v6155 = vunpack.c.h.b16 %v5669
    %v6156 = vunpack.c.l.b16 %v5670
    %v6157 = vunpack.c.h.b16 %v5670
    %v6158 = vunpack.c.l.b16 %v5671
    %v6159 = vunpack.c.h.b16 %v5671
    %v6160 = vunpack.c.l.b16 %v5672
    %v6161 = vunpack.c.h.b16 %v5672
    %v6162 = vunpack.c.l.b16 %v5673
    %v6163 = vunpack.c.h.b16 %v5673
    %v6164 = vunpack.c.l.b16 %v5674
    %v6165 = vunpack.c.h.b16 %v5674
    %v6166 = vunpack.c.l.b16 %v5675
    %v6167 = vunpack.c.h.b16 %v5675
    %v6168 = vunpack.c.l.b16 %v5676
    %v6169 = vunpack.c.h.b16 %v5676
    %v6170 = vunpack.c.l.b16 %v5677
    %v6171 = vunpack.c.h.b16 %v5677
    %v6172 = vunpack.c.l.b16 %v5678
    %v6173 = vunpack.c.h.b16 %v5678
    %v6174 = vunpack.c.l.b16 %v5679
    %v6175 = vunpack.c.h.b16 %v5679
    %v6176 = vunpack.c.l.b16 %v5680
    %v6177 = vunpack.c.h.b16 %v5680
    %v6178 = vunpack.c.l.b16 %v5681
    %v6179 = vunpack.c.h.b16 %v5681
    %v6180 = vunpack.c.l.b16 %v5682
    %v6181 = vunpack.c.h.b16 %v5682
    %v6182 = vunpack.c.l.b16 %v5683
    %v6183 = vunpack.c.h.b16 %v5683
    %v6184 = vunpack.c.l.b16 %v5684
    %v6185 = vunpack.c.h.b16 %v5684
    %v6186 = vunpack.c.l.b16 %v5685
    %v6187 = vunpack.c.h.b16 %v5685
    %v6188 = vunpack.c.l.b16 %v5686
    %v6189 = vunpack.c.h.b16 %v5686
    %v6190 = vunpack.c.l.b16 %v5687
    %v6191 = vunpack.c.h.b16 %v5687
    %v6192 = vunpack.c.l.b16 %v5688
    %v6193 = vunpack.c.h.b16 %v5688
    %v6194 = vunpack.c.l.b16 %v5689
    %v6195 = vunpack.c.h.b16 %v5689
    %v6196 = vunpack.c.l.b16 %v5690
    %v6197 = vunpack.c.h.b16 %v5690
    %v6198 = vunpack.c.l.b16 %v5691
    %v6199 = vunpack.c.h.b16 %v5691
    %v6200 = vunpack.c.l.b16 %v5692
    %v6201 = vunpack.c.h.b16 %v5692
    %v6202 = vunpack.c.l.b16 %v5693
    %v6203 = vunpack.c.h.b16 %v5693
    %v6204 = vunpack.c.l.b16 %v5694
    %v6205 = vunpack.c.h.b16 %v5694
    %v6206 = vunpack.c.l.b16 %v5695
    %v6207 = vunpack.c.h.b16 %v5695
    %v6208 = vunpack.c.l.b16 %v5696
    %v6209 = vunpack.c.h.b16 %v5696
    %v6210 = vunpack.c.l.b16 %v5697
    %v6211 = vunpack.c.h.b16 %v5697
    %v6212 = vunpack.c.l.b16 %v5698
    %v6213 = vunpack.c.h.b16 %v5698
    %v6214 = vunpack.c.l.b16 %v5699
    %v6215 = vunpack.c.h.b16 %v5699
    %v6216 = vunpack.c.l.b16 %v5700
    %v6217 = vunpack.c.h.b16 %v5700
    %v6218 = vunpack.c.l.b16 %v5701
    %v6219 = vunpack.c.h.b16 %v5701
    %v6220 = vunpack.c.l.b16 %v5702
    %v6221 = vunpack.c.h.b16 %v5702
    %v6222 = vunpack.c.l.b16 %v5703
    %v6223 = vunpack.c.h.b16 %v5703
    %v6224 = vunpack.c.l.b16 %v5704
    %v6225 = vunpack.c.h.b16 %v5704
    %v6226 = vunpack.c.l.b16 %v5705
    %v6227 = vunpack.c.h.b16 %v5705
    %v6228 = vunpack.c.l.b16 %v5706
    %v6229 = vunpack.c.h.b16 %v5706
    %v6230 = vunpack.c.l.b16 %v5707
    %v6231 = vunpack.c.h.b16 %v5707
    %v6232 = vunpack.c.l.b16 %v5708
    %v6233 = vunpack.c.h.b16 %v5708
    %v6234 = vunpack.c.l.b16 %v5709
    %v6235 = vunpack.c.h.b16 %v5709
    %v6236 = vunpack.c.l.b16 %v5710
    %v6237 = vunpack.c.h.b16 %v5710
    %v6238 = vunpack.c.l.b16 %v5711
    %v6239 = vunpack.c.h.b16 %v5711
    %v6240 = vunpack.c.l.b16 %v5712
    %v6241 = vunpack.c.h.b16 %v5712
    %v6242 = vunpack.c.l.b16 %v5713
    %v6243 = vunpack.c.h.b16 %v5713
    %v6244 = vunpack.c.l.b16 %v5714
    %v6245 = vunpack.c.h.b16 %v5714
    %v6246 = vunpack.c.l.b16 %v5715
    %v6247 = vunpack.c.h.b16 %v5715
    %v6248 = vunpack.c.l.b16 %v5716
    %v6249 = vunpack.c.h.b16 %v5716
    %v6250 = vunpack.c.l.b16 %v5717
    %v6251 = vunpack.c.h.b16 %v5717
    %v6252 = vunpack.c.l.b16 %v5718
    %v6253 = vunpack.c.h.b16 %v5718
    %v6254 = vunpack.c.l.b16 %v5719
    %v6255 = vunpack.c.h.b16 %v5719
    %v6256 = vunpack.c.l.b16 %v5720
    %v6257 = vunpack.c.h.b16 %v5720
    %v6258 = vunpack.c.l.b16 %v5721
    %v6259 = vunpack.c.h.b16 %v5721
    %v6260 = vunpack.c.l.b16 %v5722
    %v6261 = vunpack.c.h.b16 %v5722
    %v6262 = vunpack.c.l.b16 %v5723
    %v6263 = vunpack.c.h.b16 %v5723
    %v6264 = vunpack.c.l.b16 %v5724
    %v6265 = vunpack.c.h.b16 %v5724
    %v6266 = vunpack.c.l.b16 %v5725
    %v6267 = vunpack.c.h.b16 %v5725
    %v6268 = vunpack.c.l.b16 %v5726
    %v6269 = vunpack.c.h.b16 %v5726
    %v6270 = vunpack.c.l.b16 %v5727
    %v6271 = vunpack.c.h.b16 %v5727
    %v6272 = vunpack.c.l.b16 %v5728
    %v6273 = vunpack.c.h.b16 %v5728
    %v6274 = vunpack.c.l.b16 %v5729
    %v6275 = vunpack.c.h.b16 %v5729
    %v6276 = vunpack.c.l.b16 %v5730
    %v6277 = vunpack.c.h.b16 %v5730
    %v6278 = vunpack.c.l.b16 %v5731
    %v6279 = vunpack.c.h.b16 %v5731
    %v6280 = vunpack.c.l.b16 %v5732
    %v6281 = vunpack.c.h.b16 %v5732
    %v6282 = vunpack.c.l.b16 %v5733
    %v6283 = vunpack.c.h.b16 %v5733
    %v6284 = vunpack.c.l.b16 %v5734
    %v6285 = vunpack.c.h.b16 %v5734
    %v6286 = vunpack.c.l.b16 %v5735
    %v6287 = vunpack.c.h.b16 %v5735
    %v6288 = vunpack.c.l.b16 %v5736
    %v6289 = vunpack.c.h.b16 %v5736
    %v6290 = vunpack.c.l.b16 %v5737
    %v6291 = vunpack.c.h.b16 %v5737
    %v6292 = vunpack.c.l.b16 %v5738
    %v6293 = vunpack.c.h.b16 %v5738
    %v6294 = vunpack.c.l.b16 %v5739
    %v6295 = vunpack.c.h.b16 %v5739
    %v6296 = vunpack.c.l.b16 %v5740
    %v6297 = vunpack.c.h.b16 %v5740
    %v6298 = vunpack.c.l.b16 %v5741
    %v6299 = vunpack.c.h.b16 %v5741
    %v6300 = vunpack.c.l.b16 %v5742
    %v6301 = vunpack.c.h.b16 %v5742
    %v6302 = vunpack.c.l.b16 %v5743
    %v6303 = vunpack.c.h.b16 %v5743
    %v6304 = vunpack.c.l.b16 %v5744
    %v6305 = vunpack.c.h.b16 %v5744
    %v6306 = vunpack.c.l.b16 %v5745
    %v6307 = vunpack.c.h.b16 %v5745
    %v6308 = vunpack.c.l.b16 %v5746
    %v6309 = vunpack.c.h.b16 %v5746
    %v6310 = vunpack.c.l.b16 %v5747
    %v6311 = vunpack.c.h.b16 %v5747
    %v6312 = vpack.c.b16 %v6074, %v6072
    %v6313 = vpack.c.b16 %v6075, %v6073
    %v6314 = vpack.c.b16 %v6078, %v6076
    %v6315 = vpack.c.b16 %v6079, %v6077
    %v6316 = vpack.c.b16 %v6082, %v6080
    %v6317 = vpack.c.b16 %v6083, %v6081
    %v6318 = vpack.c.b16 %v6086, %v6084
    %v6319 = vpack.c.b16 %v6087, %v6085
    %v6320 = vpack.c.b16 %v6090, %v6088
    %v6321 = vpack.c.b16 %v6091, %v6089
    %v6322 = vpack.c.b16 %v6094, %v6092
    %v6323 = vpack.c.b16 %v6095, %v6093
    %v6324 = vpack.c.b16 %v6098, %v6096
    %v6325 = vpack.c.b16 %v6099, %v6097
    %v6326 = vpack.c.b16 %v6102, %v6100
    %v6327 = vpack.c.b16 %v6103, %v6101
    %v6328 = vpack.c.b16 %v6106, %v6104
    %v6329 = vpack.c.b16 %v6107, %v6105
    %v6330 = vpack.c.b16 %v6110, %v6108
    %v6331 = vpack.c.b16 %v6111, %v6109
    %v6332 = vpack.c.b16 %v6114, %v6112
    %v6333 = vpack.c.b16 %v6115, %v6113
    %v6334 = vpack.c.b16 %v6118, %v6116
    %v6335 = vpack.c.b16 %v6119, %v6117
    %v6336 = vpack.c.b16 %v6122, %v6120
    %v6337 = vpack.c.b16 %v6123, %v6121
    %v6338 = vpack.c.b16 %v6126, %v6124
    %v6339 = vpack.c.b16 %v6127, %v6125
    %v6340 = vpack.c.b16 %v6130, %v6128
    %v6341 = vpack.c.b16 %v6131, %v6129
    %v6342 = vpack.c.b16 %v6134, %v6132
    %v6343 = vpack.c.b16 %v6135, %v6133
    %v6344 = vpack.c.b16 %v6138, %v6136
    %v6345 = vpack.c.b16 %v6139, %v6137
    %v6346 = vpack.c.b16 %v6142, %v6140
    %v6347 = vpack.c.b16 %v6143, %v6141
    %v6348 = vpack.c.b16 %v6146, %v6144
    %v6349 = vpack.c.b16 %v6147, %v6145
    %v6350 = vpack.c.b16 %v6150, %v6148
    %v6351 = vpack.c.b16 %v6151, %v6149
    %v6352 = vpack.c.b16 %v6154, %v6152
    %v6353 = vpack.c.b16 %v6155, %v6153
    %v6354 = vpack.c.b16 %v6158, %v6156
    %v6355 = vpack.c.b16 %v6159, %v6157
    %v6356 = vpack.c.b16 %v6162, %v6160
    %v6357 = vpack.c.b16 %v6163, %v6161
    %v6358 = vpack.c.b16 %v6166, %v6164
    %v6359 = vpack.c.b16 %v6167, %v6165
    %v6360 = vpack.c.b16 %v6170, %v6168
    %v6361 = vpack.c.b16 %v6171, %v6169
    %v6362 = vpack.c.b16 %v6174, %v6172
    %v6363 = vpack.c.b16 %v6175, %v6173
    %v6364 = vpack.c.b16 %v6178, %v6176
    %v6365 = vpack.c.b16 %v6179, %v6177
    %v6366 = vpack.c.b16 %v6182, %v6180
    %v6367 = vpack.c.b16 %v6183, %v6181
    %v6368 = vpack.c.b16 %v6186, %v6184
    %v6369 = vpack.c.b16 %v6187, %v6185
    %v6370 = vpack.c.b16 %v6190, %v6188
    %v6371 = vpack.c.b16 %v6191, %v6189
    %v6372 = vpack.c.b16 %v6194, %v6192
    %v6373 = vpack.c.b16 %v6195, %v6193
    %v6374 = vpack.c.b16 %v6198, %v6196
    %v6375 = vpack.c.b16 %v6199, %v6197
    %v6376 = vpack.c.b16 %v6202, %v6200
    %v6377 = vpack.c.b16 %v6203, %v6201
    %v6378 = vpack.c.b16 %v6206, %v6204
    %v6379 = vpack.c.b16 %v6207, %v6205
    %v6380 = vpack.c.b16 %v6210, %v6208
    %v6381 = vpack.c.b16 %v6211, %v6209
    %v6382 = vpack.c.b16 %v6214, %v6212
    %v6383 = vpack.c.b16 %v6215, %v6213
    %v6384 = vpack.c.b16 %v6218, %v6216
    %v6385 = vpack.c.b16 %v6219, %v6217
    %v6386 = vpack.c.b16 %v6222, %v6220
    %v6387 = vpack.c.b16 %v6223, %v6221
    %v6388 = vpack.c.b16 %v6226, %v6224
    %v6389 = vpack.c.b16 %v6227, %v6225
    %v6390 = vpack.c.b16 %v6230, %v6228
    %v6391 = vpack.c.b16 %v6231, %v6229
    %v6392 = vpack.c.b16 %v6234, %v6232
    %v6393 = vpack.c.b16 %v6235, %v6233
    %v6394 = vpack.c.b16 %v6238, %v6236
    %v6395 = vpack.c.b16 %v6239, %v6237
    %v6396 = vpack.c.b16 %v6242, %v6240
    %v6397 = vpack.c.b16 %v6243, %v6241
    %v6398 = vpack.c.b16 %v6246, %v6244
    %v6399 = vpack.c.b16 %v6247, %v6245
    %v6400 = vpack.c.b16 %v6250, %v6248
    %v6401 = vpack.c.b16 %v6251, %v6249
    %v6402 = vpack.c.b16 %v6254, %v6252
    %v6403 = vpack.c.b16 %v6255, %v6253
    %v6404 = vpack.c.b16 %v6258, %v6256
    %v6405 = vpack.c.b16 %v6259, %v6257
    %v6406 = vpack.c.b16 %v6262, %v6260
    %v6407 = vpack.c.b16 %v6263, %v6261
    %v6408 = vpack.c.b16 %v6266, %v6264
    %v6409 = vpack.c.b16 %v6267, %v6265
    %v6410 = vpack.c.b16 %v6270, %v6268
    %v6411 = vpack.c.b16 %v6271, %v6269
    %v6412 = vpack.c.b16 %v6274, %v6272
    %v6413 = vpack.c.b16 %v6275, %v6273
    %v6414 = vpack.c.b16 %v6278, %v6276
    %v6415 = vpack.c.b16 %v6279, %v6277
    %v6416 = vpack.c.b16 %v6282, %v6280
    %v6417 = vpack.c.b16 %v6283, %v6281
    %v6418 = vpack.c.b16 %v6286, %v6284
    %v6419 = vpack.c.b16 %v6287, %v6285
    %v6420 = vpack.c.b16 %v6290, %v6288
    %v6421 = vpack.c.b16 %v6291, %v6289
    %v6422 = vpack.c.b16 %v6294, %v6292
    %v6423 = vpack.c.b16 %v6295, %v6293
    %v6424 = vpack.c.b16 %v6298, %v6296
    %v6425 = vpack.c.b16 %v6299, %v6297
    %v6426 = vpack.c.b16 %v6302, %v6300
    %v6427 = vpack.c.b16 %v6303, %v6301
    %v6428 = vpack.c.b16 %v6306, %v6304
    %v6429 = vpack.c.b16 %v6307, %v6305
    %v6430 = vpack.c.b16 %v6310, %v6308
    %v6431 = vpack.c.b16 %v6311, %v6309
    %v6553 = vsel %vm3366, %v5899, 0
    %v6556 = vsel %vm3366, %v5907, 0
    %v6559 = vsel %vm3366, %v5915, 0
    %v6562 = vsel %vm3366, %v5923, 0
    %6564 = vmatpush.bf16.msra.mxu0 %v6326
    %6565 = vmatpush.bf16.msra.mxu0 %v6324
    %6566 = vmatpush.bf16.msra.mxu0 %v6322
    %6567 = vmatpush.bf16.msra.mxu0 %v6320
    %6568 = vmatpush.bf16.msra.mxu0 %v6318
    %6569 = vmatpush.bf16.msra.mxu0 %v6316
    %6570 = vmatpush.bf16.msra.mxu0 %v6314
    %6571 = vmatpush.bf16.msra.mxu0 %v6312
    %6572 = vmatmul.bf16.gmra.mxu0 %v5892
    %v6573 = vpop.f32.mrf.mxu0
    %v6574 = vadd.f32 %v5759, %v6573
    %v6575 = vpop.f32.mrf.mxu0
    %v6576 = vadd.f32 %v5764, %v6575
    %6577 = vmatmul.bf16.gmra.mxu0 %v5900
    %v6578 = vpop.f32.mrf.mxu0
    %v6579 = vadd.f32 %v5769, %v6578
    %v6580 = vpop.f32.mrf.mxu0
    %v6581 = vadd.f32 %v5774, %v6580
    %6582 = vmatmul.bf16.gmra.mxu0 %v5908
    %v6583 = vpop.f32.mrf.mxu0
    %v6584 = vadd.f32 %v5779, %v6583
    %v6585 = vpop.f32.mrf.mxu0
    %v6586 = vadd.f32 %v5784, %v6585
    %6587 = vmatmul.bf16.gmra.mxu0 %v5916
    %v6588 = vpop.f32.mrf.mxu0
    %v6589 = vadd.f32 %v5789, %v6588
    %v6590 = vpop.f32.mrf.mxu0
    %v6591 = vadd.f32 %v5794, %v6590
    %6592 = vdwg.mxu0
    %6593 = vmatpush.bf16.msra.mxu0 %v6342
    %6594 = vmatpush.bf16.msra.mxu0 %v6340
    %6595 = vmatpush.bf16.msra.mxu0 %v6338
    %6596 = vmatpush.bf16.msra.mxu0 %v6336
    %6597 = vmatpush.bf16.msra.mxu0 %v6334
    %6598 = vmatpush.bf16.msra.mxu0 %v6332
    %6599 = vmatpush.bf16.msra.mxu0 %v6330
    %6600 = vmatpush.bf16.msra.mxu0 %v6328
    %6601 = vmatmul.bf16.gmra.mxu0 %v5893
    %v6602 = vpop.f32.mrf.mxu0
    %v6603 = vadd.f32 %v6574, %v6602
    %v6604 = vpop.f32.mrf.mxu0
    %v6605 = vadd.f32 %v6576, %v6604
    %6606 = vmatmul.bf16.gmra.mxu0 %v5901
    %v6607 = vpop.f32.mrf.mxu0
    %v6608 = vadd.f32 %v6579, %v6607
    %v6609 = vpop.f32.mrf.mxu0
    %v6610 = vadd.f32 %v6581, %v6609
    %6611 = vmatmul.bf16.gmra.mxu0 %v5909
    %v6612 = vpop.f32.mrf.mxu0
    %v6613 = vadd.f32 %v6584, %v6612
    %v6614 = vpop.f32.mrf.mxu0
    %v6615 = vadd.f32 %v6586, %v6614
    %6616 = vmatmul.bf16.gmra.mxu0 %v5917
    %v6617 = vpop.f32.mrf.mxu0
    %v6618 = vadd.f32 %v6589, %v6617
    %v6619 = vpop.f32.mrf.mxu0
    %v6620 = vadd.f32 %v6591, %v6619
    %6621 = vdwg.mxu0
    %6622 = vmatpush.bf16.msra.mxu0 %v6358
    %6623 = vmatpush.bf16.msra.mxu0 %v6356
    %6624 = vmatpush.bf16.msra.mxu0 %v6354
    %6625 = vmatpush.bf16.msra.mxu0 %v6352
    %6626 = vmatpush.bf16.msra.mxu0 %v6350
    %6627 = vmatpush.bf16.msra.mxu0 %v6348
    %6628 = vmatpush.bf16.msra.mxu0 %v6346
    %6629 = vmatpush.bf16.msra.mxu0 %v6344
    %6630 = vmatmul.bf16.gmra.mxu0 %v5894
    %v6631 = vpop.f32.mrf.mxu0
    %v6632 = vadd.f32 %v6603, %v6631
    %v6633 = vpop.f32.mrf.mxu0
    %v6634 = vadd.f32 %v6605, %v6633
    %6635 = vmatmul.bf16.gmra.mxu0 %v5902
    %v6636 = vpop.f32.mrf.mxu0
    %v6637 = vadd.f32 %v6608, %v6636
    %v6638 = vpop.f32.mrf.mxu0
    %v6639 = vadd.f32 %v6610, %v6638
    %6640 = vmatmul.bf16.gmra.mxu0 %v5910
    %v6641 = vpop.f32.mrf.mxu0
    %v6642 = vadd.f32 %v6613, %v6641
    %v6643 = vpop.f32.mrf.mxu0
    %v6644 = vadd.f32 %v6615, %v6643
    %6645 = vmatmul.bf16.gmra.mxu0 %v5918
    %v6646 = vpop.f32.mrf.mxu0
    %v6647 = vadd.f32 %v6618, %v6646
    %v6648 = vpop.f32.mrf.mxu0
    %v6649 = vadd.f32 %v6620, %v6648
    %6650 = vdwg.mxu0
    %6651 = vmatpush.bf16.msra.mxu0 %v6374
    %6652 = vmatpush.bf16.msra.mxu0 %v6372
    %6653 = vmatpush.bf16.msra.mxu0 %v6370
    %6654 = vmatpush.bf16.msra.mxu0 %v6368
    %6655 = vmatpush.bf16.msra.mxu0 %v6366
    %6656 = vmatpush.bf16.msra.mxu0 %v6364
    %6657 = vmatpush.bf16.msra.mxu0 %v6362
    %6658 = vmatpush.bf16.msra.mxu0 %v6360
    %6659 = vmatmul.bf16.gmra.mxu0 %v5895
    %v6660 = vpop.f32.mrf.mxu0
    %v6661 = vadd.f32 %v6632, %v6660
    %v6662 = vpop.f32.mrf.mxu0
    %v6663 = vadd.f32 %v6634, %v6662
    %6664 = vmatmul.bf16.gmra.mxu0 %v5903
    %v6665 = vpop.f32.mrf.mxu0
    %v6666 = vadd.f32 %v6637, %v6665
    %v6667 = vpop.f32.mrf.mxu0
    %v6668 = vadd.f32 %v6639, %v6667
    %6669 = vmatmul.bf16.gmra.mxu0 %v5911
    %v6670 = vpop.f32.mrf.mxu0
    %v6671 = vadd.f32 %v6642, %v6670
    %v6672 = vpop.f32.mrf.mxu0
    %v6673 = vadd.f32 %v6644, %v6672
    %6674 = vmatmul.bf16.gmra.mxu0 %v5919
    %v6675 = vpop.f32.mrf.mxu0
    %v6676 = vadd.f32 %v6647, %v6675
    %v6677 = vpop.f32.mrf.mxu0
    %v6678 = vadd.f32 %v6649, %v6677
    %6679 = vdwg.mxu0
    %6680 = vmatpush.bf16.msra.mxu0 %v6390
    %6681 = vmatpush.bf16.msra.mxu0 %v6388
    %6682 = vmatpush.bf16.msra.mxu0 %v6386
    %6683 = vmatpush.bf16.msra.mxu0 %v6384
    %6684 = vmatpush.bf16.msra.mxu0 %v6382
    %6685 = vmatpush.bf16.msra.mxu0 %v6380
    %6686 = vmatpush.bf16.msra.mxu0 %v6378
    %6687 = vmatpush.bf16.msra.mxu0 %v6376
    %6688 = vmatmul.bf16.gmra.mxu0 %v5896
    %v6689 = vpop.f32.mrf.mxu0
    %v6690 = vadd.f32 %v6661, %v6689
    %v6691 = vpop.f32.mrf.mxu0
    %v6692 = vadd.f32 %v6663, %v6691
    %6693 = vmatmul.bf16.gmra.mxu0 %v5904
    %v6694 = vpop.f32.mrf.mxu0
    %v6695 = vadd.f32 %v6666, %v6694
    %v6696 = vpop.f32.mrf.mxu0
    %v6697 = vadd.f32 %v6668, %v6696
    %6698 = vmatmul.bf16.gmra.mxu0 %v5912
    %v6699 = vpop.f32.mrf.mxu0
    %v6700 = vadd.f32 %v6671, %v6699
    %v6701 = vpop.f32.mrf.mxu0
    %v6702 = vadd.f32 %v6673, %v6701
    %6703 = vmatmul.bf16.gmra.mxu0 %v5920
    %v6704 = vpop.f32.mrf.mxu0
    %v6705 = vadd.f32 %v6676, %v6704
    %v6706 = vpop.f32.mrf.mxu0
    %v6707 = vadd.f32 %v6678, %v6706
    %6708 = vdwg.mxu0
    %6709 = vmatpush.bf16.msra.mxu0 %v6406
    %6710 = vmatpush.bf16.msra.mxu0 %v6404
    %6711 = vmatpush.bf16.msra.mxu0 %v6402
    %6712 = vmatpush.bf16.msra.mxu0 %v6400
    %6713 = vmatpush.bf16.msra.mxu0 %v6398
    %6714 = vmatpush.bf16.msra.mxu0 %v6396
    %6715 = vmatpush.bf16.msra.mxu0 %v6394
    %6716 = vmatpush.bf16.msra.mxu0 %v6392
    %6717 = vmatmul.bf16.gmra.mxu0 %v5897
    %v6718 = vpop.f32.mrf.mxu0
    %v6719 = vadd.f32 %v6690, %v6718
    %v6720 = vpop.f32.mrf.mxu0
    %v6721 = vadd.f32 %v6692, %v6720
    %6722 = vmatmul.bf16.gmra.mxu0 %v5905
    %v6723 = vpop.f32.mrf.mxu0
    %v6724 = vadd.f32 %v6695, %v6723
    %v6725 = vpop.f32.mrf.mxu0
    %v6726 = vadd.f32 %v6697, %v6725
    %6727 = vmatmul.bf16.gmra.mxu0 %v5913
    %v6728 = vpop.f32.mrf.mxu0
    %v6729 = vadd.f32 %v6700, %v6728
    %v6730 = vpop.f32.mrf.mxu0
    %v6731 = vadd.f32 %v6702, %v6730
    %6732 = vmatmul.bf16.gmra.mxu0 %v5921
    %v6733 = vpop.f32.mrf.mxu0
    %v6734 = vadd.f32 %v6705, %v6733
    %v6735 = vpop.f32.mrf.mxu0
    %v6736 = vadd.f32 %v6707, %v6735
    %6737 = vdwg.mxu0
    %6738 = vmatpush.bf16.msra.mxu0 %v6422
    %6739 = vmatpush.bf16.msra.mxu0 %v6420
    %6740 = vmatpush.bf16.msra.mxu0 %v6418
    %6741 = vmatpush.bf16.msra.mxu0 %v6416
    %6742 = vmatpush.bf16.msra.mxu0 %v6414
    %6743 = vmatpush.bf16.msra.mxu0 %v6412
    %6744 = vmatpush.bf16.msra.mxu0 %v6410
    %6745 = vmatpush.bf16.msra.mxu0 %v6408
    %6746 = vmatmul.bf16.gmra.mxu0 %v5898
    %v6747 = vpop.f32.mrf.mxu0
    %v6748 = vadd.f32 %v6719, %v6747
    %v6749 = vpop.f32.mrf.mxu0
    %v6750 = vadd.f32 %v6721, %v6749
    %6751 = vmatmul.bf16.gmra.mxu0 %v5906
    %v6752 = vpop.f32.mrf.mxu0
    %v6753 = vadd.f32 %v6724, %v6752
    %v6754 = vpop.f32.mrf.mxu0
    %v6755 = vadd.f32 %v6726, %v6754
    %6756 = vmatmul.bf16.gmra.mxu0 %v5914
    %v6757 = vpop.f32.mrf.mxu0
    %v6758 = vadd.f32 %v6729, %v6757
    %v6759 = vpop.f32.mrf.mxu0
    %v6760 = vadd.f32 %v6731, %v6759
    %6761 = vmatmul.bf16.gmra.mxu0 %v5922
    %v6762 = vpop.f32.mrf.mxu0
    %v6763 = vadd.f32 %v6734, %v6762
    %v6764 = vpop.f32.mrf.mxu0
    %v6765 = vadd.f32 %v6736, %v6764
    %6766 = vdwg.mxu0
    %6767 = vmatpush.bf16.msra.mxu0 0
    %6768 = vmatpush.bf16.msra.mxu0 0
    %6769 = vmatpush.bf16.msra.mxu0 0
    %6770 = vmatpush.bf16.msra.mxu0 0
    %6771 = vmatpush.bf16.msra.mxu0 %v6430
    %6772 = vmatpush.bf16.msra.mxu0 %v6428
    %6773 = vmatpush.bf16.msra.mxu0 %v6426
    %6774 = vmatpush.bf16.msra.mxu0 %v6424
    %6775 = vmatmul.bf16.gmra.mxu0 %v6553
    %v6776 = vpop.f32.mrf.mxu0
    %v6777 = vadd.f32 %v6748, %v6776
    %v6778 = vpop.f32.mrf.mxu0
    %v6779 = vadd.f32 %v6750, %v6778
    %6780 = vmatmul.bf16.gmra.mxu0 %v6556
    %v6781 = vpop.f32.mrf.mxu0
    %v6782 = vadd.f32 %v6753, %v6781
    %v6783 = vpop.f32.mrf.mxu0
    %v6784 = vadd.f32 %v6755, %v6783
    %6785 = vmatmul.bf16.gmra.mxu0 %v6559
    %v6786 = vpop.f32.mrf.mxu0
    %v6787 = vadd.f32 %v6758, %v6786
    %v6788 = vpop.f32.mrf.mxu0
    %v6789 = vadd.f32 %v6760, %v6788
    %6790 = vmatmul.bf16.gmra.mxu0 %v6562
    %v6791 = vpop.f32.mrf.mxu0
    %v6792 = vadd.f32 %v6763, %v6791
    %v6793 = vpop.f32.mrf.mxu0
    %v6794 = vadd.f32 %v6765, %v6793
    %6795 = vdwg.mxu0
    %6796 = vmatpush.bf16.msra.mxu0 %v6327
    %6797 = vmatpush.bf16.msra.mxu0 %v6325
    %6798 = vmatpush.bf16.msra.mxu0 %v6323
    %6799 = vmatpush.bf16.msra.mxu0 %v6321
    %6800 = vmatpush.bf16.msra.mxu0 %v6319
    %6801 = vmatpush.bf16.msra.mxu0 %v6317
    %6802 = vmatpush.bf16.msra.mxu0 %v6315
    %6803 = vmatpush.bf16.msra.mxu0 %v6313
    %6804 = vmatmul.bf16.gmra.mxu0 %v5892
    %v6805 = vpop.f32.mrf.mxu0
    %v6806 = vadd.f32 %v5759, %v6805
    %v6807 = vpop.f32.mrf.mxu0
    %v6808 = vadd.f32 %v5764, %v6807
    %6809 = vmatmul.bf16.gmra.mxu0 %v5900
    %v6810 = vpop.f32.mrf.mxu0
    %v6811 = vadd.f32 %v5769, %v6810
    %v6812 = vpop.f32.mrf.mxu0
    %v6813 = vadd.f32 %v5774, %v6812
    %6814 = vmatmul.bf16.gmra.mxu0 %v5908
    %v6815 = vpop.f32.mrf.mxu0
    %v6816 = vadd.f32 %v5779, %v6815
    %v6817 = vpop.f32.mrf.mxu0
    %v6818 = vadd.f32 %v5784, %v6817
    %6819 = vmatmul.bf16.gmra.mxu0 %v5916
    %v6820 = vpop.f32.mrf.mxu0
    %v6821 = vadd.f32 %v5789, %v6820
    %v6822 = vpop.f32.mrf.mxu0
    %v6823 = vadd.f32 %v5794, %v6822
    %6824 = vdwg.mxu0
    %6825 = vmatpush.bf16.msra.mxu0 %v6343
    %6826 = vmatpush.bf16.msra.mxu0 %v6341
    %6827 = vmatpush.bf16.msra.mxu0 %v6339
    %6828 = vmatpush.bf16.msra.mxu0 %v6337
    %6829 = vmatpush.bf16.msra.mxu0 %v6335
    %6830 = vmatpush.bf16.msra.mxu0 %v6333
    %6831 = vmatpush.bf16.msra.mxu0 %v6331
    %6832 = vmatpush.bf16.msra.mxu0 %v6329
    %6833 = vmatmul.bf16.gmra.mxu0 %v5893
    %v6834 = vpop.f32.mrf.mxu0
    %v6835 = vadd.f32 %v6806, %v6834
    %v6836 = vpop.f32.mrf.mxu0
    %v6837 = vadd.f32 %v6808, %v6836
    %6838 = vmatmul.bf16.gmra.mxu0 %v5901
    %v6839 = vpop.f32.mrf.mxu0
    %v6840 = vadd.f32 %v6811, %v6839
    %v6841 = vpop.f32.mrf.mxu0
    %v6842 = vadd.f32 %v6813, %v6841
    %6843 = vmatmul.bf16.gmra.mxu0 %v5909
    %v6844 = vpop.f32.mrf.mxu0
    %v6845 = vadd.f32 %v6816, %v6844
    %v6846 = vpop.f32.mrf.mxu0
    %v6847 = vadd.f32 %v6818, %v6846
    %6848 = vmatmul.bf16.gmra.mxu0 %v5917
    %v6849 = vpop.f32.mrf.mxu0
    %v6850 = vadd.f32 %v6821, %v6849
    %v6851 = vpop.f32.mrf.mxu0
    %v6852 = vadd.f32 %v6823, %v6851
    %6853 = vdwg.mxu0
    %6854 = vmatpush.bf16.msra.mxu0 %v6359
    %6855 = vmatpush.bf16.msra.mxu0 %v6357
    %6856 = vmatpush.bf16.msra.mxu0 %v6355
    %6857 = vmatpush.bf16.msra.mxu0 %v6353
    %6858 = vmatpush.bf16.msra.mxu0 %v6351
    %6859 = vmatpush.bf16.msra.mxu0 %v6349
    %6860 = vmatpush.bf16.msra.mxu0 %v6347
    %6861 = vmatpush.bf16.msra.mxu0 %v6345
    %6862 = vmatmul.bf16.gmra.mxu0 %v5894
    %v6863 = vpop.f32.mrf.mxu0
    %v6864 = vadd.f32 %v6835, %v6863
    %v6865 = vpop.f32.mrf.mxu0
    %v6866 = vadd.f32 %v6837, %v6865
    %6867 = vmatmul.bf16.gmra.mxu0 %v5902
    %v6868 = vpop.f32.mrf.mxu0
    %v6869 = vadd.f32 %v6840, %v6868
    %v6870 = vpop.f32.mrf.mxu0
    %v6871 = vadd.f32 %v6842, %v6870
    %6872 = vmatmul.bf16.gmra.mxu0 %v5910
    %v6873 = vpop.f32.mrf.mxu0
    %v6874 = vadd.f32 %v6845, %v6873
    %v6875 = vpop.f32.mrf.mxu0
    %v6876 = vadd.f32 %v6847, %v6875
    %6877 = vmatmul.bf16.gmra.mxu0 %v5918
    %v6878 = vpop.f32.mrf.mxu0
    %v6879 = vadd.f32 %v6850, %v6878
    %v6880 = vpop.f32.mrf.mxu0
    %v6881 = vadd.f32 %v6852, %v6880
    %6882 = vdwg.mxu0
    %6883 = vmatpush.bf16.msra.mxu0 %v6375
    %6884 = vmatpush.bf16.msra.mxu0 %v6373
    %6885 = vmatpush.bf16.msra.mxu0 %v6371
    %6886 = vmatpush.bf16.msra.mxu0 %v6369
    %6887 = vmatpush.bf16.msra.mxu0 %v6367
    %6888 = vmatpush.bf16.msra.mxu0 %v6365
    %6889 = vmatpush.bf16.msra.mxu0 %v6363
    %6890 = vmatpush.bf16.msra.mxu0 %v6361
    %6891 = vmatmul.bf16.gmra.mxu0 %v5895
    %v6892 = vpop.f32.mrf.mxu0
    %v6893 = vadd.f32 %v6864, %v6892
    %v6894 = vpop.f32.mrf.mxu0
    %v6895 = vadd.f32 %v6866, %v6894
    %6896 = vmatmul.bf16.gmra.mxu0 %v5903
    %v6897 = vpop.f32.mrf.mxu0
    %v6898 = vadd.f32 %v6869, %v6897
    %v6899 = vpop.f32.mrf.mxu0
    %v6900 = vadd.f32 %v6871, %v6899
    %6901 = vmatmul.bf16.gmra.mxu0 %v5911
    %v6902 = vpop.f32.mrf.mxu0
    %v6903 = vadd.f32 %v6874, %v6902
    %v6904 = vpop.f32.mrf.mxu0
    %v6905 = vadd.f32 %v6876, %v6904
    %6906 = vmatmul.bf16.gmra.mxu0 %v5919
    %v6907 = vpop.f32.mrf.mxu0
    %v6908 = vadd.f32 %v6879, %v6907
    %v6909 = vpop.f32.mrf.mxu0
    %v6910 = vadd.f32 %v6881, %v6909
    %6911 = vdwg.mxu0
    %6912 = vmatpush.bf16.msra.mxu0 %v6391
    %6913 = vmatpush.bf16.msra.mxu0 %v6389
    %6914 = vmatpush.bf16.msra.mxu0 %v6387
    %6915 = vmatpush.bf16.msra.mxu0 %v6385
    %6916 = vmatpush.bf16.msra.mxu0 %v6383
    %6917 = vmatpush.bf16.msra.mxu0 %v6381
    %6918 = vmatpush.bf16.msra.mxu0 %v6379
    %6919 = vmatpush.bf16.msra.mxu0 %v6377
    %6920 = vmatmul.bf16.gmra.mxu0 %v5896
    %v6921 = vpop.f32.mrf.mxu0
    %v6922 = vadd.f32 %v6893, %v6921
    %v6923 = vpop.f32.mrf.mxu0
    %v6924 = vadd.f32 %v6895, %v6923
    %6925 = vmatmul.bf16.gmra.mxu0 %v5904
    %v6926 = vpop.f32.mrf.mxu0
    %v6927 = vadd.f32 %v6898, %v6926
    %v6928 = vpop.f32.mrf.mxu0
    %v6929 = vadd.f32 %v6900, %v6928
    %6930 = vmatmul.bf16.gmra.mxu0 %v5912
    %v6931 = vpop.f32.mrf.mxu0
    %v6932 = vadd.f32 %v6903, %v6931
    %v6933 = vpop.f32.mrf.mxu0
    %v6934 = vadd.f32 %v6905, %v6933
    %6935 = vmatmul.bf16.gmra.mxu0 %v5920
    %v6936 = vpop.f32.mrf.mxu0
    %v6937 = vadd.f32 %v6908, %v6936
    %v6938 = vpop.f32.mrf.mxu0
    %v6939 = vadd.f32 %v6910, %v6938
    %6940 = vdwg.mxu0
    %6941 = vmatpush.bf16.msra.mxu0 %v6407
    %6942 = vmatpush.bf16.msra.mxu0 %v6405
    %6943 = vmatpush.bf16.msra.mxu0 %v6403
    %6944 = vmatpush.bf16.msra.mxu0 %v6401
    %6945 = vmatpush.bf16.msra.mxu0 %v6399
    %6946 = vmatpush.bf16.msra.mxu0 %v6397
    %6947 = vmatpush.bf16.msra.mxu0 %v6395
    %6948 = vmatpush.bf16.msra.mxu0 %v6393
    %6949 = vmatmul.bf16.gmra.mxu0 %v5897
    %v6950 = vpop.f32.mrf.mxu0
    %v6951 = vadd.f32 %v6922, %v6950
    %v6952 = vpop.f32.mrf.mxu0
    %v6953 = vadd.f32 %v6924, %v6952
    %6954 = vmatmul.bf16.gmra.mxu0 %v5905
    %v6955 = vpop.f32.mrf.mxu0
    %v6956 = vadd.f32 %v6927, %v6955
    %v6957 = vpop.f32.mrf.mxu0
    %v6958 = vadd.f32 %v6929, %v6957
    %6959 = vmatmul.bf16.gmra.mxu0 %v5913
    %v6960 = vpop.f32.mrf.mxu0
    %v6961 = vadd.f32 %v6932, %v6960
    %v6962 = vpop.f32.mrf.mxu0
    %v6963 = vadd.f32 %v6934, %v6962
    %6964 = vmatmul.bf16.gmra.mxu0 %v5921
    %v6965 = vpop.f32.mrf.mxu0
    %v6966 = vadd.f32 %v6937, %v6965
    %v6967 = vpop.f32.mrf.mxu0
    %v6968 = vadd.f32 %v6939, %v6967
    %6969 = vdwg.mxu0
    %6970 = vmatpush.bf16.msra.mxu0 %v6423
    %6971 = vmatpush.bf16.msra.mxu0 %v6421
    %6972 = vmatpush.bf16.msra.mxu0 %v6419
    %6973 = vmatpush.bf16.msra.mxu0 %v6417
    %6974 = vmatpush.bf16.msra.mxu0 %v6415
    %6975 = vmatpush.bf16.msra.mxu0 %v6413
    %6976 = vmatpush.bf16.msra.mxu0 %v6411
    %6977 = vmatpush.bf16.msra.mxu0 %v6409
    %6978 = vmatmul.bf16.gmra.mxu0 %v5898
    %v6979 = vpop.f32.mrf.mxu0
    %v6980 = vadd.f32 %v6951, %v6979
    %v6981 = vpop.f32.mrf.mxu0
    %v6982 = vadd.f32 %v6953, %v6981
    %6983 = vmatmul.bf16.gmra.mxu0 %v5906
    %v6984 = vpop.f32.mrf.mxu0
    %v6985 = vadd.f32 %v6956, %v6984
    %v6986 = vpop.f32.mrf.mxu0
    %v6987 = vadd.f32 %v6958, %v6986
    %6988 = vmatmul.bf16.gmra.mxu0 %v5914
    %v6989 = vpop.f32.mrf.mxu0
    %v6990 = vadd.f32 %v6961, %v6989
    %v6991 = vpop.f32.mrf.mxu0
    %v6992 = vadd.f32 %v6963, %v6991
    %6993 = vmatmul.bf16.gmra.mxu0 %v5922
    %v6994 = vpop.f32.mrf.mxu0
    %v6995 = vadd.f32 %v6966, %v6994
    %v6996 = vpop.f32.mrf.mxu0
    %v6997 = vadd.f32 %v6968, %v6996
    %6998 = vdwg.mxu0
    %6999 = vmatpush.bf16.msra.mxu0 0
    %7000 = vmatpush.bf16.msra.mxu0 0
    %7001 = vmatpush.bf16.msra.mxu0 0
    %7002 = vmatpush.bf16.msra.mxu0 0
    %7003 = vmatpush.bf16.msra.mxu0 %v6431
    %7004 = vmatpush.bf16.msra.mxu0 %v6429
    %7005 = vmatpush.bf16.msra.mxu0 %v6427
    %7006 = vmatpush.bf16.msra.mxu0 %v6425
    %7007 = vmatmul.bf16.gmra.mxu0 %v6553
    %v7008 = vpop.f32.mrf.mxu0
    %v7009 = vadd.f32 %v6980, %v7008
    %v7010 = vpop.f32.mrf.mxu0
    %v7011 = vadd.f32 %v6982, %v7010
    %7012 = vmatmul.bf16.gmra.mxu0 %v6556
    %v7013 = vpop.f32.mrf.mxu0
    %v7014 = vadd.f32 %v6985, %v7013
    %v7015 = vpop.f32.mrf.mxu0
    %v7016 = vadd.f32 %v6987, %v7015
    %7017 = vmatmul.bf16.gmra.mxu0 %v6559
    %v7018 = vpop.f32.mrf.mxu0
    %v7019 = vadd.f32 %v6990, %v7018
    %v7020 = vpop.f32.mrf.mxu0
    %v7021 = vadd.f32 %v6992, %v7020
    %7022 = vmatmul.bf16.gmra.mxu0 %v6562
    %v7023 = vpop.f32.mrf.mxu0
    %v7024 = vadd.f32 %v6995, %v7023
    %v7025 = vpop.f32.mrf.mxu0
    %v7026 = vadd.f32 %v6997, %v7025
    %7027 = vdwg.mxu0
    %vm7028 = vcmp.gt.f32.partialorder %v6777, 0.0
    %vm7029 = vcmp.gt.f32.partialorder %v7009, 0.0
    %vm7030 = vcmp.gt.f32.partialorder %v6779, 0.0
    %vm7031 = vcmp.gt.f32.partialorder %v7011, 0.0
    %vm7032 = vcmp.gt.f32.partialorder %v6782, 0.0
    %vm7033 = vcmp.gt.f32.partialorder %v7014, 0.0
    %vm7034 = vcmp.gt.f32.partialorder %v6784, 0.0
    %vm7035 = vcmp.gt.f32.partialorder %v7016, 0.0
    %vm7036 = vcmp.gt.f32.partialorder %v6787, 0.0
    %vm7037 = vcmp.gt.f32.partialorder %v7019, 0.0
    %vm7038 = vcmp.gt.f32.partialorder %v6789, 0.0
    %vm7039 = vcmp.gt.f32.partialorder %v7021, 0.0
    %vm7040 = vcmp.gt.f32.partialorder %v6792, 0.0
    %vm7041 = vcmp.gt.f32.partialorder %v7024, 0.0
    %vm7042 = vcmp.gt.f32.partialorder %v6794, 0.0
    %vm7043 = vcmp.gt.f32.partialorder %v7026, 0.0
    %v7044 = vmin.f32 %v6777, 0.0
    %v7045 = vmin.f32 %v7009, 0.0
    %v7046 = vmin.f32 %v6779, 0.0
    %v7047 = vmin.f32 %v7011, 0.0
    %v7048 = vmin.f32 %v6782, 0.0
    %v7049 = vmin.f32 %v7014, 0.0
    %v7050 = vmin.f32 %v6784, 0.0
    %v7051 = vmin.f32 %v7016, 0.0
    %v7052 = vmin.f32 %v6787, 0.0
    %v7053 = vmin.f32 %v7019, 0.0
    %v7054 = vmin.f32 %v6789, 0.0
    %v7055 = vmin.f32 %v7021, 0.0
    %v7056 = vmin.f32 %v6792, 0.0
    %v7057 = vmin.f32 %v7024, 0.0
    %v7058 = vmin.f32 %v6794, 0.0
    %v7059 = vmin.f32 %v7026, 0.0
    %v7060 = vmul.f32 %v7044, 1.442695
    %v7061 = vpow.pop %v7060
    %v7062 = vmul.f32 %v7045, 1.442695
    %v7063 = vpow.pop %v7062
    %v7064 = vmul.f32 %v7046, 1.442695
    %v7065 = vpow.pop %v7064
    %v7066 = vmul.f32 %v7047, 1.442695
    %v7067 = vpow.pop %v7066
    %v7068 = vmul.f32 %v7048, 1.442695
    %v7069 = vpow.pop %v7068
    %v7070 = vmul.f32 %v7049, 1.442695
    %v7071 = vpow.pop %v7070
    %v7072 = vmul.f32 %v7050, 1.442695
    %v7073 = vpow.pop %v7072
    %v7074 = vmul.f32 %v7051, 1.442695
    %v7075 = vpow.pop %v7074
    %v7076 = vmul.f32 %v7052, 1.442695
    %v7077 = vpow.pop %v7076
    %v7078 = vmul.f32 %v7053, 1.442695
    %v7079 = vpow.pop %v7078
    %v7080 = vmul.f32 %v7054, 1.442695
    %v7081 = vpow.pop %v7080
    %v7082 = vmul.f32 %v7055, 1.442695
    %v7083 = vpow.pop %v7082
    %v7084 = vmul.f32 %v7056, 1.442695
    %v7085 = vpow.pop %v7084
    %v7086 = vmul.f32 %v7057, 1.442695
    %v7087 = vpow.pop %v7086
    %v7088 = vmul.f32 %v7058, 1.442695
    %v7089 = vpow.pop %v7088
    %v7090 = vmul.f32 %v7059, 1.442695
    %v7091 = vpow.pop %v7090
    %v7092 = vsub.f32 %v7061, 1.0
    %v7093 = vsub.f32 %v7063, 1.0
    %v7094 = vsub.f32 %v7065, 1.0
    %v7095 = vsub.f32 %v7067, 1.0
    %v7096 = vsub.f32 %v7069, 1.0
    %v7097 = vsub.f32 %v7071, 1.0
    %v7098 = vsub.f32 %v7073, 1.0
    %v7099 = vsub.f32 %v7075, 1.0
    %v7100 = vsub.f32 %v7077, 1.0
    %v7101 = vsub.f32 %v7079, 1.0
    %v7102 = vsub.f32 %v7081, 1.0
    %v7103 = vsub.f32 %v7083, 1.0
    %v7104 = vsub.f32 %v7085, 1.0
    %v7105 = vsub.f32 %v7087, 1.0
    %v7106 = vsub.f32 %v7089, 1.0
    %v7107 = vsub.f32 %v7091, 1.0
    %v7108 = vsel %vm7028, %v6777, %v7092
    %v7109 = vsel %vm7029, %v7009, %v7093
    %v7110 = vsel %vm7030, %v6779, %v7094
    %v7111 = vsel %vm7031, %v7011, %v7095
    %v7112 = vsel %vm7032, %v6782, %v7096
    %v7113 = vsel %vm7033, %v7014, %v7097
    %v7114 = vsel %vm7034, %v6784, %v7098
    %v7115 = vsel %vm7035, %v7016, %v7099
    %v7116 = vsel %vm7036, %v6787, %v7100
    %v7117 = vsel %vm7037, %v7019, %v7101
    %v7118 = vsel %vm7038, %v6789, %v7102
    %v7119 = vsel %vm7039, %v7021, %v7103
    %v7120 = vsel %vm7040, %v6792, %v7104
    %v7121 = vsel %vm7041, %v7024, %v7105
    %v7122 = vsel %vm7042, %v6794, %v7106
    %v7123 = vsel %vm7043, %v7026, %v7107
    %v7124 = vpack.c.bf16 %v7110, %v7108
    %v7125 = vpack.c.bf16 %v7111, %v7109
    %v7126 = vpack.c.bf16 %v7114, %v7112
    %v7127 = vpack.c.bf16 %v7115, %v7113
    %v7128 = vpack.c.bf16 %v7118, %v7116
    %v7129 = vpack.c.bf16 %v7119, %v7117
    %v7130 = vpack.c.bf16 %v7122, %v7120
    %v7131 = vpack.c.bf16 %v7123, %v7121
    %v7132 = vld [vmem:[%s7] sm:$0xf]
    %v7133 = vld [vmem:[%s7 + $0x4] sm:$0xf]
    %v7134 = vld [vmem:[%s7 + $0x8] sm:$0xf]
    %v7135 = vld [vmem:[%s7 + $0xc] sm:$0xf]
    %v7136 = vld [vmem:[%s7 + $0x10] sm:$0xf]
    %v7137 = vld [vmem:[%s7 + $0x14] sm:$0xf]
    %v7138 = vld [vmem:[%s7 + $0x18] sm:$0xf]
    %v7139 = vld [vmem:[%s7 + $0x1c] sm:$0xf]
    %v7140 = vld [vmem:[%s7 + $0x20] sm:$0xf]
    %v7141 = vld [vmem:[%s7 + $0x24] sm:$0xf]
    %v7142 = vld [vmem:[%s7 + $0x28] sm:$0xf]
    %v7143 = vld [vmem:[%s7 + $0x2c] sm:$0xf]
    %v7144 = vld [vmem:[%s7 + $0x30] sm:$0xf]
    %v7145 = vld [vmem:[%s7 + $0x34] sm:$0xf]
    %v7146 = vld [vmem:[%s7 + $0x38] sm:$0xf]
    %v7147 = vld [vmem:[%s7 + $0x3c] sm:$0xf]
    %v7148 = vld [vmem:[%s7 + $0x40] sm:$0xf]
    %v7149 = vld [vmem:[%s7 + $0x44] sm:$0xf]
    %v7150 = vld [vmem:[%s7 + $0x48] sm:$0xf]
    %v7151 = vld [vmem:[%s7 + $0x4c] sm:$0xf]
    %v7152 = vld [vmem:[%s7 + $0x50] sm:$0xf]
    %v7153 = vld [vmem:[%s7 + $0x54] sm:$0xf]
    %v7154 = vld [vmem:[%s7 + $0x58] sm:$0xf]
    %v7155 = vld [vmem:[%s7 + $0x5c] sm:$0x3]
    %v7180 = vunpack.c.l.b16 %v7132
    %v7181 = vunpack.c.l.b16 %v7133
    %v7182 = vunpack.c.l.b16 %v7134
    %v7183 = vunpack.c.l.b16 %v7135
    %v7184 = vunpack.c.l.b16 %v7136
    %v7185 = vunpack.c.l.b16 %v7137
    %v7186 = vunpack.c.l.b16 %v7138
    %v7187 = vunpack.c.l.b16 %v7139
    %v7188 = vunpack.c.l.b16 %v7140
    %v7189 = vunpack.c.l.b16 %v7141
    %v7190 = vunpack.c.l.b16 %v7142
    %v7191 = vunpack.c.l.b16 %v7143
    %v7192 = vunpack.c.l.b16 %v7144
    %v7193 = vunpack.c.l.b16 %v7145
    %v7194 = vunpack.c.l.b16 %v7146
    %v7195 = vunpack.c.l.b16 %v7147
    %v7196 = vunpack.c.l.b16 %v7148
    %v7197 = vunpack.c.l.b16 %v7149
    %v7198 = vunpack.c.l.b16 %v7150
    %v7199 = vunpack.c.l.b16 %v7151
    %v7200 = vunpack.c.l.b16 %v7152
    %v7201 = vunpack.c.l.b16 %v7153
    %v7202 = vunpack.c.l.b16 %v7154
    %v7203 = vunpack.c.l.b16 %v7155
    %v7204 = vpack.c.b16 %v7181, %v7180
    %v7205 = vpack.c.b16 %v7183, %v7182
    %v7206 = vpack.c.b16 %v7185, %v7184
    %v7207 = vpack.c.b16 %v7187, %v7186
    %v7208 = vpack.c.b16 %v7189, %v7188
    %v7209 = vpack.c.b16 %v7191, %v7190
    %v7210 = vpack.c.b16 %v7193, %v7192
    %v7211 = vpack.c.b16 %v7195, %v7194
    %v7212 = vpack.c.b16 %v7197, %v7196
    %v7213 = vpack.c.b16 %v7199, %v7198
    %v7214 = vpack.c.b16 %v7201, %v7200
    %v7215 = vpack.c.b16 %v7203, %v7202
    %vm7227 = vcmask 482304
    %v7229 = vsel %vm7227, %v7125, 0
    %v7232 = vsel %vm7227, %v7127, 0
    %v7235 = vsel %vm7227, %v7129, 0
    %v7238 = vsel %vm7227, %v7131, 0
    %vm7240 = vcmask 1044480
    %vm7241 = vcmask 1045504
    %v7242 = vsel %vm7240, 4294967295, 65535
    %v7243 = vsel %vm7241, %v7242, 0
    %v7245 = vand.u32 %v7215, %v7243
    %7247 = vmatpush.bf16.msra.mxu0 %v7211
    %7248 = vmatpush.bf16.msra.mxu0 %v7210
    %7249 = vmatpush.bf16.msra.mxu0 %v7209
    %7250 = vmatpush.bf16.msra.mxu0 %v7208
    %7251 = vmatpush.bf16.msra.mxu0 %v7207
    %7252 = vmatpush.bf16.msra.mxu0 %v7206
    %7253 = vmatpush.bf16.msra.mxu0 %v7205
    %7254 = vmatpush.bf16.msra.mxu0 %v7204
    %7255 = vmatmul.bf16.gmra.mxu0 %v7124
    %v7256 = vpop.f32.mrf.mxu0
    %v7257 = vadd.f32 0.0, %v7256
    %v7258 = vpop.f32.mrf.mxu0
    %v7259 = vadd.f32 0.0, %v7258
    %7260 = vmatmul.bf16.gmra.mxu0 %v7126
    %v7261 = vpop.f32.mrf.mxu0
    %v7262 = vadd.f32 0.0, %v7261
    %v7263 = vpop.f32.mrf.mxu0
    %v7264 = vadd.f32 0.0, %v7263
    %7265 = vmatmul.bf16.gmra.mxu0 %v7128
    %v7266 = vpop.f32.mrf.mxu0
    %v7267 = vadd.f32 0.0, %v7266
    %v7268 = vpop.f32.mrf.mxu0
    %v7269 = vadd.f32 0.0, %v7268
    %7270 = vmatmul.bf16.gmra.mxu0 %v7130
    %v7271 = vpop.f32.mrf.mxu0
    %v7272 = vadd.f32 0.0, %v7271
    %v7273 = vpop.f32.mrf.mxu0
    %v7274 = vadd.f32 0.0, %v7273
    %7275 = vdwg.mxu0
    %7276 = vmatpush.bf16.msra.mxu0 0
    %7277 = vmatpush.bf16.msra.mxu0 0
    %7278 = vmatpush.bf16.msra.mxu0 0
    %7279 = vmatpush.bf16.msra.mxu0 0
    %7280 = vmatpush.bf16.msra.mxu0 %v7245
    %7281 = vmatpush.bf16.msra.mxu0 %v7214
    %7282 = vmatpush.bf16.msra.mxu0 %v7213
    %7283 = vmatpush.bf16.msra.mxu0 %v7212
    %7284 = vmatmul.bf16.gmra.mxu0 %v7229
    %v7285 = vpop.f32.mrf.mxu0
    %v7286 = vadd.f32 %v7257, %v7285
    %v7287 = vpop.f32.mrf.mxu0
    %v7288 = vadd.f32 %v7259, %v7287
    %7289 = vmatmul.bf16.gmra.mxu0 %v7232
    %v7290 = vpop.f32.mrf.mxu0
    %v7291 = vadd.f32 %v7262, %v7290
    %v7292 = vpop.f32.mrf.mxu0
    %v7293 = vadd.f32 %v7264, %v7292
    %7294 = vmatmul.bf16.gmra.mxu0 %v7235
    %v7295 = vpop.f32.mrf.mxu0
    %v7296 = vadd.f32 %v7267, %v7295
    %v7297 = vpop.f32.mrf.mxu0
    %v7298 = vadd.f32 %v7269, %v7297
    %7299 = vmatmul.bf16.gmra.mxu0 %v7238
    %v7300 = vpop.f32.mrf.mxu0
    %v7301 = vadd.f32 %v7272, %v7300
    %v7302 = vpop.f32.mrf.mxu0
    %v7303 = vadd.f32 %v7274, %v7302
    %7304 = vdwg.mxu0
    %v7305 = vld [vmem:[%s8] sm:$0xff]
    %v7306 = vld [vmem:[%s8 + $0x8] sm:$0xff]
    %v7307 = vld [vmem:[%s8 + $0x10] sm:$0xff]
    %v7308 = vld [vmem:[%s8 + $0x18] sm:$0xff]
    %v7309 = vld [vmem:[%s8 + $0x20] sm:$0xff]
    %v7310 = vld [vmem:[%s8 + $0x28] sm:$0xff]
    %v7311 = vld [vmem:[%s8 + $0x30] sm:$0xff]
    %v7312 = vld [vmem:[%s8 + $0x38] sm:$0xff]
    %v7313 = vmul.f32 %v7286, %v7305
    %v7314 = vmul.f32 %v7288, %v7306
    %v7315 = vmul.f32 %v7291, %v7307
    %v7316 = vmul.f32 %v7293, %v7308
    %v7317 = vmul.f32 %v7296, %v7309
    %v7318 = vmul.f32 %v7298, %v7310
    %v7319 = vmul.f32 %v7301, %v7311
    %v7320 = vmul.f32 %v7303, %v7312
    %vm7321 = vcmask 187392
    %v7322 = vsel %vm7321, %v7313, 0.0
    %7323 = vadd.xlane.f32.xlu0 %v7322
    %v7324 = vpop.xlane.xlu0 %7323
    %v7325 = vsel %vm7321, %v7314, 0.0
    %7326 = vadd.xlane.f32.xlu0 %v7325
    %v7327 = vpop.xlane.xlu0 %7326
    %v7328 = vsel %vm7321, %v7315, 0.0
    %7329 = vadd.xlane.f32.xlu0 %v7328
    %v7330 = vpop.xlane.xlu0 %7329
    %v7331 = vsel %vm7321, %v7316, 0.0
    %7332 = vadd.xlane.f32.xlu0 %v7331
    %v7333 = vpop.xlane.xlu0 %7332
    %v7334 = vsel %vm7321, %v7317, 0.0
    %7335 = vadd.xlane.f32.xlu0 %v7334
    %v7336 = vpop.xlane.xlu0 %7335
    %v7337 = vsel %vm7321, %v7318, 0.0
    %7338 = vadd.xlane.f32.xlu0 %v7337
    %v7339 = vpop.xlane.xlu0 %7338
    %v7340 = vsel %vm7321, %v7319, 0.0
    %7341 = vadd.xlane.f32.xlu0 %v7340
    %v7342 = vpop.xlane.xlu0 %7341
    %v7343 = vsel %vm7321, %v7320, 0.0
    %7344 = vadd.xlane.f32.xlu0 %v7343
    %v7345 = vpop.xlane.xlu0 %7344
    %v7346 = vld [vmem:[%s8 + $0x40] sm:$0xff]
    %v7347 = vld [vmem:[%s8 + $0x48] sm:$0xff]
    %v7348 = vld [vmem:[%s8 + $0x50] sm:$0xff]
    %v7349 = vld [vmem:[%s8 + $0x58] sm:$0xff]
    %v7350 = vld [vmem:[%s8 + $0x60] sm:$0xff]
    %v7351 = vld [vmem:[%s8 + $0x68] sm:$0xff]
    %v7352 = vld [vmem:[%s8 + $0x70] sm:$0xff]
    %v7353 = vld [vmem:[%s8 + $0x78] sm:$0xff]
    %v7354 = vmul.f32 %v7286, %v7346
    %v7355 = vmul.f32 %v7288, %v7347
    %v7356 = vmul.f32 %v7291, %v7348
    %v7357 = vmul.f32 %v7293, %v7349
    %v7358 = vmul.f32 %v7296, %v7350
    %v7359 = vmul.f32 %v7298, %v7351
    %v7360 = vmul.f32 %v7301, %v7352
    %v7361 = vmul.f32 %v7303, %v7353
    %v7362 = vsel %vm7321, %v7354, 0.0
    %7363 = vadd.xlane.f32.xlu0 %v7362
    %v7364 = vpop.xlane.xlu0 %7363
    %v7365 = vsel %vm7321, %v7355, 0.0
    %7366 = vadd.xlane.f32.xlu0 %v7365
    %v7367 = vpop.xlane.xlu0 %7366
    %v7368 = vsel %vm7321, %v7356, 0.0
    %7369 = vadd.xlane.f32.xlu0 %v7368
    %v7370 = vpop.xlane.xlu0 %7369
    %v7371 = vsel %vm7321, %v7357, 0.0
    %7372 = vadd.xlane.f32.xlu0 %v7371
    %v7373 = vpop.xlane.xlu0 %7372
    %v7374 = vsel %vm7321, %v7358, 0.0
    %7375 = vadd.xlane.f32.xlu0 %v7374
    %v7376 = vpop.xlane.xlu0 %7375
    %v7377 = vsel %vm7321, %v7359, 0.0
    %7378 = vadd.xlane.f32.xlu0 %v7377
    %v7379 = vpop.xlane.xlu0 %7378
    %v7380 = vsel %vm7321, %v7360, 0.0
    %7381 = vadd.xlane.f32.xlu0 %v7380
    %v7382 = vpop.xlane.xlu0 %7381
    %v7383 = vsel %vm7321, %v7361, 0.0
    %7384 = vadd.xlane.f32.xlu0 %v7383
    %v7385 = vpop.xlane.xlu0 %7384
    %vm7386 = vcmask 7168
    %v7387 = vsel %vm7386, %v7324, %v7364
    %v7388 = vsel %vm7386, %v7327, %v7367
    %v7389 = vsel %vm7386, %v7330, %v7370
    %v7390 = vsel %vm7386, %v7333, %v7373
    %v7391 = vsel %vm7386, %v7336, %v7376
    %v7392 = vsel %vm7386, %v7339, %v7379
    %v7393 = vsel %vm7386, %v7342, %v7382
    %v7394 = vsel %vm7386, %v7345, %v7385
    %v7395 = vpack.c.bf16 %v7388, %v7387
    %v7396 = vpack.c.bf16 %v7390, %v7389
    %v7397 = vpack.c.bf16 %v7392, %v7391
    %v7398 = vpack.c.bf16 %v7394, %v7393
    %v7399 = vld [vmem:[%s9] sm:$0x1]
    %v7400 = vld [vmem:[%s10] sm:$0x1]
    %v7402 = vperm.slane %v7400, 0
    %v7405 = vsel %vm3366, %v7399, 0
    %7407 = vmatpush.bf16.msra.mxu0 0
    %7408 = vmatpush.bf16.msra.mxu0 0
    %7409 = vmatpush.bf16.msra.mxu0 0
    %7410 = vmatpush.bf16.msra.mxu0 0
    %7411 = vmatpush.bf16.msra.mxu0 %v7398
    %7412 = vmatpush.bf16.msra.mxu0 %v7397
    %7413 = vmatpush.bf16.msra.mxu0 %v7396
    %7414 = vmatpush.bf16.msra.mxu0 %v7395
    %7415 = vmatmul.bf16.gmra.mxu0 %v7405
    %v7416 = vpop.f32.mrf.mxu0
    %v7417 = vadd.f32 %v7402, %v7416
    %v7418 = vpop.f32.mrf.mxu0
    %7419 = vdwg.mxu0
    %vm7420 = vcmask 9216
    %7421 = vst.msk [vmem:[#allocation5] sm:$0x3] %vm7420, %v7417
    // Predicated region
    $region158: #{tpu_custom_call.1} parent=1 // pred_check
      _
    $region159: #{tpu_custom_call.1} parent=1 // pred_check_branch
      %7423 = sbr.rel (0) target = $region161
    $region160: #{tpu_custom_call.1} parent=1 // pred_region
      %7425 = vsyncadd [#allocation6], 0
      %s7427 = sshll.u32 [#allocation5], 4
      %s7428 = int_to_ptr.vmem [resolvable:$true] %s7427
      %s7429 = sshll.u32 %s11, 4
      %s7430 = int_to_ptr.hbm [resolvable:$true] %s7429
      %7432 = dma.vmem_to_hbm [thread:$0]  %s7428, 32, %s7430, [#allocation6]
    $region161: #{tpu_custom_call.1} parent=1 // pred_fallthru
      _
    // Predicated region
    $region162: #{tpu_custom_call.1} parent=1 // pred_check
      _
    $region163: #{tpu_custom_call.1} parent=1 // pred_check_branch
      %7434 = sbr.rel (0) target = $region165
    $region164: #{tpu_custom_call.1} parent=1 // pred_region
      %7436 = dma.done [#allocation6], 32
    $region165: #{tpu_custom_call.1} parent=1 // pred_fallthru
      _
    %7437 = vsyncpa [#allocation6], 1

</llo_original>
